<compile_context>
chip_gen: v7x
topology: tpu7x:2x2x1
jax: 0.10.0
libtpu: 0.0.40
codegen_flags: <defaults>
</compile_context>

<pallas_src>
import math

import jax
import jax.numpy as jnp
from jax.experimental import pallas as pl
from jax.experimental.pallas import tpu as pltpu

EPS = 1e-5
_VMEM_LIMIT = 64 * 1024 * 1024


# --------------------------------------------------------------------------- small helpers

def _round_up(x, m):
    return ((x + m - 1) // m) * m


def _pick_tm(M, want_blocks=4, tmax=512):
    """Largest M tile (<= tmax, multiple of 8, dividing round_up(M,8)) that still yields
    >= want_blocks grid blocks, so both v7x TensorCores stay busy on small problems."""
    Mp = _round_up(M, 8)
    cands = (512, 256, 128, 64, 32, 16, 8)
    for tm in cands:
        if tm <= tmax and Mp % tm == 0 and Mp // tm >= want_blocks:
            return tm, Mp
    for tm in cands:
        if tm <= tmax and Mp % tm == 0:
            return tm, Mp
    return 8, Mp


def _plan_kn(K, N):
    """K (reduction) tiling and lane-dense N tiling."""
    if K <= 1024:                         # single full-width K block, zero K padding
        tk, Kp = K, K
    else:                                 # 256-multiple padding, deep K tiles for the MXU
        Kp = _round_up(K, 256)
        tk = 512 if Kp % 512 == 0 else 256
    Np = _round_up(N, 128)                # outputs always lane-dense (>=128 lanes)
    tn = 256 if (Np >= 512 and Np % 256 == 0) else 128
    return tk, Kp, tn, Np


def _pad2(x, rows, cols):
    r, c = x.shape
    if r == rows and c == cols:
        return x
    return jnp.pad(x, ((0, rows - r), (0, cols - c)))


def _pad_row(v, n):
    v = v.astype(jnp.float32)
    if v.shape[0] != n:
        v = jnp.pad(v, (0, n - v.shape[0]))
    return v.reshape(1, n)


def _bn_fold(bn):
    """Inference-mode BatchNorm2d -> per-channel (scale, shift)."""
    g, b, m, v = bn
    s = g * jax.lax.rsqrt(v + EPS)
    return s, b - m * s


# --------------------------------------------------------------------------- Pallas kernels

def _preact_mm_bn_relu_kernel(a_ref, si_ref, ti_ref, b_ref, so_ref, to_ref, o_ref, acc_ref):
    """o = relu( relu(a*si+ti) @ b * so + to ); si/ti per K column, so/to per N column."""
    @pl.when(pl.program_id(2) == 0)
    def _zero():
        acc_ref[...] = jnp.zeros_like(acc_ref)

    a = jnp.maximum(a_ref[...].astype(jnp.float32) * si_ref[...] + ti_ref[...], 0.0)
    acc_ref[...] += jnp.dot(a.astype(jnp.bfloat16), b_ref[...],
                            preferred_element_type=jnp.float32)

    @pl.when(pl.program_id(2) == pl.num_programs(2) - 1)
    def _finish():
        o_ref[...] = jnp.maximum(
            acc_ref[...] * so_ref[...] + to_ref[...], 0.0).astype(o_ref.dtype)


def _mm_bias_res_kernel(a_ref, b_ref, bias_ref, res_ref, o_ref):
    """o = a @ b + bias + res.  o is f32 and resident across the k axis, so it doubles as
    the accumulator (no VMEM scratch)."""
    @pl.when(pl.program_id(2) == 0)
    def _init():
        o_ref[...] = bias_ref[...] + res_ref[...]

    o_ref[...] += jnp.dot(a_ref[...], b_ref[...], preferred_element_type=jnp.float32)


# --------------------------------------------------------------------------- GEMM wrappers

def preact_gemm_bn_relu(a, s_in, t_in, b, s_out, t_out):
    """relu( relu(a*s_in+t_in) @ b * s_out + t_out ).

    a: (M,K) bf16, b: (K,Nw) bf16.  Returns (M, round_up(Nw,128)) bf16 — padded output
    columns are exactly zero and are carried lane-dense downstream."""
    M, K = a.shape
    Nw = b.shape[1]
    tm, Mp = _pick_tm(M)
    tk, Kp, tn, Np = _plan_kn(K, Nw)

    a_p = _pad2(a, Mp, Kp)
    b_p = _pad2(b, Kp, Np)
    si = _pad_row(s_in, Kp)
    ti = _pad_row(t_in, Kp)
    so = _pad_row(s_out, Np)
    to = _pad_row(t_out, Np)

    out = pl.pallas_call(
        _preact_mm_bn_relu_kernel,
        out_shape=jax.ShapeDtypeStruct((Mp, Np), jnp.bfloat16),
        grid_spec=pltpu.PrefetchScalarGridSpec(
            num_scalar_prefetch=0,
            grid=(Mp // tm, Np // tn, Kp // tk),
            in_specs=[
                pl.BlockSpec((tm, tk), lambda i, j, k: (i, k)),
                pl.BlockSpec((1, tk), lambda i, j, k: (0, k)),
                pl.BlockSpec((1, tk), lambda i, j, k: (0, k)),
                pl.BlockSpec((tk, tn), lambda i, j, k: (k, j)),
                pl.BlockSpec((1, tn), lambda i, j, k: (0, j)),
                pl.BlockSpec((1, tn), lambda i, j, k: (0, j)),
            ],
            out_specs=pl.BlockSpec((tm, tn), lambda i, j, k: (i, j)),
            scratch_shapes=[pltpu.VMEM((tm, tn), jnp.float32)],
        ),
        compiler_params=pltpu.CompilerParams(
            dimension_semantics=("parallel", "parallel", "arbitrary"),
            vmem_limit_bytes=_VMEM_LIMIT),
    )(a_p, si, ti, b_p, so, to)
    return out[:M] if Mp != M else out


def conv3x3_bn_relu(y_act, n, h, w, w_oihw, s_out, t_out):
    """3x3 / stride 1 / pad 1 conv over an already-activated channels-last activation with
    BN+ReLU (scale/shift per output channel; conv bias folded into t_out) in the epilogue.

    y_act: (n*h*w, Cp) bf16 with channels zero-padded to a multiple of 128.
    Returns (n*h*w, round_up(Cout,128)) bf16.

    No HBM im2col: per image, the zero-padded activation is stored as flattened
    padded-coordinate rows with Wp+1 slack rows on each side; the 9 taps become 9
    statically-offset row windows of that single VMEM tile.  Border/alignment rows compute
    garbage and are discarded by the interior slice at the end."""
    Cp = y_act.shape[1]
    cin = w_oihw.shape[1]
    cout = w_oihw.shape[0]
    Np = _round_up(cout, 128)
    tn = 128

    Hp, Wp = h + 2, w + 2
    HWp = Hp * Wp
    Rout = _round_up(HWp, 8)              # output rows per image (padded coords, 8-aligned)
    slack = Wp + 1                        # max |tap offset|
    Rslack = _round_up(Rout + 2 * slack, 8)
    tap_starts = tuple(slack + (ki - 1) * Wp + (kj - 1)
                       for ki in range(3) for kj in range(3))

    # (n, Rslack, Cp) f32: rows [slack, slack+HWp) hold the zero-padded image (row-major
    # over (Hp, Wp)); everything else zero.  f32 keeps the unaligned row-window loads on the
    # unpacked path; values are exact bf16 upcasts, so numerics are unchanged.
    a = y_act.astype(jnp.float32).reshape(n, h, w, Cp)
    a = jnp.pad(a, ((0, 0), (1, 1), (1, 1), (0, 0))).reshape(n, HWp, Cp)
    a = jnp.pad(a, ((0, 0), (slack, Rslack - slack - HWp), (0, 0)))

    wt = jnp.transpose(w_oihw, (2, 3, 1, 0))                        # (3, 3, cin, cout)
    wt = jnp.pad(wt, ((0, 0), (0, 0), (0, Cp - cin), (0, Np - cout)))
    wt = wt.reshape(9, Cp, Np).astype(jnp.bfloat16)
    so = _pad_row(s_out, Np)
    to = _pad_row(t_out, Np)

    def kernel(a_ref, w_ref, so_ref, to_ref, o_ref, acc_ref):
        acc_ref[...] = jnp.zeros_like(acc_ref)
        for t in range(9):                                          # unrolled taps
            a_t = a_ref[pl.ds(tap_starts[t], Rout), :].astype(jnp.bfloat16)
            acc_ref[...] += jnp.dot(a_t, w_ref[t],
                                    preferred_element_type=jnp.float32)
        o_ref[...] = jnp.maximum(
            acc_ref[...] * so_ref[...] + to_ref[...], 0.0).astype(o_ref.dtype)

    out = pl.pallas_call(
        kernel,
        out_shape=jax.ShapeDtypeStruct((n, Rout, Np), jnp.bfloat16),
        grid_spec=pltpu.PrefetchScalarGridSpec(
            num_scalar_prefetch=0,
            grid=(n, Np // tn),
            in_specs=[
                pl.BlockSpec((None, Rslack, Cp), lambda i, j: (i, 0, 0)),
                pl.BlockSpec((9, Cp, tn), lambda i, j: (0, 0, j)),
                pl.BlockSpec((1, tn), lambda i, j: (0, j)),
                pl.BlockSpec((1, tn), lambda i, j: (0, j)),
            ],
            out_specs=pl.BlockSpec((None, Rout, tn), lambda i, j: (i, 0, j)),
            scratch_shapes=[pltpu.VMEM((Rout, tn), jnp.float32)],
        ),
        compiler_params=pltpu.CompilerParams(
            dimension_semantics=("parallel", "parallel"),
            vmem_limit_bytes=_VMEM_LIMIT),
    )(a, wt, so, to)

    # Drop alignment rows and the padded-coordinate border ring -> (n*h*w, Np).
    out = out[:, :HWp, :].reshape(n, Hp, Wp, Np)
    return out[:, 1:1 + h, 1:1 + w, :].reshape(n * h * w, Np)


def gemm_bias_residual(a, b, bias, res):
    """(M,K)bf16 @ b + bias + res -> (M, Nw) f32.  b's rows are zero-padded up to a's K
    (the extra a columns are zero channels); bias/residual add fused into the epilogue."""
    M, K = a.shape
    Nw = b.shape[1]
    tm, Mp = _pick_tm(M)
    tk, Kp, tn, Np = _plan_kn(K, Nw)

    a_p = _pad2(a, Mp, Kp)
    b_p = _pad2(b, Kp, Np)
    bias_p = _pad_row(bias, Np)
    res_p = _pad2(res.astype(jnp.float32), Mp, Np)

    out = pl.pallas_call(
        _mm_bias_res_kernel,
        out_shape=jax.ShapeDtypeStruct((Mp, Np), jnp.float32),
        grid_spec=pltpu.PrefetchScalarGridSpec(
            num_scalar_prefetch=0,
            grid=(Mp // tm, Np // tn, Kp // tk),
            in_specs=[
                pl.BlockSpec((tm, tk), lambda i, j, k: (i, k)),
                pl.BlockSpec((tk, tn), lambda i, j, k: (k, j)),
                pl.BlockSpec((1, tn), lambda i, j, k: (0, j)),
                pl.BlockSpec((tm, tn), lambda i, j, k: (i, j)),
            ],
            out_specs=pl.BlockSpec((tm, tn), lambda i, j, k: (i, j)),
        ),
        compiler_params=pltpu.CompilerParams(
            dimension_semantics=("parallel", "parallel", "arbitrary"),
            vmem_limit_bytes=_VMEM_LIMIT),
    )(a_p, b_p, bias_p, res_p)
    if Mp != M or Np != Nw:
        out = out[:M, :Nw]
    return out


# --------------------------------------------------------------------------- forward pass

def bottleneck_fwd(params, x):
    """x: (N, C_in, H, W) f32 -> (N, C_out, H, W) f32 (C_in == C_out for the residual)."""
    n, c_in, h, w = x.shape
    mid = params['w1'].shape[0]
    c_out = params['w3'].shape[0]

    # Single layout change to channels-last; activations stay (N*H*W, C) from here on.
    x_nhwc = jnp.transpose(x, (0, 2, 3, 1))
    x2 = x_nhwc.reshape(n * h * w, c_in)            # identity path (f32)
    a1 = x2.astype(jnp.bfloat16)

    s1, t1 = _bn_fold(params['bn1'])
    s2, t2 = _bn_fold(params['bn2'])
    s3, t3 = _bn_fold(params['bn3'])

    # block1 (1x1): BN1+ReLU prologue, conv1, then the NEXT block's BN2+ReLU epilogue
    # (conv1 bias folded into BN2's shift).  Output is lane-dense (mid padded to 128).
    w1m = jnp.transpose(params['w1'], (2, 3, 1, 0)).reshape(c_in, mid).astype(jnp.bfloat16)
    y1 = preact_gemm_bn_relu(a1, s1, t1, w1m, s2, t2 + s2 * params['b1'])

    # block2 (3x3, pad=1): in-kernel 9-tap conv GEMM (no HBM im2col, no identity prologue),
    # BN3+ReLU (+ folded conv2 bias) fused into the epilogue.
    y2 = conv3x3_bn_relu(y1, n, h, w, params['w2'], s3, t3 + s3 * params['b2'])

    # block3 (1x1): conv3 + bias + residual add fused in the epilogue, f32 output.
    w3m = jnp.transpose(params['w3'], (2, 3, 1, 0)).reshape(mid, c_out).astype(jnp.bfloat16)
    y3 = gemm_bias_residual(y2, w3m, params['b3'], x2)

    return jnp.transpose(y3.reshape(n, h, w, c_out), (0, 3, 1, 2))


# --------------------------------------------------------------------------- reference

def _ref_bottleneck(params, x):
    """Pure-JAX reference (lax.conv) mirroring the kernel's bf16 quantization points."""
    s1, t1 = _bn_fold(params['bn1'])
    s2, t2 = _bn_fold(params['bn2'])
    s3, t3 = _bn_fold(params['bn3'])

    def conv_nhwc(h_act, w, pad=0):
        wh = jnp.transpose(w, (2, 3, 1, 0)).astype(jnp.bfloat16)    # HWIO
        return jax.lax.conv_general_dilated(
            h_act.astype(jnp.bfloat16), wh, (1, 1), [(pad, pad), (pad, pad)],
            dimension_numbers=("NHWC", "HWIO", "NHWC"),
            preferred_element_type=jnp.float32)

    xt = jnp.transpose(x, (0, 2, 3, 1))
    a1 = jnp.maximum(xt.astype(jnp.bfloat16).astype(jnp.float32) * s1 + t1, 0.0)
    y1 = conv_nhwc(a1.astype(jnp.bfloat16), params['w1'])
    y1 = jnp.maximum(y1 * s2 + (t2 + s2 * params['b1']), 0.0).astype(jnp.bfloat16)
    y2 = conv_nhwc(y1, params['w2'], pad=1)
    y2 = jnp.maximum(y2 * s3 + (t3 + s3 * params['b2']), 0.0).astype(jnp.bfloat16)
    y3 = conv_nhwc(y2, params['w3']) + params['b3'] + xt
    return jnp.transpose(y3, (0, 3, 1, 2))


# --------------------------------------------------------------------------- params & main

def init_bottleneck_params(key, in_ch, out_ch):
    assert out_ch % 4 == 0
    mid = out_ch // 4
    ks = jax.random.split(key, 9)

    def conv_w(k, cout, cin, kh, kw):
        fan = cin * kh * kw
        return jax.random.normal(k, (cout, cin, kh, kw), jnp.float32) / math.sqrt(fan)

    def bn(k, c):
        k1, k2, k3, k4 = jax.random.split(k, 4)
        g = 1.0 + 0.1 * jax.random.normal(k1, (c,), jnp.float32)
        b = 0.1 * jax.random.normal(k2, (c,), jnp.float32)
        m = 0.1 * jax.random.normal(k3, (c,), jnp.float32)
        v = 1.0 + 0.1 * jax.random.uniform(k4, (c,), jnp.float32)
        return (g, b, m, v)

    return dict(
        bn1=bn(ks[0], in_ch),
        w1=conv_w(ks[1], mid, in_ch, 1, 1),
        b1=0.01 * jax.random.normal(ks[2], (mid,), jnp.float32),
        bn2=bn(ks[3], mid),
        w2=conv_w(ks[4], mid, mid, 3, 3),
        b2=0.01 * jax.random.normal(ks[5], (mid,), jnp.float32),
        bn3=bn(ks[6], mid),
        w3=conv_w(ks[7], out_ch, mid, 1, 1),
        b3=0.01 * jax.random.normal(ks[8], (out_ch,), jnp.float32),
    )


if __name__ == "__main__":
    in_ch = out_ch = 256          # residual add requires in_ch == out_ch; mid = 64
    batch, height, width = 2, 16, 16

    key = jax.random.PRNGKey(0)
    kp, kx = jax.random.split(key)
    params = init_bottleneck_params(kp, in_ch, out_ch)
    x = jax.random.normal(kx, (batch, in_ch, height, width), jnp.float32)   # NCHW, like PyTorch

    fwd = jax.jit(bottleneck_fwd)
    out = jax.block_until_ready(fwd(params, x))

    assert out.shape == (batch, out_ch, height, width), out.shape
    assert out.dtype == jnp.float32

    ref = jax.block_until_ready(jax.jit(_ref_bottleneck)(params, x))
    err = float(jnp.max(jnp.abs(out - ref)))
    scale = float(jnp.max(jnp.abs(ref)))
    assert err <= 1e-2 * scale + 1e-3, (err, scale)

    print("KERNEL_OK")
</pallas_src>

<mosaic_0001>
module attributes {stable_mosaic.version = 11 : i64} {
  func.func @_preact_mm_bn_relu_kernel(%arg0: i32, %arg1: i32, %arg2: i32, %arg3: memref<128x256xbf16, #tpu.memory_space<vmem>>, %arg4: memref<1x256xf32, #tpu.memory_space<vmem>>, %arg5: memref<1x256xf32, #tpu.memory_space<vmem>>, %arg6: memref<256x128xbf16, #tpu.memory_space<vmem>>, %arg7: memref<1x128xf32, #tpu.memory_space<vmem>>, %arg8: memref<1x128xf32, #tpu.memory_space<vmem>>, %arg9: memref<128x128xbf16, #tpu.memory_space<vmem>>, %arg10: memref<128x128xf32, #tpu.memory_space<vmem>>) attributes {dimension_semantics = [#tpu.dimension_semantics<parallel>, #tpu.dimension_semantics<parallel>, #tpu.dimension_semantics<arbitrary>], iteration_bounds = array<i64: 4, 1, 1>, scalar_prefetch = 0 : i64, scratch_operands = 1 : i64, tpu.core_type = #tpu.core_type<tc>, window_params = [{transform_indices = @transform_0, window_bounds = array<i64: 128, 256>}, {transform_indices = @transform_1, window_bounds = array<i64: 1, 256>}, {transform_indices = @transform_2, window_bounds = array<i64: 1, 256>}, {transform_indices = @transform_3, window_bounds = array<i64: 256, 128>}, {transform_indices = @transform_4, window_bounds = array<i64: 1, 128>}, {transform_indices = @transform_5, window_bounds = array<i64: 1, 128>}, {transform_indices = @transform_6, window_bounds = array<i64: 128, 128>}]} {
    %c0_i32 = arith.constant 0 : i32
    %0 = arith.cmpi eq, %arg2, %c0_i32 : i32
    %1 = arith.extui %0 : i1 to i32
    %c0_i32_0 = arith.constant 0 : i32
    %2 = arith.cmpi ne, %1, %c0_i32_0 : i32
    scf.if %2 {
      %cst_15 = arith.constant 0.000000e+00 : f32
      %22 = vector.broadcast %cst_15 : f32 to vector<128x128xf32>
      %c0_16 = arith.constant 0 : index
      %c0_17 = arith.constant 0 : index
      %23 = vector.load %arg10[%c0_16, %c0_17] : memref<128x128xf32, #tpu.memory_space<vmem>>, vector<128x128xf32>
      tpu.vector_store %arg10[%c0_16, %c0_17], %22 {strides = array<i32>} : memref<128x128xf32, #tpu.memory_space<vmem>>, vector<128x128xf32>,
    } else {
    }
    %c0 = arith.constant 0 : index
    %c0_1 = arith.constant 0 : index
    %3 = vector.load %arg3[%c0, %c0_1] : memref<128x256xbf16, #tpu.memory_space<vmem>>, vector<128x256xbf16>
    %4 = arith.extf %3 : vector<128x256xbf16> to vector<128x256xf32>
    %c0_2 = arith.constant 0 : index
    %c0_3 = arith.constant 0 : index
    %5 = vector.load %arg4[%c0_2, %c0_3] : memref<1x256xf32, #tpu.memory_space<vmem>>, vector<1x256xf32>
    %6 = vector.broadcast %5 : vector<1x256xf32> to vector<128x256xf32>
    %7 = arith.mulf %4, %6 : vector<128x256xf32>
    %c0_4 = arith.constant 0 : index
    %c0_5 = arith.constant 0 : index
    %8 = vector.load %arg5[%c0_4, %c0_5] : memref<1x256xf32, #tpu.memory_space<vmem>>, vector<1x256xf32>
    %9 = vector.broadcast %8 : vector<1x256xf32> to vector<128x256xf32>
    %10 = arith.addf %7, %9 : vector<128x256xf32>
    %cst = arith.constant 0.000000e+00 : f32
    %11 = vector.broadcast %cst : f32 to vector<128x256xf32>
    %12 = arith.maximumf %10, %11 : vector<128x256xf32>
    %c0_6 = arith.constant 0 : index
    %c0_7 = arith.constant 0 : index
    %13 = vector.load %arg10[%c0_6, %c0_7] : memref<128x128xf32, #tpu.memory_space<vmem>>, vector<128x128xf32>
    %14 = arith.truncf %12 : vector<128x256xf32> to vector<128x256xbf16>
    %c0_8 = arith.constant 0 : index
    %c0_9 = arith.constant 0 : index
    %15 = vector.load %arg6[%c0_8, %c0_9] : memref<256x128xbf16, #tpu.memory_space<vmem>>, vector<256x128xbf16>
    %cst_10 = arith.constant dense<0.000000e+00> : vector<128x128xf32>
    %16 = tpu.matmul %14, %15, %cst_10 {dimension_numbers = #tpu.dot_dimension_numbers<[1], [0], [0], [1], [0, 0, 1, 1], [], []>} : vector<128x256xbf16>, vector<256x128xbf16>, vector<128x128xf32> -> vector<128x128xf32>
    %17 = arith.addf %13, %16 : vector<128x128xf32>
    %c0_11 = arith.constant 0 : index
    %c0_12 = arith.constant 0 : index
    %18 = vector.load %arg10[%c0_11, %c0_12] : memref<128x128xf32, #tpu.memory_space<vmem>>, vector<128x128xf32>
    tpu.vector_store %arg10[%c0_11, %c0_12], %17 {strides = array<i32>} : memref<128x128xf32, #tpu.memory_space<vmem>>, vector<128x128xf32>,
    %c0_i32_13 = arith.constant 0 : i32
    %19 = arith.cmpi eq, %arg2, %c0_i32_13 : i32
    %20 = arith.extui %19 : i1 to i32
    %c0_i32_14 = arith.constant 0 : i32
    %21 = arith.cmpi ne, %20, %c0_i32_14 : i32
    scf.if %21 {
      %c0_15 = arith.constant 0 : index
      %c0_16 = arith.constant 0 : index
      %22 = vector.load %arg10[%c0_15, %c0_16] : memref<128x128xf32, #tpu.memory_space<vmem>>, vector<128x128xf32>
      %c0_17 = arith.constant 0 : index
      %c0_18 = arith.constant 0 : index
      %23 = vector.load %arg7[%c0_17, %c0_18] : memref<1x128xf32, #tpu.memory_space<vmem>>, vector<1x128xf32>
      %24 = vector.broadcast %23 : vector<1x128xf32> to vector<128x128xf32>
      %25 = arith.mulf %22, %24 : vector<128x128xf32>
      %c0_19 = arith.constant 0 : index
      %c0_20 = arith.constant 0 : index
      %26 = vector.load %arg8[%c0_19, %c0_20] : memref<1x128xf32, #tpu.memory_space<vmem>>, vector<1x128xf32>
      %27 = vector.broadcast %26 : vector<1x128xf32> to vector<128x128xf32>
      %28 = arith.addf %25, %27 : vector<128x128xf32>
      %cst_21 = arith.constant 0.000000e+00 : f32
      %29 = vector.broadcast %cst_21 : f32 to vector<128x128xf32>
      %30 = arith.maximumf %28, %29 : vector<128x128xf32>
      %31 = arith.truncf %30 : vector<128x128xf32> to vector<128x128xbf16>
      %c0_22 = arith.constant 0 : index
      %c0_23 = arith.constant 0 : index
      %32 = vector.load %arg9[%c0_22, %c0_23] : memref<128x128xbf16, #tpu.memory_space<vmem>>, vector<128x128xbf16>
      tpu.vector_store %arg9[%c0_22, %c0_23], %31 {strides = array<i32>} : memref<128x128xbf16, #tpu.memory_space<vmem>>, vector<128x128xbf16>,
    } else {
    }
    return
  }
  func.func @transform_0(%arg0: i32, %arg1: i32, %arg2: i32) -> (i32, i32) {
    %c0_i32 = arith.constant 0 : i32
    return %arg0, %arg2 : i32, i32
  }
  func.func @transform_1(%arg0: i32, %arg1: i32, %arg2: i32) -> (i32, i32) {
    %c0_i32 = arith.constant 0 : i32
    %c0_i32_0 = arith.constant 0 : i32
    return %c0_i32, %arg2 : i32, i32
  }
  func.func @transform_2(%arg0: i32, %arg1: i32, %arg2: i32) -> (i32, i32) {
    %c0_i32 = arith.constant 0 : i32
    %c0_i32_0 = arith.constant 0 : i32
    return %c0_i32, %arg2 : i32, i32
  }
  func.func @transform_3(%arg0: i32, %arg1: i32, %arg2: i32) -> (i32, i32) {
    %c0_i32 = arith.constant 0 : i32
    return %arg2, %arg1 : i32, i32
  }
  func.func @transform_4(%arg0: i32, %arg1: i32, %arg2: i32) -> (i32, i32) {
    %c0_i32 = arith.constant 0 : i32
    %c0_i32_0 = arith.constant 0 : i32
    return %c0_i32, %arg1 : i32, i32
  }
  func.func @transform_5(%arg0: i32, %arg1: i32, %arg2: i32) -> (i32, i32) {
    %c0_i32 = arith.constant 0 : i32
    %c0_i32_0 = arith.constant 0 : i32
    return %c0_i32, %arg1 : i32, i32
  }
  func.func @transform_6(%arg0: i32, %arg1: i32, %arg2: i32) -> (i32, i32) {
    %c0_i32 = arith.constant 0 : i32
    return %arg0, %arg1 : i32, i32
  }
}

module attributes {stable_mosaic.version = 11 : i64} {
  func.func @kernel(%arg0: i32, %arg1: i32, %arg2: memref<1x368x128xf32, #tpu.memory_space<vmem>>, %arg3: memref<9x128x128xbf16, #tpu.memory_space<vmem>>, %arg4: memref<1x128xf32, #tpu.memory_space<vmem>>, %arg5: memref<1x128xf32, #tpu.memory_space<vmem>>, %arg6: memref<1x328x128xbf16, #tpu.memory_space<vmem>>, %arg7: memref<328x128xf32, #tpu.memory_space<vmem>>) attributes {dimension_semantics = [#tpu.dimension_semantics<parallel>, #tpu.dimension_semantics<parallel>], iteration_bounds = array<i64: 2, 1>, scalar_prefetch = 0 : i64, scratch_operands = 1 : i64, tpu.core_type = #tpu.core_type<tc>, window_params = [{transform_indices = @transform_0, window_bounds = array<i64: 1, 368, 128>}, {transform_indices = @transform_1, window_bounds = array<i64: 9, 128, 128>}, {transform_indices = @transform_2, window_bounds = array<i64: 1, 128>}, {transform_indices = @transform_3, window_bounds = array<i64: 1, 128>}, {transform_indices = @transform_4, window_bounds = array<i64: 1, 328, 128>}]} {
    %cst = arith.constant 0.000000e+00 : f32
    %0 = vector.broadcast %cst : f32 to vector<328x128xf32>
    %c0 = arith.constant 0 : index
    %c0_0 = arith.constant 0 : index
    %1 = vector.load %arg7[%c0, %c0_0] : memref<328x128xf32, #tpu.memory_space<vmem>>, vector<328x128xf32>
    tpu.vector_store %arg7[%c0, %c0_0], %0 {strides = array<i32>} : memref<328x128xf32, #tpu.memory_space<vmem>>, vector<328x128xf32>,
    %c0_1 = arith.constant 0 : index
    %c0_2 = arith.constant 0 : index
    %c0_3 = arith.constant 0 : index
    %2 = vector.load %arg2[%c0_1, %c0_2, %c0_3] : memref<1x368x128xf32, #tpu.memory_space<vmem>>, vector<1x328x128xf32>
    %3 = vector.shape_cast %2 : vector<1x328x128xf32> to vector<328x128xf32>
    %4 = arith.truncf %3 : vector<328x128xf32> to vector<328x128xbf16>
    %c0_4 = arith.constant 0 : index
    %c0_5 = arith.constant 0 : index
    %5 = vector.load %arg7[%c0_4, %c0_5] : memref<328x128xf32, #tpu.memory_space<vmem>>, vector<328x128xf32>
    %c0_6 = arith.constant 0 : index
    %c0_7 = arith.constant 0 : index
    %c0_8 = arith.constant 0 : index
    %6 = vector.load %arg3[%c0_6, %c0_7, %c0_8] : memref<9x128x128xbf16, #tpu.memory_space<vmem>>, vector<1x128x128xbf16>
    %7 = vector.shape_cast %6 : vector<1x128x128xbf16> to vector<128x128xbf16>
    %cst_9 = arith.constant dense<0.000000e+00> : vector<328x128xf32>
    %8 = tpu.matmul %4, %7, %cst_9 {dimension_numbers = #tpu.dot_dimension_numbers<[1], [0], [0], [1], [0, 0, 1, 1], [], []>} : vector<328x128xbf16>, vector<128x128xbf16>, vector<328x128xf32> -> vector<328x128xf32>
    %9 = arith.addf %5, %8 : vector<328x128xf32>
    %c0_10 = arith.constant 0 : index
    %c0_11 = arith.constant 0 : index
    %10 = vector.load %arg7[%c0_10, %c0_11] : memref<328x128xf32, #tpu.memory_space<vmem>>, vector<328x128xf32>
    tpu.vector_store %arg7[%c0_10, %c0_11], %9 {strides = array<i32>} : memref<328x128xf32, #tpu.memory_space<vmem>>, vector<328x128xf32>,
    %c0_12 = arith.constant 0 : index
    %c1 = arith.constant 1 : index
    %c0_13 = arith.constant 0 : index
    %11 = vector.load %arg2[%c0_12, %c1, %c0_13] : memref<1x368x128xf32, #tpu.memory_space<vmem>>, vector<1x328x128xf32>
    %12 = vector.shape_cast %11 : vector<1x328x128xf32> to vector<328x128xf32>
    %13 = arith.truncf %12 : vector<328x128xf32> to vector<328x128xbf16>
    %c0_14 = arith.constant 0 : index
    %c0_15 = arith.constant 0 : index
    %14 = vector.load %arg7[%c0_14, %c0_15] : memref<328x128xf32, #tpu.memory_space<vmem>>, vector<328x128xf32>
    %c1_16 = arith.constant 1 : index
    %c0_17 = arith.constant 0 : index
    %c0_18 = arith.constant 0 : index
    %15 = vector.load %arg3[%c1_16, %c0_17, %c0_18] : memref<9x128x128xbf16, #tpu.memory_space<vmem>>, vector<1x128x128xbf16>
    %16 = vector.shape_cast %15 : vector<1x128x128xbf16> to vector<128x128xbf16>
    %cst_19 = arith.constant dense<0.000000e+00> : vector<328x128xf32>
    %17 = tpu.matmul %13, %16, %cst_19 {dimension_numbers = #tpu.dot_dimension_numbers<[1], [0], [0], [1], [0, 0, 1, 1], [], []>} : vector<328x128xbf16>, vector<128x128xbf16>, vector<328x128xf32> -> vector<328x128xf32>
    %18 = arith.addf %14, %17 : vector<328x128xf32>
    %c0_20 = arith.constant 0 : index
    %c0_21 = arith.constant 0 : index
    %19 = vector.load %arg7[%c0_20, %c0_21] : memref<328x128xf32, #tpu.memory_space<vmem>>, vector<328x128xf32>
    tpu.vector_store %arg7[%c0_20, %c0_21], %18 {strides = array<i32>} : memref<328x128xf32, #tpu.memory_space<vmem>>, vector<328x128xf32>,
    %c0_22 = arith.constant 0 : index
    %c2 = arith.constant 2 : index
    %c0_23 = arith.constant 0 : index
    %20 = vector.load %arg2[%c0_22, %c2, %c0_23] : memref<1x368x128xf32, #tpu.memory_space<vmem>>, vector<1x328x128xf32>
    %21 = vector.shape_cast %20 : vector<1x328x128xf32> to vector<328x128xf32>
    %22 = arith.truncf %21 : vector<328x128xf32> to vector<328x128xbf16>
    %c0_24 = arith.constant 0 : index
    %c0_25 = arith.constant 0 : index
    %23 = vector.load %arg7[%c0_24, %c0_25] : memref<328x128xf32, #tpu.memory_space<vmem>>, vector<328x128xf32>
    %c2_26 = arith.constant 2 : index
    %c0_27 = arith.constant 0 : index
    %c0_28 = arith.constant 0 : index
    %24 = vector.load %arg3[%c2_26, %c0_27, %c0_28] : memref<9x128x128xbf16, #tpu.memory_space<vmem>>, vector<1x128x128xbf16>
    %25 = vector.shape_cast %24 : vector<1x128x128xbf16> to vector<128x128xbf16>
    %cst_29 = arith.constant dense<0.000000e+00> : vector<328x128xf32>
    %26 = tpu.matmul %22, %25, %cst_29 {dimension_numbers = #tpu.dot_dimension_numbers<[1], [0], [0], [1], [0, 0, 1, 1], [], []>} : vector<328x128xbf16>, vector<128x128xbf16>, vector<328x128xf32> -> vector<328x128xf32>
    %27 = arith.addf %23, %26 : vector<328x128xf32>
    %c0_30 = arith.constant 0 : index
    %c0_31 = arith.constant 0 : index
    %28 = vector.load %arg7[%c0_30, %c0_31] : memref<328x128xf32, #tpu.memory_space<vmem>>, vector<328x128xf32>
    tpu.vector_store %arg7[%c0_30, %c0_31], %27 {strides = array<i32>} : memref<328x128xf32, #tpu.memory_space<vmem>>, vector<328x128xf32>,
    %c0_32 = arith.constant 0 : index
    %c18 = arith.constant 18 : index
    %c0_33 = arith.constant 0 : index
    %29 = vector.load %arg2[%c0_32, %c18, %c0_33] : memref<1x368x128xf32, #tpu.memory_space<vmem>>, vector<1x328x128xf32>
    %30 = vector.shape_cast %29 : vector<1x328x128xf32> to vector<328x128xf32>
    %31 = arith.truncf %30 : vector<328x128xf32> to vector<328x128xbf16>
    %c0_34 = arith.constant 0 : index
    %c0_35 = arith.constant 0 : index
    %32 = vector.load %arg7[%c0_34, %c0_35] : memref<328x128xf32, #tpu.memory_space<vmem>>, vector<328x128xf32>
    %c3 = arith.constant 3 : index
    %c0_36 = arith.constant 0 : index
    %c0_37 = arith.constant 0 : index
    %33 = vector.load %arg3[%c3, %c0_36, %c0_37] : memref<9x128x128xbf16, #tpu.memory_space<vmem>>, vector<1x128x128xbf16>
    %34 = vector.shape_cast %33 : vector<1x128x128xbf16> to vector<128x128xbf16>
    %cst_38 = arith.constant dense<0.000000e+00> : vector<328x128xf32>
    %35 = tpu.matmul %31, %34, %cst_38 {dimension_numbers = #tpu.dot_dimension_numbers<[1], [0], [0], [1], [0, 0, 1, 1], [], []>} : vector<328x128xbf16>, vector<128x128xbf16>, vector<328x128xf32> -> vector<328x128xf32>
    %36 = arith.addf %32, %35 : vector<328x128xf32>
    %c0_39 = arith.constant 0 : index
    %c0_40 = arith.constant 0 : index
    %37 = vector.load %arg7[%c0_39, %c0_40] : memref<328x128xf32, #tpu.memory_space<vmem>>, vector<328x128xf32>
    tpu.vector_store %arg7[%c0_39, %c0_40], %36 {strides = array<i32>} : memref<328x128xf32, #tpu.memory_space<vmem>>, vector<328x128xf32>,
    %c0_41 = arith.constant 0 : index
    %c19 = arith.constant 19 : index
    %c0_42 = arith.constant 0 : index
    %38 = vector.load %arg2[%c0_41, %c19, %c0_42] : memref<1x368x128xf32, #tpu.memory_space<vmem>>, vector<1x328x128xf32>
    %39 = vector.shape_cast %38 : vector<1x328x128xf32> to vector<328x128xf32>
    %40 = arith.truncf %39 : vector<328x128xf32> to vector<328x128xbf16>
    %c0_43 = arith.constant 0 : index
    %c0_44 = arith.constant 0 : index
    %41 = vector.load %arg7[%c0_43, %c0_44] : memref<328x128xf32, #tpu.memory_space<vmem>>, vector<328x128xf32>
    %c4 = arith.constant 4 : index
    %c0_45 = arith.constant 0 : index
    %c0_46 = arith.constant 0 : index
    %42 = vector.load %arg3[%c4, %c0_45, %c0_46] : memref<9x128x128xbf16, #tpu.memory_space<vmem>>, vector<1x128x128xbf16>
    %43 = vector.shape_cast %42 : vector<1x128x128xbf16> to vector<128x128xbf16>
    %cst_47 = arith.constant dense<0.000000e+00> : vector<328x128xf32>
    %44 = tpu.matmul %40, %43, %cst_47 {dimension_numbers = #tpu.dot_dimension_numbers<[1], [0], [0], [1], [0, 0, 1, 1], [], []>} : vector<328x128xbf16>, vector<128x128xbf16>, vector<328x128xf32> -> vector<328x128xf32>
    %45 = arith.addf %41, %44 : vector<328x128xf32>
    %c0_48 = arith.constant 0 : index
    %c0_49 = arith.constant 0 : index
    %46 = vector.load %arg7[%c0_48, %c0_49] : memref<328x128xf32, #tpu.memory_space<vmem>>, vector<328x128xf32>
    tpu.vector_store %arg7[%c0_48, %c0_49], %45 {strides = array<i32>} : memref<328x128xf32, #tpu.memory_space<vmem>>, vector<328x128xf32>,
    %c0_50 = arith.constant 0 : index
    %c20 = arith.constant 20 : index
    %c0_51 = arith.constant 0 : index
    %47 = vector.load %arg2[%c0_50, %c20, %c0_51] : memref<1x368x128xf32, #tpu.memory_space<vmem>>, vector<1x328x128xf32>
    %48 = vector.shape_cast %47 : vector<1x328x128xf32> to vector<328x128xf32>
    %49 = arith.truncf %48 : vector<328x128xf32> to vector<328x128xbf16>
    %c0_52 = arith.constant 0 : index
    %c0_53 = arith.constant 0 : index
    %50 = vector.load %arg7[%c0_52, %c0_53] : memref<328x128xf32, #tpu.memory_space<vmem>>, vector<328x128xf32>
    %c5 = arith.constant 5 : index
    %c0_54 = arith.constant 0 : index
    %c0_55 = arith.constant 0 : index
    %51 = vector.load %arg3[%c5, %c0_54, %c0_55] : memref<9x128x128xbf16, #tpu.memory_space<vmem>>, vector<1x128x128xbf16>
    %52 = vector.shape_cast %51 : vector<1x128x128xbf16> to vector<128x128xbf16>
    %cst_56 = arith.constant dense<0.000000e+00> : vector<328x128xf32>
    %53 = tpu.matmul %49, %52, %cst_56 {dimension_numbers = #tpu.dot_dimension_numbers<[1], [0], [0], [1], [0, 0, 1, 1], [], []>} : vector<328x128xbf16>, vector<128x128xbf16>, vector<328x128xf32> -> vector<328x128xf32>
    %54 = arith.addf %50, %53 : vector<328x128xf32>
    %c0_57 = arith.constant 0 : index
    %c0_58 = arith.constant 0 : index
    %55 = vector.load %arg7[%c0_57, %c0_58] : memref<328x128xf32, #tpu.memory_space<vmem>>, vector<328x128xf32>
    tpu.vector_store %arg7[%c0_57, %c0_58], %54 {strides = array<i32>} : memref<328x128xf32, #tpu.memory_space<vmem>>, vector<328x128xf32>,
    %c0_59 = arith.constant 0 : index
    %c36 = arith.constant 36 : index
    %c0_60 = arith.constant 0 : index
    %56 = vector.load %arg2[%c0_59, %c36, %c0_60] : memref<1x368x128xf32, #tpu.memory_space<vmem>>, vector<1x328x128xf32>
    %57 = vector.shape_cast %56 : vector<1x328x128xf32> to vector<328x128xf32>
    %58 = arith.truncf %57 : vector<328x128xf32> to vector<328x128xbf16>
    %c0_61 = arith.constant 0 : index
    %c0_62 = arith.constant 0 : index
    %59 = vector.load %arg7[%c0_61, %c0_62] : memref<328x128xf32, #tpu.memory_space<vmem>>, vector<328x128xf32>
    %c6 = arith.constant 6 : index
    %c0_63 = arith.constant 0 : index
    %c0_64 = arith.constant 0 : index
    %60 = vector.load %arg3[%c6, %c0_63, %c0_64] : memref<9x128x128xbf16, #tpu.memory_space<vmem>>, vector<1x128x128xbf16>
    %61 = vector.shape_cast %60 : vector<1x128x128xbf16> to vector<128x128xbf16>
    %cst_65 = arith.constant dense<0.000000e+00> : vector<328x128xf32>
    %62 = tpu.matmul %58, %61, %cst_65 {dimension_numbers = #tpu.dot_dimension_numbers<[1], [0], [0], [1], [0, 0, 1, 1], [], []>} : vector<328x128xbf16>, vector<128x128xbf16>, vector<328x128xf32> -> vector<328x128xf32>
    %63 = arith.addf %59, %62 : vector<328x128xf32>
    %c0_66 = arith.constant 0 : index
    %c0_67 = arith.constant 0 : index
    %64 = vector.load %arg7[%c0_66, %c0_67] : memref<328x128xf32, #tpu.memory_space<vmem>>, vector<328x128xf32>
    tpu.vector_store %arg7[%c0_66, %c0_67], %63 {strides = array<i32>} : memref<328x128xf32, #tpu.memory_space<vmem>>, vector<328x128xf32>,
    %c0_68 = arith.constant 0 : index
    %c37 = arith.constant 37 : index
    %c0_69 = arith.constant 0 : index
    %65 = vector.load %arg2[%c0_68, %c37, %c0_69] : memref<1x368x128xf32, #tpu.memory_space<vmem>>, vector<1x328x128xf32>
    %66 = vector.shape_cast %65 : vector<1x328x128xf32> to vector<328x128xf32>
    %67 = arith.truncf %66 : vector<328x128xf32> to vector<328x128xbf16>
    %c0_70 = arith.constant 0 : index
    %c0_71 = arith.constant 0 : index
    %68 = vector.load %arg7[%c0_70, %c0_71] : memref<328x128xf32, #tpu.memory_space<vmem>>, vector<328x128xf32>
    %c7 = arith.constant 7 : index
    %c0_72 = arith.constant 0 : index
    %c0_73 = arith.constant 0 : index
    %69 = vector.load %arg3[%c7, %c0_72, %c0_73] : memref<9x128x128xbf16, #tpu.memory_space<vmem>>, vector<1x128x128xbf16>
    %70 = vector.shape_cast %69 : vector<1x128x128xbf16> to vector<128x128xbf16>
    %cst_74 = arith.constant dense<0.000000e+00> : vector<328x128xf32>
    %71 = tpu.matmul %67, %70, %cst_74 {dimension_numbers = #tpu.dot_dimension_numbers<[1], [0], [0], [1], [0, 0, 1, 1], [], []>} : vector<328x128xbf16>, vector<128x128xbf16>, vector<328x128xf32> -> vector<328x128xf32>
    %72 = arith.addf %68, %71 : vector<328x128xf32>
    %c0_75 = arith.constant 0 : index
    %c0_76 = arith.constant 0 : index
    %73 = vector.load %arg7[%c0_75, %c0_76] : memref<328x128xf32, #tpu.memory_space<vmem>>, vector<328x128xf32>
    tpu.vector_store %arg7[%c0_75, %c0_76], %72 {strides = array<i32>} : memref<328x128xf32, #tpu.memory_space<vmem>>, vector<328x128xf32>,
    %c0_77 = arith.constant 0 : index
    %c38 = arith.constant 38 : index
    %c0_78 = arith.constant 0 : index
    %74 = vector.load %arg2[%c0_77, %c38, %c0_78] : memref<1x368x128xf32, #tpu.memory_space<vmem>>, vector<1x328x128xf32>
    %75 = vector.shape_cast %74 : vector<1x328x128xf32> to vector<328x128xf32>
    %76 = arith.truncf %75 : vector<328x128xf32> to vector<328x128xbf16>
    %c0_79 = arith.constant 0 : index
    %c0_80 = arith.constant 0 : index
    %77 = vector.load %arg7[%c0_79, %c0_80] : memref<328x128xf32, #tpu.memory_space<vmem>>, vector<328x128xf32>
    %c8 = arith.constant 8 : index
    %c0_81 = arith.constant 0 : index
    %c0_82 = arith.constant 0 : index
    %78 = vector.load %arg3[%c8, %c0_81, %c0_82] : memref<9x128x128xbf16, #tpu.memory_space<vmem>>, vector<1x128x128xbf16>
    %79 = vector.shape_cast %78 : vector<1x128x128xbf16> to vector<128x128xbf16>
    %cst_83 = arith.constant dense<0.000000e+00> : vector<328x128xf32>
    %80 = tpu.matmul %76, %79, %cst_83 {dimension_numbers = #tpu.dot_dimension_numbers<[1], [0], [0], [1], [0, 0, 1, 1], [], []>} : vector<328x128xbf16>, vector<128x128xbf16>, vector<328x128xf32> -> vector<328x128xf32>
    %81 = arith.addf %77, %80 : vector<328x128xf32>
    %c0_84 = arith.constant 0 : index
    %c0_85 = arith.constant 0 : index
    %82 = vector.load %arg7[%c0_84, %c0_85] : memref<328x128xf32, #tpu.memory_space<vmem>>, vector<328x128xf32>
    tpu.vector_store %arg7[%c0_84, %c0_85], %81 {strides = array<i32>} : memref<328x128xf32, #tpu.memory_space<vmem>>, vector<328x128xf32>,
    %c0_86 = arith.constant 0 : index
    %c0_87 = arith.constant 0 : index
    %83 = vector.load %arg7[%c0_86, %c0_87] : memref<328x128xf32, #tpu.memory_space<vmem>>, vector<328x128xf32>
    %c0_88 = arith.constant 0 : index
    %c0_89 = arith.constant 0 : index
    %84 = vector.load %arg4[%c0_88, %c0_89] : memref<1x128xf32, #tpu.memory_space<vmem>>, vector<1x128xf32>
    %85 = vector.broadcast %84 : vector<1x128xf32> to vector<328x128xf32>
    %86 = arith.mulf %83, %85 : vector<328x128xf32>
    %c0_90 = arith.constant 0 : index
    %c0_91 = arith.constant 0 : index
    %87 = vector.load %arg5[%c0_90, %c0_91] : memref<1x128xf32, #tpu.memory_space<vmem>>, vector<1x128xf32>
    %88 = vector.broadcast %87 : vector<1x128xf32> to vector<328x128xf32>
    %89 = arith.addf %86, %88 : vector<328x128xf32>
    %cst_92 = arith.constant 0.000000e+00 : f32
    %90 = vector.broadcast %cst_92 : f32 to vector<328x128xf32>
    %91 = arith.maximumf %89, %90 : vector<328x128xf32>
    %92 = arith.truncf %91 : vector<328x128xf32> to vector<328x128xbf16>
    %c0_93 = arith.constant 0 : index
    %c0_94 = arith.constant 0 : index
    %c0_95 = arith.constant 0 : index
    %93 = vector.load %arg6[%c0_93, %c0_94, %c0_95] : memref<1x328x128xbf16, #tpu.memory_space<vmem>>, vector<1x328x128xbf16>
    %94 = vector.shape_cast %93 : vector<1x328x128xbf16> to vector<328x128xbf16>
    %95 = vector.shape_cast %92 : vector<328x128xbf16> to vector<1x328x128xbf16>
    tpu.vector_store %arg6[%c0_93, %c0_94, %c0_95], %95 {strides = array<i32>} : memref<1x328x128xbf16, #tpu.memory_space<vmem>>, vector<1x328x128xbf16>,
    return
  }
  func.func @transform_0(%arg0: i32, %arg1: i32) -> (i32, i32, i32) {
    %c0_i32 = arith.constant 0 : i32
    %c0_i32_0 = arith.constant 0 : i32
    %c0_i32_1 = arith.constant 0 : i32
    return %arg0, %c0_i32, %c0_i32_0 : i32, i32, i32
  }
  func.func @transform_1(%arg0: i32, %arg1: i32) -> (i32, i32, i32) {
    %c0_i32 = arith.constant 0 : i32
    %c0_i32_0 = arith.constant 0 : i32
    %c0_i32_1 = arith.constant 0 : i32
    return %c0_i32, %c0_i32_0, %arg1 : i32, i32, i32
  }
  func.func @transform_2(%arg0: i32, %arg1: i32) -> (i32, i32) {
    %c0_i32 = arith.constant 0 : i32
    %c0_i32_0 = arith.constant 0 : i32
    return %c0_i32, %arg1 : i32, i32
  }
  func.func @transform_3(%arg0: i32, %arg1: i32) -> (i32, i32) {
    %c0_i32 = arith.constant 0 : i32
    %c0_i32_0 = arith.constant 0 : i32
    return %c0_i32, %arg1 : i32, i32
  }
  func.func @transform_4(%arg0: i32, %arg1: i32) -> (i32, i32, i32) {
    %c0_i32 = arith.constant 0 : i32
    %c0_i32_0 = arith.constant 0 : i32
    return %arg0, %c0_i32, %arg1 : i32, i32, i32
  }
}

module attributes {stable_mosaic.version = 11 : i64} {
  func.func @_mm_bias_res_kernel(%arg0: i32, %arg1: i32, %arg2: i32, %arg3: memref<128x128xbf16, #tpu.memory_space<vmem>>, %arg4: memref<128x128xbf16, #tpu.memory_space<vmem>>, %arg5: memref<1x128xf32, #tpu.memory_space<vmem>>, %arg6: memref<128x128xf32, #tpu.memory_space<vmem>>, %arg7: memref<128x128xf32, #tpu.memory_space<vmem>>) attributes {dimension_semantics = [#tpu.dimension_semantics<parallel>, #tpu.dimension_semantics<parallel>, #tpu.dimension_semantics<arbitrary>], iteration_bounds = array<i64: 4, 2, 1>, scalar_prefetch = 0 : i64, scratch_operands = 0 : i64, tpu.core_type = #tpu.core_type<tc>, window_params = [{transform_indices = @transform_0, window_bounds = array<i64: 128, 128>}, {transform_indices = @transform_1, window_bounds = array<i64: 128, 128>}, {transform_indices = @transform_2, window_bounds = array<i64: 1, 128>}, {transform_indices = @transform_3, window_bounds = array<i64: 128, 128>}, {transform_indices = @transform_4, window_bounds = array<i64: 128, 128>}]} {
    %c0_i32 = arith.constant 0 : i32
    %0 = arith.cmpi eq, %arg2, %c0_i32 : i32
    %1 = arith.extui %0 : i1 to i32
    %c0_i32_0 = arith.constant 0 : i32
    %2 = arith.cmpi ne, %1, %c0_i32_0 : i32
    scf.if %2 {
      %c0_8 = arith.constant 0 : index
      %c0_9 = arith.constant 0 : index
      %9 = vector.load %arg5[%c0_8, %c0_9] : memref<1x128xf32, #tpu.memory_space<vmem>>, vector<1x128xf32>
      %c0_10 = arith.constant 0 : index
      %c0_11 = arith.constant 0 : index
      %10 = vector.load %arg6[%c0_10, %c0_11] : memref<128x128xf32, #tpu.memory_space<vmem>>, vector<128x128xf32>
      %11 = vector.broadcast %9 : vector<1x128xf32> to vector<128x128xf32>
      %12 = arith.addf %11, %10 : vector<128x128xf32>
      %c0_12 = arith.constant 0 : index
      %c0_13 = arith.constant 0 : index
      %13 = vector.load %arg7[%c0_12, %c0_13] : memref<128x128xf32, #tpu.memory_space<vmem>>, vector<128x128xf32>
      tpu.vector_store %arg7[%c0_12, %c0_13], %12 {strides = array<i32>} : memref<128x128xf32, #tpu.memory_space<vmem>>, vector<128x128xf32>,
    } else {
    }
    %c0 = arith.constant 0 : index
    %c0_1 = arith.constant 0 : index
    %3 = vector.load %arg7[%c0, %c0_1] : memref<128x128xf32, #tpu.memory_space<vmem>>, vector<128x128xf32>
    %c0_2 = arith.constant 0 : index
    %c0_3 = arith.constant 0 : index
    %4 = vector.load %arg3[%c0_2, %c0_3] : memref<128x128xbf16, #tpu.memory_space<vmem>>, vector<128x128xbf16>
    %c0_4 = arith.constant 0 : index
    %c0_5 = arith.constant 0 : index
    %5 = vector.load %arg4[%c0_4, %c0_5] : memref<128x128xbf16, #tpu.memory_space<vmem>>, vector<128x128xbf16>
    %cst = arith.constant dense<0.000000e+00> : vector<128x128xf32>
    %6 = tpu.matmul %4, %5, %cst {dimension_numbers = #tpu.dot_dimension_numbers<[1], [0], [0], [1], [0, 0, 1, 1], [], []>} : vector<128x128xbf16>, vector<128x128xbf16>, vector<128x128xf32> -> vector<128x128xf32>
    %7 = arith.addf %3, %6 : vector<128x128xf32>
    %c0_6 = arith.constant 0 : index
    %c0_7 = arith.constant 0 : index
    %8 = vector.load %arg7[%c0_6, %c0_7] : memref<128x128xf32, #tpu.memory_space<vmem>>, vector<128x128xf32>
    tpu.vector_store %arg7[%c0_6, %c0_7], %7 {strides = array<i32>} : memref<128x128xf32, #tpu.memory_space<vmem>>, vector<128x128xf32>,
    return
  }
  func.func @transform_0(%arg0: i32, %arg1: i32, %arg2: i32) -> (i32, i32) {
    %c0_i32 = arith.constant 0 : i32
    return %arg0, %arg2 : i32, i32
  }
  func.func @transform_1(%arg0: i32, %arg1: i32, %arg2: i32) -> (i32, i32) {
    %c0_i32 = arith.constant 0 : i32
    return %arg2, %arg1 : i32, i32
  }
  func.func @transform_2(%arg0: i32, %arg1: i32, %arg2: i32) -> (i32, i32) {
    %c0_i32 = arith.constant 0 : i32
    %c0_i32_0 = arith.constant 0 : i32
    return %c0_i32, %arg1 : i32, i32
  }
  func.func @transform_3(%arg0: i32, %arg1: i32, %arg2: i32) -> (i32, i32) {
    %c0_i32 = arith.constant 0 : i32
    return %arg0, %arg1 : i32, i32
  }
  func.func @transform_4(%arg0: i32, %arg1: i32, %arg2: i32) -> (i32, i32) {
    %c0_i32 = arith.constant 0 : i32
    return %arg0, %arg1 : i32, i32
  }
}

</mosaic_0001>

<llo_original>
// kernel: bottleneck_fwd.3
$region0: #{bottleneck_fwd.3}
  #allocation0 [shape = 'u32[]', space=smem, size = 0x4, offset = 0x4, fixed_abs, tag = 'smem constant byte address 0x4 - core index']
  #allocation1 [shape = 'u32[144,128]{1,0:T(1,128)}', space=vmem, size = 0x12000, scoped, tag = 'internal scratch']
  #allocation2 [shape = 'f32[128,128]{1,0:T(8,128)}', space=vmem, size = 0x10000, scoped, tag = 'scratch operand']
  %s0 = inlined_call_operand.hbm [shape: bf16[512,256], index: 0, kind: input, shape index: {}]
  %s1 = inlined_call_operand.hbm [shape: f32[1,256], index: 1, kind: input, shape index: {}]
  %s2 = inlined_call_operand.hbm [shape: f32[1,256], index: 2, kind: input, shape index: {}]
  %s3 = inlined_call_operand.hbm [shape: bf16[256,128], index: 3, kind: input, shape index: {}]
  %s4 = inlined_call_operand.hbm [shape: f32[1,128], index: 4, kind: input, shape index: {}]
  %s5 = inlined_call_operand.hbm [shape: f32[1,128], index: 5, kind: input, shape index: {}]
  %s6 = inlined_call_operand.hbm [shape: bf16[512,128], index: 6, kind: output, shape index: {}]
  %s7 = sld [smem:[#allocation0]]
  $region89: #{bottleneck_fwd.3} parent=0
    _
  %s9 = ssub.s32 1, %s7
  %s10 = scalar_select 0, %s9, %s7
  $region1: #{bottleneck_fwd.3} parent=0
    #allocation3 [shape = 'u8[131072]{0}', space=vmem, size = 0x20000, scoped, tag = 'input window, operand 0']
    #allocation4 [shape = 's32[2]{0}', space=sflag, size = 0x8, scoped, tag = 'scoped memory for bottleneck_fwd.3']
    #allocation5 [shape = 's32[2]{0}', space=sflag, size = 0x8, scoped, tag = 'scoped memory for bottleneck_fwd.3']
    #allocation6 [shape = 'u8[1024]{0}', space=vmem, size = 0x400, scoped, tag = 'input window, operand 1, single buffered']
    #allocation7 [shape = 's32[1]{0}', space=sflag, size = 0x4, scoped, tag = 'scoped memory for bottleneck_fwd.3']
    #allocation8 [shape = 'u8[1024]{0}', space=vmem, size = 0x400, scoped, tag = 'input window, operand 2, single buffered']
    #allocation9 [shape = 'u8[65536]{0}', space=vmem, size = 0x10000, scoped, tag = 'input window, operand 3, single buffered']
    #allocation10 [shape = 's32[1]{0}', space=sflag, size = 0x4, scoped, tag = 'scoped memory for bottleneck_fwd.3']
    #allocation11 [shape = 'u8[512]{0}', space=vmem, size = 0x400, scoped, tag = 'input window, operand 4, single buffered']
    #allocation12 [shape = 'u8[512]{0}', space=vmem, size = 0x400, scoped, tag = 'input window, operand 5, single buffered']
    #allocation13 [shape = 's32[1]{0}', space=sflag, size = 0x4, scoped, tag = 'scoped memory for bottleneck_fwd.3']
    #allocation14 [shape = 'u8[65536]{0}', space=vmem, size = 0x10000, scoped, tag = 'output window, operand 0']
    %11 = vsyncpa [#allocation4], 0
    %s12 = scalar_lea.sflag [#allocation4], 1
    %13 = vsyncpa %s12, 0
    %14 = vsyncpa [#allocation7], 0
    %15 = vsyncpa [#allocation10], 0
    %16 = vsyncpa [#allocation13], 0
    %17 = vsyncpa [#allocation5], 0
    %s18 = scalar_lea.sflag [#allocation5], 1
    %19 = vsyncpa %s18, 0
    loop: start=0, step=1, limit=6
    $region2: #{bottleneck_fwd.3} parent=1 // loop_pre_header
      _
    $region3: #{bottleneck_fwd.3} parent=1 // loop_header
      %s21 = sphi 0, %s25
      %p22 = scmp.ge.s32.totalorder %s21, 6
      %s28 = sphi 0, %s47
      %s29 = sphi 0, %s43
      %s30 = sphi 0, %s39
      %s31 = sphi 0, %s28
      %s32 = sphi 0, %s29
      %s33 = sphi 0, %s30
      %s34 = sphi 0, %s31
      %s35 = sphi 0, %s32
      %s36 = sphi 0, %s33
      %s52 = sphi 0, %s54
      %s55 = sphi 0, %s52
      %s56 = sphi 0, %s55
      %s72 = sphi 0, %s56
      %s78 = sphi 0, %s80
      %s81 = sphi 0, %s78
      %s82 = sphi 0, %s81
      %s98 = sphi 0, %s82
      %s104 = sphi 0, %s106
      %s107 = sphi 0, %s104
      %s108 = sphi 0, %s107
      %s124 = sphi 0, %s108
      %s132 = sphi 0, %s134
      %s135 = sphi 0, %s132
      %s136 = sphi 0, %s135
      %s152 = sphi 0, %s136
      %s158 = sphi 0, %s160
      %s161 = sphi 0, %s158
      %s162 = sphi 0, %s161
      %s178 = sphi 0, %s162
      %s184 = sphi 0, %s186
      %s187 = sphi 0, %s184
      %s188 = sphi 0, %s187
      %s204 = sphi 0, %s188
      %s212 = sphi 0, %s214
      %s215 = sphi 0, %s212
      %s216 = sphi 0, %s215
      %s232 = sphi 0, %s216
    $region4: #{bottleneck_fwd.3} parent=1 // loop_header_branch
      %24 = sbr.rel (%p22) target = $region8
    $region5: #{bottleneck_fwd.3} parent=1 // loop_body
      %s26 = ssub.s32 %s21, 1
      %s27 = ssub.s32 %s21, 2
      %s37 = sadd.s32 1, %s30
      %p38 = scmp.ge.s32.totalorder %s37, 1
      %s39 = scalar_select %p38, 0, %s37
      %s40 = sadd.s32 1, %s29
      %s41 = scalar_select %p38, %s40, %s29
      %p42 = scmp.ge.s32.totalorder %s41, 1
      %s43 = scalar_select %p42, 0, %s41
      %s44 = sadd.s32 1, %s28
      %s45 = scalar_select %p42, %s44, %s28
      %p46 = scmp.ge.s32.totalorder %s45, 4
      %s47 = scalar_select %p46, 0, %s45
      %s48 = ssub.s32 %s28, %s47
      %s49 = ssub.s32 %s30, %s39
      %s50 = sor.u32 %s48, %s49
      %p51 = scmp.eq.s32.totalorder %s50, 0
      %s53 = sadd.s32 %s52, 1
      %s54 = scalar_select %p51, %s52, %s53
      %p57 = pneg %p51
      %p58 = scmp.eq.s32.totalorder %s21, 3
      %p59 = por %p57, %p58
      %p60 = scmp.ne.s32.totalorder %s52, %s55
      %p61 = scmp.eq.s32.totalorder %s21, 0
      %p62 = por %p60, %p61
      %p63 = scmp.ne.s32.totalorder %s52, %s55
      %p64 = scmp.eq.s32.totalorder %s26, 3
      %p65 = por %p63, %p64
      %p66 = scmp.ne.s32.totalorder %s55, %s56
      %p67 = scmp.eq.s32.totalorder %s26, 0
      %p68 = por %p66, %p67
      %p69 = scmp.ne.s32.totalorder %s55, %s56
      %p70 = scmp.eq.s32.totalorder %s27, 3
      %p71 = por %p69, %p70
      %p73 = scmp.ne.s32.totalorder %s56, %s72
      %p74 = scmp.eq.s32.totalorder %s27, 0
      %p75 = por %p73, %p74
      %s76 = ssub.s32 %s30, %s39
      %p77 = scmp.eq.s32.totalorder %s76, 0
      %s79 = sadd.s32 %s78, 1
      %s80 = scalar_select %p77, %s78, %s79
      %p83 = pneg %p77
      %p84 = scmp.eq.s32.totalorder %s21, 3
      %p85 = por %p83, %p84
      %p86 = scmp.ne.s32.totalorder %s78, %s81
      %p87 = scmp.eq.s32.totalorder %s21, 0
      %p88 = por %p86, %p87
      %p89 = scmp.ne.s32.totalorder %s78, %s81
      %p90 = scmp.eq.s32.totalorder %s26, 3
      %p91 = por %p89, %p90
      %p92 = scmp.ne.s32.totalorder %s81, %s82
      %p93 = scmp.eq.s32.totalorder %s26, 0
      %p94 = por %p92, %p93
      %p95 = scmp.ne.s32.totalorder %s81, %s82
      %p96 = scmp.eq.s32.totalorder %s27, 3
      %p97 = por %p95, %p96
      %p99 = scmp.ne.s32.totalorder %s82, %s98
      %p100 = scmp.eq.s32.totalorder %s27, 0
      %p101 = por %p99, %p100
      %s102 = ssub.s32 %s30, %s39
      %p103 = scmp.eq.s32.totalorder %s102, 0
      %s105 = sadd.s32 %s104, 1
      %s106 = scalar_select %p103, %s104, %s105
      %p109 = pneg %p103
      %p110 = scmp.eq.s32.totalorder %s21, 3
      %p111 = por %p109, %p110
      %p112 = scmp.ne.s32.totalorder %s104, %s107
      %p113 = scmp.eq.s32.totalorder %s21, 0
      %p114 = por %p112, %p113
      %p115 = scmp.ne.s32.totalorder %s104, %s107
      %p116 = scmp.eq.s32.totalorder %s26, 3
      %p117 = por %p115, %p116
      %p118 = scmp.ne.s32.totalorder %s107, %s108
      %p119 = scmp.eq.s32.totalorder %s26, 0
      %p120 = por %p118, %p119
      %p121 = scmp.ne.s32.totalorder %s107, %s108
      %p122 = scmp.eq.s32.totalorder %s27, 3
      %p123 = por %p121, %p122
      %p125 = scmp.ne.s32.totalorder %s108, %s124
      %p126 = scmp.eq.s32.totalorder %s27, 0
      %p127 = por %p125, %p126
      %s128 = ssub.s32 %s30, %s39
      %s129 = ssub.s32 %s29, %s43
      %s130 = sor.u32 %s128, %s129
      %p131 = scmp.eq.s32.totalorder %s130, 0
      %s133 = sadd.s32 %s132, 1
      %s134 = scalar_select %p131, %s132, %s133
      %p137 = pneg %p131
      %p138 = scmp.eq.s32.totalorder %s21, 3
      %p139 = por %p137, %p138
      %p140 = scmp.ne.s32.totalorder %s132, %s135
      %p141 = scmp.eq.s32.totalorder %s21, 0
      %p142 = por %p140, %p141
      %p143 = scmp.ne.s32.totalorder %s132, %s135
      %p144 = scmp.eq.s32.totalorder %s26, 3
      %p145 = por %p143, %p144
      %p146 = scmp.ne.s32.totalorder %s135, %s136
      %p147 = scmp.eq.s32.totalorder %s26, 0
      %p148 = por %p146, %p147
      %p149 = scmp.ne.s32.totalorder %s135, %s136
      %p150 = scmp.eq.s32.totalorder %s27, 3
      %p151 = por %p149, %p150
      %p153 = scmp.ne.s32.totalorder %s136, %s152
      %p154 = scmp.eq.s32.totalorder %s27, 0
      %p155 = por %p153, %p154
      %s156 = ssub.s32 %s29, %s43
      %p157 = scmp.eq.s32.totalorder %s156, 0
      %s159 = sadd.s32 %s158, 1
      %s160 = scalar_select %p157, %s158, %s159
      %p163 = pneg %p157
      %p164 = scmp.eq.s32.totalorder %s21, 3
      %p165 = por %p163, %p164
      %p166 = scmp.ne.s32.totalorder %s158, %s161
      %p167 = scmp.eq.s32.totalorder %s21, 0
      %p168 = por %p166, %p167
      %p169 = scmp.ne.s32.totalorder %s158, %s161
      %p170 = scmp.eq.s32.totalorder %s26, 3
      %p171 = por %p169, %p170
      %p172 = scmp.ne.s32.totalorder %s161, %s162
      %p173 = scmp.eq.s32.totalorder %s26, 0
      %p174 = por %p172, %p173
      %p175 = scmp.ne.s32.totalorder %s161, %s162
      %p176 = scmp.eq.s32.totalorder %s27, 3
      %p177 = por %p175, %p176
      %p179 = scmp.ne.s32.totalorder %s162, %s178
      %p180 = scmp.eq.s32.totalorder %s27, 0
      %p181 = por %p179, %p180
      %s182 = ssub.s32 %s29, %s43
      %p183 = scmp.eq.s32.totalorder %s182, 0
      %s185 = sadd.s32 %s184, 1
      %s186 = scalar_select %p183, %s184, %s185
      %p189 = pneg %p183
      %p190 = scmp.eq.s32.totalorder %s21, 3
      %p191 = por %p189, %p190
      %p192 = scmp.ne.s32.totalorder %s184, %s187
      %p193 = scmp.eq.s32.totalorder %s21, 0
      %p194 = por %p192, %p193
      %p195 = scmp.ne.s32.totalorder %s184, %s187
      %p196 = scmp.eq.s32.totalorder %s26, 3
      %p197 = por %p195, %p196
      %p198 = scmp.ne.s32.totalorder %s187, %s188
      %p199 = scmp.eq.s32.totalorder %s26, 0
      %p200 = por %p198, %p199
      %p201 = scmp.ne.s32.totalorder %s187, %s188
      %p202 = scmp.eq.s32.totalorder %s27, 3
      %p203 = por %p201, %p202
      %p205 = scmp.ne.s32.totalorder %s188, %s204
      %p206 = scmp.eq.s32.totalorder %s27, 0
      %p207 = por %p205, %p206
      %s208 = ssub.s32 %s28, %s47
      %s209 = ssub.s32 %s29, %s43
      %s210 = sor.u32 %s208, %s209
      %p211 = scmp.eq.s32.totalorder %s210, 0
      %s213 = sadd.s32 %s212, 1
      %s214 = scalar_select %p211, %s212, %s213
      %p217 = pneg %p211
      %p218 = scmp.eq.s32.totalorder %s21, 3
      %p219 = por %p217, %p218
      %p220 = scmp.ne.s32.totalorder %s212, %s215
      %p221 = scmp.eq.s32.totalorder %s21, 0
      %p222 = por %p220, %p221
      %p223 = scmp.ne.s32.totalorder %s212, %s215
      %p224 = scmp.eq.s32.totalorder %s26, 3
      %p225 = por %p223, %p224
      %p226 = scmp.ne.s32.totalorder %s215, %s216
      %p227 = scmp.eq.s32.totalorder %s26, 0
      %p228 = por %p226, %p227
      %p229 = scmp.ne.s32.totalorder %s215, %s216
      %p230 = scmp.eq.s32.totalorder %s27, 3
      %p231 = por %p229, %p230
      %p233 = scmp.ne.s32.totalorder %s216, %s232
      %p234 = scmp.eq.s32.totalorder %s27, 0
      %p235 = por %p233, %p234
      %p236 = scmp.le.s32.totalorder 1, %s21
      %p237 = scmp.lt.s32.totalorder %s21, 5
      %p238 = pnand %p236, %p237
      %p239 = pneg %p238
      // Predicated region
      $region9: #{bottleneck_fwd.3} parent=5 // pred_check
        _
      $region10: #{bottleneck_fwd.3} parent=5 // pred_check_branch
        %241 = sbr.rel (%p238) target = $region12
      $region11: #{bottleneck_fwd.3} parent=5 // pred_region
        %s242 = ssub.s32 %s21, 1
        // Predicated region
        $region13: #{bottleneck_fwd.3} parent=11 // pred_check
          %p243 = pneg %p94
        $region14: #{bottleneck_fwd.3} parent=11 // pred_check_branch
          %245 = sbr.rel (%p243) target = $region16
        $region15: #{bottleneck_fwd.3} parent=11 // pred_region
          %s246 = smul.u32 2, %s33
          %s248 = ssub.s32 32, 32
          %249 = vsyncadd [#allocation7], %s248
          %s250 = smul.addr %s246, 16
          %s251 = scalar_lea.hbm %s1, %s250
          %s253 = sshll.u32 [#allocation6], 4
          %s254 = int_to_ptr.vmem [resolvable:$true] %s253
          %256 = dma.hbm_to_vmem [thread:$0]  %s251, 32, %s254, [#allocation7]
        $region16: #{bottleneck_fwd.3} parent=11 // pred_fallthru
          _
        // Predicated region
        $region17: #{bottleneck_fwd.3} parent=11 // pred_check
          %p257 = pneg %p120
        $region18: #{bottleneck_fwd.3} parent=11 // pred_check_branch
          %259 = sbr.rel (%p257) target = $region20
        $region19: #{bottleneck_fwd.3} parent=11 // pred_region
          %s260 = smul.u32 2, %s33
          %s262 = ssub.s32 32, 32
          %263 = vsyncadd [#allocation7], %s262
          %s264 = smul.addr %s260, 16
          %s265 = scalar_lea.hbm %s2, %s264
          %s267 = sshll.u32 [#allocation8], 4
          %s268 = int_to_ptr.vmem [resolvable:$true] %s267
          %270 = dma.hbm_to_vmem [thread:$0]  %s265, 32, %s268, [#allocation7]
        $region20: #{bottleneck_fwd.3} parent=11 // pred_fallthru
          _
        // Predicated region
        $region21: #{bottleneck_fwd.3} parent=11 // pred_check
          %p271 = pneg %p148
        $region22: #{bottleneck_fwd.3} parent=11 // pred_check_branch
          %273 = sbr.rel (%p271) target = $region24
        $region23: #{bottleneck_fwd.3} parent=11 // pred_region
          %s274 = smul.u32 32, %s33
          %s276 = ssub.s32 2048, 2048
          %277 = vsyncadd [#allocation10], %s276
          %s278 = sadd.s32 %s32, %s274
          %s279 = smul.addr %s278, 64
          %s280 = scalar_lea.hbm %s3, %s279
          %s281 = sshll.u32 [#allocation9], 4
          %s282 = int_to_ptr.vmem [resolvable:$true] %s281
          %287 = dma.hbm_to_vmem [thread:$0]  %s280, 2048, %s282, [#allocation10], 64, 64, 4
        $region24: #{bottleneck_fwd.3} parent=11 // pred_fallthru
          _
        // Predicated region
        $region25: #{bottleneck_fwd.3} parent=11 // pred_check
          %p288 = pneg %p174
        $region26: #{bottleneck_fwd.3} parent=11 // pred_check_branch
          %290 = sbr.rel (%p288) target = $region28
        $region27: #{bottleneck_fwd.3} parent=11 // pred_region
          %s292 = ssub.s32 16, 16
          %293 = vsyncadd [#allocation10], %s292
          %s294 = smul.addr %s32, 16
          %s295 = scalar_lea.hbm %s4, %s294
          %s297 = sshll.u32 [#allocation11], 4
          %s298 = int_to_ptr.vmem [resolvable:$true] %s297
          %300 = dma.hbm_to_vmem [thread:$0]  %s295, 16, %s298, [#allocation10]
        $region28: #{bottleneck_fwd.3} parent=11 // pred_fallthru
          _
        // Predicated region
        $region29: #{bottleneck_fwd.3} parent=11 // pred_check
          %p301 = pneg %p200
        $region30: #{bottleneck_fwd.3} parent=11 // pred_check_branch
          %303 = sbr.rel (%p301) target = $region32
        $region31: #{bottleneck_fwd.3} parent=11 // pred_region
          %s305 = ssub.s32 16, 16
          %306 = vsyncadd [#allocation13], %s305
          %s307 = smul.addr %s32, 16
          %s308 = scalar_lea.hbm %s5, %s307
          %s310 = sshll.u32 [#allocation12], 4
          %s311 = int_to_ptr.vmem [resolvable:$true] %s310
          %313 = dma.hbm_to_vmem [thread:$0]  %s308, 16, %s311, [#allocation13]
        $region32: #{bottleneck_fwd.3} parent=11 // pred_fallthru
          _
      $region12: #{bottleneck_fwd.3} parent=5 // pred_fallthru
        _
      %p314 = scmp.lt.s32.totalorder %s21, 4
      // Predicated region
      $region33: #{bottleneck_fwd.3} parent=5 // pred_check
        %p315 = pneg %p314
      $region34: #{bottleneck_fwd.3} parent=5 // pred_check_branch
        %317 = sbr.rel (%p315) target = $region36
      $region35: #{bottleneck_fwd.3} parent=5 // pred_region
        // Predicated region
        $region37: #{bottleneck_fwd.3} parent=35 // pred_check
          %p318 = pneg %p62
        $region38: #{bottleneck_fwd.3} parent=35 // pred_check_branch
          %320 = sbr.rel (%p318) target = $region40
        $region39: #{bottleneck_fwd.3} parent=35 // pred_region
          %s321 = sand.u32 %s52, 1
          %s322 = scalar_lea.sflag [#allocation4], %s321
          %s323 = sand.u32 %s52, 1
          %s324 = smul.addr %s323, 128
          %s325 = scalar_lea.vmem [#allocation3], %s324
          %s326 = smul.u32 16, %s28
          %s327 = smul.u32 2, %s30
          %s329 = ssub.s32 2048, 2048
          %330 = vsyncadd %s322, %s329
          %s331 = smul.addr %s326, 2
          %s332 = sadd.s32 %s327, %s331
          %s333 = smul.addr %s332, 64
          %s334 = scalar_lea.hbm %s0, %s333
          %s335 = sshll.u32 %s325, 4
          %s336 = int_to_ptr.vmem [resolvable:$true] %s335
          %341 = dma.hbm_to_vmem [thread:$0]  %s334, 2048, %s336, %s322, 128, 128, 8
        $region40: #{bottleneck_fwd.3} parent=35 // pred_fallthru
          _
      $region36: #{bottleneck_fwd.3} parent=5 // pred_fallthru
        _
      %p342 = scmp.le.s32.totalorder 1, %s21
      %p343 = scmp.lt.s32.totalorder %s21, 5
      %p344 = pnand %p342, %p343
      %p345 = pneg %p344
      // Predicated region
      $region41: #{bottleneck_fwd.3} parent=5 // pred_check
        _
      $region42: #{bottleneck_fwd.3} parent=5 // pred_check_branch
        %347 = sbr.rel (%p344) target = $region44
      $region43: #{bottleneck_fwd.3} parent=5 // pred_region
        %s348 = ssub.s32 %s21, 1
        %s349 = sand.u32 %s55, 1
        %s350 = scalar_lea.sflag [#allocation4], %s349
        %s351 = sand.u32 %s55, 1
        %s352 = smul.addr %s351, 128
        %s353 = scalar_lea.vmem [#allocation3], %s352
        // Predicated region
        $region45: #{bottleneck_fwd.3} parent=43 // pred_check
          %p354 = pneg %p68
        $region46: #{bottleneck_fwd.3} parent=43 // pred_check_branch
          %356 = sbr.rel (%p354) target = $region48
        $region47: #{bottleneck_fwd.3} parent=43 // pred_region
          %357 = dma.done %s350, 2048
        $region48: #{bottleneck_fwd.3} parent=43 // pred_fallthru
          _
        // Predicated region
        $region49: #{bottleneck_fwd.3} parent=43 // pred_check
          %p358 = pneg %p94
        $region50: #{bottleneck_fwd.3} parent=43 // pred_check_branch
          %360 = sbr.rel (%p358) target = $region52
        $region51: #{bottleneck_fwd.3} parent=43 // pred_region
          %361 = dma.done [#allocation7], 32
        $region52: #{bottleneck_fwd.3} parent=43 // pred_fallthru
          _
        // Predicated region
        $region53: #{bottleneck_fwd.3} parent=43 // pred_check
          %p362 = pneg %p120
        $region54: #{bottleneck_fwd.3} parent=43 // pred_check_branch
          %364 = sbr.rel (%p362) target = $region56
        $region55: #{bottleneck_fwd.3} parent=43 // pred_region
          %365 = dma.done [#allocation7], 32
        $region56: #{bottleneck_fwd.3} parent=43 // pred_fallthru
          _
        // Predicated region
        $region57: #{bottleneck_fwd.3} parent=43 // pred_check
          %p366 = pneg %p148
        $region58: #{bottleneck_fwd.3} parent=43 // pred_check_branch
          %368 = sbr.rel (%p366) target = $region60
        $region59: #{bottleneck_fwd.3} parent=43 // pred_region
          %369 = dma.done [#allocation10], 2048
        $region60: #{bottleneck_fwd.3} parent=43 // pred_fallthru
          _
        // Predicated region
        $region61: #{bottleneck_fwd.3} parent=43 // pred_check
          %p370 = pneg %p174
        $region62: #{bottleneck_fwd.3} parent=43 // pred_check_branch
          %372 = sbr.rel (%p370) target = $region64
        $region63: #{bottleneck_fwd.3} parent=43 // pred_region
          %373 = dma.done [#allocation10], 16
        $region64: #{bottleneck_fwd.3} parent=43 // pred_fallthru
          _
        // Predicated region
        $region65: #{bottleneck_fwd.3} parent=43 // pred_check
          %p374 = pneg %p200
        $region66: #{bottleneck_fwd.3} parent=43 // pred_check_branch
          %376 = sbr.rel (%p374) target = $region68
        $region67: #{bottleneck_fwd.3} parent=43 // pred_region
          %377 = dma.done [#allocation13], 16
        $region68: #{bottleneck_fwd.3} parent=43 // pred_fallthru
          _
        %s378 = sand.u32 %s55, 1
        %s379 = scalar_lea.sflag [#allocation4], %s378
        %s380 = sand.u32 %s55, 1
        %s381 = smul.addr %s380, 128
        %s382 = scalar_lea.vmem [#allocation3], %s381
        %p383 = pneg %p68
        %p384 = pneg %p65
        %p385 = pneg %p94
        %p386 = pneg %p91
        %p387 = pneg %p120
        %p388 = pneg %p117
        %p389 = pneg %p148
        %p390 = pneg %p145
        %p391 = pneg %p174
        %p392 = pneg %p171
        %p393 = pneg %p200
        %p394 = pneg %p197
        %p395 = pneg %p228
        %p396 = pneg %p225
        %s397 = sand.u32 %s215, 1
        %s398 = scalar_lea.sflag [#allocation5], %s397
        %s399 = sand.u32 %s215, 1
        %s400 = smul.addr %s399, 64
        %s401 = scalar_lea.vmem [#allocation14], %s400
        %s402 = smul.u32 16, %s31
        %s403 = smul.u32 2, %s33
        %s404 = smul.u32 2, %s33
        %s405 = smul.u32 2, %s33
        %s406 = smul.u32 32, %s33
        %s407 = smul.u32 16, %s31
        %p409 = scmp.eq.s32.totalorder %s33, 0
        // Predicated region
        $region69: #{bottleneck_fwd.3} parent=43 // pred_check
          %p410 = pneg %p409
        $region70: #{bottleneck_fwd.3} parent=43 // pred_check_branch
          %412 = sbr.rel (%p410) target = $region72
        $region71: #{bottleneck_fwd.3} parent=43 // pred_region
          %413 = vst [vmem:[#allocation2] sm:$0xff] 0.0
          %414 = vst [vmem:[#allocation2 + $0x8] sm:$0xff] 0.0
          %415 = vst [vmem:[#allocation2 + $0x10] sm:$0xff] 0.0
          %416 = vst [vmem:[#allocation2 + $0x18] sm:$0xff] 0.0
          %417 = vst [vmem:[#allocation2 + $0x20] sm:$0xff] 0.0
          %418 = vst [vmem:[#allocation2 + $0x28] sm:$0xff] 0.0
          %419 = vst [vmem:[#allocation2 + $0x30] sm:$0xff] 0.0
          %420 = vst [vmem:[#allocation2 + $0x38] sm:$0xff] 0.0
          %421 = vst [vmem:[#allocation2 + $0x40] sm:$0xff] 0.0
          %422 = vst [vmem:[#allocation2 + $0x48] sm:$0xff] 0.0
          %423 = vst [vmem:[#allocation2 + $0x50] sm:$0xff] 0.0
          %424 = vst [vmem:[#allocation2 + $0x58] sm:$0xff] 0.0
          %425 = vst [vmem:[#allocation2 + $0x60] sm:$0xff] 0.0
          %426 = vst [vmem:[#allocation2 + $0x68] sm:$0xff] 0.0
          %427 = vst [vmem:[#allocation2 + $0x70] sm:$0xff] 0.0
          %428 = vst [vmem:[#allocation2 + $0x78] sm:$0xff] 0.0
        $region72: #{bottleneck_fwd.3} parent=43 // pred_fallthru
          _
        %v429 = vld [vmem:[%s353] sm:$0xff]
        %v430 = vld [vmem:[%s353 + $0x8] sm:$0xff]
        %v431 = vld [vmem:[%s353 + $0x10] sm:$0xff]
        %v432 = vld [vmem:[%s353 + $0x18] sm:$0xff]
        %v433 = vld [vmem:[%s353 + $0x20] sm:$0xff]
        %v434 = vld [vmem:[%s353 + $0x28] sm:$0xff]
        %v435 = vld [vmem:[%s353 + $0x30] sm:$0xff]
        %v436 = vld [vmem:[%s353 + $0x38] sm:$0xff]
        %v437 = vld [vmem:[%s353 + $0x40] sm:$0xff]
        %v438 = vld [vmem:[%s353 + $0x48] sm:$0xff]
        %v439 = vld [vmem:[%s353 + $0x50] sm:$0xff]
        %v440 = vld [vmem:[%s353 + $0x58] sm:$0xff]
        %v441 = vld [vmem:[%s353 + $0x60] sm:$0xff]
        %v442 = vld [vmem:[%s353 + $0x68] sm:$0xff]
        %v443 = vld [vmem:[%s353 + $0x70] sm:$0xff]
        %v444 = vld [vmem:[%s353 + $0x78] sm:$0xff]
        %v445 = vunpack.c.l.bf16 %v429
        %v446 = vunpack.c.h.bf16 %v429
        %v447 = vunpack.c.l.bf16 %v430
        %v448 = vunpack.c.h.bf16 %v430
        %v449 = vunpack.c.l.bf16 %v431
        %v450 = vunpack.c.h.bf16 %v431
        %v451 = vunpack.c.l.bf16 %v432
        %v452 = vunpack.c.h.bf16 %v432
        %v453 = vunpack.c.l.bf16 %v433
        %v454 = vunpack.c.h.bf16 %v433
        %v455 = vunpack.c.l.bf16 %v434
        %v456 = vunpack.c.h.bf16 %v434
        %v457 = vunpack.c.l.bf16 %v435
        %v458 = vunpack.c.h.bf16 %v435
        %v459 = vunpack.c.l.bf16 %v436
        %v460 = vunpack.c.h.bf16 %v436
        %v461 = vunpack.c.l.bf16 %v437
        %v462 = vunpack.c.h.bf16 %v437
        %v463 = vunpack.c.l.bf16 %v438
        %v464 = vunpack.c.h.bf16 %v438
        %v465 = vunpack.c.l.bf16 %v439
        %v466 = vunpack.c.h.bf16 %v439
        %v467 = vunpack.c.l.bf16 %v440
        %v468 = vunpack.c.h.bf16 %v440
        %v469 = vunpack.c.l.bf16 %v441
        %v470 = vunpack.c.h.bf16 %v441
        %v471 = vunpack.c.l.bf16 %v442
        %v472 = vunpack.c.h.bf16 %v442
        %v473 = vunpack.c.l.bf16 %v443
        %v474 = vunpack.c.h.bf16 %v443
        %v475 = vunpack.c.l.bf16 %v444
        %v476 = vunpack.c.h.bf16 %v444
        %v477 = vld [vmem:[#allocation6] sm:$0x3]
        %v479 = vlaneseq
        %v480 = vshrl.u32 %v479, 7
        %v481 = vsub.s32 0, %v480
        %v482 = vrot.slane %v477, %v481
        %v483 = vlaneseq
        %v484 = vshrl.u32 %v483, 7
        %v485 = vsub.s32 1, %v484
        %v486 = vrot.slane %v477, %v485
        %v489 = vmul.f32 %v445, %v482
        %v490 = vmul.f32 %v446, %v486
        %v491 = vmul.f32 %v447, %v482
        %v492 = vmul.f32 %v448, %v486
        %v493 = vmul.f32 %v449, %v482
        %v494 = vmul.f32 %v450, %v486
        %v495 = vmul.f32 %v451, %v482
        %v496 = vmul.f32 %v452, %v486
        %v497 = vmul.f32 %v453, %v482
        %v498 = vmul.f32 %v454, %v486
        %v499 = vmul.f32 %v455, %v482
        %v500 = vmul.f32 %v456, %v486
        %v501 = vmul.f32 %v457, %v482
        %v502 = vmul.f32 %v458, %v486
        %v503 = vmul.f32 %v459, %v482
        %v504 = vmul.f32 %v460, %v486
        %v505 = vmul.f32 %v461, %v482
        %v506 = vmul.f32 %v462, %v486
        %v507 = vmul.f32 %v463, %v482
        %v508 = vmul.f32 %v464, %v486
        %v509 = vmul.f32 %v465, %v482
        %v510 = vmul.f32 %v466, %v486
        %v511 = vmul.f32 %v467, %v482
        %v512 = vmul.f32 %v468, %v486
        %v513 = vmul.f32 %v469, %v482
        %v514 = vmul.f32 %v470, %v486
        %v515 = vmul.f32 %v471, %v482
        %v516 = vmul.f32 %v472, %v486
        %v517 = vmul.f32 %v473, %v482
        %v518 = vmul.f32 %v474, %v486
        %v519 = vmul.f32 %v475, %v482
        %v520 = vmul.f32 %v476, %v486
        %v521 = vld [vmem:[#allocation8] sm:$0x3]
        %v523 = vlaneseq
        %v524 = vshrl.u32 %v523, 7
        %v525 = vsub.s32 0, %v524
        %v526 = vrot.slane %v521, %v525
        %v527 = vlaneseq
        %v528 = vshrl.u32 %v527, 7
        %v529 = vsub.s32 1, %v528
        %v530 = vrot.slane %v521, %v529
        %v533 = vadd.f32 %v489, %v526
        %v534 = vadd.f32 %v490, %v530
        %v535 = vadd.f32 %v491, %v526
        %v536 = vadd.f32 %v492, %v530
        %v537 = vadd.f32 %v493, %v526
        %v538 = vadd.f32 %v494, %v530
        %v539 = vadd.f32 %v495, %v526
        %v540 = vadd.f32 %v496, %v530
        %v541 = vadd.f32 %v497, %v526
        %v542 = vadd.f32 %v498, %v530
        %v543 = vadd.f32 %v499, %v526
        %v544 = vadd.f32 %v500, %v530
        %v545 = vadd.f32 %v501, %v526
        %v546 = vadd.f32 %v502, %v530
        %v547 = vadd.f32 %v503, %v526
        %v548 = vadd.f32 %v504, %v530
        %v549 = vadd.f32 %v505, %v526
        %v550 = vadd.f32 %v506, %v530
        %v551 = vadd.f32 %v507, %v526
        %v552 = vadd.f32 %v508, %v530
        %v553 = vadd.f32 %v509, %v526
        %v554 = vadd.f32 %v510, %v530
        %v555 = vadd.f32 %v511, %v526
        %v556 = vadd.f32 %v512, %v530
        %v557 = vadd.f32 %v513, %v526
        %v558 = vadd.f32 %v514, %v530
        %v559 = vadd.f32 %v515, %v526
        %v560 = vadd.f32 %v516, %v530
        %v561 = vadd.f32 %v517, %v526
        %v562 = vadd.f32 %v518, %v530
        %v563 = vadd.f32 %v519, %v526
        %v564 = vadd.f32 %v520, %v530
        %v565 = vmax.f32 %v533, 0.0
        %v566 = vmax.f32 %v534, 0.0
        %v567 = vmax.f32 %v535, 0.0
        %v568 = vmax.f32 %v536, 0.0
        %v569 = vmax.f32 %v537, 0.0
        %v570 = vmax.f32 %v538, 0.0
        %v571 = vmax.f32 %v539, 0.0
        %v572 = vmax.f32 %v540, 0.0
        %v573 = vmax.f32 %v541, 0.0
        %v574 = vmax.f32 %v542, 0.0
        %v575 = vmax.f32 %v543, 0.0
        %v576 = vmax.f32 %v544, 0.0
        %v577 = vmax.f32 %v545, 0.0
        %v578 = vmax.f32 %v546, 0.0
        %v579 = vmax.f32 %v547, 0.0
        %v580 = vmax.f32 %v548, 0.0
        %v581 = vmax.f32 %v549, 0.0
        %v582 = vmax.f32 %v550, 0.0
        %v583 = vmax.f32 %v551, 0.0
        %v584 = vmax.f32 %v552, 0.0
        %v585 = vmax.f32 %v553, 0.0
        %v586 = vmax.f32 %v554, 0.0
        %v587 = vmax.f32 %v555, 0.0
        %v588 = vmax.f32 %v556, 0.0
        %v589 = vmax.f32 %v557, 0.0
        %v590 = vmax.f32 %v558, 0.0
        %v591 = vmax.f32 %v559, 0.0
        %v592 = vmax.f32 %v560, 0.0
        %v593 = vmax.f32 %v561, 0.0
        %v594 = vmax.f32 %v562, 0.0
        %v595 = vmax.f32 %v563, 0.0
        %v596 = vmax.f32 %v564, 0.0
        %v597 = vld [vmem:[#allocation2] sm:$0xff]
        %v598 = vld [vmem:[#allocation2 + $0x8] sm:$0xff]
        %v599 = vld [vmem:[#allocation2 + $0x10] sm:$0xff]
        %v600 = vld [vmem:[#allocation2 + $0x18] sm:$0xff]
        %v601 = vld [vmem:[#allocation2 + $0x20] sm:$0xff]
        %v602 = vld [vmem:[#allocation2 + $0x28] sm:$0xff]
        %v603 = vld [vmem:[#allocation2 + $0x30] sm:$0xff]
        %v604 = vld [vmem:[#allocation2 + $0x38] sm:$0xff]
        %v605 = vld [vmem:[#allocation2 + $0x40] sm:$0xff]
        %v606 = vld [vmem:[#allocation2 + $0x48] sm:$0xff]
        %v607 = vld [vmem:[#allocation2 + $0x50] sm:$0xff]
        %v608 = vld [vmem:[#allocation2 + $0x58] sm:$0xff]
        %v609 = vld [vmem:[#allocation2 + $0x60] sm:$0xff]
        %v610 = vld [vmem:[#allocation2 + $0x68] sm:$0xff]
        %v611 = vld [vmem:[#allocation2 + $0x70] sm:$0xff]
        %v612 = vld [vmem:[#allocation2 + $0x78] sm:$0xff]
        %v613 = vpack.c.bf16 %v567, %v565
        %v614 = vpack.c.bf16 %v568, %v566
        %v615 = vpack.c.bf16 %v571, %v569
        %v616 = vpack.c.bf16 %v572, %v570
        %v617 = vpack.c.bf16 %v575, %v573
        %v618 = vpack.c.bf16 %v576, %v574
        %v619 = vpack.c.bf16 %v579, %v577
        %v620 = vpack.c.bf16 %v580, %v578
        %v621 = vpack.c.bf16 %v583, %v581
        %v622 = vpack.c.bf16 %v584, %v582
        %v623 = vpack.c.bf16 %v587, %v585
        %v624 = vpack.c.bf16 %v588, %v586
        %v625 = vpack.c.bf16 %v591, %v589
        %v626 = vpack.c.bf16 %v592, %v590
        %v627 = vpack.c.bf16 %v595, %v593
        %v628 = vpack.c.bf16 %v596, %v594
        %v629 = vld [vmem:[#allocation9] sm:$0xf]
        %v630 = vld [vmem:[#allocation9 + $0x4] sm:$0xf]
        %v631 = vld [vmem:[#allocation9 + $0x8] sm:$0xf]
        %v632 = vld [vmem:[#allocation9 + $0xc] sm:$0xf]
        %v633 = vld [vmem:[#allocation9 + $0x10] sm:$0xf]
        %v634 = vld [vmem:[#allocation9 + $0x14] sm:$0xf]
        %v635 = vld [vmem:[#allocation9 + $0x18] sm:$0xf]
        %v636 = vld [vmem:[#allocation9 + $0x1c] sm:$0xf]
        %v637 = vld [vmem:[#allocation9 + $0x20] sm:$0xf]
        %v638 = vld [vmem:[#allocation9 + $0x24] sm:$0xf]
        %v639 = vld [vmem:[#allocation9 + $0x28] sm:$0xf]
        %v640 = vld [vmem:[#allocation9 + $0x2c] sm:$0xf]
        %v641 = vld [vmem:[#allocation9 + $0x30] sm:$0xf]
        %v642 = vld [vmem:[#allocation9 + $0x34] sm:$0xf]
        %v643 = vld [vmem:[#allocation9 + $0x38] sm:$0xf]
        %v644 = vld [vmem:[#allocation9 + $0x3c] sm:$0xf]
        %v645 = vld [vmem:[#allocation9 + $0x40] sm:$0xf]
        %v646 = vld [vmem:[#allocation9 + $0x44] sm:$0xf]
        %v647 = vld [vmem:[#allocation9 + $0x48] sm:$0xf]
        %v648 = vld [vmem:[#allocation9 + $0x4c] sm:$0xf]
        %v649 = vld [vmem:[#allocation9 + $0x50] sm:$0xf]
        %v650 = vld [vmem:[#allocation9 + $0x54] sm:$0xf]
        %v651 = vld [vmem:[#allocation9 + $0x58] sm:$0xf]
        %v652 = vld [vmem:[#allocation9 + $0x5c] sm:$0xf]
        %v653 = vld [vmem:[#allocation9 + $0x60] sm:$0xf]
        %v654 = vld [vmem:[#allocation9 + $0x64] sm:$0xf]
        %v655 = vld [vmem:[#allocation9 + $0x68] sm:$0xf]
        %v656 = vld [vmem:[#allocation9 + $0x6c] sm:$0xf]
        %v657 = vld [vmem:[#allocation9 + $0x70] sm:$0xf]
        %v658 = vld [vmem:[#allocation9 + $0x74] sm:$0xf]
        %v659 = vld [vmem:[#allocation9 + $0x78] sm:$0xf]
        %v660 = vld [vmem:[#allocation9 + $0x7c] sm:$0xf]
        %v693 = vunpack.c.l.b16 %v629
        %v694 = vunpack.c.l.b16 %v630
        %v695 = vunpack.c.l.b16 %v631
        %v696 = vunpack.c.l.b16 %v632
        %v697 = vunpack.c.l.b16 %v633
        %v698 = vunpack.c.l.b16 %v634
        %v699 = vunpack.c.l.b16 %v635
        %v700 = vunpack.c.l.b16 %v636
        %v701 = vunpack.c.l.b16 %v637
        %v702 = vunpack.c.l.b16 %v638
        %v703 = vunpack.c.l.b16 %v639
        %v704 = vunpack.c.l.b16 %v640
        %v705 = vunpack.c.l.b16 %v641
        %v706 = vunpack.c.l.b16 %v642
        %v707 = vunpack.c.l.b16 %v643
        %v708 = vunpack.c.l.b16 %v644
        %v709 = vunpack.c.l.b16 %v645
        %v710 = vunpack.c.l.b16 %v646
        %v711 = vunpack.c.l.b16 %v647
        %v712 = vunpack.c.l.b16 %v648
        %v713 = vunpack.c.l.b16 %v649
        %v714 = vunpack.c.l.b16 %v650
        %v715 = vunpack.c.l.b16 %v651
        %v716 = vunpack.c.l.b16 %v652
        %v717 = vunpack.c.l.b16 %v653
        %v718 = vunpack.c.l.b16 %v654
        %v719 = vunpack.c.l.b16 %v655
        %v720 = vunpack.c.l.b16 %v656
        %v721 = vunpack.c.l.b16 %v657
        %v722 = vunpack.c.l.b16 %v658
        %v723 = vunpack.c.l.b16 %v659
        %v724 = vunpack.c.l.b16 %v660
        %v725 = vpack.c.b16 %v694, %v693
        %v726 = vpack.c.b16 %v696, %v695
        %v727 = vpack.c.b16 %v698, %v697
        %v728 = vpack.c.b16 %v700, %v699
        %v729 = vpack.c.b16 %v702, %v701
        %v730 = vpack.c.b16 %v704, %v703
        %v731 = vpack.c.b16 %v706, %v705
        %v732 = vpack.c.b16 %v708, %v707
        %v733 = vpack.c.b16 %v710, %v709
        %v734 = vpack.c.b16 %v712, %v711
        %v735 = vpack.c.b16 %v714, %v713
        %v736 = vpack.c.b16 %v716, %v715
        %v737 = vpack.c.b16 %v718, %v717
        %v738 = vpack.c.b16 %v720, %v719
        %v739 = vpack.c.b16 %v722, %v721
        %v740 = vpack.c.b16 %v724, %v723
        %757 = vmatprep.subr.bf16.mxu0 0
        %758 = vmatpush1.bf16.msra.mxu0 %v725
        %759 = vmatprep.subr.bf16.mxu0 0
        %760 = vmatpush1.bf16.msra.mxu0 %v726
        %761 = vmatprep.subr.bf16.mxu0 0
        %762 = vmatpush1.bf16.msra.mxu0 %v727
        %763 = vmatprep.subr.bf16.mxu0 0
        %764 = vmatpush1.bf16.msra.mxu0 %v728
        %765 = vmatprep.subr.bf16.mxu0 0
        %766 = vmatpush1.bf16.msra.mxu0 %v729
        %767 = vmatprep.subr.bf16.mxu0 0
        %768 = vmatpush1.bf16.msra.mxu0 %v730
        %769 = vmatprep.subr.bf16.mxu0 0
        %770 = vmatpush1.bf16.msra.mxu0 %v731
        %771 = vmatprep.subr.bf16.mxu0 0
        %772 = vmatpush1.bf16.msra.mxu0 %v732
        %773 = vmatprep.subr.bf16.mxu0 0
        %774 = vmatpush1.bf16.msra.mxu0 %v733
        %775 = vmatprep.subr.bf16.mxu0 0
        %776 = vmatpush1.bf16.msra.mxu0 %v734
        %777 = vmatprep.subr.bf16.mxu0 0
        %778 = vmatpush1.bf16.msra.mxu0 %v735
        %779 = vmatprep.subr.bf16.mxu0 0
        %780 = vmatpush1.bf16.msra.mxu0 %v736
        %781 = vmatprep.subr.bf16.mxu0 0
        %782 = vmatpush1.bf16.msra.mxu0 %v737
        %783 = vmatprep.subr.bf16.mxu0 0
        %784 = vmatpush1.bf16.msra.mxu0 %v738
        %785 = vmatprep.subr.bf16.mxu0 0
        %786 = vmatpush1.bf16.msra.mxu0 %v739
        %787 = vmatprep.subr.bf16.mxu0 0
        %788 = vmatpush1.bf16.msra.mxu0 %v740
        %789 = vmatprep.mubr.bf16.mxu0 %v614
        %790 = vmatmul.mubr.bf16.gmra.mrb[0].mxu0 %v613
        %v791 = vpop.f32.mrb[0].mxu0
        %v792 = vadd.f32 0.0, %v791
        %v793 = vpop.f32.mrb[0].mxu0
        %v794 = vpop.f32.mrb[0].mxu0
        %v795 = vadd.f32 0.0, %v794
        %v796 = vpop.f32.mrb[0].mxu0
        %797 = vmatprep.mubr.bf16.mxu0 %v616
        %798 = vmatmul.mubr.bf16.gmra.mrb[0].mxu0 %v615
        %v799 = vpop.f32.mrb[0].mxu0
        %v800 = vadd.f32 0.0, %v799
        %v801 = vpop.f32.mrb[0].mxu0
        %v802 = vpop.f32.mrb[0].mxu0
        %v803 = vadd.f32 0.0, %v802
        %v804 = vpop.f32.mrb[0].mxu0
        %805 = vmatprep.mubr.bf16.mxu0 %v618
        %806 = vmatmul.mubr.bf16.gmra.mrb[0].mxu0 %v617
        %v807 = vpop.f32.mrb[0].mxu0
        %v808 = vadd.f32 0.0, %v807
        %v809 = vpop.f32.mrb[0].mxu0
        %v810 = vpop.f32.mrb[0].mxu0
        %v811 = vadd.f32 0.0, %v810
        %v812 = vpop.f32.mrb[0].mxu0
        %813 = vmatprep.mubr.bf16.mxu0 %v620
        %814 = vmatmul.mubr.bf16.gmra.mrb[0].mxu0 %v619
        %v815 = vpop.f32.mrb[0].mxu0
        %v816 = vadd.f32 0.0, %v815
        %v817 = vpop.f32.mrb[0].mxu0
        %v818 = vpop.f32.mrb[0].mxu0
        %v819 = vadd.f32 0.0, %v818
        %v820 = vpop.f32.mrb[0].mxu0
        %821 = vmatprep.mubr.bf16.mxu0 %v622
        %822 = vmatmul.mubr.bf16.gmra.mrb[0].mxu0 %v621
        %v823 = vpop.f32.mrb[0].mxu0
        %v824 = vadd.f32 0.0, %v823
        %v825 = vpop.f32.mrb[0].mxu0
        %v826 = vpop.f32.mrb[0].mxu0
        %v827 = vadd.f32 0.0, %v826
        %v828 = vpop.f32.mrb[0].mxu0
        %829 = vmatprep.mubr.bf16.mxu0 %v624
        %830 = vmatmul.mubr.bf16.gmra.mrb[0].mxu0 %v623
        %v831 = vpop.f32.mrb[0].mxu0
        %v832 = vadd.f32 0.0, %v831
        %v833 = vpop.f32.mrb[0].mxu0
        %v834 = vpop.f32.mrb[0].mxu0
        %v835 = vadd.f32 0.0, %v834
        %v836 = vpop.f32.mrb[0].mxu0
        %837 = vmatprep.mubr.bf16.mxu0 %v626
        %838 = vmatmul.mubr.bf16.gmra.mrb[0].mxu0 %v625
        %v839 = vpop.f32.mrb[0].mxu0
        %v840 = vadd.f32 0.0, %v839
        %v841 = vpop.f32.mrb[0].mxu0
        %v842 = vpop.f32.mrb[0].mxu0
        %v843 = vadd.f32 0.0, %v842
        %v844 = vpop.f32.mrb[0].mxu0
        %845 = vmatprep.mubr.bf16.mxu0 %v628
        %846 = vmatmul.mubr.bf16.gmra.mrb[0].mxu0 %v627
        %v847 = vpop.f32.mrb[0].mxu0
        %v848 = vadd.f32 0.0, %v847
        %v849 = vpop.f32.mrb[0].mxu0
        %v850 = vpop.f32.mrb[0].mxu0
        %v851 = vadd.f32 0.0, %v850
        %v852 = vpop.f32.mrb[0].mxu0
        %853 = vdwg.mxu0
        %v854 = vadd.f32 %v597, %v792
        %v855 = vadd.f32 %v598, %v795
        %v856 = vadd.f32 %v599, %v800
        %v857 = vadd.f32 %v600, %v803
        %v858 = vadd.f32 %v601, %v808
        %v859 = vadd.f32 %v602, %v811
        %v860 = vadd.f32 %v603, %v816
        %v861 = vadd.f32 %v604, %v819
        %v862 = vadd.f32 %v605, %v824
        %v863 = vadd.f32 %v606, %v827
        %v864 = vadd.f32 %v607, %v832
        %v865 = vadd.f32 %v608, %v835
        %v866 = vadd.f32 %v609, %v840
        %v867 = vadd.f32 %v610, %v843
        %v868 = vadd.f32 %v611, %v848
        %v869 = vadd.f32 %v612, %v851
        %870 = vst [vmem:[#allocation2] sm:$0xff] %v854
        %871 = vst [vmem:[#allocation2 + $0x8] sm:$0xff] %v855
        %872 = vst [vmem:[#allocation2 + $0x10] sm:$0xff] %v856
        %873 = vst [vmem:[#allocation2 + $0x18] sm:$0xff] %v857
        %874 = vst [vmem:[#allocation2 + $0x20] sm:$0xff] %v858
        %875 = vst [vmem:[#allocation2 + $0x28] sm:$0xff] %v859
        %876 = vst [vmem:[#allocation2 + $0x30] sm:$0xff] %v860
        %877 = vst [vmem:[#allocation2 + $0x38] sm:$0xff] %v861
        %878 = vst [vmem:[#allocation2 + $0x40] sm:$0xff] %v862
        %879 = vst [vmem:[#allocation2 + $0x48] sm:$0xff] %v863
        %880 = vst [vmem:[#allocation2 + $0x50] sm:$0xff] %v864
        %881 = vst [vmem:[#allocation2 + $0x58] sm:$0xff] %v865
        %882 = vst [vmem:[#allocation2 + $0x60] sm:$0xff] %v866
        %883 = vst [vmem:[#allocation2 + $0x68] sm:$0xff] %v867
        %884 = vst [vmem:[#allocation2 + $0x70] sm:$0xff] %v868
        %885 = vst [vmem:[#allocation2 + $0x78] sm:$0xff] %v869
        // Predicated region
        $region73: #{bottleneck_fwd.3} parent=43 // pred_check
          %p886 = pneg %p409
        $region74: #{bottleneck_fwd.3} parent=43 // pred_check_branch
          %888 = sbr.rel (%p886) target = $region76
        $region75: #{bottleneck_fwd.3} parent=43 // pred_region
          %v889 = vld [vmem:[#allocation2] sm:$0xff]
          %v890 = vld [vmem:[#allocation2 + $0x8] sm:$0xff]
          %v891 = vld [vmem:[#allocation2 + $0x10] sm:$0xff]
          %v892 = vld [vmem:[#allocation2 + $0x18] sm:$0xff]
          %v893 = vld [vmem:[#allocation2 + $0x20] sm:$0xff]
          %v894 = vld [vmem:[#allocation2 + $0x28] sm:$0xff]
          %v895 = vld [vmem:[#allocation2 + $0x30] sm:$0xff]
          %v896 = vld [vmem:[#allocation2 + $0x38] sm:$0xff]
          %v897 = vld [vmem:[#allocation2 + $0x40] sm:$0xff]
          %v898 = vld [vmem:[#allocation2 + $0x48] sm:$0xff]
          %v899 = vld [vmem:[#allocation2 + $0x50] sm:$0xff]
          %v900 = vld [vmem:[#allocation2 + $0x58] sm:$0xff]
          %v901 = vld [vmem:[#allocation2 + $0x60] sm:$0xff]
          %v902 = vld [vmem:[#allocation2 + $0x68] sm:$0xff]
          %v903 = vld [vmem:[#allocation2 + $0x70] sm:$0xff]
          %v904 = vld [vmem:[#allocation2 + $0x78] sm:$0xff]
          %v905 = vld [vmem:[#allocation11] sm:$0x1]
          %v907 = vlaneseq
          %v908 = vshrl.u32 %v907, 7
          %v909 = vsub.s32 0, %v908
          %v910 = vrot.slane %v905, %v909
          %v912 = vmul.f32 %v889, %v910
          %v913 = vmul.f32 %v890, %v910
          %v914 = vmul.f32 %v891, %v910
          %v915 = vmul.f32 %v892, %v910
          %v916 = vmul.f32 %v893, %v910
          %v917 = vmul.f32 %v894, %v910
          %v918 = vmul.f32 %v895, %v910
          %v919 = vmul.f32 %v896, %v910
          %v920 = vmul.f32 %v897, %v910
          %v921 = vmul.f32 %v898, %v910
          %v922 = vmul.f32 %v899, %v910
          %v923 = vmul.f32 %v900, %v910
          %v924 = vmul.f32 %v901, %v910
          %v925 = vmul.f32 %v902, %v910
          %v926 = vmul.f32 %v903, %v910
          %v927 = vmul.f32 %v904, %v910
          %v928 = vld [vmem:[#allocation12] sm:$0x1]
          %v930 = vlaneseq
          %v931 = vshrl.u32 %v930, 7
          %v932 = vsub.s32 0, %v931
          %v933 = vrot.slane %v928, %v932
          %v935 = vadd.f32 %v912, %v933
          %v936 = vadd.f32 %v913, %v933
          %v937 = vadd.f32 %v914, %v933
          %v938 = vadd.f32 %v915, %v933
          %v939 = vadd.f32 %v916, %v933
          %v940 = vadd.f32 %v917, %v933
          %v941 = vadd.f32 %v918, %v933
          %v942 = vadd.f32 %v919, %v933
          %v943 = vadd.f32 %v920, %v933
          %v944 = vadd.f32 %v921, %v933
          %v945 = vadd.f32 %v922, %v933
          %v946 = vadd.f32 %v923, %v933
          %v947 = vadd.f32 %v924, %v933
          %v948 = vadd.f32 %v925, %v933
          %v949 = vadd.f32 %v926, %v933
          %v950 = vadd.f32 %v927, %v933
          %v951 = vmax.f32 %v935, 0.0
          %v952 = vmax.f32 %v936, 0.0
          %v953 = vmax.f32 %v937, 0.0
          %v954 = vmax.f32 %v938, 0.0
          %v955 = vmax.f32 %v939, 0.0
          %v956 = vmax.f32 %v940, 0.0
          %v957 = vmax.f32 %v941, 0.0
          %v958 = vmax.f32 %v942, 0.0
          %v959 = vmax.f32 %v943, 0.0
          %v960 = vmax.f32 %v944, 0.0
          %v961 = vmax.f32 %v945, 0.0
          %v962 = vmax.f32 %v946, 0.0
          %v963 = vmax.f32 %v947, 0.0
          %v964 = vmax.f32 %v948, 0.0
          %v965 = vmax.f32 %v949, 0.0
          %v966 = vmax.f32 %v950, 0.0
          %v967 = vpack.c.bf16 %v952, %v951
          %v968 = vpack.c.bf16 %v954, %v953
          %v969 = vpack.c.bf16 %v956, %v955
          %v970 = vpack.c.bf16 %v958, %v957
          %v971 = vpack.c.bf16 %v960, %v959
          %v972 = vpack.c.bf16 %v962, %v961
          %v973 = vpack.c.bf16 %v964, %v963
          %v974 = vpack.c.bf16 %v966, %v965
          %v983 = vunpack.c.l.b16 %v967
          %v984 = vunpack.c.h.b16 %v967
          %v985 = vunpack.c.l.b16 %v968
          %v986 = vunpack.c.h.b16 %v968
          %v987 = vunpack.c.l.b16 %v969
          %v988 = vunpack.c.h.b16 %v969
          %v989 = vunpack.c.l.b16 %v970
          %v990 = vunpack.c.h.b16 %v970
          %v991 = vunpack.c.l.b16 %v971
          %v992 = vunpack.c.h.b16 %v971
          %v993 = vunpack.c.l.b16 %v972
          %v994 = vunpack.c.h.b16 %v972
          %v995 = vunpack.c.l.b16 %v973
          %v996 = vunpack.c.h.b16 %v973
          %v997 = vunpack.c.l.b16 %v974
          %v998 = vunpack.c.h.b16 %v974
          %v999 = vpack.c.b16 %v983, %v983
          %v1000 = vpack.c.b16 %v984, %v984
          %v1001 = vpack.c.b16 %v985, %v985
          %v1002 = vpack.c.b16 %v986, %v986
          %v1003 = vpack.c.b16 %v987, %v987
          %v1004 = vpack.c.b16 %v988, %v988
          %v1005 = vpack.c.b16 %v989, %v989
          %v1006 = vpack.c.b16 %v990, %v990
          %v1007 = vpack.c.b16 %v991, %v991
          %v1008 = vpack.c.b16 %v992, %v992
          %v1009 = vpack.c.b16 %v993, %v993
          %v1010 = vpack.c.b16 %v994, %v994
          %v1011 = vpack.c.b16 %v995, %v995
          %v1012 = vpack.c.b16 %v996, %v996
          %v1013 = vpack.c.b16 %v997, %v997
          %v1014 = vpack.c.b16 %v998, %v998
          %1031 = vst [vmem:[%s401] sm:$0xf] %v999
          %1032 = vst [vmem:[%s401 + $0x4] sm:$0xf] %v1000
          %1033 = vst [vmem:[%s401 + $0x8] sm:$0xf] %v1001
          %1034 = vst [vmem:[%s401 + $0xc] sm:$0xf] %v1002
          %1035 = vst [vmem:[%s401 + $0x10] sm:$0xf] %v1003
          %1036 = vst [vmem:[%s401 + $0x14] sm:$0xf] %v1004
          %1037 = vst [vmem:[%s401 + $0x18] sm:$0xf] %v1005
          %1038 = vst [vmem:[%s401 + $0x1c] sm:$0xf] %v1006
          %1039 = vst [vmem:[%s401 + $0x20] sm:$0xf] %v1007
          %1040 = vst [vmem:[%s401 + $0x24] sm:$0xf] %v1008
          %1041 = vst [vmem:[%s401 + $0x28] sm:$0xf] %v1009
          %1042 = vst [vmem:[%s401 + $0x2c] sm:$0xf] %v1010
          %1043 = vst [vmem:[%s401 + $0x30] sm:$0xf] %v1011
          %1044 = vst [vmem:[%s401 + $0x34] sm:$0xf] %v1012
          %1045 = vst [vmem:[%s401 + $0x38] sm:$0xf] %v1013
          %1046 = vst [vmem:[%s401 + $0x3c] sm:$0xf] %v1014
        $region76: #{bottleneck_fwd.3} parent=43 // pred_fallthru
          _
        %s1047 = sand.u32 %s215, 1
        %s1048 = scalar_lea.sflag [#allocation5], %s1047
        %s1049 = sand.u32 %s215, 1
        %s1050 = smul.addr %s1049, 64
        %s1051 = scalar_lea.vmem [#allocation14], %s1050
        // Predicated region
        $region77: #{bottleneck_fwd.3} parent=43 // pred_check
          %p1052 = pneg %p225
        $region78: #{bottleneck_fwd.3} parent=43 // pred_check_branch
          %1054 = sbr.rel (%p1052) target = $region80
        $region79: #{bottleneck_fwd.3} parent=43 // pred_region
          %s1055 = smul.u32 16, %s31
          %s1057 = ssub.s32 1024, 1024
          %1058 = vsyncadd %s1048, %s1057
          %s1059 = sadd.s32 %s32, %s1055
          %s1060 = smul.addr %s1059, 64
          %s1061 = scalar_lea.hbm %s6, %s1060
          %s1062 = sshll.u32 %s1051, 4
          %s1063 = int_to_ptr.vmem [resolvable:$true] %s1062
          %1068 = dma.vmem_to_hbm [thread:$0]  %s1063, 1024, %s1061, %s1048, 64, 64, 4
        $region80: #{bottleneck_fwd.3} parent=43 // pred_fallthru
          _
      $region44: #{bottleneck_fwd.3} parent=5 // pred_fallthru
        _
      %p1069 = scmp.le.s32.totalorder 2, %s21
      // Predicated region
      $region81: #{bottleneck_fwd.3} parent=5 // pred_check
        %p1070 = pneg %p1069
      $region82: #{bottleneck_fwd.3} parent=5 // pred_check_branch
        %1072 = sbr.rel (%p1070) target = $region84
      $region83: #{bottleneck_fwd.3} parent=5 // pred_region
        %s1073 = ssub.s32 %s21, 2
        // Predicated region
        $region85: #{bottleneck_fwd.3} parent=83 // pred_check
          %p1074 = pneg %p231
        $region86: #{bottleneck_fwd.3} parent=83 // pred_check_branch
          %1076 = sbr.rel (%p1074) target = $region88
        $region87: #{bottleneck_fwd.3} parent=83 // pred_region
          %s1077 = sand.u32 %s216, 1
          %s1078 = scalar_lea.sflag [#allocation5], %s1077
          %s1079 = sand.u32 %s216, 1
          %s1080 = smul.addr %s1079, 64
          %s1081 = scalar_lea.vmem [#allocation14], %s1080
          %1082 = dma.done %s1078, 1024
        $region88: #{bottleneck_fwd.3} parent=83 // pred_fallthru
          _
      $region84: #{bottleneck_fwd.3} parent=5 // pred_fallthru
        _
    $region6: #{bottleneck_fwd.3} parent=1 // loop_footer
      %s25 = sadd.s32 1, %s21
    $region7: #{bottleneck_fwd.3} parent=1 // loop_footer_branch
      %20 = sbr.rel target = $region3
    $region8: #{bottleneck_fwd.3} parent=1 // loop_exit
      _
    %1083 = vsyncpa [#allocation4], 1
    %s1084 = scalar_lea.sflag [#allocation4], 1
    %1085 = vsyncpa %s1084, 1
    %1086 = vsyncpa [#allocation7], 1
    %1087 = vsyncpa [#allocation10], 1
    %1088 = vsyncpa [#allocation13], 1
    %1089 = vsyncpa [#allocation5], 1
    %s1090 = scalar_lea.sflag [#allocation5], 1
    %1091 = vsyncpa %s1090, 1

// kernel: bottleneck_fwd.5
$region0: #{bottleneck_fwd.5}
  #allocation0 [shape = 'u32[]', space=smem, size = 0x4, offset = 0x4, fixed_abs, tag = 'smem constant byte address 0x4 - core index']
  #allocation1 [shape = 'u32[144,128]{1,0:T(1,128)}', space=vmem, size = 0x12000, scoped, tag = 'internal scratch']
  %s0 = inlined_call_operand.hbm [shape: bf16[512,128], index: 0, kind: input, shape index: {}]
  %s1 = inlined_call_operand.hbm [shape: bf16[128,256], index: 1, kind: input, shape index: {}]
  %s2 = inlined_call_operand.hbm [shape: f32[1,256], index: 2, kind: input, shape index: {}]
  %s3 = inlined_call_operand.hbm [shape: f32[512,256], index: 3, kind: input, shape index: {}]
  %s4 = inlined_call_operand.hbm [shape: f32[512,256], index: 4, kind: output, shape index: {}]
  %s5 = sld [smem:[#allocation0]]
  $region69: #{bottleneck_fwd.5} parent=0
    _
  %s7 = ssub.s32 1, %s5
  %s8 = scalar_select 0, %s7, %s5
  $region1: #{bottleneck_fwd.5} parent=0
    #allocation2 [shape = 'u8[65536]{0}', space=vmem, size = 0x10000, scoped, tag = 'input window, operand 0']
    #allocation3 [shape = 's32[2]{0}', space=sflag, size = 0x8, scoped, tag = 'scoped memory for bottleneck_fwd.5']
    #allocation4 [shape = 's32[2]{0}', space=sflag, size = 0x8, scoped, tag = 'scoped memory for bottleneck_fwd.5']
    #allocation5 [shape = 'u8[65536]{0}', space=vmem, size = 0x10000, scoped, tag = 'input window, operand 1']
    #allocation6 [shape = 's32[2]{0}', space=sflag, size = 0x8, scoped, tag = 'scoped memory for bottleneck_fwd.5']
    #allocation7 [shape = 'u8[1024]{0}', space=vmem, size = 0x400, scoped, tag = 'input window, operand 2']
    #allocation8 [shape = 'u8[131072]{0}', space=vmem, size = 0x20000, scoped, tag = 'input window, operand 3']
    #allocation9 [shape = 's32[2]{0}', space=sflag, size = 0x8, scoped, tag = 'scoped memory for bottleneck_fwd.5']
    #allocation10 [shape = 'u8[131072]{0}', space=vmem, size = 0x20000, scoped, tag = 'output window, operand 0']
    %9 = vsyncpa [#allocation3], 0
    %s10 = scalar_lea.sflag [#allocation3], 1
    %11 = vsyncpa %s10, 0
    %12 = vsyncpa [#allocation6], 0
    %s13 = scalar_lea.sflag [#allocation6], 1
    %14 = vsyncpa %s13, 0
    %15 = vsyncpa [#allocation9], 0
    %s16 = scalar_lea.sflag [#allocation9], 1
    %17 = vsyncpa %s16, 0
    %18 = vsyncpa [#allocation4], 0
    %s19 = scalar_lea.sflag [#allocation4], 1
    %20 = vsyncpa %s19, 0
    loop: start=0, step=1, limit=10
    $region2: #{bottleneck_fwd.5} parent=1 // loop_pre_header
      _
    $region3: #{bottleneck_fwd.5} parent=1 // loop_header
      %s22 = sphi 0, %s26
      %p23 = scmp.ge.s32.totalorder %s22, 10
      %s29 = sphi 0, %s48
      %s30 = sphi 0, %s44
      %s31 = sphi 0, %s40
      %s32 = sphi 0, %s29
      %s33 = sphi 0, %s30
      %s34 = sphi 0, %s31
      %s35 = sphi 0, %s32
      %s36 = sphi 0, %s33
      %s37 = sphi 0, %s34
      %s53 = sphi 0, %s55
      %s56 = sphi 0, %s53
      %s57 = sphi 0, %s56
      %s73 = sphi 0, %s57
      %s81 = sphi 0, %s83
      %s84 = sphi 0, %s81
      %s85 = sphi 0, %s84
      %s101 = sphi 0, %s85
      %s107 = sphi 0, %s109
      %s110 = sphi 0, %s107
      %s111 = sphi 0, %s110
      %s127 = sphi 0, %s111
      %s135 = sphi 0, %s137
      %s138 = sphi 0, %s135
      %s139 = sphi 0, %s138
      %s155 = sphi 0, %s139
      %s163 = sphi 0, %s165
      %s166 = sphi 0, %s163
      %s167 = sphi 0, %s166
      %s183 = sphi 0, %s167
    $region4: #{bottleneck_fwd.5} parent=1 // loop_header_branch
      %25 = sbr.rel (%p23) target = $region8
    $region5: #{bottleneck_fwd.5} parent=1 // loop_body
      %s27 = ssub.s32 %s22, 1
      %s28 = ssub.s32 %s22, 2
      %s38 = sadd.s32 1, %s31
      %p39 = scmp.ge.s32.totalorder %s38, 1
      %s40 = scalar_select %p39, 0, %s38
      %s41 = sadd.s32 1, %s30
      %s42 = scalar_select %p39, %s41, %s30
      %p43 = scmp.ge.s32.totalorder %s42, 2
      %s44 = scalar_select %p43, 0, %s42
      %s45 = sadd.s32 1, %s29
      %s46 = scalar_select %p43, %s45, %s29
      %p47 = scmp.ge.s32.totalorder %s46, 4
      %s48 = scalar_select %p47, 0, %s46
      %s49 = ssub.s32 %s29, %s48
      %s50 = ssub.s32 %s31, %s40
      %s51 = sor.u32 %s49, %s50
      %p52 = scmp.eq.s32.totalorder %s51, 0
      %s54 = sadd.s32 %s53, 1
      %s55 = scalar_select %p52, %s53, %s54
      %p58 = pneg %p52
      %p59 = scmp.eq.s32.totalorder %s22, 7
      %p60 = por %p58, %p59
      %p61 = scmp.ne.s32.totalorder %s53, %s56
      %p62 = scmp.eq.s32.totalorder %s22, 0
      %p63 = por %p61, %p62
      %p64 = scmp.ne.s32.totalorder %s53, %s56
      %p65 = scmp.eq.s32.totalorder %s27, 7
      %p66 = por %p64, %p65
      %p67 = scmp.ne.s32.totalorder %s56, %s57
      %p68 = scmp.eq.s32.totalorder %s27, 0
      %p69 = por %p67, %p68
      %p70 = scmp.ne.s32.totalorder %s56, %s57
      %p71 = scmp.eq.s32.totalorder %s28, 7
      %p72 = por %p70, %p71
      %p74 = scmp.ne.s32.totalorder %s57, %s73
      %p75 = scmp.eq.s32.totalorder %s28, 0
      %p76 = por %p74, %p75
      %s77 = ssub.s32 %s31, %s40
      %s78 = ssub.s32 %s30, %s44
      %s79 = sor.u32 %s77, %s78
      %p80 = scmp.eq.s32.totalorder %s79, 0
      %s82 = sadd.s32 %s81, 1
      %s83 = scalar_select %p80, %s81, %s82
      %p86 = pneg %p80
      %p87 = scmp.eq.s32.totalorder %s22, 7
      %p88 = por %p86, %p87
      %p89 = scmp.ne.s32.totalorder %s81, %s84
      %p90 = scmp.eq.s32.totalorder %s22, 0
      %p91 = por %p89, %p90
      %p92 = scmp.ne.s32.totalorder %s81, %s84
      %p93 = scmp.eq.s32.totalorder %s27, 7
      %p94 = por %p92, %p93
      %p95 = scmp.ne.s32.totalorder %s84, %s85
      %p96 = scmp.eq.s32.totalorder %s27, 0
      %p97 = por %p95, %p96
      %p98 = scmp.ne.s32.totalorder %s84, %s85
      %p99 = scmp.eq.s32.totalorder %s28, 7
      %p100 = por %p98, %p99
      %p102 = scmp.ne.s32.totalorder %s85, %s101
      %p103 = scmp.eq.s32.totalorder %s28, 0
      %p104 = por %p102, %p103
      %s105 = ssub.s32 %s30, %s44
      %p106 = scmp.eq.s32.totalorder %s105, 0
      %s108 = sadd.s32 %s107, 1
      %s109 = scalar_select %p106, %s107, %s108
      %p112 = pneg %p106
      %p113 = scmp.eq.s32.totalorder %s22, 7
      %p114 = por %p112, %p113
      %p115 = scmp.ne.s32.totalorder %s107, %s110
      %p116 = scmp.eq.s32.totalorder %s22, 0
      %p117 = por %p115, %p116
      %p118 = scmp.ne.s32.totalorder %s107, %s110
      %p119 = scmp.eq.s32.totalorder %s27, 7
      %p120 = por %p118, %p119
      %p121 = scmp.ne.s32.totalorder %s110, %s111
      %p122 = scmp.eq.s32.totalorder %s27, 0
      %p123 = por %p121, %p122
      %p124 = scmp.ne.s32.totalorder %s110, %s111
      %p125 = scmp.eq.s32.totalorder %s28, 7
      %p126 = por %p124, %p125
      %p128 = scmp.ne.s32.totalorder %s111, %s127
      %p129 = scmp.eq.s32.totalorder %s28, 0
      %p130 = por %p128, %p129
      %s131 = ssub.s32 %s29, %s48
      %s132 = ssub.s32 %s30, %s44
      %s133 = sor.u32 %s131, %s132
      %p134 = scmp.eq.s32.totalorder %s133, 0
      %s136 = sadd.s32 %s135, 1
      %s137 = scalar_select %p134, %s135, %s136
      %p140 = pneg %p134
      %p141 = scmp.eq.s32.totalorder %s22, 7
      %p142 = por %p140, %p141
      %p143 = scmp.ne.s32.totalorder %s135, %s138
      %p144 = scmp.eq.s32.totalorder %s22, 0
      %p145 = por %p143, %p144
      %p146 = scmp.ne.s32.totalorder %s135, %s138
      %p147 = scmp.eq.s32.totalorder %s27, 7
      %p148 = por %p146, %p147
      %p149 = scmp.ne.s32.totalorder %s138, %s139
      %p150 = scmp.eq.s32.totalorder %s27, 0
      %p151 = por %p149, %p150
      %p152 = scmp.ne.s32.totalorder %s138, %s139
      %p153 = scmp.eq.s32.totalorder %s28, 7
      %p154 = por %p152, %p153
      %p156 = scmp.ne.s32.totalorder %s139, %s155
      %p157 = scmp.eq.s32.totalorder %s28, 0
      %p158 = por %p156, %p157
      %s159 = ssub.s32 %s29, %s48
      %s160 = ssub.s32 %s30, %s44
      %s161 = sor.u32 %s159, %s160
      %p162 = scmp.eq.s32.totalorder %s161, 0
      %s164 = sadd.s32 %s163, 1
      %s165 = scalar_select %p162, %s163, %s164
      %p168 = pneg %p162
      %p169 = scmp.eq.s32.totalorder %s22, 7
      %p170 = por %p168, %p169
      %p171 = scmp.ne.s32.totalorder %s163, %s166
      %p172 = scmp.eq.s32.totalorder %s22, 0
      %p173 = por %p171, %p172
      %p174 = scmp.ne.s32.totalorder %s163, %s166
      %p175 = scmp.eq.s32.totalorder %s27, 7
      %p176 = por %p174, %p175
      %p177 = scmp.ne.s32.totalorder %s166, %s167
      %p178 = scmp.eq.s32.totalorder %s27, 0
      %p179 = por %p177, %p178
      %p180 = scmp.ne.s32.totalorder %s166, %s167
      %p181 = scmp.eq.s32.totalorder %s28, 7
      %p182 = por %p180, %p181
      %p184 = scmp.ne.s32.totalorder %s167, %s183
      %p185 = scmp.eq.s32.totalorder %s28, 0
      %p186 = por %p184, %p185
      %p187 = scmp.le.s32.totalorder 1, %s22
      %p188 = scmp.lt.s32.totalorder %s22, 9
      %p189 = pnand %p187, %p188
      %p190 = pneg %p189
      // Predicated region
      $region9: #{bottleneck_fwd.5} parent=5 // pred_check
        _
      $region10: #{bottleneck_fwd.5} parent=5 // pred_check_branch
        %192 = sbr.rel (%p189) target = $region12
      $region11: #{bottleneck_fwd.5} parent=5 // pred_region
        %s193 = ssub.s32 %s22, 1
      $region12: #{bottleneck_fwd.5} parent=5 // pred_fallthru
        _
      %p194 = scmp.lt.s32.totalorder %s22, 8
      // Predicated region
      $region13: #{bottleneck_fwd.5} parent=5 // pred_check
        %p195 = pneg %p194
      $region14: #{bottleneck_fwd.5} parent=5 // pred_check_branch
        %197 = sbr.rel (%p195) target = $region16
      $region15: #{bottleneck_fwd.5} parent=5 // pred_region
        // Predicated region
        $region17: #{bottleneck_fwd.5} parent=15 // pred_check
          %p198 = pneg %p63
        $region18: #{bottleneck_fwd.5} parent=15 // pred_check_branch
          %200 = sbr.rel (%p198) target = $region20
        $region19: #{bottleneck_fwd.5} parent=15 // pred_region
          %s201 = sand.u32 %s53, 1
          %s202 = scalar_lea.sflag [#allocation3], %s201
          %s203 = sand.u32 %s53, 1
          %s204 = smul.addr %s203, 64
          %s205 = scalar_lea.vmem [#allocation2], %s204
          %s206 = smul.u32 16, %s29
          %s208 = ssub.s32 1024, 1024
          %209 = vsyncadd %s202, %s208
          %s210 = sadd.s32 %s31, %s206
          %s211 = smul.addr %s210, 64
          %s212 = scalar_lea.hbm %s0, %s211
          %s213 = sshll.u32 %s205, 4
          %s214 = int_to_ptr.vmem [resolvable:$true] %s213
          %219 = dma.hbm_to_vmem [thread:$0]  %s212, 1024, %s214, %s202, 64, 64, 4
        $region20: #{bottleneck_fwd.5} parent=15 // pred_fallthru
          _
        // Predicated region
        $region21: #{bottleneck_fwd.5} parent=15 // pred_check
          %p220 = pneg %p91
        $region22: #{bottleneck_fwd.5} parent=15 // pred_check_branch
          %222 = sbr.rel (%p220) target = $region24
        $region23: #{bottleneck_fwd.5} parent=15 // pred_region
          %s223 = sand.u32 %s22, 1
          %s224 = scalar_lea.sflag [#allocation6], %s223
          %s225 = sand.u32 %s81, 1
          %s226 = smul.addr %s225, 64
          %s227 = scalar_lea.vmem [#allocation5], %s226
          %s228 = smul.u32 16, %s31
          %s230 = ssub.s32 1024, 1024
          %231 = vsyncadd %s224, %s230
          %s232 = smul.addr %s228, 2
          %s233 = sadd.s32 %s30, %s232
          %s234 = smul.addr %s233, 64
          %s235 = scalar_lea.hbm %s1, %s234
          %s236 = sshll.u32 %s227, 4
          %s237 = int_to_ptr.vmem [resolvable:$true] %s236
          %242 = dma.hbm_to_vmem [thread:$0]  %s235, 1024, %s237, %s224, 128, 64, 4
        $region24: #{bottleneck_fwd.5} parent=15 // pred_fallthru
          _
        // Predicated region
        $region25: #{bottleneck_fwd.5} parent=15 // pred_check
          %p243 = pneg %p117
        $region26: #{bottleneck_fwd.5} parent=15 // pred_check_branch
          %245 = sbr.rel (%p243) target = $region28
        $region27: #{bottleneck_fwd.5} parent=15 // pred_region
          %s246 = sand.u32 %s22, 1
          %s247 = scalar_lea.sflag [#allocation6], %s246
          %s248 = sand.u32 %s107, 1
          %s249 = scalar_lea.vmem [#allocation7], %s248
          %s251 = ssub.s32 16, 16
          %252 = vsyncadd %s247, %s251
          %s253 = smul.addr %s30, 16
          %s254 = scalar_lea.hbm %s2, %s253
          %s256 = sshll.u32 %s249, 4
          %s257 = int_to_ptr.vmem [resolvable:$true] %s256
          %259 = dma.hbm_to_vmem [thread:$0]  %s254, 16, %s257, %s247
        $region28: #{bottleneck_fwd.5} parent=15 // pred_fallthru
          _
        // Predicated region
        $region29: #{bottleneck_fwd.5} parent=15 // pred_check
          %p260 = pneg %p145
        $region30: #{bottleneck_fwd.5} parent=15 // pred_check_branch
          %262 = sbr.rel (%p260) target = $region32
        $region31: #{bottleneck_fwd.5} parent=15 // pred_region
          %s263 = sand.u32 %s135, 1
          %s264 = scalar_lea.sflag [#allocation9], %s263
          %s265 = sand.u32 %s135, 1
          %s266 = smul.addr %s265, 128
          %s267 = scalar_lea.vmem [#allocation8], %s266
          %s268 = smul.u32 16, %s29
          %s270 = ssub.s32 2048, 2048
          %271 = vsyncadd %s264, %s270
          %s272 = smul.addr %s268, 2
          %s273 = sadd.s32 %s30, %s272
          %s274 = smul.addr %s273, 128
          %s275 = scalar_lea.hbm %s3, %s274
          %s276 = sshll.u32 %s267, 4
          %s277 = int_to_ptr.vmem [resolvable:$true] %s276
          %282 = dma.hbm_to_vmem [thread:$0]  %s275, 2048, %s277, %s264, 256, 128, 8
        $region32: #{bottleneck_fwd.5} parent=15 // pred_fallthru
          _
      $region16: #{bottleneck_fwd.5} parent=5 // pred_fallthru
        _
      %p283 = scmp.le.s32.totalorder 1, %s22
      %p284 = scmp.lt.s32.totalorder %s22, 9
      %p285 = pnand %p283, %p284
      %p286 = pneg %p285
      // Predicated region
      $region33: #{bottleneck_fwd.5} parent=5 // pred_check
        _
      $region34: #{bottleneck_fwd.5} parent=5 // pred_check_branch
        %288 = sbr.rel (%p285) target = $region36
      $region35: #{bottleneck_fwd.5} parent=5 // pred_region
        %s289 = ssub.s32 %s22, 1
        %s290 = sand.u32 %s56, 1
        %s291 = scalar_lea.sflag [#allocation3], %s290
        %s292 = sand.u32 %s56, 1
        %s293 = smul.addr %s292, 64
        %s294 = scalar_lea.vmem [#allocation2], %s293
        // Predicated region
        $region37: #{bottleneck_fwd.5} parent=35 // pred_check
          %p295 = pneg %p69
        $region38: #{bottleneck_fwd.5} parent=35 // pred_check_branch
          %297 = sbr.rel (%p295) target = $region40
        $region39: #{bottleneck_fwd.5} parent=35 // pred_region
          %298 = dma.done %s291, 1024
        $region40: #{bottleneck_fwd.5} parent=35 // pred_fallthru
          _
        %s299 = sand.u32 %s27, 1
        %s300 = scalar_lea.sflag [#allocation6], %s299
        %s301 = sand.u32 %s84, 1
        %s302 = smul.addr %s301, 64
        %s303 = scalar_lea.vmem [#allocation5], %s302
        // Predicated region
        $region41: #{bottleneck_fwd.5} parent=35 // pred_check
          %p304 = pneg %p97
        $region42: #{bottleneck_fwd.5} parent=35 // pred_check_branch
          %306 = sbr.rel (%p304) target = $region44
        $region43: #{bottleneck_fwd.5} parent=35 // pred_region
          %307 = dma.done %s300, 1024
        $region44: #{bottleneck_fwd.5} parent=35 // pred_fallthru
          _
        %s308 = sand.u32 %s27, 1
        %s309 = scalar_lea.sflag [#allocation6], %s308
        %s310 = sand.u32 %s110, 1
        %s311 = scalar_lea.vmem [#allocation7], %s310
        // Predicated region
        $region45: #{bottleneck_fwd.5} parent=35 // pred_check
          %p312 = pneg %p123
        $region46: #{bottleneck_fwd.5} parent=35 // pred_check_branch
          %314 = sbr.rel (%p312) target = $region48
        $region47: #{bottleneck_fwd.5} parent=35 // pred_region
          %315 = dma.done %s309, 16
        $region48: #{bottleneck_fwd.5} parent=35 // pred_fallthru
          _
        %s316 = sand.u32 %s138, 1
        %s317 = scalar_lea.sflag [#allocation9], %s316
        %s318 = sand.u32 %s138, 1
        %s319 = smul.addr %s318, 128
        %s320 = scalar_lea.vmem [#allocation8], %s319
        // Predicated region
        $region49: #{bottleneck_fwd.5} parent=35 // pred_check
          %p321 = pneg %p151
        $region50: #{bottleneck_fwd.5} parent=35 // pred_check_branch
          %323 = sbr.rel (%p321) target = $region52
        $region51: #{bottleneck_fwd.5} parent=35 // pred_region
          %324 = dma.done %s317, 2048
        $region52: #{bottleneck_fwd.5} parent=35 // pred_fallthru
          _
        %s325 = sand.u32 %s56, 1
        %s326 = scalar_lea.sflag [#allocation3], %s325
        %s327 = sand.u32 %s56, 1
        %s328 = smul.addr %s327, 64
        %s329 = scalar_lea.vmem [#allocation2], %s328
        %p330 = pneg %p69
        %p331 = pneg %p66
        %s332 = sand.u32 %s27, 1
        %s333 = scalar_lea.sflag [#allocation6], %s332
        %s334 = sand.u32 %s84, 1
        %s335 = smul.addr %s334, 64
        %s336 = scalar_lea.vmem [#allocation5], %s335
        %p337 = pneg %p97
        %p338 = pneg %p94
        %s339 = sand.u32 %s27, 1
        %s340 = scalar_lea.sflag [#allocation6], %s339
        %s341 = sand.u32 %s110, 1
        %s342 = scalar_lea.vmem [#allocation7], %s341
        %p343 = pneg %p123
        %p344 = pneg %p120
        %s345 = sand.u32 %s138, 1
        %s346 = scalar_lea.sflag [#allocation9], %s345
        %s347 = sand.u32 %s138, 1
        %s348 = smul.addr %s347, 128
        %s349 = scalar_lea.vmem [#allocation8], %s348
        %p350 = pneg %p151
        %p351 = pneg %p148
        %p352 = pneg %p179
        %p353 = pneg %p176
        %s354 = sand.u32 %s166, 1
        %s355 = scalar_lea.sflag [#allocation4], %s354
        %s356 = sand.u32 %s166, 1
        %s357 = smul.addr %s356, 128
        %s358 = scalar_lea.vmem [#allocation10], %s357
        %s359 = smul.u32 16, %s32
        %s360 = smul.u32 16, %s34
        %s361 = smul.u32 16, %s32
        %s362 = smul.u32 16, %s32
        %p364 = scmp.eq.s32.totalorder %s34, 0
        // Predicated region
        $region53: #{bottleneck_fwd.5} parent=35 // pred_check
          %p365 = pneg %p364
        $region54: #{bottleneck_fwd.5} parent=35 // pred_check_branch
          %367 = sbr.rel (%p365) target = $region56
        $region55: #{bottleneck_fwd.5} parent=35 // pred_region
          %v368 = vld [vmem:[%s311] sm:$0x1]
          %v369 = vld [vmem:[%s320] sm:$0xff]
          %v370 = vld [vmem:[%s320 + $0x8] sm:$0xff]
          %v371 = vld [vmem:[%s320 + $0x10] sm:$0xff]
          %v372 = vld [vmem:[%s320 + $0x18] sm:$0xff]
          %v373 = vld [vmem:[%s320 + $0x20] sm:$0xff]
          %v374 = vld [vmem:[%s320 + $0x28] sm:$0xff]
          %v375 = vld [vmem:[%s320 + $0x30] sm:$0xff]
          %v376 = vld [vmem:[%s320 + $0x38] sm:$0xff]
          %v377 = vld [vmem:[%s320 + $0x40] sm:$0xff]
          %v378 = vld [vmem:[%s320 + $0x48] sm:$0xff]
          %v379 = vld [vmem:[%s320 + $0x50] sm:$0xff]
          %v380 = vld [vmem:[%s320 + $0x58] sm:$0xff]
          %v381 = vld [vmem:[%s320 + $0x60] sm:$0xff]
          %v382 = vld [vmem:[%s320 + $0x68] sm:$0xff]
          %v383 = vld [vmem:[%s320 + $0x70] sm:$0xff]
          %v384 = vld [vmem:[%s320 + $0x78] sm:$0xff]
          %v386 = vlaneseq
          %v387 = vshrl.u32 %v386, 7
          %v388 = vsub.s32 0, %v387
          %v389 = vrot.slane %v368, %v388
          %v391 = vadd.f32 %v389, %v369
          %v392 = vadd.f32 %v389, %v370
          %v393 = vadd.f32 %v389, %v371
          %v394 = vadd.f32 %v389, %v372
          %v395 = vadd.f32 %v389, %v373
          %v396 = vadd.f32 %v389, %v374
          %v397 = vadd.f32 %v389, %v375
          %v398 = vadd.f32 %v389, %v376
          %v399 = vadd.f32 %v389, %v377
          %v400 = vadd.f32 %v389, %v378
          %v401 = vadd.f32 %v389, %v379
          %v402 = vadd.f32 %v389, %v380
          %v403 = vadd.f32 %v389, %v381
          %v404 = vadd.f32 %v389, %v382
          %v405 = vadd.f32 %v389, %v383
          %v406 = vadd.f32 %v389, %v384
          %407 = vst [vmem:[%s358] sm:$0xff] %v391
          %408 = vst [vmem:[%s358 + $0x8] sm:$0xff] %v392
          %409 = vst [vmem:[%s358 + $0x10] sm:$0xff] %v393
          %410 = vst [vmem:[%s358 + $0x18] sm:$0xff] %v394
          %411 = vst [vmem:[%s358 + $0x20] sm:$0xff] %v395
          %412 = vst [vmem:[%s358 + $0x28] sm:$0xff] %v396
          %413 = vst [vmem:[%s358 + $0x30] sm:$0xff] %v397
          %414 = vst [vmem:[%s358 + $0x38] sm:$0xff] %v398
          %415 = vst [vmem:[%s358 + $0x40] sm:$0xff] %v399
          %416 = vst [vmem:[%s358 + $0x48] sm:$0xff] %v400
          %417 = vst [vmem:[%s358 + $0x50] sm:$0xff] %v401
          %418 = vst [vmem:[%s358 + $0x58] sm:$0xff] %v402
          %419 = vst [vmem:[%s358 + $0x60] sm:$0xff] %v403
          %420 = vst [vmem:[%s358 + $0x68] sm:$0xff] %v404
          %421 = vst [vmem:[%s358 + $0x70] sm:$0xff] %v405
          %422 = vst [vmem:[%s358 + $0x78] sm:$0xff] %v406
        $region56: #{bottleneck_fwd.5} parent=35 // pred_fallthru
          _
        %v423 = vld [vmem:[%s358] sm:$0xff]
        %v424 = vld [vmem:[%s358 + $0x8] sm:$0xff]
        %v425 = vld [vmem:[%s358 + $0x10] sm:$0xff]
        %v426 = vld [vmem:[%s358 + $0x18] sm:$0xff]
        %v427 = vld [vmem:[%s358 + $0x20] sm:$0xff]
        %v428 = vld [vmem:[%s358 + $0x28] sm:$0xff]
        %v429 = vld [vmem:[%s358 + $0x30] sm:$0xff]
        %v430 = vld [vmem:[%s358 + $0x38] sm:$0xff]
        %v431 = vld [vmem:[%s358 + $0x40] sm:$0xff]
        %v432 = vld [vmem:[%s358 + $0x48] sm:$0xff]
        %v433 = vld [vmem:[%s358 + $0x50] sm:$0xff]
        %v434 = vld [vmem:[%s358 + $0x58] sm:$0xff]
        %v435 = vld [vmem:[%s358 + $0x60] sm:$0xff]
        %v436 = vld [vmem:[%s358 + $0x68] sm:$0xff]
        %v437 = vld [vmem:[%s358 + $0x70] sm:$0xff]
        %v438 = vld [vmem:[%s358 + $0x78] sm:$0xff]
        %v439 = vld [vmem:[%s294] sm:$0xf]
        %v440 = vld [vmem:[%s294 + $0x4] sm:$0xf]
        %v441 = vld [vmem:[%s294 + $0x8] sm:$0xf]
        %v442 = vld [vmem:[%s294 + $0xc] sm:$0xf]
        %v443 = vld [vmem:[%s294 + $0x10] sm:$0xf]
        %v444 = vld [vmem:[%s294 + $0x14] sm:$0xf]
        %v445 = vld [vmem:[%s294 + $0x18] sm:$0xf]
        %v446 = vld [vmem:[%s294 + $0x1c] sm:$0xf]
        %v447 = vld [vmem:[%s294 + $0x20] sm:$0xf]
        %v448 = vld [vmem:[%s294 + $0x24] sm:$0xf]
        %v449 = vld [vmem:[%s294 + $0x28] sm:$0xf]
        %v450 = vld [vmem:[%s294 + $0x2c] sm:$0xf]
        %v451 = vld [vmem:[%s294 + $0x30] sm:$0xf]
        %v452 = vld [vmem:[%s294 + $0x34] sm:$0xf]
        %v453 = vld [vmem:[%s294 + $0x38] sm:$0xf]
        %v454 = vld [vmem:[%s294 + $0x3c] sm:$0xf]
        %v455 = vld [vmem:[%s303] sm:$0xf]
        %v456 = vld [vmem:[%s303 + $0x4] sm:$0xf]
        %v457 = vld [vmem:[%s303 + $0x8] sm:$0xf]
        %v458 = vld [vmem:[%s303 + $0xc] sm:$0xf]
        %v459 = vld [vmem:[%s303 + $0x10] sm:$0xf]
        %v460 = vld [vmem:[%s303 + $0x14] sm:$0xf]
        %v461 = vld [vmem:[%s303 + $0x18] sm:$0xf]
        %v462 = vld [vmem:[%s303 + $0x1c] sm:$0xf]
        %v463 = vld [vmem:[%s303 + $0x20] sm:$0xf]
        %v464 = vld [vmem:[%s303 + $0x24] sm:$0xf]
        %v465 = vld [vmem:[%s303 + $0x28] sm:$0xf]
        %v466 = vld [vmem:[%s303 + $0x2c] sm:$0xf]
        %v467 = vld [vmem:[%s303 + $0x30] sm:$0xf]
        %v468 = vld [vmem:[%s303 + $0x34] sm:$0xf]
        %v469 = vld [vmem:[%s303 + $0x38] sm:$0xf]
        %v470 = vld [vmem:[%s303 + $0x3c] sm:$0xf]
        %v487 = vunpack.c.l.b16 %v439
        %v488 = vunpack.c.l.b16 %v440
        %v489 = vunpack.c.l.b16 %v441
        %v490 = vunpack.c.l.b16 %v442
        %v491 = vunpack.c.l.b16 %v443
        %v492 = vunpack.c.l.b16 %v444
        %v493 = vunpack.c.l.b16 %v445
        %v494 = vunpack.c.l.b16 %v446
        %v495 = vunpack.c.l.b16 %v447
        %v496 = vunpack.c.l.b16 %v448
        %v497 = vunpack.c.l.b16 %v449
        %v498 = vunpack.c.l.b16 %v450
        %v499 = vunpack.c.l.b16 %v451
        %v500 = vunpack.c.l.b16 %v452
        %v501 = vunpack.c.l.b16 %v453
        %v502 = vunpack.c.l.b16 %v454
        %v503 = vpack.c.b16 %v488, %v487
        %v504 = vpack.c.b16 %v490, %v489
        %v505 = vpack.c.b16 %v492, %v491
        %v506 = vpack.c.b16 %v494, %v493
        %v507 = vpack.c.b16 %v496, %v495
        %v508 = vpack.c.b16 %v498, %v497
        %v509 = vpack.c.b16 %v500, %v499
        %v510 = vpack.c.b16 %v502, %v501
        %v535 = vunpack.c.l.b16 %v455
        %v536 = vunpack.c.l.b16 %v456
        %v537 = vunpack.c.l.b16 %v457
        %v538 = vunpack.c.l.b16 %v458
        %v539 = vunpack.c.l.b16 %v459
        %v540 = vunpack.c.l.b16 %v460
        %v541 = vunpack.c.l.b16 %v461
        %v542 = vunpack.c.l.b16 %v462
        %v543 = vunpack.c.l.b16 %v463
        %v544 = vunpack.c.l.b16 %v464
        %v545 = vunpack.c.l.b16 %v465
        %v546 = vunpack.c.l.b16 %v466
        %v547 = vunpack.c.l.b16 %v467
        %v548 = vunpack.c.l.b16 %v468
        %v549 = vunpack.c.l.b16 %v469
        %v550 = vunpack.c.l.b16 %v470
        %v551 = vpack.c.b16 %v536, %v535
        %v552 = vpack.c.b16 %v538, %v537
        %v553 = vpack.c.b16 %v540, %v539
        %v554 = vpack.c.b16 %v542, %v541
        %v555 = vpack.c.b16 %v544, %v543
        %v556 = vpack.c.b16 %v546, %v545
        %v557 = vpack.c.b16 %v548, %v547
        %v558 = vpack.c.b16 %v550, %v549
        %567 = vmatprep.subr.bf16.mxu0 0
        %568 = vmatpush1.bf16.msra.mxu0 %v551
        %569 = vmatprep.subr.bf16.mxu0 0
        %570 = vmatpush1.bf16.msra.mxu0 %v552
        %571 = vmatprep.subr.bf16.mxu0 0
        %572 = vmatpush1.bf16.msra.mxu0 %v553
        %573 = vmatprep.subr.bf16.mxu0 0
        %574 = vmatpush1.bf16.msra.mxu0 %v554
        %575 = vmatprep.subr.bf16.mxu0 0
        %576 = vmatpush1.bf16.msra.mxu0 %v555
        %577 = vmatprep.subr.bf16.mxu0 0
        %578 = vmatpush1.bf16.msra.mxu0 %v556
        %579 = vmatprep.subr.bf16.mxu0 0
        %580 = vmatpush1.bf16.msra.mxu0 %v557
        %581 = vmatprep.subr.bf16.mxu0 0
        %582 = vmatpush1.bf16.msra.mxu0 %v558
        %583 = vmatprep.subr.bf16.mxu0 0
        %584 = vmatpush1.bf16.msra.mxu0 0
        %585 = vmatprep.subr.bf16.mxu0 0
        %586 = vmatpush1.bf16.msra.mxu0 0
        %587 = vmatprep.subr.bf16.mxu0 0
        %588 = vmatpush1.bf16.msra.mxu0 0
        %589 = vmatprep.subr.bf16.mxu0 0
        %590 = vmatpush1.bf16.msra.mxu0 0
        %591 = vmatprep.subr.bf16.mxu0 0
        %592 = vmatpush1.bf16.msra.mxu0 0
        %593 = vmatprep.subr.bf16.mxu0 0
        %594 = vmatpush1.bf16.msra.mxu0 0
        %595 = vmatprep.subr.bf16.mxu0 0
        %596 = vmatpush1.bf16.msra.mxu0 0
        %597 = vmatprep.subr.bf16.mxu0 0
        %598 = vmatpush1.bf16.msra.mxu0 0
        %599 = vmatprep.mubr.bf16.mxu0 0
        %600 = vmatmul.mubr.bf16.gmra.mrb[0].mxu0 %v503
        %v601 = vpop.f32.mrb[0].mxu0
        %v602 = vadd.f32 0.0, %v601
        %v603 = vpop.f32.mrb[0].mxu0
        %v604 = vpop.f32.mrb[0].mxu0
        %v605 = vadd.f32 0.0, %v604
        %v606 = vpop.f32.mrb[0].mxu0
        %607 = vmatprep.mubr.bf16.mxu0 0
        %608 = vmatmul.mubr.bf16.gmra.mrb[0].mxu0 %v504
        %v609 = vpop.f32.mrb[0].mxu0
        %v610 = vadd.f32 0.0, %v609
        %v611 = vpop.f32.mrb[0].mxu0
        %v612 = vpop.f32.mrb[0].mxu0
        %v613 = vadd.f32 0.0, %v612
        %v614 = vpop.f32.mrb[0].mxu0
        %615 = vmatprep.mubr.bf16.mxu0 0
        %616 = vmatmul.mubr.bf16.gmra.mrb[0].mxu0 %v505
        %v617 = vpop.f32.mrb[0].mxu0
        %v618 = vadd.f32 0.0, %v617
        %v619 = vpop.f32.mrb[0].mxu0
        %v620 = vpop.f32.mrb[0].mxu0
        %v621 = vadd.f32 0.0, %v620
        %v622 = vpop.f32.mrb[0].mxu0
        %623 = vmatprep.mubr.bf16.mxu0 0
        %624 = vmatmul.mubr.bf16.gmra.mrb[0].mxu0 %v506
        %v625 = vpop.f32.mrb[0].mxu0
        %v626 = vadd.f32 0.0, %v625
        %v627 = vpop.f32.mrb[0].mxu0
        %v628 = vpop.f32.mrb[0].mxu0
        %v629 = vadd.f32 0.0, %v628
        %v630 = vpop.f32.mrb[0].mxu0
        %631 = vmatprep.mubr.bf16.mxu0 0
        %632 = vmatmul.mubr.bf16.gmra.mrb[0].mxu0 %v507
        %v633 = vpop.f32.mrb[0].mxu0
        %v634 = vadd.f32 0.0, %v633
        %v635 = vpop.f32.mrb[0].mxu0
        %v636 = vpop.f32.mrb[0].mxu0
        %v637 = vadd.f32 0.0, %v636
        %v638 = vpop.f32.mrb[0].mxu0
        %639 = vmatprep.mubr.bf16.mxu0 0
        %640 = vmatmul.mubr.bf16.gmra.mrb[0].mxu0 %v508
        %v641 = vpop.f32.mrb[0].mxu0
        %v642 = vadd.f32 0.0, %v641
        %v643 = vpop.f32.mrb[0].mxu0
        %v644 = vpop.f32.mrb[0].mxu0
        %v645 = vadd.f32 0.0, %v644
        %v646 = vpop.f32.mrb[0].mxu0
        %647 = vmatprep.mubr.bf16.mxu0 0
        %648 = vmatmul.mubr.bf16.gmra.mrb[0].mxu0 %v509
        %v649 = vpop.f32.mrb[0].mxu0
        %v650 = vadd.f32 0.0, %v649
        %v651 = vpop.f32.mrb[0].mxu0
        %v652 = vpop.f32.mrb[0].mxu0
        %v653 = vadd.f32 0.0, %v652
        %v654 = vpop.f32.mrb[0].mxu0
        %655 = vmatprep.mubr.bf16.mxu0 0
        %656 = vmatmul.mubr.bf16.gmra.mrb[0].mxu0 %v510
        %v657 = vpop.f32.mrb[0].mxu0
        %v658 = vadd.f32 0.0, %v657
        %v659 = vpop.f32.mrb[0].mxu0
        %v660 = vpop.f32.mrb[0].mxu0
        %v661 = vadd.f32 0.0, %v660
        %v662 = vpop.f32.mrb[0].mxu0
        %663 = vdwg.mxu0
        %v664 = vadd.f32 %v423, %v602
        %v665 = vadd.f32 %v424, %v605
        %v666 = vadd.f32 %v425, %v610
        %v667 = vadd.f32 %v426, %v613
        %v668 = vadd.f32 %v427, %v618
        %v669 = vadd.f32 %v428, %v621
        %v670 = vadd.f32 %v429, %v626
        %v671 = vadd.f32 %v430, %v629
        %v672 = vadd.f32 %v431, %v634
        %v673 = vadd.f32 %v432, %v637
        %v674 = vadd.f32 %v433, %v642
        %v675 = vadd.f32 %v434, %v645
        %v676 = vadd.f32 %v435, %v650
        %v677 = vadd.f32 %v436, %v653
        %v678 = vadd.f32 %v437, %v658
        %v679 = vadd.f32 %v438, %v661
        %680 = vst [vmem:[%s358] sm:$0xff] %v664
        %681 = vst [vmem:[%s358 + $0x8] sm:$0xff] %v665
        %682 = vst [vmem:[%s358 + $0x10] sm:$0xff] %v666
        %683 = vst [vmem:[%s358 + $0x18] sm:$0xff] %v667
        %684 = vst [vmem:[%s358 + $0x20] sm:$0xff] %v668
        %685 = vst [vmem:[%s358 + $0x28] sm:$0xff] %v669
        %686 = vst [vmem:[%s358 + $0x30] sm:$0xff] %v670
        %687 = vst [vmem:[%s358 + $0x38] sm:$0xff] %v671
        %688 = vst [vmem:[%s358 + $0x40] sm:$0xff] %v672
        %689 = vst [vmem:[%s358 + $0x48] sm:$0xff] %v673
        %690 = vst [vmem:[%s358 + $0x50] sm:$0xff] %v674
        %691 = vst [vmem:[%s358 + $0x58] sm:$0xff] %v675
        %692 = vst [vmem:[%s358 + $0x60] sm:$0xff] %v676
        %693 = vst [vmem:[%s358 + $0x68] sm:$0xff] %v677
        %694 = vst [vmem:[%s358 + $0x70] sm:$0xff] %v678
        %695 = vst [vmem:[%s358 + $0x78] sm:$0xff] %v679
        %s696 = sand.u32 %s166, 1
        %s697 = scalar_lea.sflag [#allocation4], %s696
        %s698 = sand.u32 %s166, 1
        %s699 = smul.addr %s698, 128
        %s700 = scalar_lea.vmem [#allocation10], %s699
        // Predicated region
        $region57: #{bottleneck_fwd.5} parent=35 // pred_check
          %p701 = pneg %p176
        $region58: #{bottleneck_fwd.5} parent=35 // pred_check_branch
          %703 = sbr.rel (%p701) target = $region60
        $region59: #{bottleneck_fwd.5} parent=35 // pred_region
          %s704 = smul.u32 16, %s32
          %s706 = ssub.s32 2048, 2048
          %707 = vsyncadd %s697, %s706
          %s708 = smul.addr %s704, 2
          %s709 = sadd.s32 %s33, %s708
          %s710 = smul.addr %s709, 128
          %s711 = scalar_lea.hbm %s4, %s710
          %s712 = sshll.u32 %s700, 4
          %s713 = int_to_ptr.vmem [resolvable:$true] %s712
          %718 = dma.vmem_to_hbm [thread:$0]  %s713, 2048, %s711, %s697, 128, 256, 8
        $region60: #{bottleneck_fwd.5} parent=35 // pred_fallthru
          _
      $region36: #{bottleneck_fwd.5} parent=5 // pred_fallthru
        _
      %p719 = scmp.le.s32.totalorder 2, %s22
      // Predicated region
      $region61: #{bottleneck_fwd.5} parent=5 // pred_check
        %p720 = pneg %p719
      $region62: #{bottleneck_fwd.5} parent=5 // pred_check_branch
        %722 = sbr.rel (%p720) target = $region64
      $region63: #{bottleneck_fwd.5} parent=5 // pred_region
        %s723 = ssub.s32 %s22, 2
        // Predicated region
        $region65: #{bottleneck_fwd.5} parent=63 // pred_check
          %p724 = pneg %p182
        $region66: #{bottleneck_fwd.5} parent=63 // pred_check_branch
          %726 = sbr.rel (%p724) target = $region68
        $region67: #{bottleneck_fwd.5} parent=63 // pred_region
          %s727 = sand.u32 %s167, 1
          %s728 = scalar_lea.sflag [#allocation4], %s727
          %s729 = sand.u32 %s167, 1
          %s730 = smul.addr %s729, 128
          %s731 = scalar_lea.vmem [#allocation10], %s730
          %732 = dma.done %s728, 2048
        $region68: #{bottleneck_fwd.5} parent=63 // pred_fallthru
          _
      $region64: #{bottleneck_fwd.5} parent=5 // pred_fallthru
        _
    $region6: #{bottleneck_fwd.5} parent=1 // loop_footer
      %s26 = sadd.s32 1, %s22
    $region7: #{bottleneck_fwd.5} parent=1 // loop_footer_branch
      %21 = sbr.rel target = $region3
    $region8: #{bottleneck_fwd.5} parent=1 // loop_exit
      _
    %733 = vsyncpa [#allocation3], 1
    %s734 = scalar_lea.sflag [#allocation3], 1
    %735 = vsyncpa %s734, 1
    %736 = vsyncpa [#allocation6], 1
    %s737 = scalar_lea.sflag [#allocation6], 1
    %738 = vsyncpa %s737, 1
    %739 = vsyncpa [#allocation9], 1
    %s740 = scalar_lea.sflag [#allocation9], 1
    %741 = vsyncpa %s740, 1
    %742 = vsyncpa [#allocation4], 1
    %s743 = scalar_lea.sflag [#allocation4], 1
    %744 = vsyncpa %s743, 1

// kernel: bottleneck_fwd.4
$region0: #{bottleneck_fwd.4}
  #allocation0 [shape = 'u32[]', space=smem, size = 0x4, offset = 0x4, fixed_abs, tag = 'smem constant byte address 0x4 - core index']
  #allocation1 [shape = 'u32[144,128]{1,0:T(1,128)}', space=vmem, size = 0x12000, scoped, tag = 'internal scratch']
  #allocation2 [shape = 'f32[328,128]{1,0:T(8,128)}', space=vmem, size = 0x29000, scoped, tag = 'scratch operand']
  %s0 = inlined_call_operand.hbm [shape: f32[2,368,128], index: 0, kind: input, shape index: {}]
  %s1 = inlined_call_operand.hbm [shape: bf16[9,128,128], index: 1, kind: input, shape index: {}]
  %s2 = inlined_call_operand.hbm [shape: f32[1,128], index: 2, kind: input, shape index: {}]
  %s3 = inlined_call_operand.hbm [shape: f32[1,128], index: 3, kind: input, shape index: {}]
  %s4 = inlined_call_operand.hbm [shape: bf16[2,328,128], index: 4, kind: output, shape index: {}]
  %s5 = sld [smem:[#allocation0]]
  $region65: #{bottleneck_fwd.4} parent=0
    _
  %s7 = ssub.s32 1, %s5
  %s8 = scalar_select 0, %s7, %s5
  $region1: #{bottleneck_fwd.4} parent=0
    #allocation3 [shape = 'u8[376832]{0}', space=vmem, size = 0x5c000, scoped, tag = 'input window, operand 0']
    #allocation4 [shape = 's32[2]{0}', space=sflag, size = 0x8, scoped, tag = 'scoped memory for bottleneck_fwd.4']
    #allocation5 [shape = 's32[2]{0}', space=sflag, size = 0x8, scoped, tag = 'scoped memory for bottleneck_fwd.4']
    #allocation6 [shape = 'u8[294912]{0}', space=vmem, size = 0x48000, scoped, tag = 'input window, operand 1, single buffered']
    #allocation7 [shape = 's32[1]{0}', space=sflag, size = 0x4, scoped, tag = 'scoped memory for bottleneck_fwd.4']
    #allocation8 [shape = 'u8[512]{0}', space=vmem, size = 0x400, scoped, tag = 'input window, operand 2, single buffered']
    #allocation9 [shape = 'u8[512]{0}', space=vmem, size = 0x400, scoped, tag = 'input window, operand 3, single buffered']
    #allocation10 [shape = 's32[1]{0}', space=sflag, size = 0x4, scoped, tag = 'scoped memory for bottleneck_fwd.4']
    #allocation11 [shape = 'u8[167936]{0}', space=vmem, size = 0x29000, scoped, tag = 'output window, operand 0']
    %9 = vsyncpa [#allocation4], 0
    %s10 = scalar_lea.sflag [#allocation4], 1
    %11 = vsyncpa %s10, 0
    %12 = vsyncpa [#allocation7], 0
    %13 = vsyncpa [#allocation10], 0
    %14 = vsyncpa [#allocation5], 0
    %s15 = scalar_lea.sflag [#allocation5], 1
    %16 = vsyncpa %s15, 0
    loop: start=0, step=1, limit=4
    $region2: #{bottleneck_fwd.4} parent=1 // loop_pre_header
      _
    $region3: #{bottleneck_fwd.4} parent=1 // loop_header
      %s18 = sphi 0, %s22
      %p19 = scmp.ge.s32.totalorder %s18, 4
      %s25 = sphi 0, %s37
      %s26 = sphi 0, %s33
      %s27 = sphi 0, %s25
      %s28 = sphi 0, %s26
      %s29 = sphi 0, %s27
      %s30 = sphi 0, %s28
      %s40 = sphi 0, %s42
      %s43 = sphi 0, %s40
      %s44 = sphi 0, %s43
      %s60 = sphi 0, %s44
      %s66 = sphi 0, %s68
      %s69 = sphi 0, %s66
      %s70 = sphi 0, %s69
      %s86 = sphi 0, %s70
      %s92 = sphi 0, %s94
      %s95 = sphi 0, %s92
      %s96 = sphi 0, %s95
      %s112 = sphi 0, %s96
      %s118 = sphi 0, %s120
      %s121 = sphi 0, %s118
      %s122 = sphi 0, %s121
      %s138 = sphi 0, %s122
      %s146 = sphi 0, %s148
      %s149 = sphi 0, %s146
      %s150 = sphi 0, %s149
      %s166 = sphi 0, %s150
    $region4: #{bottleneck_fwd.4} parent=1 // loop_header_branch
      %21 = sbr.rel (%p19) target = $region8
    $region5: #{bottleneck_fwd.4} parent=1 // loop_body
      %s23 = ssub.s32 %s18, 1
      %s24 = ssub.s32 %s18, 2
      %s31 = sadd.s32 1, %s26
      %p32 = scmp.ge.s32.totalorder %s31, 1
      %s33 = scalar_select %p32, 0, %s31
      %s34 = sadd.s32 1, %s25
      %s35 = scalar_select %p32, %s34, %s25
      %p36 = scmp.ge.s32.totalorder %s35, 2
      %s37 = scalar_select %p36, 0, %s35
      %s38 = ssub.s32 %s25, %s37
      %p39 = scmp.eq.s32.totalorder %s38, 0
      %s41 = sadd.s32 %s40, 1
      %s42 = scalar_select %p39, %s40, %s41
      %p45 = pneg %p39
      %p46 = scmp.eq.s32.totalorder %s18, 1
      %p47 = por %p45, %p46
      %p48 = scmp.ne.s32.totalorder %s40, %s43
      %p49 = scmp.eq.s32.totalorder %s18, 0
      %p50 = por %p48, %p49
      %p51 = scmp.ne.s32.totalorder %s40, %s43
      %p52 = scmp.eq.s32.totalorder %s23, 1
      %p53 = por %p51, %p52
      %p54 = scmp.ne.s32.totalorder %s43, %s44
      %p55 = scmp.eq.s32.totalorder %s23, 0
      %p56 = por %p54, %p55
      %p57 = scmp.ne.s32.totalorder %s43, %s44
      %p58 = scmp.eq.s32.totalorder %s24, 1
      %p59 = por %p57, %p58
      %p61 = scmp.ne.s32.totalorder %s44, %s60
      %p62 = scmp.eq.s32.totalorder %s24, 0
      %p63 = por %p61, %p62
      %s64 = ssub.s32 %s26, %s33
      %p65 = scmp.eq.s32.totalorder %s64, 0
      %s67 = sadd.s32 %s66, 1
      %s68 = scalar_select %p65, %s66, %s67
      %p71 = pneg %p65
      %p72 = scmp.eq.s32.totalorder %s18, 1
      %p73 = por %p71, %p72
      %p74 = scmp.ne.s32.totalorder %s66, %s69
      %p75 = scmp.eq.s32.totalorder %s18, 0
      %p76 = por %p74, %p75
      %p77 = scmp.ne.s32.totalorder %s66, %s69
      %p78 = scmp.eq.s32.totalorder %s23, 1
      %p79 = por %p77, %p78
      %p80 = scmp.ne.s32.totalorder %s69, %s70
      %p81 = scmp.eq.s32.totalorder %s23, 0
      %p82 = por %p80, %p81
      %p83 = scmp.ne.s32.totalorder %s69, %s70
      %p84 = scmp.eq.s32.totalorder %s24, 1
      %p85 = por %p83, %p84
      %p87 = scmp.ne.s32.totalorder %s70, %s86
      %p88 = scmp.eq.s32.totalorder %s24, 0
      %p89 = por %p87, %p88
      %s90 = ssub.s32 %s26, %s33
      %p91 = scmp.eq.s32.totalorder %s90, 0
      %s93 = sadd.s32 %s92, 1
      %s94 = scalar_select %p91, %s92, %s93
      %p97 = pneg %p91
      %p98 = scmp.eq.s32.totalorder %s18, 1
      %p99 = por %p97, %p98
      %p100 = scmp.ne.s32.totalorder %s92, %s95
      %p101 = scmp.eq.s32.totalorder %s18, 0
      %p102 = por %p100, %p101
      %p103 = scmp.ne.s32.totalorder %s92, %s95
      %p104 = scmp.eq.s32.totalorder %s23, 1
      %p105 = por %p103, %p104
      %p106 = scmp.ne.s32.totalorder %s95, %s96
      %p107 = scmp.eq.s32.totalorder %s23, 0
      %p108 = por %p106, %p107
      %p109 = scmp.ne.s32.totalorder %s95, %s96
      %p110 = scmp.eq.s32.totalorder %s24, 1
      %p111 = por %p109, %p110
      %p113 = scmp.ne.s32.totalorder %s96, %s112
      %p114 = scmp.eq.s32.totalorder %s24, 0
      %p115 = por %p113, %p114
      %s116 = ssub.s32 %s26, %s33
      %p117 = scmp.eq.s32.totalorder %s116, 0
      %s119 = sadd.s32 %s118, 1
      %s120 = scalar_select %p117, %s118, %s119
      %p123 = pneg %p117
      %p124 = scmp.eq.s32.totalorder %s18, 1
      %p125 = por %p123, %p124
      %p126 = scmp.ne.s32.totalorder %s118, %s121
      %p127 = scmp.eq.s32.totalorder %s18, 0
      %p128 = por %p126, %p127
      %p129 = scmp.ne.s32.totalorder %s118, %s121
      %p130 = scmp.eq.s32.totalorder %s23, 1
      %p131 = por %p129, %p130
      %p132 = scmp.ne.s32.totalorder %s121, %s122
      %p133 = scmp.eq.s32.totalorder %s23, 0
      %p134 = por %p132, %p133
      %p135 = scmp.ne.s32.totalorder %s121, %s122
      %p136 = scmp.eq.s32.totalorder %s24, 1
      %p137 = por %p135, %p136
      %p139 = scmp.ne.s32.totalorder %s122, %s138
      %p140 = scmp.eq.s32.totalorder %s24, 0
      %p141 = por %p139, %p140
      %s142 = ssub.s32 %s25, %s37
      %s143 = ssub.s32 %s26, %s33
      %s144 = sor.u32 %s142, %s143
      %p145 = scmp.eq.s32.totalorder %s144, 0
      %s147 = sadd.s32 %s146, 1
      %s148 = scalar_select %p145, %s146, %s147
      %p151 = pneg %p145
      %p152 = scmp.eq.s32.totalorder %s18, 1
      %p153 = por %p151, %p152
      %p154 = scmp.ne.s32.totalorder %s146, %s149
      %p155 = scmp.eq.s32.totalorder %s18, 0
      %p156 = por %p154, %p155
      %p157 = scmp.ne.s32.totalorder %s146, %s149
      %p158 = scmp.eq.s32.totalorder %s23, 1
      %p159 = por %p157, %p158
      %p160 = scmp.ne.s32.totalorder %s149, %s150
      %p161 = scmp.eq.s32.totalorder %s23, 0
      %p162 = por %p160, %p161
      %p163 = scmp.ne.s32.totalorder %s149, %s150
      %p164 = scmp.eq.s32.totalorder %s24, 1
      %p165 = por %p163, %p164
      %p167 = scmp.ne.s32.totalorder %s150, %s166
      %p168 = scmp.eq.s32.totalorder %s24, 0
      %p169 = por %p167, %p168
      %p170 = scmp.le.s32.totalorder 1, %s18
      %p171 = scmp.lt.s32.totalorder %s18, 3
      %p172 = pnand %p170, %p171
      %p173 = pneg %p172
      // Predicated region
      $region9: #{bottleneck_fwd.4} parent=5 // pred_check
        _
      $region10: #{bottleneck_fwd.4} parent=5 // pred_check_branch
        %175 = sbr.rel (%p172) target = $region12
      $region11: #{bottleneck_fwd.4} parent=5 // pred_region
        %s176 = ssub.s32 %s18, 1
        // Predicated region
        $region13: #{bottleneck_fwd.4} parent=11 // pred_check
          %p177 = pneg %p82
        $region14: #{bottleneck_fwd.4} parent=11 // pred_check_branch
          %179 = sbr.rel (%p177) target = $region16
        $region15: #{bottleneck_fwd.4} parent=11 // pred_region
          %s181 = ssub.s32 9216, 9216
          %182 = vsyncadd [#allocation7], %s181
          %s183 = smul.addr %s28, 64
          %s184 = scalar_lea.hbm %s1, %s183
          %s185 = sshll.u32 [#allocation6], 4
          %s186 = int_to_ptr.vmem [resolvable:$true] %s185
          %191 = dma.hbm_to_vmem [thread:$0]  %s184, 9216, %s186, [#allocation7], 64, 64, 4
        $region16: #{bottleneck_fwd.4} parent=11 // pred_fallthru
          _
        // Predicated region
        $region17: #{bottleneck_fwd.4} parent=11 // pred_check
          %p192 = pneg %p108
        $region18: #{bottleneck_fwd.4} parent=11 // pred_check_branch
          %194 = sbr.rel (%p192) target = $region20
        $region19: #{bottleneck_fwd.4} parent=11 // pred_region
          %s196 = ssub.s32 16, 16
          %197 = vsyncadd [#allocation7], %s196
          %s198 = smul.addr %s28, 16
          %s199 = scalar_lea.hbm %s2, %s198
          %s201 = sshll.u32 [#allocation8], 4
          %s202 = int_to_ptr.vmem [resolvable:$true] %s201
          %204 = dma.hbm_to_vmem [thread:$0]  %s199, 16, %s202, [#allocation7]
        $region20: #{bottleneck_fwd.4} parent=11 // pred_fallthru
          _
        // Predicated region
        $region21: #{bottleneck_fwd.4} parent=11 // pred_check
          %p205 = pneg %p134
        $region22: #{bottleneck_fwd.4} parent=11 // pred_check_branch
          %207 = sbr.rel (%p205) target = $region24
        $region23: #{bottleneck_fwd.4} parent=11 // pred_region
          %s209 = ssub.s32 16, 16
          %210 = vsyncadd [#allocation10], %s209
          %s211 = smul.addr %s28, 16
          %s212 = scalar_lea.hbm %s3, %s211
          %s214 = sshll.u32 [#allocation9], 4
          %s215 = int_to_ptr.vmem [resolvable:$true] %s214
          %217 = dma.hbm_to_vmem [thread:$0]  %s212, 16, %s215, [#allocation10]
        $region24: #{bottleneck_fwd.4} parent=11 // pred_fallthru
          _
      $region12: #{bottleneck_fwd.4} parent=5 // pred_fallthru
        _
      %p218 = scmp.lt.s32.totalorder %s18, 2
      // Predicated region
      $region25: #{bottleneck_fwd.4} parent=5 // pred_check
        %p219 = pneg %p218
      $region26: #{bottleneck_fwd.4} parent=5 // pred_check_branch
        %221 = sbr.rel (%p219) target = $region28
      $region27: #{bottleneck_fwd.4} parent=5 // pred_region
        // Predicated region
        $region29: #{bottleneck_fwd.4} parent=27 // pred_check
          %p222 = pneg %p50
        $region30: #{bottleneck_fwd.4} parent=27 // pred_check_branch
          %224 = sbr.rel (%p222) target = $region32
        $region31: #{bottleneck_fwd.4} parent=27 // pred_region
          %s225 = sand.u32 %s40, 1
          %s226 = scalar_lea.sflag [#allocation4], %s225
          %s227 = sand.u32 %s40, 1
          %s228 = smul.addr %s227, 368
          %s229 = scalar_lea.vmem [#allocation3], %s228
          %s231 = ssub.s32 5888, 5888
          %232 = vsyncadd %s226, %s231
          %s233 = smul.addr %s25, 46
          %s234 = smul.addr %s233, 128
          %s235 = scalar_lea.hbm %s0, %s234
          %s236 = sshll.u32 %s229, 4
          %s237 = int_to_ptr.vmem [resolvable:$true] %s236
          %242 = dma.hbm_to_vmem [thread:$0]  %s235, 5888, %s237, %s226, 128, 128, 8
        $region32: #{bottleneck_fwd.4} parent=27 // pred_fallthru
          _
      $region28: #{bottleneck_fwd.4} parent=5 // pred_fallthru
        _
      %p243 = scmp.le.s32.totalorder 1, %s18
      %p244 = scmp.lt.s32.totalorder %s18, 3
      %p245 = pnand %p243, %p244
      %p246 = pneg %p245
      // Predicated region
      $region33: #{bottleneck_fwd.4} parent=5 // pred_check
        _
      $region34: #{bottleneck_fwd.4} parent=5 // pred_check_branch
        %248 = sbr.rel (%p245) target = $region36
      $region35: #{bottleneck_fwd.4} parent=5 // pred_region
        %s249 = ssub.s32 %s18, 1
        %s250 = sand.u32 %s43, 1
        %s251 = scalar_lea.sflag [#allocation4], %s250
        %s252 = sand.u32 %s43, 1
        %s253 = smul.addr %s252, 368
        %s254 = scalar_lea.vmem [#allocation3], %s253
        // Predicated region
        $region37: #{bottleneck_fwd.4} parent=35 // pred_check
          %p255 = pneg %p56
        $region38: #{bottleneck_fwd.4} parent=35 // pred_check_branch
          %257 = sbr.rel (%p255) target = $region40
        $region39: #{bottleneck_fwd.4} parent=35 // pred_region
          %258 = dma.done %s251, 5888
        $region40: #{bottleneck_fwd.4} parent=35 // pred_fallthru
          _
        // Predicated region
        $region41: #{bottleneck_fwd.4} parent=35 // pred_check
          %p259 = pneg %p82
        $region42: #{bottleneck_fwd.4} parent=35 // pred_check_branch
          %261 = sbr.rel (%p259) target = $region44
        $region43: #{bottleneck_fwd.4} parent=35 // pred_region
          %262 = dma.done [#allocation7], 9216
        $region44: #{bottleneck_fwd.4} parent=35 // pred_fallthru
          _
        // Predicated region
        $region45: #{bottleneck_fwd.4} parent=35 // pred_check
          %p263 = pneg %p108
        $region46: #{bottleneck_fwd.4} parent=35 // pred_check_branch
          %265 = sbr.rel (%p263) target = $region48
        $region47: #{bottleneck_fwd.4} parent=35 // pred_region
          %266 = dma.done [#allocation7], 16
        $region48: #{bottleneck_fwd.4} parent=35 // pred_fallthru
          _
        // Predicated region
        $region49: #{bottleneck_fwd.4} parent=35 // pred_check
          %p267 = pneg %p134
        $region50: #{bottleneck_fwd.4} parent=35 // pred_check_branch
          %269 = sbr.rel (%p267) target = $region52
        $region51: #{bottleneck_fwd.4} parent=35 // pred_region
          %270 = dma.done [#allocation10], 16
        $region52: #{bottleneck_fwd.4} parent=35 // pred_fallthru
          _
        %s271 = sand.u32 %s43, 1
        %s272 = scalar_lea.sflag [#allocation4], %s271
        %s273 = sand.u32 %s43, 1
        %s274 = smul.addr %s273, 368
        %s275 = scalar_lea.vmem [#allocation3], %s274
        %p276 = pneg %p56
        %p277 = pneg %p53
        %p278 = pneg %p82
        %p279 = pneg %p79
        %p280 = pneg %p108
        %p281 = pneg %p105
        %p282 = pneg %p134
        %p283 = pneg %p131
        %p284 = pneg %p162
        %p285 = pneg %p159
        %s286 = sand.u32 %s149, 1
        %s287 = scalar_lea.sflag [#allocation5], %s286
        %s288 = sand.u32 %s149, 1
        %s289 = smul.addr %s288, 164
        %s290 = scalar_lea.vmem [#allocation11], %s289
        %292 = vst [vmem:[#allocation2] sm:$0xff] 0.0
        %293 = vst [vmem:[#allocation2 + $0x8] sm:$0xff] 0.0
        %294 = vst [vmem:[#allocation2 + $0x10] sm:$0xff] 0.0
        %295 = vst [vmem:[#allocation2 + $0x18] sm:$0xff] 0.0
        %296 = vst [vmem:[#allocation2 + $0x20] sm:$0xff] 0.0
        %297 = vst [vmem:[#allocation2 + $0x28] sm:$0xff] 0.0
        %298 = vst [vmem:[#allocation2 + $0x30] sm:$0xff] 0.0
        %299 = vst [vmem:[#allocation2 + $0x38] sm:$0xff] 0.0
        %300 = vst [vmem:[#allocation2 + $0x40] sm:$0xff] 0.0
        %301 = vst [vmem:[#allocation2 + $0x48] sm:$0xff] 0.0
        %302 = vst [vmem:[#allocation2 + $0x50] sm:$0xff] 0.0
        %303 = vst [vmem:[#allocation2 + $0x58] sm:$0xff] 0.0
        %304 = vst [vmem:[#allocation2 + $0x60] sm:$0xff] 0.0
        %305 = vst [vmem:[#allocation2 + $0x68] sm:$0xff] 0.0
        %306 = vst [vmem:[#allocation2 + $0x70] sm:$0xff] 0.0
        %307 = vst [vmem:[#allocation2 + $0x78] sm:$0xff] 0.0
        %308 = vst [vmem:[#allocation2 + $0x80] sm:$0xff] 0.0
        %309 = vst [vmem:[#allocation2 + $0x88] sm:$0xff] 0.0
        %310 = vst [vmem:[#allocation2 + $0x90] sm:$0xff] 0.0
        %311 = vst [vmem:[#allocation2 + $0x98] sm:$0xff] 0.0
        %312 = vst [vmem:[#allocation2 + $0xa0] sm:$0xff] 0.0
        %313 = vst [vmem:[#allocation2 + $0xa8] sm:$0xff] 0.0
        %314 = vst [vmem:[#allocation2 + $0xb0] sm:$0xff] 0.0
        %315 = vst [vmem:[#allocation2 + $0xb8] sm:$0xff] 0.0
        %316 = vst [vmem:[#allocation2 + $0xc0] sm:$0xff] 0.0
        %317 = vst [vmem:[#allocation2 + $0xc8] sm:$0xff] 0.0
        %318 = vst [vmem:[#allocation2 + $0xd0] sm:$0xff] 0.0
        %319 = vst [vmem:[#allocation2 + $0xd8] sm:$0xff] 0.0
        %320 = vst [vmem:[#allocation2 + $0xe0] sm:$0xff] 0.0
        %321 = vst [vmem:[#allocation2 + $0xe8] sm:$0xff] 0.0
        %322 = vst [vmem:[#allocation2 + $0xf0] sm:$0xff] 0.0
        %323 = vst [vmem:[#allocation2 + $0xf8] sm:$0xff] 0.0
        %324 = vst [vmem:[#allocation2 + $0x100] sm:$0xff] 0.0
        %325 = vst [vmem:[#allocation2 + $0x108] sm:$0xff] 0.0
        %326 = vst [vmem:[#allocation2 + $0x110] sm:$0xff] 0.0
        %327 = vst [vmem:[#allocation2 + $0x118] sm:$0xff] 0.0
        %328 = vst [vmem:[#allocation2 + $0x120] sm:$0xff] 0.0
        %329 = vst [vmem:[#allocation2 + $0x128] sm:$0xff] 0.0
        %330 = vst [vmem:[#allocation2 + $0x130] sm:$0xff] 0.0
        %331 = vst [vmem:[#allocation2 + $0x138] sm:$0xff] 0.0
        %332 = vst [vmem:[#allocation2 + $0x140] sm:$0xff] 0.0
        %v333 = vld [vmem:[%s254] sm:$0xff]
        %v334 = vld [vmem:[%s254 + $0x8] sm:$0xff]
        %v335 = vld [vmem:[%s254 + $0x10] sm:$0xff]
        %v336 = vld [vmem:[%s254 + $0x18] sm:$0xff]
        %v337 = vld [vmem:[%s254 + $0x20] sm:$0xff]
        %v338 = vld [vmem:[%s254 + $0x28] sm:$0xff]
        %v339 = vld [vmem:[%s254 + $0x30] sm:$0xff]
        %v340 = vld [vmem:[%s254 + $0x38] sm:$0xff]
        %v341 = vld [vmem:[%s254 + $0x40] sm:$0xff]
        %v342 = vld [vmem:[%s254 + $0x48] sm:$0xff]
        %v343 = vld [vmem:[%s254 + $0x50] sm:$0xff]
        %v344 = vld [vmem:[%s254 + $0x58] sm:$0xff]
        %v345 = vld [vmem:[%s254 + $0x60] sm:$0xff]
        %v346 = vld [vmem:[%s254 + $0x68] sm:$0xff]
        %v347 = vld [vmem:[%s254 + $0x70] sm:$0xff]
        %v348 = vld [vmem:[%s254 + $0x78] sm:$0xff]
        %v349 = vld [vmem:[%s254 + $0x80] sm:$0xff]
        %v350 = vld [vmem:[%s254 + $0x88] sm:$0xff]
        %v351 = vld [vmem:[%s254 + $0x90] sm:$0xff]
        %v352 = vld [vmem:[%s254 + $0x98] sm:$0xff]
        %v353 = vld [vmem:[%s254 + $0xa0] sm:$0xff]
        %v354 = vld [vmem:[%s254 + $0xa8] sm:$0xff]
        %v355 = vld [vmem:[%s254 + $0xb0] sm:$0xff]
        %v356 = vld [vmem:[%s254 + $0xb8] sm:$0xff]
        %v357 = vld [vmem:[%s254 + $0xc0] sm:$0xff]
        %v358 = vld [vmem:[%s254 + $0xc8] sm:$0xff]
        %v359 = vld [vmem:[%s254 + $0xd0] sm:$0xff]
        %v360 = vld [vmem:[%s254 + $0xd8] sm:$0xff]
        %v361 = vld [vmem:[%s254 + $0xe0] sm:$0xff]
        %v362 = vld [vmem:[%s254 + $0xe8] sm:$0xff]
        %v363 = vld [vmem:[%s254 + $0xf0] sm:$0xff]
        %v364 = vld [vmem:[%s254 + $0xf8] sm:$0xff]
        %v365 = vld [vmem:[%s254 + $0x100] sm:$0xff]
        %v366 = vld [vmem:[%s254 + $0x108] sm:$0xff]
        %v367 = vld [vmem:[%s254 + $0x110] sm:$0xff]
        %v368 = vld [vmem:[%s254 + $0x118] sm:$0xff]
        %v369 = vld [vmem:[%s254 + $0x120] sm:$0xff]
        %v370 = vld [vmem:[%s254 + $0x128] sm:$0xff]
        %v371 = vld [vmem:[%s254 + $0x130] sm:$0xff]
        %v372 = vld [vmem:[%s254 + $0x138] sm:$0xff]
        %v373 = vld [vmem:[%s254 + $0x140] sm:$0xff]
        %v374 = vpack.c.bf16 %v334, %v333
        %v375 = vpack.c.bf16 %v336, %v335
        %v376 = vpack.c.bf16 %v338, %v337
        %v377 = vpack.c.bf16 %v340, %v339
        %v378 = vpack.c.bf16 %v342, %v341
        %v379 = vpack.c.bf16 %v344, %v343
        %v380 = vpack.c.bf16 %v346, %v345
        %v381 = vpack.c.bf16 %v348, %v347
        %v382 = vpack.c.bf16 %v350, %v349
        %v383 = vpack.c.bf16 %v352, %v351
        %v384 = vpack.c.bf16 %v354, %v353
        %v385 = vpack.c.bf16 %v356, %v355
        %v386 = vpack.c.bf16 %v358, %v357
        %v387 = vpack.c.bf16 %v360, %v359
        %v388 = vpack.c.bf16 %v362, %v361
        %v389 = vpack.c.bf16 %v364, %v363
        %v390 = vpack.c.bf16 %v366, %v365
        %v391 = vpack.c.bf16 %v368, %v367
        %v392 = vpack.c.bf16 %v370, %v369
        %v393 = vpack.c.bf16 %v372, %v371
        %v394 = vpack.c.bf16 %v373, %v373
        %v395 = vld [vmem:[#allocation2] sm:$0xff]
        %v396 = vld [vmem:[#allocation2 + $0x8] sm:$0xff]
        %v397 = vld [vmem:[#allocation2 + $0x10] sm:$0xff]
        %v398 = vld [vmem:[#allocation2 + $0x18] sm:$0xff]
        %v399 = vld [vmem:[#allocation2 + $0x20] sm:$0xff]
        %v400 = vld [vmem:[#allocation2 + $0x28] sm:$0xff]
        %v401 = vld [vmem:[#allocation2 + $0x30] sm:$0xff]
        %v402 = vld [vmem:[#allocation2 + $0x38] sm:$0xff]
        %v403 = vld [vmem:[#allocation2 + $0x40] sm:$0xff]
        %v404 = vld [vmem:[#allocation2 + $0x48] sm:$0xff]
        %v405 = vld [vmem:[#allocation2 + $0x50] sm:$0xff]
        %v406 = vld [vmem:[#allocation2 + $0x58] sm:$0xff]
        %v407 = vld [vmem:[#allocation2 + $0x60] sm:$0xff]
        %v408 = vld [vmem:[#allocation2 + $0x68] sm:$0xff]
        %v409 = vld [vmem:[#allocation2 + $0x70] sm:$0xff]
        %v410 = vld [vmem:[#allocation2 + $0x78] sm:$0xff]
        %v411 = vld [vmem:[#allocation2 + $0x80] sm:$0xff]
        %v412 = vld [vmem:[#allocation2 + $0x88] sm:$0xff]
        %v413 = vld [vmem:[#allocation2 + $0x90] sm:$0xff]
        %v414 = vld [vmem:[#allocation2 + $0x98] sm:$0xff]
        %v415 = vld [vmem:[#allocation2 + $0xa0] sm:$0xff]
        %v416 = vld [vmem:[#allocation2 + $0xa8] sm:$0xff]
        %v417 = vld [vmem:[#allocation2 + $0xb0] sm:$0xff]
        %v418 = vld [vmem:[#allocation2 + $0xb8] sm:$0xff]
        %v419 = vld [vmem:[#allocation2 + $0xc0] sm:$0xff]
        %v420 = vld [vmem:[#allocation2 + $0xc8] sm:$0xff]
        %v421 = vld [vmem:[#allocation2 + $0xd0] sm:$0xff]
        %v422 = vld [vmem:[#allocation2 + $0xd8] sm:$0xff]
        %v423 = vld [vmem:[#allocation2 + $0xe0] sm:$0xff]
        %v424 = vld [vmem:[#allocation2 + $0xe8] sm:$0xff]
        %v425 = vld [vmem:[#allocation2 + $0xf0] sm:$0xff]
        %v426 = vld [vmem:[#allocation2 + $0xf8] sm:$0xff]
        %v427 = vld [vmem:[#allocation2 + $0x100] sm:$0xff]
        %v428 = vld [vmem:[#allocation2 + $0x108] sm:$0xff]
        %v429 = vld [vmem:[#allocation2 + $0x110] sm:$0xff]
        %v430 = vld [vmem:[#allocation2 + $0x118] sm:$0xff]
        %v431 = vld [vmem:[#allocation2 + $0x120] sm:$0xff]
        %v432 = vld [vmem:[#allocation2 + $0x128] sm:$0xff]
        %v433 = vld [vmem:[#allocation2 + $0x130] sm:$0xff]
        %v434 = vld [vmem:[#allocation2 + $0x138] sm:$0xff]
        %v435 = vld [vmem:[#allocation2 + $0x140] sm:$0xff]
        %v436 = vld [vmem:[#allocation6] sm:$0xf]
        %v437 = vld [vmem:[#allocation6 + $0x4] sm:$0xf]
        %v438 = vld [vmem:[#allocation6 + $0x8] sm:$0xf]
        %v439 = vld [vmem:[#allocation6 + $0xc] sm:$0xf]
        %v440 = vld [vmem:[#allocation6 + $0x10] sm:$0xf]
        %v441 = vld [vmem:[#allocation6 + $0x14] sm:$0xf]
        %v442 = vld [vmem:[#allocation6 + $0x18] sm:$0xf]
        %v443 = vld [vmem:[#allocation6 + $0x1c] sm:$0xf]
        %v444 = vld [vmem:[#allocation6 + $0x20] sm:$0xf]
        %v445 = vld [vmem:[#allocation6 + $0x24] sm:$0xf]
        %v446 = vld [vmem:[#allocation6 + $0x28] sm:$0xf]
        %v447 = vld [vmem:[#allocation6 + $0x2c] sm:$0xf]
        %v448 = vld [vmem:[#allocation6 + $0x30] sm:$0xf]
        %v449 = vld [vmem:[#allocation6 + $0x34] sm:$0xf]
        %v450 = vld [vmem:[#allocation6 + $0x38] sm:$0xf]
        %v451 = vld [vmem:[#allocation6 + $0x3c] sm:$0xf]
        %v468 = vunpack.c.l.b16 %v436
        %v469 = vunpack.c.l.b16 %v437
        %v470 = vunpack.c.l.b16 %v438
        %v471 = vunpack.c.l.b16 %v439
        %v472 = vunpack.c.l.b16 %v440
        %v473 = vunpack.c.l.b16 %v441
        %v474 = vunpack.c.l.b16 %v442
        %v475 = vunpack.c.l.b16 %v443
        %v476 = vunpack.c.l.b16 %v444
        %v477 = vunpack.c.l.b16 %v445
        %v478 = vunpack.c.l.b16 %v446
        %v479 = vunpack.c.l.b16 %v447
        %v480 = vunpack.c.l.b16 %v448
        %v481 = vunpack.c.l.b16 %v449
        %v482 = vunpack.c.l.b16 %v450
        %v483 = vunpack.c.l.b16 %v451
        %v484 = vpack.c.b16 %v469, %v468
        %v485 = vpack.c.b16 %v471, %v470
        %v486 = vpack.c.b16 %v473, %v472
        %v487 = vpack.c.b16 %v475, %v474
        %v488 = vpack.c.b16 %v477, %v476
        %v489 = vpack.c.b16 %v479, %v478
        %v490 = vpack.c.b16 %v481, %v480
        %v491 = vpack.c.b16 %v483, %v482
        %500 = vmatprep.subr.bf16.mxu0 0
        %501 = vmatpush1.bf16.msra.mxu0 %v484
        %502 = vmatprep.subr.bf16.mxu0 0
        %503 = vmatpush1.bf16.msra.mxu0 %v485
        %504 = vmatprep.subr.bf16.mxu0 0
        %505 = vmatpush1.bf16.msra.mxu0 %v486
        %506 = vmatprep.subr.bf16.mxu0 0
        %507 = vmatpush1.bf16.msra.mxu0 %v487
        %508 = vmatprep.subr.bf16.mxu0 0
        %509 = vmatpush1.bf16.msra.mxu0 %v488
        %510 = vmatprep.subr.bf16.mxu0 0
        %511 = vmatpush1.bf16.msra.mxu0 %v489
        %512 = vmatprep.subr.bf16.mxu0 0
        %513 = vmatpush1.bf16.msra.mxu0 %v490
        %514 = vmatprep.subr.bf16.mxu0 0
        %515 = vmatpush1.bf16.msra.mxu0 %v491
        %516 = vmatprep.subr.bf16.mxu0 0
        %517 = vmatpush1.bf16.msra.mxu0 0
        %518 = vmatprep.subr.bf16.mxu0 0
        %519 = vmatpush1.bf16.msra.mxu0 0
        %520 = vmatprep.subr.bf16.mxu0 0
        %521 = vmatpush1.bf16.msra.mxu0 0
        %522 = vmatprep.subr.bf16.mxu0 0
        %523 = vmatpush1.bf16.msra.mxu0 0
        %524 = vmatprep.subr.bf16.mxu0 0
        %525 = vmatpush1.bf16.msra.mxu0 0
        %526 = vmatprep.subr.bf16.mxu0 0
        %527 = vmatpush1.bf16.msra.mxu0 0
        %528 = vmatprep.subr.bf16.mxu0 0
        %529 = vmatpush1.bf16.msra.mxu0 0
        %530 = vmatprep.subr.bf16.mxu0 0
        %531 = vmatpush1.bf16.msra.mxu0 0
        %532 = vmatprep.mubr.bf16.mxu0 0
        %533 = vmatmul.mubr.bf16.gmra.mrb[0].mxu0 %v374
        %v534 = vpop.f32.mrb[0].mxu0
        %v535 = vadd.f32 0.0, %v534
        %v536 = vpop.f32.mrb[0].mxu0
        %v537 = vpop.f32.mrb[0].mxu0
        %v538 = vadd.f32 0.0, %v537
        %v539 = vpop.f32.mrb[0].mxu0
        %540 = vmatprep.mubr.bf16.mxu0 0
        %541 = vmatmul.mubr.bf16.gmra.mrb[0].mxu0 %v375
        %v542 = vpop.f32.mrb[0].mxu0
        %v543 = vadd.f32 0.0, %v542
        %v544 = vpop.f32.mrb[0].mxu0
        %v545 = vpop.f32.mrb[0].mxu0
        %v546 = vadd.f32 0.0, %v545
        %v547 = vpop.f32.mrb[0].mxu0
        %548 = vmatprep.mubr.bf16.mxu0 0
        %549 = vmatmul.mubr.bf16.gmra.mrb[0].mxu0 %v376
        %v550 = vpop.f32.mrb[0].mxu0
        %v551 = vadd.f32 0.0, %v550
        %v552 = vpop.f32.mrb[0].mxu0
        %v553 = vpop.f32.mrb[0].mxu0
        %v554 = vadd.f32 0.0, %v553
        %v555 = vpop.f32.mrb[0].mxu0
        %556 = vmatprep.mubr.bf16.mxu0 0
        %557 = vmatmul.mubr.bf16.gmra.mrb[0].mxu0 %v377
        %v558 = vpop.f32.mrb[0].mxu0
        %v559 = vadd.f32 0.0, %v558
        %v560 = vpop.f32.mrb[0].mxu0
        %v561 = vpop.f32.mrb[0].mxu0
        %v562 = vadd.f32 0.0, %v561
        %v563 = vpop.f32.mrb[0].mxu0
        %564 = vmatprep.mubr.bf16.mxu0 0
        %565 = vmatmul.mubr.bf16.gmra.mrb[0].mxu0 %v378
        %v566 = vpop.f32.mrb[0].mxu0
        %v567 = vadd.f32 0.0, %v566
        %v568 = vpop.f32.mrb[0].mxu0
        %v569 = vpop.f32.mrb[0].mxu0
        %v570 = vadd.f32 0.0, %v569
        %v571 = vpop.f32.mrb[0].mxu0
        %572 = vmatprep.mubr.bf16.mxu0 0
        %573 = vmatmul.mubr.bf16.gmra.mrb[0].mxu0 %v379
        %v574 = vpop.f32.mrb[0].mxu0
        %v575 = vadd.f32 0.0, %v574
        %v576 = vpop.f32.mrb[0].mxu0
        %v577 = vpop.f32.mrb[0].mxu0
        %v578 = vadd.f32 0.0, %v577
        %v579 = vpop.f32.mrb[0].mxu0
        %580 = vmatprep.mubr.bf16.mxu0 0
        %581 = vmatmul.mubr.bf16.gmra.mrb[0].mxu0 %v380
        %v582 = vpop.f32.mrb[0].mxu0
        %v583 = vadd.f32 0.0, %v582
        %v584 = vpop.f32.mrb[0].mxu0
        %v585 = vpop.f32.mrb[0].mxu0
        %v586 = vadd.f32 0.0, %v585
        %v587 = vpop.f32.mrb[0].mxu0
        %588 = vmatprep.mubr.bf16.mxu0 0
        %589 = vmatmul.mubr.bf16.gmra.mrb[0].mxu0 %v381
        %v590 = vpop.f32.mrb[0].mxu0
        %v591 = vadd.f32 0.0, %v590
        %v592 = vpop.f32.mrb[0].mxu0
        %v593 = vpop.f32.mrb[0].mxu0
        %v594 = vadd.f32 0.0, %v593
        %v595 = vpop.f32.mrb[0].mxu0
        %596 = vmatprep.mubr.bf16.mxu0 0
        %597 = vmatmul.mubr.bf16.gmra.mrb[0].mxu0 %v382
        %v598 = vpop.f32.mrb[0].mxu0
        %v599 = vadd.f32 0.0, %v598
        %v600 = vpop.f32.mrb[0].mxu0
        %v601 = vpop.f32.mrb[0].mxu0
        %v602 = vadd.f32 0.0, %v601
        %v603 = vpop.f32.mrb[0].mxu0
        %604 = vmatprep.mubr.bf16.mxu0 0
        %605 = vmatmul.mubr.bf16.gmra.mrb[0].mxu0 %v383
        %v606 = vpop.f32.mrb[0].mxu0
        %v607 = vadd.f32 0.0, %v606
        %v608 = vpop.f32.mrb[0].mxu0
        %v609 = vpop.f32.mrb[0].mxu0
        %v610 = vadd.f32 0.0, %v609
        %v611 = vpop.f32.mrb[0].mxu0
        %612 = vmatprep.mubr.bf16.mxu0 0
        %613 = vmatmul.mubr.bf16.gmra.mrb[0].mxu0 %v384
        %v614 = vpop.f32.mrb[0].mxu0
        %v615 = vadd.f32 0.0, %v614
        %v616 = vpop.f32.mrb[0].mxu0
        %v617 = vpop.f32.mrb[0].mxu0
        %v618 = vadd.f32 0.0, %v617
        %v619 = vpop.f32.mrb[0].mxu0
        %620 = vmatprep.mubr.bf16.mxu0 0
        %621 = vmatmul.mubr.bf16.gmra.mrb[0].mxu0 %v385
        %v622 = vpop.f32.mrb[0].mxu0
        %v623 = vadd.f32 0.0, %v622
        %v624 = vpop.f32.mrb[0].mxu0
        %v625 = vpop.f32.mrb[0].mxu0
        %v626 = vadd.f32 0.0, %v625
        %v627 = vpop.f32.mrb[0].mxu0
        %628 = vmatprep.mubr.bf16.mxu0 0
        %629 = vmatmul.mubr.bf16.gmra.mrb[0].mxu0 %v386
        %v630 = vpop.f32.mrb[0].mxu0
        %v631 = vadd.f32 0.0, %v630
        %v632 = vpop.f32.mrb[0].mxu0
        %v633 = vpop.f32.mrb[0].mxu0
        %v634 = vadd.f32 0.0, %v633
        %v635 = vpop.f32.mrb[0].mxu0
        %636 = vmatprep.mubr.bf16.mxu0 0
        %637 = vmatmul.mubr.bf16.gmra.mrb[0].mxu0 %v387
        %v638 = vpop.f32.mrb[0].mxu0
        %v639 = vadd.f32 0.0, %v638
        %v640 = vpop.f32.mrb[0].mxu0
        %v641 = vpop.f32.mrb[0].mxu0
        %v642 = vadd.f32 0.0, %v641
        %v643 = vpop.f32.mrb[0].mxu0
        %644 = vmatprep.mubr.bf16.mxu0 0
        %645 = vmatmul.mubr.bf16.gmra.mrb[0].mxu0 %v388
        %v646 = vpop.f32.mrb[0].mxu0
        %v647 = vadd.f32 0.0, %v646
        %v648 = vpop.f32.mrb[0].mxu0
        %v649 = vpop.f32.mrb[0].mxu0
        %v650 = vadd.f32 0.0, %v649
        %v651 = vpop.f32.mrb[0].mxu0
        %652 = vmatprep.mubr.bf16.mxu0 0
        %653 = vmatmul.mubr.bf16.gmra.mrb[0].mxu0 %v389
        %v654 = vpop.f32.mrb[0].mxu0
        %v655 = vadd.f32 0.0, %v654
        %v656 = vpop.f32.mrb[0].mxu0
        %v657 = vpop.f32.mrb[0].mxu0
        %v658 = vadd.f32 0.0, %v657
        %v659 = vpop.f32.mrb[0].mxu0
        %660 = vmatprep.mubr.bf16.mxu0 0
        %661 = vmatmul.mubr.bf16.gmra.mrb[0].mxu0 %v390
        %v662 = vpop.f32.mrb[0].mxu0
        %v663 = vadd.f32 0.0, %v662
        %v664 = vpop.f32.mrb[0].mxu0
        %v665 = vpop.f32.mrb[0].mxu0
        %v666 = vadd.f32 0.0, %v665
        %v667 = vpop.f32.mrb[0].mxu0
        %668 = vmatprep.mubr.bf16.mxu0 0
        %669 = vmatmul.mubr.bf16.gmra.mrb[0].mxu0 %v391
        %v670 = vpop.f32.mrb[0].mxu0
        %v671 = vadd.f32 0.0, %v670
        %v672 = vpop.f32.mrb[0].mxu0
        %v673 = vpop.f32.mrb[0].mxu0
        %v674 = vadd.f32 0.0, %v673
        %v675 = vpop.f32.mrb[0].mxu0
        %676 = vmatprep.mubr.bf16.mxu0 0
        %677 = vmatmul.mubr.bf16.gmra.mrb[0].mxu0 %v392
        %v678 = vpop.f32.mrb[0].mxu0
        %v679 = vadd.f32 0.0, %v678
        %v680 = vpop.f32.mrb[0].mxu0
        %v681 = vpop.f32.mrb[0].mxu0
        %v682 = vadd.f32 0.0, %v681
        %v683 = vpop.f32.mrb[0].mxu0
        %684 = vmatprep.mubr.bf16.mxu0 0
        %685 = vmatmul.mubr.bf16.gmra.mrb[0].mxu0 %v393
        %v686 = vpop.f32.mrb[0].mxu0
        %v687 = vadd.f32 0.0, %v686
        %v688 = vpop.f32.mrb[0].mxu0
        %v689 = vpop.f32.mrb[0].mxu0
        %v690 = vadd.f32 0.0, %v689
        %v691 = vpop.f32.mrb[0].mxu0
        %692 = vmatprep.mubr.bf16.mxu0 0
        %693 = vmatmul.mubr.bf16.gmra.mrb[0].mxu0 %v394
        %v694 = vpop.f32.mrb[0].mxu0
        %v695 = vadd.f32 0.0, %v694
        %v696 = vpop.f32.mrb[0].mxu0
        %v697 = vpop.f32.mrb[0].mxu0
        %v698 = vpop.f32.mrb[0].mxu0
        %699 = vdwg.mxu0
        %v700 = vadd.f32 %v395, %v535
        %v701 = vadd.f32 %v396, %v538
        %v702 = vadd.f32 %v397, %v543
        %v703 = vadd.f32 %v398, %v546
        %v704 = vadd.f32 %v399, %v551
        %v705 = vadd.f32 %v400, %v554
        %v706 = vadd.f32 %v401, %v559
        %v707 = vadd.f32 %v402, %v562
        %v708 = vadd.f32 %v403, %v567
        %v709 = vadd.f32 %v404, %v570
        %v710 = vadd.f32 %v405, %v575
        %v711 = vadd.f32 %v406, %v578
        %v712 = vadd.f32 %v407, %v583
        %v713 = vadd.f32 %v408, %v586
        %v714 = vadd.f32 %v409, %v591
        %v715 = vadd.f32 %v410, %v594
        %v716 = vadd.f32 %v411, %v599
        %v717 = vadd.f32 %v412, %v602
        %v718 = vadd.f32 %v413, %v607
        %v719 = vadd.f32 %v414, %v610
        %v720 = vadd.f32 %v415, %v615
        %v721 = vadd.f32 %v416, %v618
        %v722 = vadd.f32 %v417, %v623
        %v723 = vadd.f32 %v418, %v626
        %v724 = vadd.f32 %v419, %v631
        %v725 = vadd.f32 %v420, %v634
        %v726 = vadd.f32 %v421, %v639
        %v727 = vadd.f32 %v422, %v642
        %v728 = vadd.f32 %v423, %v647
        %v729 = vadd.f32 %v424, %v650
        %v730 = vadd.f32 %v425, %v655
        %v731 = vadd.f32 %v426, %v658
        %v732 = vadd.f32 %v427, %v663
        %v733 = vadd.f32 %v428, %v666
        %v734 = vadd.f32 %v429, %v671
        %v735 = vadd.f32 %v430, %v674
        %v736 = vadd.f32 %v431, %v679
        %v737 = vadd.f32 %v432, %v682
        %v738 = vadd.f32 %v433, %v687
        %v739 = vadd.f32 %v434, %v690
        %v740 = vadd.f32 %v435, %v695
        %741 = vst [vmem:[#allocation2] sm:$0xff] %v700
        %742 = vst [vmem:[#allocation2 + $0x8] sm:$0xff] %v701
        %743 = vst [vmem:[#allocation2 + $0x10] sm:$0xff] %v702
        %744 = vst [vmem:[#allocation2 + $0x18] sm:$0xff] %v703
        %745 = vst [vmem:[#allocation2 + $0x20] sm:$0xff] %v704
        %746 = vst [vmem:[#allocation2 + $0x28] sm:$0xff] %v705
        %747 = vst [vmem:[#allocation2 + $0x30] sm:$0xff] %v706
        %748 = vst [vmem:[#allocation2 + $0x38] sm:$0xff] %v707
        %749 = vst [vmem:[#allocation2 + $0x40] sm:$0xff] %v708
        %750 = vst [vmem:[#allocation2 + $0x48] sm:$0xff] %v709
        %751 = vst [vmem:[#allocation2 + $0x50] sm:$0xff] %v710
        %752 = vst [vmem:[#allocation2 + $0x58] sm:$0xff] %v711
        %753 = vst [vmem:[#allocation2 + $0x60] sm:$0xff] %v712
        %754 = vst [vmem:[#allocation2 + $0x68] sm:$0xff] %v713
        %755 = vst [vmem:[#allocation2 + $0x70] sm:$0xff] %v714
        %756 = vst [vmem:[#allocation2 + $0x78] sm:$0xff] %v715
        %757 = vst [vmem:[#allocation2 + $0x80] sm:$0xff] %v716
        %758 = vst [vmem:[#allocation2 + $0x88] sm:$0xff] %v717
        %759 = vst [vmem:[#allocation2 + $0x90] sm:$0xff] %v718
        %760 = vst [vmem:[#allocation2 + $0x98] sm:$0xff] %v719
        %761 = vst [vmem:[#allocation2 + $0xa0] sm:$0xff] %v720
        %762 = vst [vmem:[#allocation2 + $0xa8] sm:$0xff] %v721
        %763 = vst [vmem:[#allocation2 + $0xb0] sm:$0xff] %v722
        %764 = vst [vmem:[#allocation2 + $0xb8] sm:$0xff] %v723
        %765 = vst [vmem:[#allocation2 + $0xc0] sm:$0xff] %v724
        %766 = vst [vmem:[#allocation2 + $0xc8] sm:$0xff] %v725
        %767 = vst [vmem:[#allocation2 + $0xd0] sm:$0xff] %v726
        %768 = vst [vmem:[#allocation2 + $0xd8] sm:$0xff] %v727
        %769 = vst [vmem:[#allocation2 + $0xe0] sm:$0xff] %v728
        %770 = vst [vmem:[#allocation2 + $0xe8] sm:$0xff] %v729
        %771 = vst [vmem:[#allocation2 + $0xf0] sm:$0xff] %v730
        %772 = vst [vmem:[#allocation2 + $0xf8] sm:$0xff] %v731
        %773 = vst [vmem:[#allocation2 + $0x100] sm:$0xff] %v732
        %774 = vst [vmem:[#allocation2 + $0x108] sm:$0xff] %v733
        %775 = vst [vmem:[#allocation2 + $0x110] sm:$0xff] %v734
        %776 = vst [vmem:[#allocation2 + $0x118] sm:$0xff] %v735
        %777 = vst [vmem:[#allocation2 + $0x120] sm:$0xff] %v736
        %778 = vst [vmem:[#allocation2 + $0x128] sm:$0xff] %v737
        %779 = vst [vmem:[#allocation2 + $0x130] sm:$0xff] %v738
        %780 = vst [vmem:[#allocation2 + $0x138] sm:$0xff] %v739
        %781 = vst [vmem:[#allocation2 + $0x140] sm:$0xff] %v740
        %v782 = vld [vmem:[%s254 + $0x1] sm:$0xff]
        %v783 = vld [vmem:[%s254 + $0x9] sm:$0xff]
        %v784 = vld [vmem:[%s254 + $0x11] sm:$0xff]
        %v785 = vld [vmem:[%s254 + $0x19] sm:$0xff]
        %v786 = vld [vmem:[%s254 + $0x21] sm:$0xff]
        %v787 = vld [vmem:[%s254 + $0x29] sm:$0xff]
        %v788 = vld [vmem:[%s254 + $0x31] sm:$0xff]
        %v789 = vld [vmem:[%s254 + $0x39] sm:$0xff]
        %v790 = vld [vmem:[%s254 + $0x41] sm:$0xff]
        %v791 = vld [vmem:[%s254 + $0x49] sm:$0xff]
        %v792 = vld [vmem:[%s254 + $0x51] sm:$0xff]
        %v793 = vld [vmem:[%s254 + $0x59] sm:$0xff]
        %v794 = vld [vmem:[%s254 + $0x61] sm:$0xff]
        %v795 = vld [vmem:[%s254 + $0x69] sm:$0xff]
        %v796 = vld [vmem:[%s254 + $0x71] sm:$0xff]
        %v797 = vld [vmem:[%s254 + $0x79] sm:$0xff]
        %v798 = vld [vmem:[%s254 + $0x81] sm:$0xff]
        %v799 = vld [vmem:[%s254 + $0x89] sm:$0xff]
        %v800 = vld [vmem:[%s254 + $0x91] sm:$0xff]
        %v801 = vld [vmem:[%s254 + $0x99] sm:$0xff]
        %v802 = vld [vmem:[%s254 + $0xa1] sm:$0xff]
        %v803 = vld [vmem:[%s254 + $0xa9] sm:$0xff]
        %v804 = vld [vmem:[%s254 + $0xb1] sm:$0xff]
        %v805 = vld [vmem:[%s254 + $0xb9] sm:$0xff]
        %v806 = vld [vmem:[%s254 + $0xc1] sm:$0xff]
        %v807 = vld [vmem:[%s254 + $0xc9] sm:$0xff]
        %v808 = vld [vmem:[%s254 + $0xd1] sm:$0xff]
        %v809 = vld [vmem:[%s254 + $0xd9] sm:$0xff]
        %v810 = vld [vmem:[%s254 + $0xe1] sm:$0xff]
        %v811 = vld [vmem:[%s254 + $0xe9] sm:$0xff]
        %v812 = vld [vmem:[%s254 + $0xf1] sm:$0xff]
        %v813 = vld [vmem:[%s254 + $0xf9] sm:$0xff]
        %v814 = vld [vmem:[%s254 + $0x101] sm:$0xff]
        %v815 = vld [vmem:[%s254 + $0x109] sm:$0xff]
        %v816 = vld [vmem:[%s254 + $0x111] sm:$0xff]
        %v817 = vld [vmem:[%s254 + $0x119] sm:$0xff]
        %v818 = vld [vmem:[%s254 + $0x121] sm:$0xff]
        %v819 = vld [vmem:[%s254 + $0x129] sm:$0xff]
        %v820 = vld [vmem:[%s254 + $0x131] sm:$0xff]
        %v821 = vld [vmem:[%s254 + $0x139] sm:$0xff]
        %v822 = vld [vmem:[%s254 + $0x141] sm:$0xff]
        %v823 = vpack.c.bf16 %v783, %v782
        %v824 = vpack.c.bf16 %v785, %v784
        %v825 = vpack.c.bf16 %v787, %v786
        %v826 = vpack.c.bf16 %v789, %v788
        %v827 = vpack.c.bf16 %v791, %v790
        %v828 = vpack.c.bf16 %v793, %v792
        %v829 = vpack.c.bf16 %v795, %v794
        %v830 = vpack.c.bf16 %v797, %v796
        %v831 = vpack.c.bf16 %v799, %v798
        %v832 = vpack.c.bf16 %v801, %v800
        %v833 = vpack.c.bf16 %v803, %v802
        %v834 = vpack.c.bf16 %v805, %v804
        %v835 = vpack.c.bf16 %v807, %v806
        %v836 = vpack.c.bf16 %v809, %v808
        %v837 = vpack.c.bf16 %v811, %v810
        %v838 = vpack.c.bf16 %v813, %v812
        %v839 = vpack.c.bf16 %v815, %v814
        %v840 = vpack.c.bf16 %v817, %v816
        %v841 = vpack.c.bf16 %v819, %v818
        %v842 = vpack.c.bf16 %v821, %v820
        %v843 = vpack.c.bf16 %v822, %v822
        %v844 = vld [vmem:[#allocation2] sm:$0xff]
        %v845 = vld [vmem:[#allocation2 + $0x8] sm:$0xff]
        %v846 = vld [vmem:[#allocation2 + $0x10] sm:$0xff]
        %v847 = vld [vmem:[#allocation2 + $0x18] sm:$0xff]
        %v848 = vld [vmem:[#allocation2 + $0x20] sm:$0xff]
        %v849 = vld [vmem:[#allocation2 + $0x28] sm:$0xff]
        %v850 = vld [vmem:[#allocation2 + $0x30] sm:$0xff]
        %v851 = vld [vmem:[#allocation2 + $0x38] sm:$0xff]
        %v852 = vld [vmem:[#allocation2 + $0x40] sm:$0xff]
        %v853 = vld [vmem:[#allocation2 + $0x48] sm:$0xff]
        %v854 = vld [vmem:[#allocation2 + $0x50] sm:$0xff]
        %v855 = vld [vmem:[#allocation2 + $0x58] sm:$0xff]
        %v856 = vld [vmem:[#allocation2 + $0x60] sm:$0xff]
        %v857 = vld [vmem:[#allocation2 + $0x68] sm:$0xff]
        %v858 = vld [vmem:[#allocation2 + $0x70] sm:$0xff]
        %v859 = vld [vmem:[#allocation2 + $0x78] sm:$0xff]
        %v860 = vld [vmem:[#allocation2 + $0x80] sm:$0xff]
        %v861 = vld [vmem:[#allocation2 + $0x88] sm:$0xff]
        %v862 = vld [vmem:[#allocation2 + $0x90] sm:$0xff]
        %v863 = vld [vmem:[#allocation2 + $0x98] sm:$0xff]
        %v864 = vld [vmem:[#allocation2 + $0xa0] sm:$0xff]
        %v865 = vld [vmem:[#allocation2 + $0xa8] sm:$0xff]
        %v866 = vld [vmem:[#allocation2 + $0xb0] sm:$0xff]
        %v867 = vld [vmem:[#allocation2 + $0xb8] sm:$0xff]
        %v868 = vld [vmem:[#allocation2 + $0xc0] sm:$0xff]
        %v869 = vld [vmem:[#allocation2 + $0xc8] sm:$0xff]
        %v870 = vld [vmem:[#allocation2 + $0xd0] sm:$0xff]
        %v871 = vld [vmem:[#allocation2 + $0xd8] sm:$0xff]
        %v872 = vld [vmem:[#allocation2 + $0xe0] sm:$0xff]
        %v873 = vld [vmem:[#allocation2 + $0xe8] sm:$0xff]
        %v874 = vld [vmem:[#allocation2 + $0xf0] sm:$0xff]
        %v875 = vld [vmem:[#allocation2 + $0xf8] sm:$0xff]
        %v876 = vld [vmem:[#allocation2 + $0x100] sm:$0xff]
        %v877 = vld [vmem:[#allocation2 + $0x108] sm:$0xff]
        %v878 = vld [vmem:[#allocation2 + $0x110] sm:$0xff]
        %v879 = vld [vmem:[#allocation2 + $0x118] sm:$0xff]
        %v880 = vld [vmem:[#allocation2 + $0x120] sm:$0xff]
        %v881 = vld [vmem:[#allocation2 + $0x128] sm:$0xff]
        %v882 = vld [vmem:[#allocation2 + $0x130] sm:$0xff]
        %v883 = vld [vmem:[#allocation2 + $0x138] sm:$0xff]
        %v884 = vld [vmem:[#allocation2 + $0x140] sm:$0xff]
        %s885 = scalar_lea.vmem [#allocation6], 64
        %v886 = vld [vmem:[%s885] sm:$0xf]
        %v887 = vld [vmem:[%s885 + $0x4] sm:$0xf]
        %v888 = vld [vmem:[%s885 + $0x8] sm:$0xf]
        %v889 = vld [vmem:[%s885 + $0xc] sm:$0xf]
        %v890 = vld [vmem:[%s885 + $0x10] sm:$0xf]
        %v891 = vld [vmem:[%s885 + $0x14] sm:$0xf]
        %v892 = vld [vmem:[%s885 + $0x18] sm:$0xf]
        %v893 = vld [vmem:[%s885 + $0x1c] sm:$0xf]
        %v894 = vld [vmem:[%s885 + $0x20] sm:$0xf]
        %v895 = vld [vmem:[%s885 + $0x24] sm:$0xf]
        %v896 = vld [vmem:[%s885 + $0x28] sm:$0xf]
        %v897 = vld [vmem:[%s885 + $0x2c] sm:$0xf]
        %v898 = vld [vmem:[%s885 + $0x30] sm:$0xf]
        %v899 = vld [vmem:[%s885 + $0x34] sm:$0xf]
        %v900 = vld [vmem:[%s885 + $0x38] sm:$0xf]
        %v901 = vld [vmem:[%s885 + $0x3c] sm:$0xf]
        %v918 = vunpack.c.l.b16 %v886
        %v919 = vunpack.c.l.b16 %v887
        %v920 = vunpack.c.l.b16 %v888
        %v921 = vunpack.c.l.b16 %v889
        %v922 = vunpack.c.l.b16 %v890
        %v923 = vunpack.c.l.b16 %v891
        %v924 = vunpack.c.l.b16 %v892
        %v925 = vunpack.c.l.b16 %v893
        %v926 = vunpack.c.l.b16 %v894
        %v927 = vunpack.c.l.b16 %v895
        %v928 = vunpack.c.l.b16 %v896
        %v929 = vunpack.c.l.b16 %v897
        %v930 = vunpack.c.l.b16 %v898
        %v931 = vunpack.c.l.b16 %v899
        %v932 = vunpack.c.l.b16 %v900
        %v933 = vunpack.c.l.b16 %v901
        %v934 = vpack.c.b16 %v919, %v918
        %v935 = vpack.c.b16 %v921, %v920
        %v936 = vpack.c.b16 %v923, %v922
        %v937 = vpack.c.b16 %v925, %v924
        %v938 = vpack.c.b16 %v927, %v926
        %v939 = vpack.c.b16 %v929, %v928
        %v940 = vpack.c.b16 %v931, %v930
        %v941 = vpack.c.b16 %v933, %v932
        %950 = vmatprep.subr.bf16.mxu0 0
        %951 = vmatpush1.bf16.msra.mxu0 %v934
        %952 = vmatprep.subr.bf16.mxu0 0
        %953 = vmatpush1.bf16.msra.mxu0 %v935
        %954 = vmatprep.subr.bf16.mxu0 0
        %955 = vmatpush1.bf16.msra.mxu0 %v936
        %956 = vmatprep.subr.bf16.mxu0 0
        %957 = vmatpush1.bf16.msra.mxu0 %v937
        %958 = vmatprep.subr.bf16.mxu0 0
        %959 = vmatpush1.bf16.msra.mxu0 %v938
        %960 = vmatprep.subr.bf16.mxu0 0
        %961 = vmatpush1.bf16.msra.mxu0 %v939
        %962 = vmatprep.subr.bf16.mxu0 0
        %963 = vmatpush1.bf16.msra.mxu0 %v940
        %964 = vmatprep.subr.bf16.mxu0 0
        %965 = vmatpush1.bf16.msra.mxu0 %v941
        %966 = vmatprep.subr.bf16.mxu0 0
        %967 = vmatpush1.bf16.msra.mxu0 0
        %968 = vmatprep.subr.bf16.mxu0 0
        %969 = vmatpush1.bf16.msra.mxu0 0
        %970 = vmatprep.subr.bf16.mxu0 0
        %971 = vmatpush1.bf16.msra.mxu0 0
        %972 = vmatprep.subr.bf16.mxu0 0
        %973 = vmatpush1.bf16.msra.mxu0 0
        %974 = vmatprep.subr.bf16.mxu0 0
        %975 = vmatpush1.bf16.msra.mxu0 0
        %976 = vmatprep.subr.bf16.mxu0 0
        %977 = vmatpush1.bf16.msra.mxu0 0
        %978 = vmatprep.subr.bf16.mxu0 0
        %979 = vmatpush1.bf16.msra.mxu0 0
        %980 = vmatprep.subr.bf16.mxu0 0
        %981 = vmatpush1.bf16.msra.mxu0 0
        %982 = vmatprep.mubr.bf16.mxu0 0
        %983 = vmatmul.mubr.bf16.gmra.mrb[0].mxu0 %v823
        %v984 = vpop.f32.mrb[0].mxu0
        %v985 = vadd.f32 0.0, %v984
        %v986 = vpop.f32.mrb[0].mxu0
        %v987 = vpop.f32.mrb[0].mxu0
        %v988 = vadd.f32 0.0, %v987
        %v989 = vpop.f32.mrb[0].mxu0
        %990 = vmatprep.mubr.bf16.mxu0 0
        %991 = vmatmul.mubr.bf16.gmra.mrb[0].mxu0 %v824
        %v992 = vpop.f32.mrb[0].mxu0
        %v993 = vadd.f32 0.0, %v992
        %v994 = vpop.f32.mrb[0].mxu0
        %v995 = vpop.f32.mrb[0].mxu0
        %v996 = vadd.f32 0.0, %v995
        %v997 = vpop.f32.mrb[0].mxu0
        %998 = vmatprep.mubr.bf16.mxu0 0
        %999 = vmatmul.mubr.bf16.gmra.mrb[0].mxu0 %v825
        %v1000 = vpop.f32.mrb[0].mxu0
        %v1001 = vadd.f32 0.0, %v1000
        %v1002 = vpop.f32.mrb[0].mxu0
        %v1003 = vpop.f32.mrb[0].mxu0
        %v1004 = vadd.f32 0.0, %v1003
        %v1005 = vpop.f32.mrb[0].mxu0
        %1006 = vmatprep.mubr.bf16.mxu0 0
        %1007 = vmatmul.mubr.bf16.gmra.mrb[0].mxu0 %v826
        %v1008 = vpop.f32.mrb[0].mxu0
        %v1009 = vadd.f32 0.0, %v1008
        %v1010 = vpop.f32.mrb[0].mxu0
        %v1011 = vpop.f32.mrb[0].mxu0
        %v1012 = vadd.f32 0.0, %v1011
        %v1013 = vpop.f32.mrb[0].mxu0
        %1014 = vmatprep.mubr.bf16.mxu0 0
        %1015 = vmatmul.mubr.bf16.gmra.mrb[0].mxu0 %v827
        %v1016 = vpop.f32.mrb[0].mxu0
        %v1017 = vadd.f32 0.0, %v1016
        %v1018 = vpop.f32.mrb[0].mxu0
        %v1019 = vpop.f32.mrb[0].mxu0
        %v1020 = vadd.f32 0.0, %v1019
        %v1021 = vpop.f32.mrb[0].mxu0
        %1022 = vmatprep.mubr.bf16.mxu0 0
        %1023 = vmatmul.mubr.bf16.gmra.mrb[0].mxu0 %v828
        %v1024 = vpop.f32.mrb[0].mxu0
        %v1025 = vadd.f32 0.0, %v1024
        %v1026 = vpop.f32.mrb[0].mxu0
        %v1027 = vpop.f32.mrb[0].mxu0
        %v1028 = vadd.f32 0.0, %v1027
        %v1029 = vpop.f32.mrb[0].mxu0
        %1030 = vmatprep.mubr.bf16.mxu0 0
        %1031 = vmatmul.mubr.bf16.gmra.mrb[0].mxu0 %v829
        %v1032 = vpop.f32.mrb[0].mxu0
        %v1033 = vadd.f32 0.0, %v1032
        %v1034 = vpop.f32.mrb[0].mxu0
        %v1035 = vpop.f32.mrb[0].mxu0
        %v1036 = vadd.f32 0.0, %v1035
        %v1037 = vpop.f32.mrb[0].mxu0
        %1038 = vmatprep.mubr.bf16.mxu0 0
        %1039 = vmatmul.mubr.bf16.gmra.mrb[0].mxu0 %v830
        %v1040 = vpop.f32.mrb[0].mxu0
        %v1041 = vadd.f32 0.0, %v1040
        %v1042 = vpop.f32.mrb[0].mxu0
        %v1043 = vpop.f32.mrb[0].mxu0
        %v1044 = vadd.f32 0.0, %v1043
        %v1045 = vpop.f32.mrb[0].mxu0
        %1046 = vmatprep.mubr.bf16.mxu0 0
        %1047 = vmatmul.mubr.bf16.gmra.mrb[0].mxu0 %v831
        %v1048 = vpop.f32.mrb[0].mxu0
        %v1049 = vadd.f32 0.0, %v1048
        %v1050 = vpop.f32.mrb[0].mxu0
        %v1051 = vpop.f32.mrb[0].mxu0
        %v1052 = vadd.f32 0.0, %v1051
        %v1053 = vpop.f32.mrb[0].mxu0
        %1054 = vmatprep.mubr.bf16.mxu0 0
        %1055 = vmatmul.mubr.bf16.gmra.mrb[0].mxu0 %v832
        %v1056 = vpop.f32.mrb[0].mxu0
        %v1057 = vadd.f32 0.0, %v1056
        %v1058 = vpop.f32.mrb[0].mxu0
        %v1059 = vpop.f32.mrb[0].mxu0
        %v1060 = vadd.f32 0.0, %v1059
        %v1061 = vpop.f32.mrb[0].mxu0
        %1062 = vmatprep.mubr.bf16.mxu0 0
        %1063 = vmatmul.mubr.bf16.gmra.mrb[0].mxu0 %v833
        %v1064 = vpop.f32.mrb[0].mxu0
        %v1065 = vadd.f32 0.0, %v1064
        %v1066 = vpop.f32.mrb[0].mxu0
        %v1067 = vpop.f32.mrb[0].mxu0
        %v1068 = vadd.f32 0.0, %v1067
        %v1069 = vpop.f32.mrb[0].mxu0
        %1070 = vmatprep.mubr.bf16.mxu0 0
        %1071 = vmatmul.mubr.bf16.gmra.mrb[0].mxu0 %v834
        %v1072 = vpop.f32.mrb[0].mxu0
        %v1073 = vadd.f32 0.0, %v1072
        %v1074 = vpop.f32.mrb[0].mxu0
        %v1075 = vpop.f32.mrb[0].mxu0
        %v1076 = vadd.f32 0.0, %v1075
        %v1077 = vpop.f32.mrb[0].mxu0
        %1078 = vmatprep.mubr.bf16.mxu0 0
        %1079 = vmatmul.mubr.bf16.gmra.mrb[0].mxu0 %v835
        %v1080 = vpop.f32.mrb[0].mxu0
        %v1081 = vadd.f32 0.0, %v1080
        %v1082 = vpop.f32.mrb[0].mxu0
        %v1083 = vpop.f32.mrb[0].mxu0
        %v1084 = vadd.f32 0.0, %v1083
        %v1085 = vpop.f32.mrb[0].mxu0
        %1086 = vmatprep.mubr.bf16.mxu0 0
        %1087 = vmatmul.mubr.bf16.gmra.mrb[0].mxu0 %v836
        %v1088 = vpop.f32.mrb[0].mxu0
        %v1089 = vadd.f32 0.0, %v1088
        %v1090 = vpop.f32.mrb[0].mxu0
        %v1091 = vpop.f32.mrb[0].mxu0
        %v1092 = vadd.f32 0.0, %v1091
        %v1093 = vpop.f32.mrb[0].mxu0
        %1094 = vmatprep.mubr.bf16.mxu0 0
        %1095 = vmatmul.mubr.bf16.gmra.mrb[0].mxu0 %v837
        %v1096 = vpop.f32.mrb[0].mxu0
        %v1097 = vadd.f32 0.0, %v1096
        %v1098 = vpop.f32.mrb[0].mxu0
        %v1099 = vpop.f32.mrb[0].mxu0
        %v1100 = vadd.f32 0.0, %v1099
        %v1101 = vpop.f32.mrb[0].mxu0
        %1102 = vmatprep.mubr.bf16.mxu0 0
        %1103 = vmatmul.mubr.bf16.gmra.mrb[0].mxu0 %v838
        %v1104 = vpop.f32.mrb[0].mxu0
        %v1105 = vadd.f32 0.0, %v1104
        %v1106 = vpop.f32.mrb[0].mxu0
        %v1107 = vpop.f32.mrb[0].mxu0
        %v1108 = vadd.f32 0.0, %v1107
        %v1109 = vpop.f32.mrb[0].mxu0
        %1110 = vmatprep.mubr.bf16.mxu0 0
        %1111 = vmatmul.mubr.bf16.gmra.mrb[0].mxu0 %v839
        %v1112 = vpop.f32.mrb[0].mxu0
        %v1113 = vadd.f32 0.0, %v1112
        %v1114 = vpop.f32.mrb[0].mxu0
        %v1115 = vpop.f32.mrb[0].mxu0
        %v1116 = vadd.f32 0.0, %v1115
        %v1117 = vpop.f32.mrb[0].mxu0
        %1118 = vmatprep.mubr.bf16.mxu0 0
        %1119 = vmatmul.mubr.bf16.gmra.mrb[0].mxu0 %v840
        %v1120 = vpop.f32.mrb[0].mxu0
        %v1121 = vadd.f32 0.0, %v1120
        %v1122 = vpop.f32.mrb[0].mxu0
        %v1123 = vpop.f32.mrb[0].mxu0
        %v1124 = vadd.f32 0.0, %v1123
        %v1125 = vpop.f32.mrb[0].mxu0
        %1126 = vmatprep.mubr.bf16.mxu0 0
        %1127 = vmatmul.mubr.bf16.gmra.mrb[0].mxu0 %v841
        %v1128 = vpop.f32.mrb[0].mxu0
        %v1129 = vadd.f32 0.0, %v1128
        %v1130 = vpop.f32.mrb[0].mxu0
        %v1131 = vpop.f32.mrb[0].mxu0
        %v1132 = vadd.f32 0.0, %v1131
        %v1133 = vpop.f32.mrb[0].mxu0
        %1134 = vmatprep.mubr.bf16.mxu0 0
        %1135 = vmatmul.mubr.bf16.gmra.mrb[0].mxu0 %v842
        %v1136 = vpop.f32.mrb[0].mxu0
        %v1137 = vadd.f32 0.0, %v1136
        %v1138 = vpop.f32.mrb[0].mxu0
        %v1139 = vpop.f32.mrb[0].mxu0
        %v1140 = vadd.f32 0.0, %v1139
        %v1141 = vpop.f32.mrb[0].mxu0
        %1142 = vmatprep.mubr.bf16.mxu0 0
        %1143 = vmatmul.mubr.bf16.gmra.mrb[0].mxu0 %v843
        %v1144 = vpop.f32.mrb[0].mxu0
        %v1145 = vadd.f32 0.0, %v1144
        %v1146 = vpop.f32.mrb[0].mxu0
        %v1147 = vpop.f32.mrb[0].mxu0
        %v1148 = vpop.f32.mrb[0].mxu0
        %1149 = vdwg.mxu0
        %v1150 = vadd.f32 %v844, %v985
        %v1151 = vadd.f32 %v845, %v988
        %v1152 = vadd.f32 %v846, %v993
        %v1153 = vadd.f32 %v847, %v996
        %v1154 = vadd.f32 %v848, %v1001
        %v1155 = vadd.f32 %v849, %v1004
        %v1156 = vadd.f32 %v850, %v1009
        %v1157 = vadd.f32 %v851, %v1012
        %v1158 = vadd.f32 %v852, %v1017
        %v1159 = vadd.f32 %v853, %v1020
        %v1160 = vadd.f32 %v854, %v1025
        %v1161 = vadd.f32 %v855, %v1028
        %v1162 = vadd.f32 %v856, %v1033
        %v1163 = vadd.f32 %v857, %v1036
        %v1164 = vadd.f32 %v858, %v1041
        %v1165 = vadd.f32 %v859, %v1044
        %v1166 = vadd.f32 %v860, %v1049
        %v1167 = vadd.f32 %v861, %v1052
        %v1168 = vadd.f32 %v862, %v1057
        %v1169 = vadd.f32 %v863, %v1060
        %v1170 = vadd.f32 %v864, %v1065
        %v1171 = vadd.f32 %v865, %v1068
        %v1172 = vadd.f32 %v866, %v1073
        %v1173 = vadd.f32 %v867, %v1076
        %v1174 = vadd.f32 %v868, %v1081
        %v1175 = vadd.f32 %v869, %v1084
        %v1176 = vadd.f32 %v870, %v1089
        %v1177 = vadd.f32 %v871, %v1092
        %v1178 = vadd.f32 %v872, %v1097
        %v1179 = vadd.f32 %v873, %v1100
        %v1180 = vadd.f32 %v874, %v1105
        %v1181 = vadd.f32 %v875, %v1108
        %v1182 = vadd.f32 %v876, %v1113
        %v1183 = vadd.f32 %v877, %v1116
        %v1184 = vadd.f32 %v878, %v1121
        %v1185 = vadd.f32 %v879, %v1124
        %v1186 = vadd.f32 %v880, %v1129
        %v1187 = vadd.f32 %v881, %v1132
        %v1188 = vadd.f32 %v882, %v1137
        %v1189 = vadd.f32 %v883, %v1140
        %v1190 = vadd.f32 %v884, %v1145
        %1191 = vst [vmem:[#allocation2] sm:$0xff] %v1150
        %1192 = vst [vmem:[#allocation2 + $0x8] sm:$0xff] %v1151
        %1193 = vst [vmem:[#allocation2 + $0x10] sm:$0xff] %v1152
        %1194 = vst [vmem:[#allocation2 + $0x18] sm:$0xff] %v1153
        %1195 = vst [vmem:[#allocation2 + $0x20] sm:$0xff] %v1154
        %1196 = vst [vmem:[#allocation2 + $0x28] sm:$0xff] %v1155
        %1197 = vst [vmem:[#allocation2 + $0x30] sm:$0xff] %v1156
        %1198 = vst [vmem:[#allocation2 + $0x38] sm:$0xff] %v1157
        %1199 = vst [vmem:[#allocation2 + $0x40] sm:$0xff] %v1158
        %1200 = vst [vmem:[#allocation2 + $0x48] sm:$0xff] %v1159
        %1201 = vst [vmem:[#allocation2 + $0x50] sm:$0xff] %v1160
        %1202 = vst [vmem:[#allocation2 + $0x58] sm:$0xff] %v1161
        %1203 = vst [vmem:[#allocation2 + $0x60] sm:$0xff] %v1162
        %1204 = vst [vmem:[#allocation2 + $0x68] sm:$0xff] %v1163
        %1205 = vst [vmem:[#allocation2 + $0x70] sm:$0xff] %v1164
        %1206 = vst [vmem:[#allocation2 + $0x78] sm:$0xff] %v1165
        %1207 = vst [vmem:[#allocation2 + $0x80] sm:$0xff] %v1166
        %1208 = vst [vmem:[#allocation2 + $0x88] sm:$0xff] %v1167
        %1209 = vst [vmem:[#allocation2 + $0x90] sm:$0xff] %v1168
        %1210 = vst [vmem:[#allocation2 + $0x98] sm:$0xff] %v1169
        %1211 = vst [vmem:[#allocation2 + $0xa0] sm:$0xff] %v1170
        %1212 = vst [vmem:[#allocation2 + $0xa8] sm:$0xff] %v1171
        %1213 = vst [vmem:[#allocation2 + $0xb0] sm:$0xff] %v1172
        %1214 = vst [vmem:[#allocation2 + $0xb8] sm:$0xff] %v1173
        %1215 = vst [vmem:[#allocation2 + $0xc0] sm:$0xff] %v1174
        %1216 = vst [vmem:[#allocation2 + $0xc8] sm:$0xff] %v1175
        %1217 = vst [vmem:[#allocation2 + $0xd0] sm:$0xff] %v1176
        %1218 = vst [vmem:[#allocation2 + $0xd8] sm:$0xff] %v1177
        %1219 = vst [vmem:[#allocation2 + $0xe0] sm:$0xff] %v1178
        %1220 = vst [vmem:[#allocation2 + $0xe8] sm:$0xff] %v1179
        %1221 = vst [vmem:[#allocation2 + $0xf0] sm:$0xff] %v1180
        %1222 = vst [vmem:[#allocation2 + $0xf8] sm:$0xff] %v1181
        %1223 = vst [vmem:[#allocation2 + $0x100] sm:$0xff] %v1182
        %1224 = vst [vmem:[#allocation2 + $0x108] sm:$0xff] %v1183
        %1225 = vst [vmem:[#allocation2 + $0x110] sm:$0xff] %v1184
        %1226 = vst [vmem:[#allocation2 + $0x118] sm:$0xff] %v1185
        %1227 = vst [vmem:[#allocation2 + $0x120] sm:$0xff] %v1186
        %1228 = vst [vmem:[#allocation2 + $0x128] sm:$0xff] %v1187
        %1229 = vst [vmem:[#allocation2 + $0x130] sm:$0xff] %v1188
        %1230 = vst [vmem:[#allocation2 + $0x138] sm:$0xff] %v1189
        %1231 = vst [vmem:[#allocation2 + $0x140] sm:$0xff] %v1190
        %v1232 = vld [vmem:[%s254 + $0x2] sm:$0xff]
        %v1233 = vld [vmem:[%s254 + $0xa] sm:$0xff]
        %v1234 = vld [vmem:[%s254 + $0x12] sm:$0xff]
        %v1235 = vld [vmem:[%s254 + $0x1a] sm:$0xff]
        %v1236 = vld [vmem:[%s254 + $0x22] sm:$0xff]
        %v1237 = vld [vmem:[%s254 + $0x2a] sm:$0xff]
        %v1238 = vld [vmem:[%s254 + $0x32] sm:$0xff]
        %v1239 = vld [vmem:[%s254 + $0x3a] sm:$0xff]
        %v1240 = vld [vmem:[%s254 + $0x42] sm:$0xff]
        %v1241 = vld [vmem:[%s254 + $0x4a] sm:$0xff]
        %v1242 = vld [vmem:[%s254 + $0x52] sm:$0xff]
        %v1243 = vld [vmem:[%s254 + $0x5a] sm:$0xff]
        %v1244 = vld [vmem:[%s254 + $0x62] sm:$0xff]
        %v1245 = vld [vmem:[%s254 + $0x6a] sm:$0xff]
        %v1246 = vld [vmem:[%s254 + $0x72] sm:$0xff]
        %v1247 = vld [vmem:[%s254 + $0x7a] sm:$0xff]
        %v1248 = vld [vmem:[%s254 + $0x82] sm:$0xff]
        %v1249 = vld [vmem:[%s254 + $0x8a] sm:$0xff]
        %v1250 = vld [vmem:[%s254 + $0x92] sm:$0xff]
        %v1251 = vld [vmem:[%s254 + $0x9a] sm:$0xff]
        %v1252 = vld [vmem:[%s254 + $0xa2] sm:$0xff]
        %v1253 = vld [vmem:[%s254 + $0xaa] sm:$0xff]
        %v1254 = vld [vmem:[%s254 + $0xb2] sm:$0xff]
        %v1255 = vld [vmem:[%s254 + $0xba] sm:$0xff]
        %v1256 = vld [vmem:[%s254 + $0xc2] sm:$0xff]
        %v1257 = vld [vmem:[%s254 + $0xca] sm:$0xff]
        %v1258 = vld [vmem:[%s254 + $0xd2] sm:$0xff]
        %v1259 = vld [vmem:[%s254 + $0xda] sm:$0xff]
        %v1260 = vld [vmem:[%s254 + $0xe2] sm:$0xff]
        %v1261 = vld [vmem:[%s254 + $0xea] sm:$0xff]
        %v1262 = vld [vmem:[%s254 + $0xf2] sm:$0xff]
        %v1263 = vld [vmem:[%s254 + $0xfa] sm:$0xff]
        %v1264 = vld [vmem:[%s254 + $0x102] sm:$0xff]
        %v1265 = vld [vmem:[%s254 + $0x10a] sm:$0xff]
        %v1266 = vld [vmem:[%s254 + $0x112] sm:$0xff]
        %v1267 = vld [vmem:[%s254 + $0x11a] sm:$0xff]
        %v1268 = vld [vmem:[%s254 + $0x122] sm:$0xff]
        %v1269 = vld [vmem:[%s254 + $0x12a] sm:$0xff]
        %v1270 = vld [vmem:[%s254 + $0x132] sm:$0xff]
        %v1271 = vld [vmem:[%s254 + $0x13a] sm:$0xff]
        %v1272 = vld [vmem:[%s254 + $0x142] sm:$0xff]
        %v1273 = vpack.c.bf16 %v1233, %v1232
        %v1274 = vpack.c.bf16 %v1235, %v1234
        %v1275 = vpack.c.bf16 %v1237, %v1236
        %v1276 = vpack.c.bf16 %v1239, %v1238
        %v1277 = vpack.c.bf16 %v1241, %v1240
        %v1278 = vpack.c.bf16 %v1243, %v1242
        %v1279 = vpack.c.bf16 %v1245, %v1244
        %v1280 = vpack.c.bf16 %v1247, %v1246
        %v1281 = vpack.c.bf16 %v1249, %v1248
        %v1282 = vpack.c.bf16 %v1251, %v1250
        %v1283 = vpack.c.bf16 %v1253, %v1252
        %v1284 = vpack.c.bf16 %v1255, %v1254
        %v1285 = vpack.c.bf16 %v1257, %v1256
        %v1286 = vpack.c.bf16 %v1259, %v1258
        %v1287 = vpack.c.bf16 %v1261, %v1260
        %v1288 = vpack.c.bf16 %v1263, %v1262
        %v1289 = vpack.c.bf16 %v1265, %v1264
        %v1290 = vpack.c.bf16 %v1267, %v1266
        %v1291 = vpack.c.bf16 %v1269, %v1268
        %v1292 = vpack.c.bf16 %v1271, %v1270
        %v1293 = vpack.c.bf16 %v1272, %v1272
        %v1294 = vld [vmem:[#allocation2] sm:$0xff]
        %v1295 = vld [vmem:[#allocation2 + $0x8] sm:$0xff]
        %v1296 = vld [vmem:[#allocation2 + $0x10] sm:$0xff]
        %v1297 = vld [vmem:[#allocation2 + $0x18] sm:$0xff]
        %v1298 = vld [vmem:[#allocation2 + $0x20] sm:$0xff]
        %v1299 = vld [vmem:[#allocation2 + $0x28] sm:$0xff]
        %v1300 = vld [vmem:[#allocation2 + $0x30] sm:$0xff]
        %v1301 = vld [vmem:[#allocation2 + $0x38] sm:$0xff]
        %v1302 = vld [vmem:[#allocation2 + $0x40] sm:$0xff]
        %v1303 = vld [vmem:[#allocation2 + $0x48] sm:$0xff]
        %v1304 = vld [vmem:[#allocation2 + $0x50] sm:$0xff]
        %v1305 = vld [vmem:[#allocation2 + $0x58] sm:$0xff]
        %v1306 = vld [vmem:[#allocation2 + $0x60] sm:$0xff]
        %v1307 = vld [vmem:[#allocation2 + $0x68] sm:$0xff]
        %v1308 = vld [vmem:[#allocation2 + $0x70] sm:$0xff]
        %v1309 = vld [vmem:[#allocation2 + $0x78] sm:$0xff]
        %v1310 = vld [vmem:[#allocation2 + $0x80] sm:$0xff]
        %v1311 = vld [vmem:[#allocation2 + $0x88] sm:$0xff]
        %v1312 = vld [vmem:[#allocation2 + $0x90] sm:$0xff]
        %v1313 = vld [vmem:[#allocation2 + $0x98] sm:$0xff]
        %v1314 = vld [vmem:[#allocation2 + $0xa0] sm:$0xff]
        %v1315 = vld [vmem:[#allocation2 + $0xa8] sm:$0xff]
        %v1316 = vld [vmem:[#allocation2 + $0xb0] sm:$0xff]
        %v1317 = vld [vmem:[#allocation2 + $0xb8] sm:$0xff]
        %v1318 = vld [vmem:[#allocation2 + $0xc0] sm:$0xff]
        %v1319 = vld [vmem:[#allocation2 + $0xc8] sm:$0xff]
        %v1320 = vld [vmem:[#allocation2 + $0xd0] sm:$0xff]
        %v1321 = vld [vmem:[#allocation2 + $0xd8] sm:$0xff]
        %v1322 = vld [vmem:[#allocation2 + $0xe0] sm:$0xff]
        %v1323 = vld [vmem:[#allocation2 + $0xe8] sm:$0xff]
        %v1324 = vld [vmem:[#allocation2 + $0xf0] sm:$0xff]
        %v1325 = vld [vmem:[#allocation2 + $0xf8] sm:$0xff]
        %v1326 = vld [vmem:[#allocation2 + $0x100] sm:$0xff]
        %v1327 = vld [vmem:[#allocation2 + $0x108] sm:$0xff]
        %v1328 = vld [vmem:[#allocation2 + $0x110] sm:$0xff]
        %v1329 = vld [vmem:[#allocation2 + $0x118] sm:$0xff]
        %v1330 = vld [vmem:[#allocation2 + $0x120] sm:$0xff]
        %v1331 = vld [vmem:[#allocation2 + $0x128] sm:$0xff]
        %v1332 = vld [vmem:[#allocation2 + $0x130] sm:$0xff]
        %v1333 = vld [vmem:[#allocation2 + $0x138] sm:$0xff]
        %v1334 = vld [vmem:[#allocation2 + $0x140] sm:$0xff]
        %s1335 = scalar_lea.vmem [#allocation6], 128
        %v1336 = vld [vmem:[%s1335] sm:$0xf]
        %v1337 = vld [vmem:[%s1335 + $0x4] sm:$0xf]
        %v1338 = vld [vmem:[%s1335 + $0x8] sm:$0xf]
        %v1339 = vld [vmem:[%s1335 + $0xc] sm:$0xf]
        %v1340 = vld [vmem:[%s1335 + $0x10] sm:$0xf]
        %v1341 = vld [vmem:[%s1335 + $0x14] sm:$0xf]
        %v1342 = vld [vmem:[%s1335 + $0x18] sm:$0xf]
        %v1343 = vld [vmem:[%s1335 + $0x1c] sm:$0xf]
        %v1344 = vld [vmem:[%s1335 + $0x20] sm:$0xf]
        %v1345 = vld [vmem:[%s1335 + $0x24] sm:$0xf]
        %v1346 = vld [vmem:[%s1335 + $0x28] sm:$0xf]
        %v1347 = vld [vmem:[%s1335 + $0x2c] sm:$0xf]
        %v1348 = vld [vmem:[%s1335 + $0x30] sm:$0xf]
        %v1349 = vld [vmem:[%s1335 + $0x34] sm:$0xf]
        %v1350 = vld [vmem:[%s1335 + $0x38] sm:$0xf]
        %v1351 = vld [vmem:[%s1335 + $0x3c] sm:$0xf]
        %v1368 = vunpack.c.l.b16 %v1336
        %v1369 = vunpack.c.l.b16 %v1337
        %v1370 = vunpack.c.l.b16 %v1338
        %v1371 = vunpack.c.l.b16 %v1339
        %v1372 = vunpack.c.l.b16 %v1340
        %v1373 = vunpack.c.l.b16 %v1341
        %v1374 = vunpack.c.l.b16 %v1342
        %v1375 = vunpack.c.l.b16 %v1343
        %v1376 = vunpack.c.l.b16 %v1344
        %v1377 = vunpack.c.l.b16 %v1345
        %v1378 = vunpack.c.l.b16 %v1346
        %v1379 = vunpack.c.l.b16 %v1347
        %v1380 = vunpack.c.l.b16 %v1348
        %v1381 = vunpack.c.l.b16 %v1349
        %v1382 = vunpack.c.l.b16 %v1350
        %v1383 = vunpack.c.l.b16 %v1351
        %v1384 = vpack.c.b16 %v1369, %v1368
        %v1385 = vpack.c.b16 %v1371, %v1370
        %v1386 = vpack.c.b16 %v1373, %v1372
        %v1387 = vpack.c.b16 %v1375, %v1374
        %v1388 = vpack.c.b16 %v1377, %v1376
        %v1389 = vpack.c.b16 %v1379, %v1378
        %v1390 = vpack.c.b16 %v1381, %v1380
        %v1391 = vpack.c.b16 %v1383, %v1382
        %1400 = vmatprep.subr.bf16.mxu0 0
        %1401 = vmatpush1.bf16.msra.mxu0 %v1384
        %1402 = vmatprep.subr.bf16.mxu0 0
        %1403 = vmatpush1.bf16.msra.mxu0 %v1385
        %1404 = vmatprep.subr.bf16.mxu0 0
        %1405 = vmatpush1.bf16.msra.mxu0 %v1386
        %1406 = vmatprep.subr.bf16.mxu0 0
        %1407 = vmatpush1.bf16.msra.mxu0 %v1387
        %1408 = vmatprep.subr.bf16.mxu0 0
        %1409 = vmatpush1.bf16.msra.mxu0 %v1388
        %1410 = vmatprep.subr.bf16.mxu0 0
        %1411 = vmatpush1.bf16.msra.mxu0 %v1389
        %1412 = vmatprep.subr.bf16.mxu0 0
        %1413 = vmatpush1.bf16.msra.mxu0 %v1390
        %1414 = vmatprep.subr.bf16.mxu0 0
        %1415 = vmatpush1.bf16.msra.mxu0 %v1391
        %1416 = vmatprep.subr.bf16.mxu0 0
        %1417 = vmatpush1.bf16.msra.mxu0 0
        %1418 = vmatprep.subr.bf16.mxu0 0
        %1419 = vmatpush1.bf16.msra.mxu0 0
        %1420 = vmatprep.subr.bf16.mxu0 0
        %1421 = vmatpush1.bf16.msra.mxu0 0
        %1422 = vmatprep.subr.bf16.mxu0 0
        %1423 = vmatpush1.bf16.msra.mxu0 0
        %1424 = vmatprep.subr.bf16.mxu0 0
        %1425 = vmatpush1.bf16.msra.mxu0 0
        %1426 = vmatprep.subr.bf16.mxu0 0
        %1427 = vmatpush1.bf16.msra.mxu0 0
        %1428 = vmatprep.subr.bf16.mxu0 0
        %1429 = vmatpush1.bf16.msra.mxu0 0
        %1430 = vmatprep.subr.bf16.mxu0 0
        %1431 = vmatpush1.bf16.msra.mxu0 0
        %1432 = vmatprep.mubr.bf16.mxu0 0
        %1433 = vmatmul.mubr.bf16.gmra.mrb[0].mxu0 %v1273
        %v1434 = vpop.f32.mrb[0].mxu0
        %v1435 = vadd.f32 0.0, %v1434
        %v1436 = vpop.f32.mrb[0].mxu0
        %v1437 = vpop.f32.mrb[0].mxu0
        %v1438 = vadd.f32 0.0, %v1437
        %v1439 = vpop.f32.mrb[0].mxu0
        %1440 = vmatprep.mubr.bf16.mxu0 0
        %1441 = vmatmul.mubr.bf16.gmra.mrb[0].mxu0 %v1274
        %v1442 = vpop.f32.mrb[0].mxu0
        %v1443 = vadd.f32 0.0, %v1442
        %v1444 = vpop.f32.mrb[0].mxu0
        %v1445 = vpop.f32.mrb[0].mxu0
        %v1446 = vadd.f32 0.0, %v1445
        %v1447 = vpop.f32.mrb[0].mxu0
        %1448 = vmatprep.mubr.bf16.mxu0 0
        %1449 = vmatmul.mubr.bf16.gmra.mrb[0].mxu0 %v1275
        %v1450 = vpop.f32.mrb[0].mxu0
        %v1451 = vadd.f32 0.0, %v1450
        %v1452 = vpop.f32.mrb[0].mxu0
        %v1453 = vpop.f32.mrb[0].mxu0
        %v1454 = vadd.f32 0.0, %v1453
        %v1455 = vpop.f32.mrb[0].mxu0
        %1456 = vmatprep.mubr.bf16.mxu0 0
        %1457 = vmatmul.mubr.bf16.gmra.mrb[0].mxu0 %v1276
        %v1458 = vpop.f32.mrb[0].mxu0
        %v1459 = vadd.f32 0.0, %v1458
        %v1460 = vpop.f32.mrb[0].mxu0
        %v1461 = vpop.f32.mrb[0].mxu0
        %v1462 = vadd.f32 0.0, %v1461
        %v1463 = vpop.f32.mrb[0].mxu0
        %1464 = vmatprep.mubr.bf16.mxu0 0
        %1465 = vmatmul.mubr.bf16.gmra.mrb[0].mxu0 %v1277
        %v1466 = vpop.f32.mrb[0].mxu0
        %v1467 = vadd.f32 0.0, %v1466
        %v1468 = vpop.f32.mrb[0].mxu0
        %v1469 = vpop.f32.mrb[0].mxu0
        %v1470 = vadd.f32 0.0, %v1469
        %v1471 = vpop.f32.mrb[0].mxu0
        %1472 = vmatprep.mubr.bf16.mxu0 0
        %1473 = vmatmul.mubr.bf16.gmra.mrb[0].mxu0 %v1278
        %v1474 = vpop.f32.mrb[0].mxu0
        %v1475 = vadd.f32 0.0, %v1474
        %v1476 = vpop.f32.mrb[0].mxu0
        %v1477 = vpop.f32.mrb[0].mxu0
        %v1478 = vadd.f32 0.0, %v1477
        %v1479 = vpop.f32.mrb[0].mxu0
        %1480 = vmatprep.mubr.bf16.mxu0 0
        %1481 = vmatmul.mubr.bf16.gmra.mrb[0].mxu0 %v1279
        %v1482 = vpop.f32.mrb[0].mxu0
        %v1483 = vadd.f32 0.0, %v1482
        %v1484 = vpop.f32.mrb[0].mxu0
        %v1485 = vpop.f32.mrb[0].mxu0
        %v1486 = vadd.f32 0.0, %v1485
        %v1487 = vpop.f32.mrb[0].mxu0
        %1488 = vmatprep.mubr.bf16.mxu0 0
        %1489 = vmatmul.mubr.bf16.gmra.mrb[0].mxu0 %v1280
        %v1490 = vpop.f32.mrb[0].mxu0
        %v1491 = vadd.f32 0.0, %v1490
        %v1492 = vpop.f32.mrb[0].mxu0
        %v1493 = vpop.f32.mrb[0].mxu0
        %v1494 = vadd.f32 0.0, %v1493
        %v1495 = vpop.f32.mrb[0].mxu0
        %1496 = vmatprep.mubr.bf16.mxu0 0
        %1497 = vmatmul.mubr.bf16.gmra.mrb[0].mxu0 %v1281
        %v1498 = vpop.f32.mrb[0].mxu0
        %v1499 = vadd.f32 0.0, %v1498
        %v1500 = vpop.f32.mrb[0].mxu0
        %v1501 = vpop.f32.mrb[0].mxu0
        %v1502 = vadd.f32 0.0, %v1501
        %v1503 = vpop.f32.mrb[0].mxu0
        %1504 = vmatprep.mubr.bf16.mxu0 0
        %1505 = vmatmul.mubr.bf16.gmra.mrb[0].mxu0 %v1282
        %v1506 = vpop.f32.mrb[0].mxu0
        %v1507 = vadd.f32 0.0, %v1506
        %v1508 = vpop.f32.mrb[0].mxu0
        %v1509 = vpop.f32.mrb[0].mxu0
        %v1510 = vadd.f32 0.0, %v1509
        %v1511 = vpop.f32.mrb[0].mxu0
        %1512 = vmatprep.mubr.bf16.mxu0 0
        %1513 = vmatmul.mubr.bf16.gmra.mrb[0].mxu0 %v1283
        %v1514 = vpop.f32.mrb[0].mxu0
        %v1515 = vadd.f32 0.0, %v1514
        %v1516 = vpop.f32.mrb[0].mxu0
        %v1517 = vpop.f32.mrb[0].mxu0
        %v1518 = vadd.f32 0.0, %v1517
        %v1519 = vpop.f32.mrb[0].mxu0
        %1520 = vmatprep.mubr.bf16.mxu0 0
        %1521 = vmatmul.mubr.bf16.gmra.mrb[0].mxu0 %v1284
        %v1522 = vpop.f32.mrb[0].mxu0
        %v1523 = vadd.f32 0.0, %v1522
        %v1524 = vpop.f32.mrb[0].mxu0
        %v1525 = vpop.f32.mrb[0].mxu0
        %v1526 = vadd.f32 0.0, %v1525
        %v1527 = vpop.f32.mrb[0].mxu0
        %1528 = vmatprep.mubr.bf16.mxu0 0
        %1529 = vmatmul.mubr.bf16.gmra.mrb[0].mxu0 %v1285
        %v1530 = vpop.f32.mrb[0].mxu0
        %v1531 = vadd.f32 0.0, %v1530
        %v1532 = vpop.f32.mrb[0].mxu0
        %v1533 = vpop.f32.mrb[0].mxu0
        %v1534 = vadd.f32 0.0, %v1533
        %v1535 = vpop.f32.mrb[0].mxu0
        %1536 = vmatprep.mubr.bf16.mxu0 0
        %1537 = vmatmul.mubr.bf16.gmra.mrb[0].mxu0 %v1286
        %v1538 = vpop.f32.mrb[0].mxu0
        %v1539 = vadd.f32 0.0, %v1538
        %v1540 = vpop.f32.mrb[0].mxu0
        %v1541 = vpop.f32.mrb[0].mxu0
        %v1542 = vadd.f32 0.0, %v1541
        %v1543 = vpop.f32.mrb[0].mxu0
        %1544 = vmatprep.mubr.bf16.mxu0 0
        %1545 = vmatmul.mubr.bf16.gmra.mrb[0].mxu0 %v1287
        %v1546 = vpop.f32.mrb[0].mxu0
        %v1547 = vadd.f32 0.0, %v1546
        %v1548 = vpop.f32.mrb[0].mxu0
        %v1549 = vpop.f32.mrb[0].mxu0
        %v1550 = vadd.f32 0.0, %v1549
        %v1551 = vpop.f32.mrb[0].mxu0
        %1552 = vmatprep.mubr.bf16.mxu0 0
        %1553 = vmatmul.mubr.bf16.gmra.mrb[0].mxu0 %v1288
        %v1554 = vpop.f32.mrb[0].mxu0
        %v1555 = vadd.f32 0.0, %v1554
        %v1556 = vpop.f32.mrb[0].mxu0
        %v1557 = vpop.f32.mrb[0].mxu0
        %v1558 = vadd.f32 0.0, %v1557
        %v1559 = vpop.f32.mrb[0].mxu0
        %1560 = vmatprep.mubr.bf16.mxu0 0
        %1561 = vmatmul.mubr.bf16.gmra.mrb[0].mxu0 %v1289
        %v1562 = vpop.f32.mrb[0].mxu0
        %v1563 = vadd.f32 0.0, %v1562
        %v1564 = vpop.f32.mrb[0].mxu0
        %v1565 = vpop.f32.mrb[0].mxu0
        %v1566 = vadd.f32 0.0, %v1565
        %v1567 = vpop.f32.mrb[0].mxu0
        %1568 = vmatprep.mubr.bf16.mxu0 0
        %1569 = vmatmul.mubr.bf16.gmra.mrb[0].mxu0 %v1290
        %v1570 = vpop.f32.mrb[0].mxu0
        %v1571 = vadd.f32 0.0, %v1570
        %v1572 = vpop.f32.mrb[0].mxu0
        %v1573 = vpop.f32.mrb[0].mxu0
        %v1574 = vadd.f32 0.0, %v1573
        %v1575 = vpop.f32.mrb[0].mxu0
        %1576 = vmatprep.mubr.bf16.mxu0 0
        %1577 = vmatmul.mubr.bf16.gmra.mrb[0].mxu0 %v1291
        %v1578 = vpop.f32.mrb[0].mxu0
        %v1579 = vadd.f32 0.0, %v1578
        %v1580 = vpop.f32.mrb[0].mxu0
        %v1581 = vpop.f32.mrb[0].mxu0
        %v1582 = vadd.f32 0.0, %v1581
        %v1583 = vpop.f32.mrb[0].mxu0
        %1584 = vmatprep.mubr.bf16.mxu0 0
        %1585 = vmatmul.mubr.bf16.gmra.mrb[0].mxu0 %v1292
        %v1586 = vpop.f32.mrb[0].mxu0
        %v1587 = vadd.f32 0.0, %v1586
        %v1588 = vpop.f32.mrb[0].mxu0
        %v1589 = vpop.f32.mrb[0].mxu0
        %v1590 = vadd.f32 0.0, %v1589
        %v1591 = vpop.f32.mrb[0].mxu0
        %1592 = vmatprep.mubr.bf16.mxu0 0
        %1593 = vmatmul.mubr.bf16.gmra.mrb[0].mxu0 %v1293
        %v1594 = vpop.f32.mrb[0].mxu0
        %v1595 = vadd.f32 0.0, %v1594
        %v1596 = vpop.f32.mrb[0].mxu0
        %v1597 = vpop.f32.mrb[0].mxu0
        %v1598 = vpop.f32.mrb[0].mxu0
        %1599 = vdwg.mxu0
        %v1600 = vadd.f32 %v1294, %v1435
        %v1601 = vadd.f32 %v1295, %v1438
        %v1602 = vadd.f32 %v1296, %v1443
        %v1603 = vadd.f32 %v1297, %v1446
        %v1604 = vadd.f32 %v1298, %v1451
        %v1605 = vadd.f32 %v1299, %v1454
        %v1606 = vadd.f32 %v1300, %v1459
        %v1607 = vadd.f32 %v1301, %v1462
        %v1608 = vadd.f32 %v1302, %v1467
        %v1609 = vadd.f32 %v1303, %v1470
        %v1610 = vadd.f32 %v1304, %v1475
        %v1611 = vadd.f32 %v1305, %v1478
        %v1612 = vadd.f32 %v1306, %v1483
        %v1613 = vadd.f32 %v1307, %v1486
        %v1614 = vadd.f32 %v1308, %v1491
        %v1615 = vadd.f32 %v1309, %v1494
        %v1616 = vadd.f32 %v1310, %v1499
        %v1617 = vadd.f32 %v1311, %v1502
        %v1618 = vadd.f32 %v1312, %v1507
        %v1619 = vadd.f32 %v1313, %v1510
        %v1620 = vadd.f32 %v1314, %v1515
        %v1621 = vadd.f32 %v1315, %v1518
        %v1622 = vadd.f32 %v1316, %v1523
        %v1623 = vadd.f32 %v1317, %v1526
        %v1624 = vadd.f32 %v1318, %v1531
        %v1625 = vadd.f32 %v1319, %v1534
        %v1626 = vadd.f32 %v1320, %v1539
        %v1627 = vadd.f32 %v1321, %v1542
        %v1628 = vadd.f32 %v1322, %v1547
        %v1629 = vadd.f32 %v1323, %v1550
        %v1630 = vadd.f32 %v1324, %v1555
        %v1631 = vadd.f32 %v1325, %v1558
        %v1632 = vadd.f32 %v1326, %v1563
        %v1633 = vadd.f32 %v1327, %v1566
        %v1634 = vadd.f32 %v1328, %v1571
        %v1635 = vadd.f32 %v1329, %v1574
        %v1636 = vadd.f32 %v1330, %v1579
        %v1637 = vadd.f32 %v1331, %v1582
        %v1638 = vadd.f32 %v1332, %v1587
        %v1639 = vadd.f32 %v1333, %v1590
        %v1640 = vadd.f32 %v1334, %v1595
        %1641 = vst [vmem:[#allocation2] sm:$0xff] %v1600
        %1642 = vst [vmem:[#allocation2 + $0x8] sm:$0xff] %v1601
        %1643 = vst [vmem:[#allocation2 + $0x10] sm:$0xff] %v1602
        %1644 = vst [vmem:[#allocation2 + $0x18] sm:$0xff] %v1603
        %1645 = vst [vmem:[#allocation2 + $0x20] sm:$0xff] %v1604
        %1646 = vst [vmem:[#allocation2 + $0x28] sm:$0xff] %v1605
        %1647 = vst [vmem:[#allocation2 + $0x30] sm:$0xff] %v1606
        %1648 = vst [vmem:[#allocation2 + $0x38] sm:$0xff] %v1607
        %1649 = vst [vmem:[#allocation2 + $0x40] sm:$0xff] %v1608
        %1650 = vst [vmem:[#allocation2 + $0x48] sm:$0xff] %v1609
        %1651 = vst [vmem:[#allocation2 + $0x50] sm:$0xff] %v1610
        %1652 = vst [vmem:[#allocation2 + $0x58] sm:$0xff] %v1611
        %1653 = vst [vmem:[#allocation2 + $0x60] sm:$0xff] %v1612
        %1654 = vst [vmem:[#allocation2 + $0x68] sm:$0xff] %v1613
        %1655 = vst [vmem:[#allocation2 + $0x70] sm:$0xff] %v1614
        %1656 = vst [vmem:[#allocation2 + $0x78] sm:$0xff] %v1615
        %1657 = vst [vmem:[#allocation2 + $0x80] sm:$0xff] %v1616
        %1658 = vst [vmem:[#allocation2 + $0x88] sm:$0xff] %v1617
        %1659 = vst [vmem:[#allocation2 + $0x90] sm:$0xff] %v1618
        %1660 = vst [vmem:[#allocation2 + $0x98] sm:$0xff] %v1619
        %1661 = vst [vmem:[#allocation2 + $0xa0] sm:$0xff] %v1620
        %1662 = vst [vmem:[#allocation2 + $0xa8] sm:$0xff] %v1621
        %1663 = vst [vmem:[#allocation2 + $0xb0] sm:$0xff] %v1622
        %1664 = vst [vmem:[#allocation2 + $0xb8] sm:$0xff] %v1623
        %1665 = vst [vmem:[#allocation2 + $0xc0] sm:$0xff] %v1624
        %1666 = vst [vmem:[#allocation2 + $0xc8] sm:$0xff] %v1625
        %1667 = vst [vmem:[#allocation2 + $0xd0] sm:$0xff] %v1626
        %1668 = vst [vmem:[#allocation2 + $0xd8] sm:$0xff] %v1627
        %1669 = vst [vmem:[#allocation2 + $0xe0] sm:$0xff] %v1628
        %1670 = vst [vmem:[#allocation2 + $0xe8] sm:$0xff] %v1629
        %1671 = vst [vmem:[#allocation2 + $0xf0] sm:$0xff] %v1630
        %1672 = vst [vmem:[#allocation2 + $0xf8] sm:$0xff] %v1631
        %1673 = vst [vmem:[#allocation2 + $0x100] sm:$0xff] %v1632
        %1674 = vst [vmem:[#allocation2 + $0x108] sm:$0xff] %v1633
        %1675 = vst [vmem:[#allocation2 + $0x110] sm:$0xff] %v1634
        %1676 = vst [vmem:[#allocation2 + $0x118] sm:$0xff] %v1635
        %1677 = vst [vmem:[#allocation2 + $0x120] sm:$0xff] %v1636
        %1678 = vst [vmem:[#allocation2 + $0x128] sm:$0xff] %v1637
        %1679 = vst [vmem:[#allocation2 + $0x130] sm:$0xff] %v1638
        %1680 = vst [vmem:[#allocation2 + $0x138] sm:$0xff] %v1639
        %1681 = vst [vmem:[#allocation2 + $0x140] sm:$0xff] %v1640
        %v1682 = vld [vmem:[%s254 + $0x12] sm:$0xff]
        %v1683 = vld [vmem:[%s254 + $0x1a] sm:$0xff]
        %v1684 = vld [vmem:[%s254 + $0x22] sm:$0xff]
        %v1685 = vld [vmem:[%s254 + $0x2a] sm:$0xff]
        %v1686 = vld [vmem:[%s254 + $0x32] sm:$0xff]
        %v1687 = vld [vmem:[%s254 + $0x3a] sm:$0xff]
        %v1688 = vld [vmem:[%s254 + $0x42] sm:$0xff]
        %v1689 = vld [vmem:[%s254 + $0x4a] sm:$0xff]
        %v1690 = vld [vmem:[%s254 + $0x52] sm:$0xff]
        %v1691 = vld [vmem:[%s254 + $0x5a] sm:$0xff]
        %v1692 = vld [vmem:[%s254 + $0x62] sm:$0xff]
        %v1693 = vld [vmem:[%s254 + $0x6a] sm:$0xff]
        %v1694 = vld [vmem:[%s254 + $0x72] sm:$0xff]
        %v1695 = vld [vmem:[%s254 + $0x7a] sm:$0xff]
        %v1696 = vld [vmem:[%s254 + $0x82] sm:$0xff]
        %v1697 = vld [vmem:[%s254 + $0x8a] sm:$0xff]
        %v1698 = vld [vmem:[%s254 + $0x92] sm:$0xff]
        %v1699 = vld [vmem:[%s254 + $0x9a] sm:$0xff]
        %v1700 = vld [vmem:[%s254 + $0xa2] sm:$0xff]
        %v1701 = vld [vmem:[%s254 + $0xaa] sm:$0xff]
        %v1702 = vld [vmem:[%s254 + $0xb2] sm:$0xff]
        %v1703 = vld [vmem:[%s254 + $0xba] sm:$0xff]
        %v1704 = vld [vmem:[%s254 + $0xc2] sm:$0xff]
        %v1705 = vld [vmem:[%s254 + $0xca] sm:$0xff]
        %v1706 = vld [vmem:[%s254 + $0xd2] sm:$0xff]
        %v1707 = vld [vmem:[%s254 + $0xda] sm:$0xff]
        %v1708 = vld [vmem:[%s254 + $0xe2] sm:$0xff]
        %v1709 = vld [vmem:[%s254 + $0xea] sm:$0xff]
        %v1710 = vld [vmem:[%s254 + $0xf2] sm:$0xff]
        %v1711 = vld [vmem:[%s254 + $0xfa] sm:$0xff]
        %v1712 = vld [vmem:[%s254 + $0x102] sm:$0xff]
        %v1713 = vld [vmem:[%s254 + $0x10a] sm:$0xff]
        %v1714 = vld [vmem:[%s254 + $0x112] sm:$0xff]
        %v1715 = vld [vmem:[%s254 + $0x11a] sm:$0xff]
        %v1716 = vld [vmem:[%s254 + $0x122] sm:$0xff]
        %v1717 = vld [vmem:[%s254 + $0x12a] sm:$0xff]
        %v1718 = vld [vmem:[%s254 + $0x132] sm:$0xff]
        %v1719 = vld [vmem:[%s254 + $0x13a] sm:$0xff]
        %v1720 = vld [vmem:[%s254 + $0x142] sm:$0xff]
        %v1721 = vld [vmem:[%s254 + $0x14a] sm:$0xff]
        %v1722 = vld [vmem:[%s254 + $0x152] sm:$0xff]
        %v1723 = vpack.c.bf16 %v1683, %v1682
        %v1724 = vpack.c.bf16 %v1685, %v1684
        %v1725 = vpack.c.bf16 %v1687, %v1686
        %v1726 = vpack.c.bf16 %v1689, %v1688
        %v1727 = vpack.c.bf16 %v1691, %v1690
        %v1728 = vpack.c.bf16 %v1693, %v1692
        %v1729 = vpack.c.bf16 %v1695, %v1694
        %v1730 = vpack.c.bf16 %v1697, %v1696
        %v1731 = vpack.c.bf16 %v1699, %v1698
        %v1732 = vpack.c.bf16 %v1701, %v1700
        %v1733 = vpack.c.bf16 %v1703, %v1702
        %v1734 = vpack.c.bf16 %v1705, %v1704
        %v1735 = vpack.c.bf16 %v1707, %v1706
        %v1736 = vpack.c.bf16 %v1709, %v1708
        %v1737 = vpack.c.bf16 %v1711, %v1710
        %v1738 = vpack.c.bf16 %v1713, %v1712
        %v1739 = vpack.c.bf16 %v1715, %v1714
        %v1740 = vpack.c.bf16 %v1717, %v1716
        %v1741 = vpack.c.bf16 %v1719, %v1718
        %v1742 = vpack.c.bf16 %v1721, %v1720
        %v1743 = vpack.c.bf16 %v1722, %v1722
        %v1744 = vld [vmem:[#allocation2] sm:$0xff]
        %v1745 = vld [vmem:[#allocation2 + $0x8] sm:$0xff]
        %v1746 = vld [vmem:[#allocation2 + $0x10] sm:$0xff]
        %v1747 = vld [vmem:[#allocation2 + $0x18] sm:$0xff]
        %v1748 = vld [vmem:[#allocation2 + $0x20] sm:$0xff]
        %v1749 = vld [vmem:[#allocation2 + $0x28] sm:$0xff]
        %v1750 = vld [vmem:[#allocation2 + $0x30] sm:$0xff]
        %v1751 = vld [vmem:[#allocation2 + $0x38] sm:$0xff]
        %v1752 = vld [vmem:[#allocation2 + $0x40] sm:$0xff]
        %v1753 = vld [vmem:[#allocation2 + $0x48] sm:$0xff]
        %v1754 = vld [vmem:[#allocation2 + $0x50] sm:$0xff]
        %v1755 = vld [vmem:[#allocation2 + $0x58] sm:$0xff]
        %v1756 = vld [vmem:[#allocation2 + $0x60] sm:$0xff]
        %v1757 = vld [vmem:[#allocation2 + $0x68] sm:$0xff]
        %v1758 = vld [vmem:[#allocation2 + $0x70] sm:$0xff]
        %v1759 = vld [vmem:[#allocation2 + $0x78] sm:$0xff]
        %v1760 = vld [vmem:[#allocation2 + $0x80] sm:$0xff]
        %v1761 = vld [vmem:[#allocation2 + $0x88] sm:$0xff]
        %v1762 = vld [vmem:[#allocation2 + $0x90] sm:$0xff]
        %v1763 = vld [vmem:[#allocation2 + $0x98] sm:$0xff]
        %v1764 = vld [vmem:[#allocation2 + $0xa0] sm:$0xff]
        %v1765 = vld [vmem:[#allocation2 + $0xa8] sm:$0xff]
        %v1766 = vld [vmem:[#allocation2 + $0xb0] sm:$0xff]
        %v1767 = vld [vmem:[#allocation2 + $0xb8] sm:$0xff]
        %v1768 = vld [vmem:[#allocation2 + $0xc0] sm:$0xff]
        %v1769 = vld [vmem:[#allocation2 + $0xc8] sm:$0xff]
        %v1770 = vld [vmem:[#allocation2 + $0xd0] sm:$0xff]
        %v1771 = vld [vmem:[#allocation2 + $0xd8] sm:$0xff]
        %v1772 = vld [vmem:[#allocation2 + $0xe0] sm:$0xff]
        %v1773 = vld [vmem:[#allocation2 + $0xe8] sm:$0xff]
        %v1774 = vld [vmem:[#allocation2 + $0xf0] sm:$0xff]
        %v1775 = vld [vmem:[#allocation2 + $0xf8] sm:$0xff]
        %v1776 = vld [vmem:[#allocation2 + $0x100] sm:$0xff]
        %v1777 = vld [vmem:[#allocation2 + $0x108] sm:$0xff]
        %v1778 = vld [vmem:[#allocation2 + $0x110] sm:$0xff]
        %v1779 = vld [vmem:[#allocation2 + $0x118] sm:$0xff]
        %v1780 = vld [vmem:[#allocation2 + $0x120] sm:$0xff]
        %v1781 = vld [vmem:[#allocation2 + $0x128] sm:$0xff]
        %v1782 = vld [vmem:[#allocation2 + $0x130] sm:$0xff]
        %v1783 = vld [vmem:[#allocation2 + $0x138] sm:$0xff]
        %v1784 = vld [vmem:[#allocation2 + $0x140] sm:$0xff]
        %s1785 = scalar_lea.vmem [#allocation6], 192
        %v1786 = vld [vmem:[%s1785] sm:$0xf]
        %v1787 = vld [vmem:[%s1785 + $0x4] sm:$0xf]
        %v1788 = vld [vmem:[%s1785 + $0x8] sm:$0xf]
        %v1789 = vld [vmem:[%s1785 + $0xc] sm:$0xf]
        %v1790 = vld [vmem:[%s1785 + $0x10] sm:$0xf]
        %v1791 = vld [vmem:[%s1785 + $0x14] sm:$0xf]
        %v1792 = vld [vmem:[%s1785 + $0x18] sm:$0xf]
        %v1793 = vld [vmem:[%s1785 + $0x1c] sm:$0xf]
        %v1794 = vld [vmem:[%s1785 + $0x20] sm:$0xf]
        %v1795 = vld [vmem:[%s1785 + $0x24] sm:$0xf]
        %v1796 = vld [vmem:[%s1785 + $0x28] sm:$0xf]
        %v1797 = vld [vmem:[%s1785 + $0x2c] sm:$0xf]
        %v1798 = vld [vmem:[%s1785 + $0x30] sm:$0xf]
        %v1799 = vld [vmem:[%s1785 + $0x34] sm:$0xf]
        %v1800 = vld [vmem:[%s1785 + $0x38] sm:$0xf]
        %v1801 = vld [vmem:[%s1785 + $0x3c] sm:$0xf]
        %v1818 = vunpack.c.l.b16 %v1786
        %v1819 = vunpack.c.l.b16 %v1787
        %v1820 = vunpack.c.l.b16 %v1788
        %v1821 = vunpack.c.l.b16 %v1789
        %v1822 = vunpack.c.l.b16 %v1790
        %v1823 = vunpack.c.l.b16 %v1791
        %v1824 = vunpack.c.l.b16 %v1792
        %v1825 = vunpack.c.l.b16 %v1793
        %v1826 = vunpack.c.l.b16 %v1794
        %v1827 = vunpack.c.l.b16 %v1795
        %v1828 = vunpack.c.l.b16 %v1796
        %v1829 = vunpack.c.l.b16 %v1797
        %v1830 = vunpack.c.l.b16 %v1798
        %v1831 = vunpack.c.l.b16 %v1799
        %v1832 = vunpack.c.l.b16 %v1800
        %v1833 = vunpack.c.l.b16 %v1801
        %v1834 = vpack.c.b16 %v1819, %v1818
        %v1835 = vpack.c.b16 %v1821, %v1820
        %v1836 = vpack.c.b16 %v1823, %v1822
        %v1837 = vpack.c.b16 %v1825, %v1824
        %v1838 = vpack.c.b16 %v1827, %v1826
        %v1839 = vpack.c.b16 %v1829, %v1828
        %v1840 = vpack.c.b16 %v1831, %v1830
        %v1841 = vpack.c.b16 %v1833, %v1832
        %1850 = vmatprep.subr.bf16.mxu0 0
        %1851 = vmatpush1.bf16.msra.mxu0 %v1834
        %1852 = vmatprep.subr.bf16.mxu0 0
        %1853 = vmatpush1.bf16.msra.mxu0 %v1835
        %1854 = vmatprep.subr.bf16.mxu0 0
        %1855 = vmatpush1.bf16.msra.mxu0 %v1836
        %1856 = vmatprep.subr.bf16.mxu0 0
        %1857 = vmatpush1.bf16.msra.mxu0 %v1837
        %1858 = vmatprep.subr.bf16.mxu0 0
        %1859 = vmatpush1.bf16.msra.mxu0 %v1838
        %1860 = vmatprep.subr.bf16.mxu0 0
        %1861 = vmatpush1.bf16.msra.mxu0 %v1839
        %1862 = vmatprep.subr.bf16.mxu0 0
        %1863 = vmatpush1.bf16.msra.mxu0 %v1840
        %1864 = vmatprep.subr.bf16.mxu0 0
        %1865 = vmatpush1.bf16.msra.mxu0 %v1841
        %1866 = vmatprep.subr.bf16.mxu0 0
        %1867 = vmatpush1.bf16.msra.mxu0 0
        %1868 = vmatprep.subr.bf16.mxu0 0
        %1869 = vmatpush1.bf16.msra.mxu0 0
        %1870 = vmatprep.subr.bf16.mxu0 0
        %1871 = vmatpush1.bf16.msra.mxu0 0
        %1872 = vmatprep.subr.bf16.mxu0 0
        %1873 = vmatpush1.bf16.msra.mxu0 0
        %1874 = vmatprep.subr.bf16.mxu0 0
        %1875 = vmatpush1.bf16.msra.mxu0 0
        %1876 = vmatprep.subr.bf16.mxu0 0
        %1877 = vmatpush1.bf16.msra.mxu0 0
        %1878 = vmatprep.subr.bf16.mxu0 0
        %1879 = vmatpush1.bf16.msra.mxu0 0
        %1880 = vmatprep.subr.bf16.mxu0 0
        %1881 = vmatpush1.bf16.msra.mxu0 0
        %1882 = vmatprep.mubr.bf16.mxu0 0
        %1883 = vmatmul.mubr.bf16.gmra.mrb[0].mxu0 %v1723
        %v1884 = vpop.f32.mrb[0].mxu0
        %v1885 = vadd.f32 0.0, %v1884
        %v1886 = vpop.f32.mrb[0].mxu0
        %v1887 = vpop.f32.mrb[0].mxu0
        %v1888 = vadd.f32 0.0, %v1887
        %v1889 = vpop.f32.mrb[0].mxu0
        %1890 = vmatprep.mubr.bf16.mxu0 0
        %1891 = vmatmul.mubr.bf16.gmra.mrb[0].mxu0 %v1724
        %v1892 = vpop.f32.mrb[0].mxu0
        %v1893 = vadd.f32 0.0, %v1892
        %v1894 = vpop.f32.mrb[0].mxu0
        %v1895 = vpop.f32.mrb[0].mxu0
        %v1896 = vadd.f32 0.0, %v1895
        %v1897 = vpop.f32.mrb[0].mxu0
        %1898 = vmatprep.mubr.bf16.mxu0 0
        %1899 = vmatmul.mubr.bf16.gmra.mrb[0].mxu0 %v1725
        %v1900 = vpop.f32.mrb[0].mxu0
        %v1901 = vadd.f32 0.0, %v1900
        %v1902 = vpop.f32.mrb[0].mxu0
        %v1903 = vpop.f32.mrb[0].mxu0
        %v1904 = vadd.f32 0.0, %v1903
        %v1905 = vpop.f32.mrb[0].mxu0
        %1906 = vmatprep.mubr.bf16.mxu0 0
        %1907 = vmatmul.mubr.bf16.gmra.mrb[0].mxu0 %v1726
        %v1908 = vpop.f32.mrb[0].mxu0
        %v1909 = vadd.f32 0.0, %v1908
        %v1910 = vpop.f32.mrb[0].mxu0
        %v1911 = vpop.f32.mrb[0].mxu0
        %v1912 = vadd.f32 0.0, %v1911
        %v1913 = vpop.f32.mrb[0].mxu0
        %1914 = vmatprep.mubr.bf16.mxu0 0
        %1915 = vmatmul.mubr.bf16.gmra.mrb[0].mxu0 %v1727
        %v1916 = vpop.f32.mrb[0].mxu0
        %v1917 = vadd.f32 0.0, %v1916
        %v1918 = vpop.f32.mrb[0].mxu0
        %v1919 = vpop.f32.mrb[0].mxu0
        %v1920 = vadd.f32 0.0, %v1919
        %v1921 = vpop.f32.mrb[0].mxu0
        %1922 = vmatprep.mubr.bf16.mxu0 0
        %1923 = vmatmul.mubr.bf16.gmra.mrb[0].mxu0 %v1728
        %v1924 = vpop.f32.mrb[0].mxu0
        %v1925 = vadd.f32 0.0, %v1924
        %v1926 = vpop.f32.mrb[0].mxu0
        %v1927 = vpop.f32.mrb[0].mxu0
        %v1928 = vadd.f32 0.0, %v1927
        %v1929 = vpop.f32.mrb[0].mxu0
        %1930 = vmatprep.mubr.bf16.mxu0 0
        %1931 = vmatmul.mubr.bf16.gmra.mrb[0].mxu0 %v1729
        %v1932 = vpop.f32.mrb[0].mxu0
        %v1933 = vadd.f32 0.0, %v1932
        %v1934 = vpop.f32.mrb[0].mxu0
        %v1935 = vpop.f32.mrb[0].mxu0
        %v1936 = vadd.f32 0.0, %v1935
        %v1937 = vpop.f32.mrb[0].mxu0
        %1938 = vmatprep.mubr.bf16.mxu0 0
        %1939 = vmatmul.mubr.bf16.gmra.mrb[0].mxu0 %v1730
        %v1940 = vpop.f32.mrb[0].mxu0
        %v1941 = vadd.f32 0.0, %v1940
        %v1942 = vpop.f32.mrb[0].mxu0
        %v1943 = vpop.f32.mrb[0].mxu0
        %v1944 = vadd.f32 0.0, %v1943
        %v1945 = vpop.f32.mrb[0].mxu0
        %1946 = vmatprep.mubr.bf16.mxu0 0
        %1947 = vmatmul.mubr.bf16.gmra.mrb[0].mxu0 %v1731
        %v1948 = vpop.f32.mrb[0].mxu0
        %v1949 = vadd.f32 0.0, %v1948
        %v1950 = vpop.f32.mrb[0].mxu0
        %v1951 = vpop.f32.mrb[0].mxu0
        %v1952 = vadd.f32 0.0, %v1951
        %v1953 = vpop.f32.mrb[0].mxu0
        %1954 = vmatprep.mubr.bf16.mxu0 0
        %1955 = vmatmul.mubr.bf16.gmra.mrb[0].mxu0 %v1732
        %v1956 = vpop.f32.mrb[0].mxu0
        %v1957 = vadd.f32 0.0, %v1956
        %v1958 = vpop.f32.mrb[0].mxu0
        %v1959 = vpop.f32.mrb[0].mxu0
        %v1960 = vadd.f32 0.0, %v1959
        %v1961 = vpop.f32.mrb[0].mxu0
        %1962 = vmatprep.mubr.bf16.mxu0 0
        %1963 = vmatmul.mubr.bf16.gmra.mrb[0].mxu0 %v1733
        %v1964 = vpop.f32.mrb[0].mxu0
        %v1965 = vadd.f32 0.0, %v1964
        %v1966 = vpop.f32.mrb[0].mxu0
        %v1967 = vpop.f32.mrb[0].mxu0
        %v1968 = vadd.f32 0.0, %v1967
        %v1969 = vpop.f32.mrb[0].mxu0
        %1970 = vmatprep.mubr.bf16.mxu0 0
        %1971 = vmatmul.mubr.bf16.gmra.mrb[0].mxu0 %v1734
        %v1972 = vpop.f32.mrb[0].mxu0
        %v1973 = vadd.f32 0.0, %v1972
        %v1974 = vpop.f32.mrb[0].mxu0
        %v1975 = vpop.f32.mrb[0].mxu0
        %v1976 = vadd.f32 0.0, %v1975
        %v1977 = vpop.f32.mrb[0].mxu0
        %1978 = vmatprep.mubr.bf16.mxu0 0
        %1979 = vmatmul.mubr.bf16.gmra.mrb[0].mxu0 %v1735
        %v1980 = vpop.f32.mrb[0].mxu0
        %v1981 = vadd.f32 0.0, %v1980
        %v1982 = vpop.f32.mrb[0].mxu0
        %v1983 = vpop.f32.mrb[0].mxu0
        %v1984 = vadd.f32 0.0, %v1983
        %v1985 = vpop.f32.mrb[0].mxu0
        %1986 = vmatprep.mubr.bf16.mxu0 0
        %1987 = vmatmul.mubr.bf16.gmra.mrb[0].mxu0 %v1736
        %v1988 = vpop.f32.mrb[0].mxu0
        %v1989 = vadd.f32 0.0, %v1988
        %v1990 = vpop.f32.mrb[0].mxu0
        %v1991 = vpop.f32.mrb[0].mxu0
        %v1992 = vadd.f32 0.0, %v1991
        %v1993 = vpop.f32.mrb[0].mxu0
        %1994 = vmatprep.mubr.bf16.mxu0 0
        %1995 = vmatmul.mubr.bf16.gmra.mrb[0].mxu0 %v1737
        %v1996 = vpop.f32.mrb[0].mxu0
        %v1997 = vadd.f32 0.0, %v1996
        %v1998 = vpop.f32.mrb[0].mxu0
        %v1999 = vpop.f32.mrb[0].mxu0
        %v2000 = vadd.f32 0.0, %v1999
        %v2001 = vpop.f32.mrb[0].mxu0
        %2002 = vmatprep.mubr.bf16.mxu0 0
        %2003 = vmatmul.mubr.bf16.gmra.mrb[0].mxu0 %v1738
        %v2004 = vpop.f32.mrb[0].mxu0
        %v2005 = vadd.f32 0.0, %v2004
        %v2006 = vpop.f32.mrb[0].mxu0
        %v2007 = vpop.f32.mrb[0].mxu0
        %v2008 = vadd.f32 0.0, %v2007
        %v2009 = vpop.f32.mrb[0].mxu0
        %2010 = vmatprep.mubr.bf16.mxu0 0
        %2011 = vmatmul.mubr.bf16.gmra.mrb[0].mxu0 %v1739
        %v2012 = vpop.f32.mrb[0].mxu0
        %v2013 = vadd.f32 0.0, %v2012
        %v2014 = vpop.f32.mrb[0].mxu0
        %v2015 = vpop.f32.mrb[0].mxu0
        %v2016 = vadd.f32 0.0, %v2015
        %v2017 = vpop.f32.mrb[0].mxu0
        %2018 = vmatprep.mubr.bf16.mxu0 0
        %2019 = vmatmul.mubr.bf16.gmra.mrb[0].mxu0 %v1740
        %v2020 = vpop.f32.mrb[0].mxu0
        %v2021 = vadd.f32 0.0, %v2020
        %v2022 = vpop.f32.mrb[0].mxu0
        %v2023 = vpop.f32.mrb[0].mxu0
        %v2024 = vadd.f32 0.0, %v2023
        %v2025 = vpop.f32.mrb[0].mxu0
        %2026 = vmatprep.mubr.bf16.mxu0 0
        %2027 = vmatmul.mubr.bf16.gmra.mrb[0].mxu0 %v1741
        %v2028 = vpop.f32.mrb[0].mxu0
        %v2029 = vadd.f32 0.0, %v2028
        %v2030 = vpop.f32.mrb[0].mxu0
        %v2031 = vpop.f32.mrb[0].mxu0
        %v2032 = vadd.f32 0.0, %v2031
        %v2033 = vpop.f32.mrb[0].mxu0
        %2034 = vmatprep.mubr.bf16.mxu0 0
        %2035 = vmatmul.mubr.bf16.gmra.mrb[0].mxu0 %v1742
        %v2036 = vpop.f32.mrb[0].mxu0
        %v2037 = vadd.f32 0.0, %v2036
        %v2038 = vpop.f32.mrb[0].mxu0
        %v2039 = vpop.f32.mrb[0].mxu0
        %v2040 = vadd.f32 0.0, %v2039
        %v2041 = vpop.f32.mrb[0].mxu0
        %2042 = vmatprep.mubr.bf16.mxu0 0
        %2043 = vmatmul.mubr.bf16.gmra.mrb[0].mxu0 %v1743
        %v2044 = vpop.f32.mrb[0].mxu0
        %v2045 = vadd.f32 0.0, %v2044
        %v2046 = vpop.f32.mrb[0].mxu0
        %v2047 = vpop.f32.mrb[0].mxu0
        %v2048 = vpop.f32.mrb[0].mxu0
        %2049 = vdwg.mxu0
        %v2050 = vadd.f32 %v1744, %v1885
        %v2051 = vadd.f32 %v1745, %v1888
        %v2052 = vadd.f32 %v1746, %v1893
        %v2053 = vadd.f32 %v1747, %v1896
        %v2054 = vadd.f32 %v1748, %v1901
        %v2055 = vadd.f32 %v1749, %v1904
        %v2056 = vadd.f32 %v1750, %v1909
        %v2057 = vadd.f32 %v1751, %v1912
        %v2058 = vadd.f32 %v1752, %v1917
        %v2059 = vadd.f32 %v1753, %v1920
        %v2060 = vadd.f32 %v1754, %v1925
        %v2061 = vadd.f32 %v1755, %v1928
        %v2062 = vadd.f32 %v1756, %v1933
        %v2063 = vadd.f32 %v1757, %v1936
        %v2064 = vadd.f32 %v1758, %v1941
        %v2065 = vadd.f32 %v1759, %v1944
        %v2066 = vadd.f32 %v1760, %v1949
        %v2067 = vadd.f32 %v1761, %v1952
        %v2068 = vadd.f32 %v1762, %v1957
        %v2069 = vadd.f32 %v1763, %v1960
        %v2070 = vadd.f32 %v1764, %v1965
        %v2071 = vadd.f32 %v1765, %v1968
        %v2072 = vadd.f32 %v1766, %v1973
        %v2073 = vadd.f32 %v1767, %v1976
        %v2074 = vadd.f32 %v1768, %v1981
        %v2075 = vadd.f32 %v1769, %v1984
        %v2076 = vadd.f32 %v1770, %v1989
        %v2077 = vadd.f32 %v1771, %v1992
        %v2078 = vadd.f32 %v1772, %v1997
        %v2079 = vadd.f32 %v1773, %v2000
        %v2080 = vadd.f32 %v1774, %v2005
        %v2081 = vadd.f32 %v1775, %v2008
        %v2082 = vadd.f32 %v1776, %v2013
        %v2083 = vadd.f32 %v1777, %v2016
        %v2084 = vadd.f32 %v1778, %v2021
        %v2085 = vadd.f32 %v1779, %v2024
        %v2086 = vadd.f32 %v1780, %v2029
        %v2087 = vadd.f32 %v1781, %v2032
        %v2088 = vadd.f32 %v1782, %v2037
        %v2089 = vadd.f32 %v1783, %v2040
        %v2090 = vadd.f32 %v1784, %v2045
        %2091 = vst [vmem:[#allocation2] sm:$0xff] %v2050
        %2092 = vst [vmem:[#allocation2 + $0x8] sm:$0xff] %v2051
        %2093 = vst [vmem:[#allocation2 + $0x10] sm:$0xff] %v2052
        %2094 = vst [vmem:[#allocation2 + $0x18] sm:$0xff] %v2053
        %2095 = vst [vmem:[#allocation2 + $0x20] sm:$0xff] %v2054
        %2096 = vst [vmem:[#allocation2 + $0x28] sm:$0xff] %v2055
        %2097 = vst [vmem:[#allocation2 + $0x30] sm:$0xff] %v2056
        %2098 = vst [vmem:[#allocation2 + $0x38] sm:$0xff] %v2057
        %2099 = vst [vmem:[#allocation2 + $0x40] sm:$0xff] %v2058
        %2100 = vst [vmem:[#allocation2 + $0x48] sm:$0xff] %v2059
        %2101 = vst [vmem:[#allocation2 + $0x50] sm:$0xff] %v2060
        %2102 = vst [vmem:[#allocation2 + $0x58] sm:$0xff] %v2061
        %2103 = vst [vmem:[#allocation2 + $0x60] sm:$0xff] %v2062
        %2104 = vst [vmem:[#allocation2 + $0x68] sm:$0xff] %v2063
        %2105 = vst [vmem:[#allocation2 + $0x70] sm:$0xff] %v2064
        %2106 = vst [vmem:[#allocation2 + $0x78] sm:$0xff] %v2065
        %2107 = vst [vmem:[#allocation2 + $0x80] sm:$0xff] %v2066
        %2108 = vst [vmem:[#allocation2 + $0x88] sm:$0xff] %v2067
        %2109 = vst [vmem:[#allocation2 + $0x90] sm:$0xff] %v2068
        %2110 = vst [vmem:[#allocation2 + $0x98] sm:$0xff] %v2069
        %2111 = vst [vmem:[#allocation2 + $0xa0] sm:$0xff] %v2070
        %2112 = vst [vmem:[#allocation2 + $0xa8] sm:$0xff] %v2071
        %2113 = vst [vmem:[#allocation2 + $0xb0] sm:$0xff] %v2072
        %2114 = vst [vmem:[#allocation2 + $0xb8] sm:$0xff] %v2073
        %2115 = vst [vmem:[#allocation2 + $0xc0] sm:$0xff] %v2074
        %2116 = vst [vmem:[#allocation2 + $0xc8] sm:$0xff] %v2075
        %2117 = vst [vmem:[#allocation2 + $0xd0] sm:$0xff] %v2076
        %2118 = vst [vmem:[#allocation2 + $0xd8] sm:$0xff] %v2077
        %2119 = vst [vmem:[#allocation2 + $0xe0] sm:$0xff] %v2078
        %2120 = vst [vmem:[#allocation2 + $0xe8] sm:$0xff] %v2079
        %2121 = vst [vmem:[#allocation2 + $0xf0] sm:$0xff] %v2080
        %2122 = vst [vmem:[#allocation2 + $0xf8] sm:$0xff] %v2081
        %2123 = vst [vmem:[#allocation2 + $0x100] sm:$0xff] %v2082
        %2124 = vst [vmem:[#allocation2 + $0x108] sm:$0xff] %v2083
        %2125 = vst [vmem:[#allocation2 + $0x110] sm:$0xff] %v2084
        %2126 = vst [vmem:[#allocation2 + $0x118] sm:$0xff] %v2085
        %2127 = vst [vmem:[#allocation2 + $0x120] sm:$0xff] %v2086
        %2128 = vst [vmem:[#allocation2 + $0x128] sm:$0xff] %v2087
        %2129 = vst [vmem:[#allocation2 + $0x130] sm:$0xff] %v2088
        %2130 = vst [vmem:[#allocation2 + $0x138] sm:$0xff] %v2089
        %2131 = vst [vmem:[#allocation2 + $0x140] sm:$0xff] %v2090
        %v2132 = vld [vmem:[%s254 + $0x13] sm:$0xff]
        %v2133 = vld [vmem:[%s254 + $0x1b] sm:$0xff]
        %v2134 = vld [vmem:[%s254 + $0x23] sm:$0xff]
        %v2135 = vld [vmem:[%s254 + $0x2b] sm:$0xff]
        %v2136 = vld [vmem:[%s254 + $0x33] sm:$0xff]
        %v2137 = vld [vmem:[%s254 + $0x3b] sm:$0xff]
        %v2138 = vld [vmem:[%s254 + $0x43] sm:$0xff]
        %v2139 = vld [vmem:[%s254 + $0x4b] sm:$0xff]
        %v2140 = vld [vmem:[%s254 + $0x53] sm:$0xff]
        %v2141 = vld [vmem:[%s254 + $0x5b] sm:$0xff]
        %v2142 = vld [vmem:[%s254 + $0x63] sm:$0xff]
        %v2143 = vld [vmem:[%s254 + $0x6b] sm:$0xff]
        %v2144 = vld [vmem:[%s254 + $0x73] sm:$0xff]
        %v2145 = vld [vmem:[%s254 + $0x7b] sm:$0xff]
        %v2146 = vld [vmem:[%s254 + $0x83] sm:$0xff]
        %v2147 = vld [vmem:[%s254 + $0x8b] sm:$0xff]
        %v2148 = vld [vmem:[%s254 + $0x93] sm:$0xff]
        %v2149 = vld [vmem:[%s254 + $0x9b] sm:$0xff]
        %v2150 = vld [vmem:[%s254 + $0xa3] sm:$0xff]
        %v2151 = vld [vmem:[%s254 + $0xab] sm:$0xff]
        %v2152 = vld [vmem:[%s254 + $0xb3] sm:$0xff]
        %v2153 = vld [vmem:[%s254 + $0xbb] sm:$0xff]
        %v2154 = vld [vmem:[%s254 + $0xc3] sm:$0xff]
        %v2155 = vld [vmem:[%s254 + $0xcb] sm:$0xff]
        %v2156 = vld [vmem:[%s254 + $0xd3] sm:$0xff]
        %v2157 = vld [vmem:[%s254 + $0xdb] sm:$0xff]
        %v2158 = vld [vmem:[%s254 + $0xe3] sm:$0xff]
        %v2159 = vld [vmem:[%s254 + $0xeb] sm:$0xff]
        %v2160 = vld [vmem:[%s254 + $0xf3] sm:$0xff]
        %v2161 = vld [vmem:[%s254 + $0xfb] sm:$0xff]
        %v2162 = vld [vmem:[%s254 + $0x103] sm:$0xff]
        %v2163 = vld [vmem:[%s254 + $0x10b] sm:$0xff]
        %v2164 = vld [vmem:[%s254 + $0x113] sm:$0xff]
        %v2165 = vld [vmem:[%s254 + $0x11b] sm:$0xff]
        %v2166 = vld [vmem:[%s254 + $0x123] sm:$0xff]
        %v2167 = vld [vmem:[%s254 + $0x12b] sm:$0xff]
        %v2168 = vld [vmem:[%s254 + $0x133] sm:$0xff]
        %v2169 = vld [vmem:[%s254 + $0x13b] sm:$0xff]
        %v2170 = vld [vmem:[%s254 + $0x143] sm:$0xff]
        %v2171 = vld [vmem:[%s254 + $0x14b] sm:$0xff]
        %v2172 = vld [vmem:[%s254 + $0x153] sm:$0xff]
        %v2173 = vpack.c.bf16 %v2133, %v2132
        %v2174 = vpack.c.bf16 %v2135, %v2134
        %v2175 = vpack.c.bf16 %v2137, %v2136
        %v2176 = vpack.c.bf16 %v2139, %v2138
        %v2177 = vpack.c.bf16 %v2141, %v2140
        %v2178 = vpack.c.bf16 %v2143, %v2142
        %v2179 = vpack.c.bf16 %v2145, %v2144
        %v2180 = vpack.c.bf16 %v2147, %v2146
        %v2181 = vpack.c.bf16 %v2149, %v2148
        %v2182 = vpack.c.bf16 %v2151, %v2150
        %v2183 = vpack.c.bf16 %v2153, %v2152
        %v2184 = vpack.c.bf16 %v2155, %v2154
        %v2185 = vpack.c.bf16 %v2157, %v2156
        %v2186 = vpack.c.bf16 %v2159, %v2158
        %v2187 = vpack.c.bf16 %v2161, %v2160
        %v2188 = vpack.c.bf16 %v2163, %v2162
        %v2189 = vpack.c.bf16 %v2165, %v2164
        %v2190 = vpack.c.bf16 %v2167, %v2166
        %v2191 = vpack.c.bf16 %v2169, %v2168
        %v2192 = vpack.c.bf16 %v2171, %v2170
        %v2193 = vpack.c.bf16 %v2172, %v2172
        %v2194 = vld [vmem:[#allocation2] sm:$0xff]
        %v2195 = vld [vmem:[#allocation2 + $0x8] sm:$0xff]
        %v2196 = vld [vmem:[#allocation2 + $0x10] sm:$0xff]
        %v2197 = vld [vmem:[#allocation2 + $0x18] sm:$0xff]
        %v2198 = vld [vmem:[#allocation2 + $0x20] sm:$0xff]
        %v2199 = vld [vmem:[#allocation2 + $0x28] sm:$0xff]
        %v2200 = vld [vmem:[#allocation2 + $0x30] sm:$0xff]
        %v2201 = vld [vmem:[#allocation2 + $0x38] sm:$0xff]
        %v2202 = vld [vmem:[#allocation2 + $0x40] sm:$0xff]
        %v2203 = vld [vmem:[#allocation2 + $0x48] sm:$0xff]
        %v2204 = vld [vmem:[#allocation2 + $0x50] sm:$0xff]
        %v2205 = vld [vmem:[#allocation2 + $0x58] sm:$0xff]
        %v2206 = vld [vmem:[#allocation2 + $0x60] sm:$0xff]
        %v2207 = vld [vmem:[#allocation2 + $0x68] sm:$0xff]
        %v2208 = vld [vmem:[#allocation2 + $0x70] sm:$0xff]
        %v2209 = vld [vmem:[#allocation2 + $0x78] sm:$0xff]
        %v2210 = vld [vmem:[#allocation2 + $0x80] sm:$0xff]
        %v2211 = vld [vmem:[#allocation2 + $0x88] sm:$0xff]
        %v2212 = vld [vmem:[#allocation2 + $0x90] sm:$0xff]
        %v2213 = vld [vmem:[#allocation2 + $0x98] sm:$0xff]
        %v2214 = vld [vmem:[#allocation2 + $0xa0] sm:$0xff]
        %v2215 = vld [vmem:[#allocation2 + $0xa8] sm:$0xff]
        %v2216 = vld [vmem:[#allocation2 + $0xb0] sm:$0xff]
        %v2217 = vld [vmem:[#allocation2 + $0xb8] sm:$0xff]
        %v2218 = vld [vmem:[#allocation2 + $0xc0] sm:$0xff]
        %v2219 = vld [vmem:[#allocation2 + $0xc8] sm:$0xff]
        %v2220 = vld [vmem:[#allocation2 + $0xd0] sm:$0xff]
        %v2221 = vld [vmem:[#allocation2 + $0xd8] sm:$0xff]
        %v2222 = vld [vmem:[#allocation2 + $0xe0] sm:$0xff]
        %v2223 = vld [vmem:[#allocation2 + $0xe8] sm:$0xff]
        %v2224 = vld [vmem:[#allocation2 + $0xf0] sm:$0xff]
        %v2225 = vld [vmem:[#allocation2 + $0xf8] sm:$0xff]
        %v2226 = vld [vmem:[#allocation2 + $0x100] sm:$0xff]
        %v2227 = vld [vmem:[#allocation2 + $0x108] sm:$0xff]
        %v2228 = vld [vmem:[#allocation2 + $0x110] sm:$0xff]
        %v2229 = vld [vmem:[#allocation2 + $0x118] sm:$0xff]
        %v2230 = vld [vmem:[#allocation2 + $0x120] sm:$0xff]
        %v2231 = vld [vmem:[#allocation2 + $0x128] sm:$0xff]
        %v2232 = vld [vmem:[#allocation2 + $0x130] sm:$0xff]
        %v2233 = vld [vmem:[#allocation2 + $0x138] sm:$0xff]
        %v2234 = vld [vmem:[#allocation2 + $0x140] sm:$0xff]
        %s2235 = scalar_lea.vmem [#allocation6], 256
        %v2236 = vld [vmem:[%s2235] sm:$0xf]
        %v2237 = vld [vmem:[%s2235 + $0x4] sm:$0xf]
        %v2238 = vld [vmem:[%s2235 + $0x8] sm:$0xf]
        %v2239 = vld [vmem:[%s2235 + $0xc] sm:$0xf]
        %v2240 = vld [vmem:[%s2235 + $0x10] sm:$0xf]
        %v2241 = vld [vmem:[%s2235 + $0x14] sm:$0xf]
        %v2242 = vld [vmem:[%s2235 + $0x18] sm:$0xf]
        %v2243 = vld [vmem:[%s2235 + $0x1c] sm:$0xf]
        %v2244 = vld [vmem:[%s2235 + $0x20] sm:$0xf]
        %v2245 = vld [vmem:[%s2235 + $0x24] sm:$0xf]
        %v2246 = vld [vmem:[%s2235 + $0x28] sm:$0xf]
        %v2247 = vld [vmem:[%s2235 + $0x2c] sm:$0xf]
        %v2248 = vld [vmem:[%s2235 + $0x30] sm:$0xf]
        %v2249 = vld [vmem:[%s2235 + $0x34] sm:$0xf]
        %v2250 = vld [vmem:[%s2235 + $0x38] sm:$0xf]
        %v2251 = vld [vmem:[%s2235 + $0x3c] sm:$0xf]
        %v2268 = vunpack.c.l.b16 %v2236
        %v2269 = vunpack.c.l.b16 %v2237
        %v2270 = vunpack.c.l.b16 %v2238
        %v2271 = vunpack.c.l.b16 %v2239
        %v2272 = vunpack.c.l.b16 %v2240
        %v2273 = vunpack.c.l.b16 %v2241
        %v2274 = vunpack.c.l.b16 %v2242
        %v2275 = vunpack.c.l.b16 %v2243
        %v2276 = vunpack.c.l.b16 %v2244
        %v2277 = vunpack.c.l.b16 %v2245
        %v2278 = vunpack.c.l.b16 %v2246
        %v2279 = vunpack.c.l.b16 %v2247
        %v2280 = vunpack.c.l.b16 %v2248
        %v2281 = vunpack.c.l.b16 %v2249
        %v2282 = vunpack.c.l.b16 %v2250
        %v2283 = vunpack.c.l.b16 %v2251
        %v2284 = vpack.c.b16 %v2269, %v2268
        %v2285 = vpack.c.b16 %v2271, %v2270
        %v2286 = vpack.c.b16 %v2273, %v2272
        %v2287 = vpack.c.b16 %v2275, %v2274
        %v2288 = vpack.c.b16 %v2277, %v2276
        %v2289 = vpack.c.b16 %v2279, %v2278
        %v2290 = vpack.c.b16 %v2281, %v2280
        %v2291 = vpack.c.b16 %v2283, %v2282
        %2300 = vmatprep.subr.bf16.mxu0 0
        %2301 = vmatpush1.bf16.msra.mxu0 %v2284
        %2302 = vmatprep.subr.bf16.mxu0 0
        %2303 = vmatpush1.bf16.msra.mxu0 %v2285
        %2304 = vmatprep.subr.bf16.mxu0 0
        %2305 = vmatpush1.bf16.msra.mxu0 %v2286
        %2306 = vmatprep.subr.bf16.mxu0 0
        %2307 = vmatpush1.bf16.msra.mxu0 %v2287
        %2308 = vmatprep.subr.bf16.mxu0 0
        %2309 = vmatpush1.bf16.msra.mxu0 %v2288
        %2310 = vmatprep.subr.bf16.mxu0 0
        %2311 = vmatpush1.bf16.msra.mxu0 %v2289
        %2312 = vmatprep.subr.bf16.mxu0 0
        %2313 = vmatpush1.bf16.msra.mxu0 %v2290
        %2314 = vmatprep.subr.bf16.mxu0 0
        %2315 = vmatpush1.bf16.msra.mxu0 %v2291
        %2316 = vmatprep.subr.bf16.mxu0 0
        %2317 = vmatpush1.bf16.msra.mxu0 0
        %2318 = vmatprep.subr.bf16.mxu0 0
        %2319 = vmatpush1.bf16.msra.mxu0 0
        %2320 = vmatprep.subr.bf16.mxu0 0
        %2321 = vmatpush1.bf16.msra.mxu0 0
        %2322 = vmatprep.subr.bf16.mxu0 0
        %2323 = vmatpush1.bf16.msra.mxu0 0
        %2324 = vmatprep.subr.bf16.mxu0 0
        %2325 = vmatpush1.bf16.msra.mxu0 0
        %2326 = vmatprep.subr.bf16.mxu0 0
        %2327 = vmatpush1.bf16.msra.mxu0 0
        %2328 = vmatprep.subr.bf16.mxu0 0
        %2329 = vmatpush1.bf16.msra.mxu0 0
        %2330 = vmatprep.subr.bf16.mxu0 0
        %2331 = vmatpush1.bf16.msra.mxu0 0
        %2332 = vmatprep.mubr.bf16.mxu0 0
        %2333 = vmatmul.mubr.bf16.gmra.mrb[0].mxu0 %v2173
        %v2334 = vpop.f32.mrb[0].mxu0
        %v2335 = vadd.f32 0.0, %v2334
        %v2336 = vpop.f32.mrb[0].mxu0
        %v2337 = vpop.f32.mrb[0].mxu0
        %v2338 = vadd.f32 0.0, %v2337
        %v2339 = vpop.f32.mrb[0].mxu0
        %2340 = vmatprep.mubr.bf16.mxu0 0
        %2341 = vmatmul.mubr.bf16.gmra.mrb[0].mxu0 %v2174
        %v2342 = vpop.f32.mrb[0].mxu0
        %v2343 = vadd.f32 0.0, %v2342
        %v2344 = vpop.f32.mrb[0].mxu0
        %v2345 = vpop.f32.mrb[0].mxu0
        %v2346 = vadd.f32 0.0, %v2345
        %v2347 = vpop.f32.mrb[0].mxu0
        %2348 = vmatprep.mubr.bf16.mxu0 0
        %2349 = vmatmul.mubr.bf16.gmra.mrb[0].mxu0 %v2175
        %v2350 = vpop.f32.mrb[0].mxu0
        %v2351 = vadd.f32 0.0, %v2350
        %v2352 = vpop.f32.mrb[0].mxu0
        %v2353 = vpop.f32.mrb[0].mxu0
        %v2354 = vadd.f32 0.0, %v2353
        %v2355 = vpop.f32.mrb[0].mxu0
        %2356 = vmatprep.mubr.bf16.mxu0 0
        %2357 = vmatmul.mubr.bf16.gmra.mrb[0].mxu0 %v2176
        %v2358 = vpop.f32.mrb[0].mxu0
        %v2359 = vadd.f32 0.0, %v2358
        %v2360 = vpop.f32.mrb[0].mxu0
        %v2361 = vpop.f32.mrb[0].mxu0
        %v2362 = vadd.f32 0.0, %v2361
        %v2363 = vpop.f32.mrb[0].mxu0
        %2364 = vmatprep.mubr.bf16.mxu0 0
        %2365 = vmatmul.mubr.bf16.gmra.mrb[0].mxu0 %v2177
        %v2366 = vpop.f32.mrb[0].mxu0
        %v2367 = vadd.f32 0.0, %v2366
        %v2368 = vpop.f32.mrb[0].mxu0
        %v2369 = vpop.f32.mrb[0].mxu0
        %v2370 = vadd.f32 0.0, %v2369
        %v2371 = vpop.f32.mrb[0].mxu0
        %2372 = vmatprep.mubr.bf16.mxu0 0
        %2373 = vmatmul.mubr.bf16.gmra.mrb[0].mxu0 %v2178
        %v2374 = vpop.f32.mrb[0].mxu0
        %v2375 = vadd.f32 0.0, %v2374
        %v2376 = vpop.f32.mrb[0].mxu0
        %v2377 = vpop.f32.mrb[0].mxu0
        %v2378 = vadd.f32 0.0, %v2377
        %v2379 = vpop.f32.mrb[0].mxu0
        %2380 = vmatprep.mubr.bf16.mxu0 0
        %2381 = vmatmul.mubr.bf16.gmra.mrb[0].mxu0 %v2179
        %v2382 = vpop.f32.mrb[0].mxu0
        %v2383 = vadd.f32 0.0, %v2382
        %v2384 = vpop.f32.mrb[0].mxu0
        %v2385 = vpop.f32.mrb[0].mxu0
        %v2386 = vadd.f32 0.0, %v2385
        %v2387 = vpop.f32.mrb[0].mxu0
        %2388 = vmatprep.mubr.bf16.mxu0 0
        %2389 = vmatmul.mubr.bf16.gmra.mrb[0].mxu0 %v2180
        %v2390 = vpop.f32.mrb[0].mxu0
        %v2391 = vadd.f32 0.0, %v2390
        %v2392 = vpop.f32.mrb[0].mxu0
        %v2393 = vpop.f32.mrb[0].mxu0
        %v2394 = vadd.f32 0.0, %v2393
        %v2395 = vpop.f32.mrb[0].mxu0
        %2396 = vmatprep.mubr.bf16.mxu0 0
        %2397 = vmatmul.mubr.bf16.gmra.mrb[0].mxu0 %v2181
        %v2398 = vpop.f32.mrb[0].mxu0
        %v2399 = vadd.f32 0.0, %v2398
        %v2400 = vpop.f32.mrb[0].mxu0
        %v2401 = vpop.f32.mrb[0].mxu0
        %v2402 = vadd.f32 0.0, %v2401
        %v2403 = vpop.f32.mrb[0].mxu0
        %2404 = vmatprep.mubr.bf16.mxu0 0
        %2405 = vmatmul.mubr.bf16.gmra.mrb[0].mxu0 %v2182
        %v2406 = vpop.f32.mrb[0].mxu0
        %v2407 = vadd.f32 0.0, %v2406
        %v2408 = vpop.f32.mrb[0].mxu0
        %v2409 = vpop.f32.mrb[0].mxu0
        %v2410 = vadd.f32 0.0, %v2409
        %v2411 = vpop.f32.mrb[0].mxu0
        %2412 = vmatprep.mubr.bf16.mxu0 0
        %2413 = vmatmul.mubr.bf16.gmra.mrb[0].mxu0 %v2183
        %v2414 = vpop.f32.mrb[0].mxu0
        %v2415 = vadd.f32 0.0, %v2414
        %v2416 = vpop.f32.mrb[0].mxu0
        %v2417 = vpop.f32.mrb[0].mxu0
        %v2418 = vadd.f32 0.0, %v2417
        %v2419 = vpop.f32.mrb[0].mxu0
        %2420 = vmatprep.mubr.bf16.mxu0 0
        %2421 = vmatmul.mubr.bf16.gmra.mrb[0].mxu0 %v2184
        %v2422 = vpop.f32.mrb[0].mxu0
        %v2423 = vadd.f32 0.0, %v2422
        %v2424 = vpop.f32.mrb[0].mxu0
        %v2425 = vpop.f32.mrb[0].mxu0
        %v2426 = vadd.f32 0.0, %v2425
        %v2427 = vpop.f32.mrb[0].mxu0
        %2428 = vmatprep.mubr.bf16.mxu0 0
        %2429 = vmatmul.mubr.bf16.gmra.mrb[0].mxu0 %v2185
        %v2430 = vpop.f32.mrb[0].mxu0
        %v2431 = vadd.f32 0.0, %v2430
        %v2432 = vpop.f32.mrb[0].mxu0
        %v2433 = vpop.f32.mrb[0].mxu0
        %v2434 = vadd.f32 0.0, %v2433
        %v2435 = vpop.f32.mrb[0].mxu0
        %2436 = vmatprep.mubr.bf16.mxu0 0
        %2437 = vmatmul.mubr.bf16.gmra.mrb[0].mxu0 %v2186
        %v2438 = vpop.f32.mrb[0].mxu0
        %v2439 = vadd.f32 0.0, %v2438
        %v2440 = vpop.f32.mrb[0].mxu0
        %v2441 = vpop.f32.mrb[0].mxu0
        %v2442 = vadd.f32 0.0, %v2441
        %v2443 = vpop.f32.mrb[0].mxu0
        %2444 = vmatprep.mubr.bf16.mxu0 0
        %2445 = vmatmul.mubr.bf16.gmra.mrb[0].mxu0 %v2187
        %v2446 = vpop.f32.mrb[0].mxu0
        %v2447 = vadd.f32 0.0, %v2446
        %v2448 = vpop.f32.mrb[0].mxu0
        %v2449 = vpop.f32.mrb[0].mxu0
        %v2450 = vadd.f32 0.0, %v2449
        %v2451 = vpop.f32.mrb[0].mxu0
        %2452 = vmatprep.mubr.bf16.mxu0 0
        %2453 = vmatmul.mubr.bf16.gmra.mrb[0].mxu0 %v2188
        %v2454 = vpop.f32.mrb[0].mxu0
        %v2455 = vadd.f32 0.0, %v2454
        %v2456 = vpop.f32.mrb[0].mxu0
        %v2457 = vpop.f32.mrb[0].mxu0
        %v2458 = vadd.f32 0.0, %v2457
        %v2459 = vpop.f32.mrb[0].mxu0
        %2460 = vmatprep.mubr.bf16.mxu0 0
        %2461 = vmatmul.mubr.bf16.gmra.mrb[0].mxu0 %v2189
        %v2462 = vpop.f32.mrb[0].mxu0
        %v2463 = vadd.f32 0.0, %v2462
        %v2464 = vpop.f32.mrb[0].mxu0
        %v2465 = vpop.f32.mrb[0].mxu0
        %v2466 = vadd.f32 0.0, %v2465
        %v2467 = vpop.f32.mrb[0].mxu0
        %2468 = vmatprep.mubr.bf16.mxu0 0
        %2469 = vmatmul.mubr.bf16.gmra.mrb[0].mxu0 %v2190
        %v2470 = vpop.f32.mrb[0].mxu0
        %v2471 = vadd.f32 0.0, %v2470
        %v2472 = vpop.f32.mrb[0].mxu0
        %v2473 = vpop.f32.mrb[0].mxu0
        %v2474 = vadd.f32 0.0, %v2473
        %v2475 = vpop.f32.mrb[0].mxu0
        %2476 = vmatprep.mubr.bf16.mxu0 0
        %2477 = vmatmul.mubr.bf16.gmra.mrb[0].mxu0 %v2191
        %v2478 = vpop.f32.mrb[0].mxu0
        %v2479 = vadd.f32 0.0, %v2478
        %v2480 = vpop.f32.mrb[0].mxu0
        %v2481 = vpop.f32.mrb[0].mxu0
        %v2482 = vadd.f32 0.0, %v2481
        %v2483 = vpop.f32.mrb[0].mxu0
        %2484 = vmatprep.mubr.bf16.mxu0 0
        %2485 = vmatmul.mubr.bf16.gmra.mrb[0].mxu0 %v2192
        %v2486 = vpop.f32.mrb[0].mxu0
        %v2487 = vadd.f32 0.0, %v2486
        %v2488 = vpop.f32.mrb[0].mxu0
        %v2489 = vpop.f32.mrb[0].mxu0
        %v2490 = vadd.f32 0.0, %v2489
        %v2491 = vpop.f32.mrb[0].mxu0
        %2492 = vmatprep.mubr.bf16.mxu0 0
        %2493 = vmatmul.mubr.bf16.gmra.mrb[0].mxu0 %v2193
        %v2494 = vpop.f32.mrb[0].mxu0
        %v2495 = vadd.f32 0.0, %v2494
        %v2496 = vpop.f32.mrb[0].mxu0
        %v2497 = vpop.f32.mrb[0].mxu0
        %v2498 = vpop.f32.mrb[0].mxu0
        %2499 = vdwg.mxu0
        %v2500 = vadd.f32 %v2194, %v2335
        %v2501 = vadd.f32 %v2195, %v2338
        %v2502 = vadd.f32 %v2196, %v2343
        %v2503 = vadd.f32 %v2197, %v2346
        %v2504 = vadd.f32 %v2198, %v2351
        %v2505 = vadd.f32 %v2199, %v2354
        %v2506 = vadd.f32 %v2200, %v2359
        %v2507 = vadd.f32 %v2201, %v2362
        %v2508 = vadd.f32 %v2202, %v2367
        %v2509 = vadd.f32 %v2203, %v2370
        %v2510 = vadd.f32 %v2204, %v2375
        %v2511 = vadd.f32 %v2205, %v2378
        %v2512 = vadd.f32 %v2206, %v2383
        %v2513 = vadd.f32 %v2207, %v2386
        %v2514 = vadd.f32 %v2208, %v2391
        %v2515 = vadd.f32 %v2209, %v2394
        %v2516 = vadd.f32 %v2210, %v2399
        %v2517 = vadd.f32 %v2211, %v2402
        %v2518 = vadd.f32 %v2212, %v2407
        %v2519 = vadd.f32 %v2213, %v2410
        %v2520 = vadd.f32 %v2214, %v2415
        %v2521 = vadd.f32 %v2215, %v2418
        %v2522 = vadd.f32 %v2216, %v2423
        %v2523 = vadd.f32 %v2217, %v2426
        %v2524 = vadd.f32 %v2218, %v2431
        %v2525 = vadd.f32 %v2219, %v2434
        %v2526 = vadd.f32 %v2220, %v2439
        %v2527 = vadd.f32 %v2221, %v2442
        %v2528 = vadd.f32 %v2222, %v2447
        %v2529 = vadd.f32 %v2223, %v2450
        %v2530 = vadd.f32 %v2224, %v2455
        %v2531 = vadd.f32 %v2225, %v2458
        %v2532 = vadd.f32 %v2226, %v2463
        %v2533 = vadd.f32 %v2227, %v2466
        %v2534 = vadd.f32 %v2228, %v2471
        %v2535 = vadd.f32 %v2229, %v2474
        %v2536 = vadd.f32 %v2230, %v2479
        %v2537 = vadd.f32 %v2231, %v2482
        %v2538 = vadd.f32 %v2232, %v2487
        %v2539 = vadd.f32 %v2233, %v2490
        %v2540 = vadd.f32 %v2234, %v2495
        %2541 = vst [vmem:[#allocation2] sm:$0xff] %v2500
        %2542 = vst [vmem:[#allocation2 + $0x8] sm:$0xff] %v2501
        %2543 = vst [vmem:[#allocation2 + $0x10] sm:$0xff] %v2502
        %2544 = vst [vmem:[#allocation2 + $0x18] sm:$0xff] %v2503
        %2545 = vst [vmem:[#allocation2 + $0x20] sm:$0xff] %v2504
        %2546 = vst [vmem:[#allocation2 + $0x28] sm:$0xff] %v2505
        %2547 = vst [vmem:[#allocation2 + $0x30] sm:$0xff] %v2506
        %2548 = vst [vmem:[#allocation2 + $0x38] sm:$0xff] %v2507
        %2549 = vst [vmem:[#allocation2 + $0x40] sm:$0xff] %v2508
        %2550 = vst [vmem:[#allocation2 + $0x48] sm:$0xff] %v2509
        %2551 = vst [vmem:[#allocation2 + $0x50] sm:$0xff] %v2510
        %2552 = vst [vmem:[#allocation2 + $0x58] sm:$0xff] %v2511
        %2553 = vst [vmem:[#allocation2 + $0x60] sm:$0xff] %v2512
        %2554 = vst [vmem:[#allocation2 + $0x68] sm:$0xff] %v2513
        %2555 = vst [vmem:[#allocation2 + $0x70] sm:$0xff] %v2514
        %2556 = vst [vmem:[#allocation2 + $0x78] sm:$0xff] %v2515
        %2557 = vst [vmem:[#allocation2 + $0x80] sm:$0xff] %v2516
        %2558 = vst [vmem:[#allocation2 + $0x88] sm:$0xff] %v2517
        %2559 = vst [vmem:[#allocation2 + $0x90] sm:$0xff] %v2518
        %2560 = vst [vmem:[#allocation2 + $0x98] sm:$0xff] %v2519
        %2561 = vst [vmem:[#allocation2 + $0xa0] sm:$0xff] %v2520
        %2562 = vst [vmem:[#allocation2 + $0xa8] sm:$0xff] %v2521
        %2563 = vst [vmem:[#allocation2 + $0xb0] sm:$0xff] %v2522
        %2564 = vst [vmem:[#allocation2 + $0xb8] sm:$0xff] %v2523
        %2565 = vst [vmem:[#allocation2 + $0xc0] sm:$0xff] %v2524
        %2566 = vst [vmem:[#allocation2 + $0xc8] sm:$0xff] %v2525
        %2567 = vst [vmem:[#allocation2 + $0xd0] sm:$0xff] %v2526
        %2568 = vst [vmem:[#allocation2 + $0xd8] sm:$0xff] %v2527
        %2569 = vst [vmem:[#allocation2 + $0xe0] sm:$0xff] %v2528
        %2570 = vst [vmem:[#allocation2 + $0xe8] sm:$0xff] %v2529
        %2571 = vst [vmem:[#allocation2 + $0xf0] sm:$0xff] %v2530
        %2572 = vst [vmem:[#allocation2 + $0xf8] sm:$0xff] %v2531
        %2573 = vst [vmem:[#allocation2 + $0x100] sm:$0xff] %v2532
        %2574 = vst [vmem:[#allocation2 + $0x108] sm:$0xff] %v2533
        %2575 = vst [vmem:[#allocation2 + $0x110] sm:$0xff] %v2534
        %2576 = vst [vmem:[#allocation2 + $0x118] sm:$0xff] %v2535
        %2577 = vst [vmem:[#allocation2 + $0x120] sm:$0xff] %v2536
        %2578 = vst [vmem:[#allocation2 + $0x128] sm:$0xff] %v2537
        %2579 = vst [vmem:[#allocation2 + $0x130] sm:$0xff] %v2538
        %2580 = vst [vmem:[#allocation2 + $0x138] sm:$0xff] %v2539
        %2581 = vst [vmem:[#allocation2 + $0x140] sm:$0xff] %v2540
        %v2582 = vld [vmem:[%s254 + $0x14] sm:$0xff]
        %v2583 = vld [vmem:[%s254 + $0x1c] sm:$0xff]
        %v2584 = vld [vmem:[%s254 + $0x24] sm:$0xff]
        %v2585 = vld [vmem:[%s254 + $0x2c] sm:$0xff]
        %v2586 = vld [vmem:[%s254 + $0x34] sm:$0xff]
        %v2587 = vld [vmem:[%s254 + $0x3c] sm:$0xff]
        %v2588 = vld [vmem:[%s254 + $0x44] sm:$0xff]
        %v2589 = vld [vmem:[%s254 + $0x4c] sm:$0xff]
        %v2590 = vld [vmem:[%s254 + $0x54] sm:$0xff]
        %v2591 = vld [vmem:[%s254 + $0x5c] sm:$0xff]
        %v2592 = vld [vmem:[%s254 + $0x64] sm:$0xff]
        %v2593 = vld [vmem:[%s254 + $0x6c] sm:$0xff]
        %v2594 = vld [vmem:[%s254 + $0x74] sm:$0xff]
        %v2595 = vld [vmem:[%s254 + $0x7c] sm:$0xff]
        %v2596 = vld [vmem:[%s254 + $0x84] sm:$0xff]
        %v2597 = vld [vmem:[%s254 + $0x8c] sm:$0xff]
        %v2598 = vld [vmem:[%s254 + $0x94] sm:$0xff]
        %v2599 = vld [vmem:[%s254 + $0x9c] sm:$0xff]
        %v2600 = vld [vmem:[%s254 + $0xa4] sm:$0xff]
        %v2601 = vld [vmem:[%s254 + $0xac] sm:$0xff]
        %v2602 = vld [vmem:[%s254 + $0xb4] sm:$0xff]
        %v2603 = vld [vmem:[%s254 + $0xbc] sm:$0xff]
        %v2604 = vld [vmem:[%s254 + $0xc4] sm:$0xff]
        %v2605 = vld [vmem:[%s254 + $0xcc] sm:$0xff]
        %v2606 = vld [vmem:[%s254 + $0xd4] sm:$0xff]
        %v2607 = vld [vmem:[%s254 + $0xdc] sm:$0xff]
        %v2608 = vld [vmem:[%s254 + $0xe4] sm:$0xff]
        %v2609 = vld [vmem:[%s254 + $0xec] sm:$0xff]
        %v2610 = vld [vmem:[%s254 + $0xf4] sm:$0xff]
        %v2611 = vld [vmem:[%s254 + $0xfc] sm:$0xff]
        %v2612 = vld [vmem:[%s254 + $0x104] sm:$0xff]
        %v2613 = vld [vmem:[%s254 + $0x10c] sm:$0xff]
        %v2614 = vld [vmem:[%s254 + $0x114] sm:$0xff]
        %v2615 = vld [vmem:[%s254 + $0x11c] sm:$0xff]
        %v2616 = vld [vmem:[%s254 + $0x124] sm:$0xff]
        %v2617 = vld [vmem:[%s254 + $0x12c] sm:$0xff]
        %v2618 = vld [vmem:[%s254 + $0x134] sm:$0xff]
        %v2619 = vld [vmem:[%s254 + $0x13c] sm:$0xff]
        %v2620 = vld [vmem:[%s254 + $0x144] sm:$0xff]
        %v2621 = vld [vmem:[%s254 + $0x14c] sm:$0xff]
        %v2622 = vld [vmem:[%s254 + $0x154] sm:$0xff]
        %v2623 = vpack.c.bf16 %v2583, %v2582
        %v2624 = vpack.c.bf16 %v2585, %v2584
        %v2625 = vpack.c.bf16 %v2587, %v2586
        %v2626 = vpack.c.bf16 %v2589, %v2588
        %v2627 = vpack.c.bf16 %v2591, %v2590
        %v2628 = vpack.c.bf16 %v2593, %v2592
        %v2629 = vpack.c.bf16 %v2595, %v2594
        %v2630 = vpack.c.bf16 %v2597, %v2596
        %v2631 = vpack.c.bf16 %v2599, %v2598
        %v2632 = vpack.c.bf16 %v2601, %v2600
        %v2633 = vpack.c.bf16 %v2603, %v2602
        %v2634 = vpack.c.bf16 %v2605, %v2604
        %v2635 = vpack.c.bf16 %v2607, %v2606
        %v2636 = vpack.c.bf16 %v2609, %v2608
        %v2637 = vpack.c.bf16 %v2611, %v2610
        %v2638 = vpack.c.bf16 %v2613, %v2612
        %v2639 = vpack.c.bf16 %v2615, %v2614
        %v2640 = vpack.c.bf16 %v2617, %v2616
        %v2641 = vpack.c.bf16 %v2619, %v2618
        %v2642 = vpack.c.bf16 %v2621, %v2620
        %v2643 = vpack.c.bf16 %v2622, %v2622
        %v2644 = vld [vmem:[#allocation2] sm:$0xff]
        %v2645 = vld [vmem:[#allocation2 + $0x8] sm:$0xff]
        %v2646 = vld [vmem:[#allocation2 + $0x10] sm:$0xff]
        %v2647 = vld [vmem:[#allocation2 + $0x18] sm:$0xff]
        %v2648 = vld [vmem:[#allocation2 + $0x20] sm:$0xff]
        %v2649 = vld [vmem:[#allocation2 + $0x28] sm:$0xff]
        %v2650 = vld [vmem:[#allocation2 + $0x30] sm:$0xff]
        %v2651 = vld [vmem:[#allocation2 + $0x38] sm:$0xff]
        %v2652 = vld [vmem:[#allocation2 + $0x40] sm:$0xff]
        %v2653 = vld [vmem:[#allocation2 + $0x48] sm:$0xff]
        %v2654 = vld [vmem:[#allocation2 + $0x50] sm:$0xff]
        %v2655 = vld [vmem:[#allocation2 + $0x58] sm:$0xff]
        %v2656 = vld [vmem:[#allocation2 + $0x60] sm:$0xff]
        %v2657 = vld [vmem:[#allocation2 + $0x68] sm:$0xff]
        %v2658 = vld [vmem:[#allocation2 + $0x70] sm:$0xff]
        %v2659 = vld [vmem:[#allocation2 + $0x78] sm:$0xff]
        %v2660 = vld [vmem:[#allocation2 + $0x80] sm:$0xff]
        %v2661 = vld [vmem:[#allocation2 + $0x88] sm:$0xff]
        %v2662 = vld [vmem:[#allocation2 + $0x90] sm:$0xff]
        %v2663 = vld [vmem:[#allocation2 + $0x98] sm:$0xff]
        %v2664 = vld [vmem:[#allocation2 + $0xa0] sm:$0xff]
        %v2665 = vld [vmem:[#allocation2 + $0xa8] sm:$0xff]
        %v2666 = vld [vmem:[#allocation2 + $0xb0] sm:$0xff]
        %v2667 = vld [vmem:[#allocation2 + $0xb8] sm:$0xff]
        %v2668 = vld [vmem:[#allocation2 + $0xc0] sm:$0xff]
        %v2669 = vld [vmem:[#allocation2 + $0xc8] sm:$0xff]
        %v2670 = vld [vmem:[#allocation2 + $0xd0] sm:$0xff]
        %v2671 = vld [vmem:[#allocation2 + $0xd8] sm:$0xff]
        %v2672 = vld [vmem:[#allocation2 + $0xe0] sm:$0xff]
        %v2673 = vld [vmem:[#allocation2 + $0xe8] sm:$0xff]
        %v2674 = vld [vmem:[#allocation2 + $0xf0] sm:$0xff]
        %v2675 = vld [vmem:[#allocation2 + $0xf8] sm:$0xff]
        %v2676 = vld [vmem:[#allocation2 + $0x100] sm:$0xff]
        %v2677 = vld [vmem:[#allocation2 + $0x108] sm:$0xff]
        %v2678 = vld [vmem:[#allocation2 + $0x110] sm:$0xff]
        %v2679 = vld [vmem:[#allocation2 + $0x118] sm:$0xff]
        %v2680 = vld [vmem:[#allocation2 + $0x120] sm:$0xff]
        %v2681 = vld [vmem:[#allocation2 + $0x128] sm:$0xff]
        %v2682 = vld [vmem:[#allocation2 + $0x130] sm:$0xff]
        %v2683 = vld [vmem:[#allocation2 + $0x138] sm:$0xff]
        %v2684 = vld [vmem:[#allocation2 + $0x140] sm:$0xff]
        %s2685 = scalar_lea.vmem [#allocation6], 320
        %v2686 = vld [vmem:[%s2685] sm:$0xf]
        %v2687 = vld [vmem:[%s2685 + $0x4] sm:$0xf]
        %v2688 = vld [vmem:[%s2685 + $0x8] sm:$0xf]
        %v2689 = vld [vmem:[%s2685 + $0xc] sm:$0xf]
        %v2690 = vld [vmem:[%s2685 + $0x10] sm:$0xf]
        %v2691 = vld [vmem:[%s2685 + $0x14] sm:$0xf]
        %v2692 = vld [vmem:[%s2685 + $0x18] sm:$0xf]
        %v2693 = vld [vmem:[%s2685 + $0x1c] sm:$0xf]
        %v2694 = vld [vmem:[%s2685 + $0x20] sm:$0xf]
        %v2695 = vld [vmem:[%s2685 + $0x24] sm:$0xf]
        %v2696 = vld [vmem:[%s2685 + $0x28] sm:$0xf]
        %v2697 = vld [vmem:[%s2685 + $0x2c] sm:$0xf]
        %v2698 = vld [vmem:[%s2685 + $0x30] sm:$0xf]
        %v2699 = vld [vmem:[%s2685 + $0x34] sm:$0xf]
        %v2700 = vld [vmem:[%s2685 + $0x38] sm:$0xf]
        %v2701 = vld [vmem:[%s2685 + $0x3c] sm:$0xf]
        %v2718 = vunpack.c.l.b16 %v2686
        %v2719 = vunpack.c.l.b16 %v2687
        %v2720 = vunpack.c.l.b16 %v2688
        %v2721 = vunpack.c.l.b16 %v2689
        %v2722 = vunpack.c.l.b16 %v2690
        %v2723 = vunpack.c.l.b16 %v2691
        %v2724 = vunpack.c.l.b16 %v2692
        %v2725 = vunpack.c.l.b16 %v2693
        %v2726 = vunpack.c.l.b16 %v2694
        %v2727 = vunpack.c.l.b16 %v2695
        %v2728 = vunpack.c.l.b16 %v2696
        %v2729 = vunpack.c.l.b16 %v2697
        %v2730 = vunpack.c.l.b16 %v2698
        %v2731 = vunpack.c.l.b16 %v2699
        %v2732 = vunpack.c.l.b16 %v2700
        %v2733 = vunpack.c.l.b16 %v2701
        %v2734 = vpack.c.b16 %v2719, %v2718
        %v2735 = vpack.c.b16 %v2721, %v2720
        %v2736 = vpack.c.b16 %v2723, %v2722
        %v2737 = vpack.c.b16 %v2725, %v2724
        %v2738 = vpack.c.b16 %v2727, %v2726
        %v2739 = vpack.c.b16 %v2729, %v2728
        %v2740 = vpack.c.b16 %v2731, %v2730
        %v2741 = vpack.c.b16 %v2733, %v2732
        %2750 = vmatprep.subr.bf16.mxu0 0
        %2751 = vmatpush1.bf16.msra.mxu0 %v2734
        %2752 = vmatprep.subr.bf16.mxu0 0
        %2753 = vmatpush1.bf16.msra.mxu0 %v2735
        %2754 = vmatprep.subr.bf16.mxu0 0
        %2755 = vmatpush1.bf16.msra.mxu0 %v2736
        %2756 = vmatprep.subr.bf16.mxu0 0
        %2757 = vmatpush1.bf16.msra.mxu0 %v2737
        %2758 = vmatprep.subr.bf16.mxu0 0
        %2759 = vmatpush1.bf16.msra.mxu0 %v2738
        %2760 = vmatprep.subr.bf16.mxu0 0
        %2761 = vmatpush1.bf16.msra.mxu0 %v2739
        %2762 = vmatprep.subr.bf16.mxu0 0
        %2763 = vmatpush1.bf16.msra.mxu0 %v2740
        %2764 = vmatprep.subr.bf16.mxu0 0
        %2765 = vmatpush1.bf16.msra.mxu0 %v2741
        %2766 = vmatprep.subr.bf16.mxu0 0
        %2767 = vmatpush1.bf16.msra.mxu0 0
        %2768 = vmatprep.subr.bf16.mxu0 0
        %2769 = vmatpush1.bf16.msra.mxu0 0
        %2770 = vmatprep.subr.bf16.mxu0 0
        %2771 = vmatpush1.bf16.msra.mxu0 0
        %2772 = vmatprep.subr.bf16.mxu0 0
        %2773 = vmatpush1.bf16.msra.mxu0 0
        %2774 = vmatprep.subr.bf16.mxu0 0
        %2775 = vmatpush1.bf16.msra.mxu0 0
        %2776 = vmatprep.subr.bf16.mxu0 0
        %2777 = vmatpush1.bf16.msra.mxu0 0
        %2778 = vmatprep.subr.bf16.mxu0 0
        %2779 = vmatpush1.bf16.msra.mxu0 0
        %2780 = vmatprep.subr.bf16.mxu0 0
        %2781 = vmatpush1.bf16.msra.mxu0 0
        %2782 = vmatprep.mubr.bf16.mxu0 0
        %2783 = vmatmul.mubr.bf16.gmra.mrb[0].mxu0 %v2623
        %v2784 = vpop.f32.mrb[0].mxu0
        %v2785 = vadd.f32 0.0, %v2784
        %v2786 = vpop.f32.mrb[0].mxu0
        %v2787 = vpop.f32.mrb[0].mxu0
        %v2788 = vadd.f32 0.0, %v2787
        %v2789 = vpop.f32.mrb[0].mxu0
        %2790 = vmatprep.mubr.bf16.mxu0 0
        %2791 = vmatmul.mubr.bf16.gmra.mrb[0].mxu0 %v2624
        %v2792 = vpop.f32.mrb[0].mxu0
        %v2793 = vadd.f32 0.0, %v2792
        %v2794 = vpop.f32.mrb[0].mxu0
        %v2795 = vpop.f32.mrb[0].mxu0
        %v2796 = vadd.f32 0.0, %v2795
        %v2797 = vpop.f32.mrb[0].mxu0
        %2798 = vmatprep.mubr.bf16.mxu0 0
        %2799 = vmatmul.mubr.bf16.gmra.mrb[0].mxu0 %v2625
        %v2800 = vpop.f32.mrb[0].mxu0
        %v2801 = vadd.f32 0.0, %v2800
        %v2802 = vpop.f32.mrb[0].mxu0
        %v2803 = vpop.f32.mrb[0].mxu0
        %v2804 = vadd.f32 0.0, %v2803
        %v2805 = vpop.f32.mrb[0].mxu0
        %2806 = vmatprep.mubr.bf16.mxu0 0
        %2807 = vmatmul.mubr.bf16.gmra.mrb[0].mxu0 %v2626
        %v2808 = vpop.f32.mrb[0].mxu0
        %v2809 = vadd.f32 0.0, %v2808
        %v2810 = vpop.f32.mrb[0].mxu0
        %v2811 = vpop.f32.mrb[0].mxu0
        %v2812 = vadd.f32 0.0, %v2811
        %v2813 = vpop.f32.mrb[0].mxu0
        %2814 = vmatprep.mubr.bf16.mxu0 0
        %2815 = vmatmul.mubr.bf16.gmra.mrb[0].mxu0 %v2627
        %v2816 = vpop.f32.mrb[0].mxu0
        %v2817 = vadd.f32 0.0, %v2816
        %v2818 = vpop.f32.mrb[0].mxu0
        %v2819 = vpop.f32.mrb[0].mxu0
        %v2820 = vadd.f32 0.0, %v2819
        %v2821 = vpop.f32.mrb[0].mxu0
        %2822 = vmatprep.mubr.bf16.mxu0 0
        %2823 = vmatmul.mubr.bf16.gmra.mrb[0].mxu0 %v2628
        %v2824 = vpop.f32.mrb[0].mxu0
        %v2825 = vadd.f32 0.0, %v2824
        %v2826 = vpop.f32.mrb[0].mxu0
        %v2827 = vpop.f32.mrb[0].mxu0
        %v2828 = vadd.f32 0.0, %v2827
        %v2829 = vpop.f32.mrb[0].mxu0
        %2830 = vmatprep.mubr.bf16.mxu0 0
        %2831 = vmatmul.mubr.bf16.gmra.mrb[0].mxu0 %v2629
        %v2832 = vpop.f32.mrb[0].mxu0
        %v2833 = vadd.f32 0.0, %v2832
        %v2834 = vpop.f32.mrb[0].mxu0
        %v2835 = vpop.f32.mrb[0].mxu0
        %v2836 = vadd.f32 0.0, %v2835
        %v2837 = vpop.f32.mrb[0].mxu0
        %2838 = vmatprep.mubr.bf16.mxu0 0
        %2839 = vmatmul.mubr.bf16.gmra.mrb[0].mxu0 %v2630
        %v2840 = vpop.f32.mrb[0].mxu0
        %v2841 = vadd.f32 0.0, %v2840
        %v2842 = vpop.f32.mrb[0].mxu0
        %v2843 = vpop.f32.mrb[0].mxu0
        %v2844 = vadd.f32 0.0, %v2843
        %v2845 = vpop.f32.mrb[0].mxu0
        %2846 = vmatprep.mubr.bf16.mxu0 0
        %2847 = vmatmul.mubr.bf16.gmra.mrb[0].mxu0 %v2631
        %v2848 = vpop.f32.mrb[0].mxu0
        %v2849 = vadd.f32 0.0, %v2848
        %v2850 = vpop.f32.mrb[0].mxu0
        %v2851 = vpop.f32.mrb[0].mxu0
        %v2852 = vadd.f32 0.0, %v2851
        %v2853 = vpop.f32.mrb[0].mxu0
        %2854 = vmatprep.mubr.bf16.mxu0 0
        %2855 = vmatmul.mubr.bf16.gmra.mrb[0].mxu0 %v2632
        %v2856 = vpop.f32.mrb[0].mxu0
        %v2857 = vadd.f32 0.0, %v2856
        %v2858 = vpop.f32.mrb[0].mxu0
        %v2859 = vpop.f32.mrb[0].mxu0
        %v2860 = vadd.f32 0.0, %v2859
        %v2861 = vpop.f32.mrb[0].mxu0
        %2862 = vmatprep.mubr.bf16.mxu0 0
        %2863 = vmatmul.mubr.bf16.gmra.mrb[0].mxu0 %v2633
        %v2864 = vpop.f32.mrb[0].mxu0
        %v2865 = vadd.f32 0.0, %v2864
        %v2866 = vpop.f32.mrb[0].mxu0
        %v2867 = vpop.f32.mrb[0].mxu0
        %v2868 = vadd.f32 0.0, %v2867
        %v2869 = vpop.f32.mrb[0].mxu0
        %2870 = vmatprep.mubr.bf16.mxu0 0
        %2871 = vmatmul.mubr.bf16.gmra.mrb[0].mxu0 %v2634
        %v2872 = vpop.f32.mrb[0].mxu0
        %v2873 = vadd.f32 0.0, %v2872
        %v2874 = vpop.f32.mrb[0].mxu0
        %v2875 = vpop.f32.mrb[0].mxu0
        %v2876 = vadd.f32 0.0, %v2875
        %v2877 = vpop.f32.mrb[0].mxu0
        %2878 = vmatprep.mubr.bf16.mxu0 0
        %2879 = vmatmul.mubr.bf16.gmra.mrb[0].mxu0 %v2635
        %v2880 = vpop.f32.mrb[0].mxu0
        %v2881 = vadd.f32 0.0, %v2880
        %v2882 = vpop.f32.mrb[0].mxu0
        %v2883 = vpop.f32.mrb[0].mxu0
        %v2884 = vadd.f32 0.0, %v2883
        %v2885 = vpop.f32.mrb[0].mxu0
        %2886 = vmatprep.mubr.bf16.mxu0 0
        %2887 = vmatmul.mubr.bf16.gmra.mrb[0].mxu0 %v2636
        %v2888 = vpop.f32.mrb[0].mxu0
        %v2889 = vadd.f32 0.0, %v2888
        %v2890 = vpop.f32.mrb[0].mxu0
        %v2891 = vpop.f32.mrb[0].mxu0
        %v2892 = vadd.f32 0.0, %v2891
        %v2893 = vpop.f32.mrb[0].mxu0
        %2894 = vmatprep.mubr.bf16.mxu0 0
        %2895 = vmatmul.mubr.bf16.gmra.mrb[0].mxu0 %v2637
        %v2896 = vpop.f32.mrb[0].mxu0
        %v2897 = vadd.f32 0.0, %v2896
        %v2898 = vpop.f32.mrb[0].mxu0
        %v2899 = vpop.f32.mrb[0].mxu0
        %v2900 = vadd.f32 0.0, %v2899
        %v2901 = vpop.f32.mrb[0].mxu0
        %2902 = vmatprep.mubr.bf16.mxu0 0
        %2903 = vmatmul.mubr.bf16.gmra.mrb[0].mxu0 %v2638
        %v2904 = vpop.f32.mrb[0].mxu0
        %v2905 = vadd.f32 0.0, %v2904
        %v2906 = vpop.f32.mrb[0].mxu0
        %v2907 = vpop.f32.mrb[0].mxu0
        %v2908 = vadd.f32 0.0, %v2907
        %v2909 = vpop.f32.mrb[0].mxu0
        %2910 = vmatprep.mubr.bf16.mxu0 0
        %2911 = vmatmul.mubr.bf16.gmra.mrb[0].mxu0 %v2639
        %v2912 = vpop.f32.mrb[0].mxu0
        %v2913 = vadd.f32 0.0, %v2912
        %v2914 = vpop.f32.mrb[0].mxu0
        %v2915 = vpop.f32.mrb[0].mxu0
        %v2916 = vadd.f32 0.0, %v2915
        %v2917 = vpop.f32.mrb[0].mxu0
        %2918 = vmatprep.mubr.bf16.mxu0 0
        %2919 = vmatmul.mubr.bf16.gmra.mrb[0].mxu0 %v2640
        %v2920 = vpop.f32.mrb[0].mxu0
        %v2921 = vadd.f32 0.0, %v2920
        %v2922 = vpop.f32.mrb[0].mxu0
        %v2923 = vpop.f32.mrb[0].mxu0
        %v2924 = vadd.f32 0.0, %v2923
        %v2925 = vpop.f32.mrb[0].mxu0
        %2926 = vmatprep.mubr.bf16.mxu0 0
        %2927 = vmatmul.mubr.bf16.gmra.mrb[0].mxu0 %v2641
        %v2928 = vpop.f32.mrb[0].mxu0
        %v2929 = vadd.f32 0.0, %v2928
        %v2930 = vpop.f32.mrb[0].mxu0
        %v2931 = vpop.f32.mrb[0].mxu0
        %v2932 = vadd.f32 0.0, %v2931
        %v2933 = vpop.f32.mrb[0].mxu0
        %2934 = vmatprep.mubr.bf16.mxu0 0
        %2935 = vmatmul.mubr.bf16.gmra.mrb[0].mxu0 %v2642
        %v2936 = vpop.f32.mrb[0].mxu0
        %v2937 = vadd.f32 0.0, %v2936
        %v2938 = vpop.f32.mrb[0].mxu0
        %v2939 = vpop.f32.mrb[0].mxu0
        %v2940 = vadd.f32 0.0, %v2939
        %v2941 = vpop.f32.mrb[0].mxu0
        %2942 = vmatprep.mubr.bf16.mxu0 0
        %2943 = vmatmul.mubr.bf16.gmra.mrb[0].mxu0 %v2643
        %v2944 = vpop.f32.mrb[0].mxu0
        %v2945 = vadd.f32 0.0, %v2944
        %v2946 = vpop.f32.mrb[0].mxu0
        %v2947 = vpop.f32.mrb[0].mxu0
        %v2948 = vpop.f32.mrb[0].mxu0
        %2949 = vdwg.mxu0
        %v2950 = vadd.f32 %v2644, %v2785
        %v2951 = vadd.f32 %v2645, %v2788
        %v2952 = vadd.f32 %v2646, %v2793
        %v2953 = vadd.f32 %v2647, %v2796
        %v2954 = vadd.f32 %v2648, %v2801
        %v2955 = vadd.f32 %v2649, %v2804
        %v2956 = vadd.f32 %v2650, %v2809
        %v2957 = vadd.f32 %v2651, %v2812
        %v2958 = vadd.f32 %v2652, %v2817
        %v2959 = vadd.f32 %v2653, %v2820
        %v2960 = vadd.f32 %v2654, %v2825
        %v2961 = vadd.f32 %v2655, %v2828
        %v2962 = vadd.f32 %v2656, %v2833
        %v2963 = vadd.f32 %v2657, %v2836
        %v2964 = vadd.f32 %v2658, %v2841
        %v2965 = vadd.f32 %v2659, %v2844
        %v2966 = vadd.f32 %v2660, %v2849
        %v2967 = vadd.f32 %v2661, %v2852
        %v2968 = vadd.f32 %v2662, %v2857
        %v2969 = vadd.f32 %v2663, %v2860
        %v2970 = vadd.f32 %v2664, %v2865
        %v2971 = vadd.f32 %v2665, %v2868
        %v2972 = vadd.f32 %v2666, %v2873
        %v2973 = vadd.f32 %v2667, %v2876
        %v2974 = vadd.f32 %v2668, %v2881
        %v2975 = vadd.f32 %v2669, %v2884
        %v2976 = vadd.f32 %v2670, %v2889
        %v2977 = vadd.f32 %v2671, %v2892
        %v2978 = vadd.f32 %v2672, %v2897
        %v2979 = vadd.f32 %v2673, %v2900
        %v2980 = vadd.f32 %v2674, %v2905
        %v2981 = vadd.f32 %v2675, %v2908
        %v2982 = vadd.f32 %v2676, %v2913
        %v2983 = vadd.f32 %v2677, %v2916
        %v2984 = vadd.f32 %v2678, %v2921
        %v2985 = vadd.f32 %v2679, %v2924
        %v2986 = vadd.f32 %v2680, %v2929
        %v2987 = vadd.f32 %v2681, %v2932
        %v2988 = vadd.f32 %v2682, %v2937
        %v2989 = vadd.f32 %v2683, %v2940
        %v2990 = vadd.f32 %v2684, %v2945
        %2991 = vst [vmem:[#allocation2] sm:$0xff] %v2950
        %2992 = vst [vmem:[#allocation2 + $0x8] sm:$0xff] %v2951
        %2993 = vst [vmem:[#allocation2 + $0x10] sm:$0xff] %v2952
        %2994 = vst [vmem:[#allocation2 + $0x18] sm:$0xff] %v2953
        %2995 = vst [vmem:[#allocation2 + $0x20] sm:$0xff] %v2954
        %2996 = vst [vmem:[#allocation2 + $0x28] sm:$0xff] %v2955
        %2997 = vst [vmem:[#allocation2 + $0x30] sm:$0xff] %v2956
        %2998 = vst [vmem:[#allocation2 + $0x38] sm:$0xff] %v2957
        %2999 = vst [vmem:[#allocation2 + $0x40] sm:$0xff] %v2958
        %3000 = vst [vmem:[#allocation2 + $0x48] sm:$0xff] %v2959
        %3001 = vst [vmem:[#allocation2 + $0x50] sm:$0xff] %v2960
        %3002 = vst [vmem:[#allocation2 + $0x58] sm:$0xff] %v2961
        %3003 = vst [vmem:[#allocation2 + $0x60] sm:$0xff] %v2962
        %3004 = vst [vmem:[#allocation2 + $0x68] sm:$0xff] %v2963
        %3005 = vst [vmem:[#allocation2 + $0x70] sm:$0xff] %v2964
        %3006 = vst [vmem:[#allocation2 + $0x78] sm:$0xff] %v2965
        %3007 = vst [vmem:[#allocation2 + $0x80] sm:$0xff] %v2966
        %3008 = vst [vmem:[#allocation2 + $0x88] sm:$0xff] %v2967
        %3009 = vst [vmem:[#allocation2 + $0x90] sm:$0xff] %v2968
        %3010 = vst [vmem:[#allocation2 + $0x98] sm:$0xff] %v2969
        %3011 = vst [vmem:[#allocation2 + $0xa0] sm:$0xff] %v2970
        %3012 = vst [vmem:[#allocation2 + $0xa8] sm:$0xff] %v2971
        %3013 = vst [vmem:[#allocation2 + $0xb0] sm:$0xff] %v2972
        %3014 = vst [vmem:[#allocation2 + $0xb8] sm:$0xff] %v2973
        %3015 = vst [vmem:[#allocation2 + $0xc0] sm:$0xff] %v2974
        %3016 = vst [vmem:[#allocation2 + $0xc8] sm:$0xff] %v2975
        %3017 = vst [vmem:[#allocation2 + $0xd0] sm:$0xff] %v2976
        %3018 = vst [vmem:[#allocation2 + $0xd8] sm:$0xff] %v2977
        %3019 = vst [vmem:[#allocation2 + $0xe0] sm:$0xff] %v2978
        %3020 = vst [vmem:[#allocation2 + $0xe8] sm:$0xff] %v2979
        %3021 = vst [vmem:[#allocation2 + $0xf0] sm:$0xff] %v2980
        %3022 = vst [vmem:[#allocation2 + $0xf8] sm:$0xff] %v2981
        %3023 = vst [vmem:[#allocation2 + $0x100] sm:$0xff] %v2982
        %3024 = vst [vmem:[#allocation2 + $0x108] sm:$0xff] %v2983
        %3025 = vst [vmem:[#allocation2 + $0x110] sm:$0xff] %v2984
        %3026 = vst [vmem:[#allocation2 + $0x118] sm:$0xff] %v2985
        %3027 = vst [vmem:[#allocation2 + $0x120] sm:$0xff] %v2986
        %3028 = vst [vmem:[#allocation2 + $0x128] sm:$0xff] %v2987
        %3029 = vst [vmem:[#allocation2 + $0x130] sm:$0xff] %v2988
        %3030 = vst [vmem:[#allocation2 + $0x138] sm:$0xff] %v2989
        %3031 = vst [vmem:[#allocation2 + $0x140] sm:$0xff] %v2990
        %v3032 = vld [vmem:[%s254 + $0x24] sm:$0xff]
        %v3033 = vld [vmem:[%s254 + $0x2c] sm:$0xff]
        %v3034 = vld [vmem:[%s254 + $0x34] sm:$0xff]
        %v3035 = vld [vmem:[%s254 + $0x3c] sm:$0xff]
        %v3036 = vld [vmem:[%s254 + $0x44] sm:$0xff]
        %v3037 = vld [vmem:[%s254 + $0x4c] sm:$0xff]
        %v3038 = vld [vmem:[%s254 + $0x54] sm:$0xff]
        %v3039 = vld [vmem:[%s254 + $0x5c] sm:$0xff]
        %v3040 = vld [vmem:[%s254 + $0x64] sm:$0xff]
        %v3041 = vld [vmem:[%s254 + $0x6c] sm:$0xff]
        %v3042 = vld [vmem:[%s254 + $0x74] sm:$0xff]
        %v3043 = vld [vmem:[%s254 + $0x7c] sm:$0xff]
        %v3044 = vld [vmem:[%s254 + $0x84] sm:$0xff]
        %v3045 = vld [vmem:[%s254 + $0x8c] sm:$0xff]
        %v3046 = vld [vmem:[%s254 + $0x94] sm:$0xff]
        %v3047 = vld [vmem:[%s254 + $0x9c] sm:$0xff]
        %v3048 = vld [vmem:[%s254 + $0xa4] sm:$0xff]
        %v3049 = vld [vmem:[%s254 + $0xac] sm:$0xff]
        %v3050 = vld [vmem:[%s254 + $0xb4] sm:$0xff]
        %v3051 = vld [vmem:[%s254 + $0xbc] sm:$0xff]
        %v3052 = vld [vmem:[%s254 + $0xc4] sm:$0xff]
        %v3053 = vld [vmem:[%s254 + $0xcc] sm:$0xff]
        %v3054 = vld [vmem:[%s254 + $0xd4] sm:$0xff]
        %v3055 = vld [vmem:[%s254 + $0xdc] sm:$0xff]
        %v3056 = vld [vmem:[%s254 + $0xe4] sm:$0xff]
        %v3057 = vld [vmem:[%s254 + $0xec] sm:$0xff]
        %v3058 = vld [vmem:[%s254 + $0xf4] sm:$0xff]
        %v3059 = vld [vmem:[%s254 + $0xfc] sm:$0xff]
        %v3060 = vld [vmem:[%s254 + $0x104] sm:$0xff]
        %v3061 = vld [vmem:[%s254 + $0x10c] sm:$0xff]
        %v3062 = vld [vmem:[%s254 + $0x114] sm:$0xff]
        %v3063 = vld [vmem:[%s254 + $0x11c] sm:$0xff]
        %v3064 = vld [vmem:[%s254 + $0x124] sm:$0xff]
        %v3065 = vld [vmem:[%s254 + $0x12c] sm:$0xff]
        %v3066 = vld [vmem:[%s254 + $0x134] sm:$0xff]
        %v3067 = vld [vmem:[%s254 + $0x13c] sm:$0xff]
        %v3068 = vld [vmem:[%s254 + $0x144] sm:$0xff]
        %v3069 = vld [vmem:[%s254 + $0x14c] sm:$0xff]
        %v3070 = vld [vmem:[%s254 + $0x154] sm:$0xff]
        %v3071 = vld [vmem:[%s254 + $0x15c] sm:$0xff]
        %v3072 = vld [vmem:[%s254 + $0x164] sm:$0xff]
        %v3073 = vpack.c.bf16 %v3033, %v3032
        %v3074 = vpack.c.bf16 %v3035, %v3034
        %v3075 = vpack.c.bf16 %v3037, %v3036
        %v3076 = vpack.c.bf16 %v3039, %v3038
        %v3077 = vpack.c.bf16 %v3041, %v3040
        %v3078 = vpack.c.bf16 %v3043, %v3042
        %v3079 = vpack.c.bf16 %v3045, %v3044
        %v3080 = vpack.c.bf16 %v3047, %v3046
        %v3081 = vpack.c.bf16 %v3049, %v3048
        %v3082 = vpack.c.bf16 %v3051, %v3050
        %v3083 = vpack.c.bf16 %v3053, %v3052
        %v3084 = vpack.c.bf16 %v3055, %v3054
        %v3085 = vpack.c.bf16 %v3057, %v3056
        %v3086 = vpack.c.bf16 %v3059, %v3058
        %v3087 = vpack.c.bf16 %v3061, %v3060
        %v3088 = vpack.c.bf16 %v3063, %v3062
        %v3089 = vpack.c.bf16 %v3065, %v3064
        %v3090 = vpack.c.bf16 %v3067, %v3066
        %v3091 = vpack.c.bf16 %v3069, %v3068
        %v3092 = vpack.c.bf16 %v3071, %v3070
        %v3093 = vpack.c.bf16 %v3072, %v3072
        %v3094 = vld [vmem:[#allocation2] sm:$0xff]
        %v3095 = vld [vmem:[#allocation2 + $0x8] sm:$0xff]
        %v3096 = vld [vmem:[#allocation2 + $0x10] sm:$0xff]
        %v3097 = vld [vmem:[#allocation2 + $0x18] sm:$0xff]
        %v3098 = vld [vmem:[#allocation2 + $0x20] sm:$0xff]
        %v3099 = vld [vmem:[#allocation2 + $0x28] sm:$0xff]
        %v3100 = vld [vmem:[#allocation2 + $0x30] sm:$0xff]
        %v3101 = vld [vmem:[#allocation2 + $0x38] sm:$0xff]
        %v3102 = vld [vmem:[#allocation2 + $0x40] sm:$0xff]
        %v3103 = vld [vmem:[#allocation2 + $0x48] sm:$0xff]
        %v3104 = vld [vmem:[#allocation2 + $0x50] sm:$0xff]
        %v3105 = vld [vmem:[#allocation2 + $0x58] sm:$0xff]
        %v3106 = vld [vmem:[#allocation2 + $0x60] sm:$0xff]
        %v3107 = vld [vmem:[#allocation2 + $0x68] sm:$0xff]
        %v3108 = vld [vmem:[#allocation2 + $0x70] sm:$0xff]
        %v3109 = vld [vmem:[#allocation2 + $0x78] sm:$0xff]
        %v3110 = vld [vmem:[#allocation2 + $0x80] sm:$0xff]
        %v3111 = vld [vmem:[#allocation2 + $0x88] sm:$0xff]
        %v3112 = vld [vmem:[#allocation2 + $0x90] sm:$0xff]
        %v3113 = vld [vmem:[#allocation2 + $0x98] sm:$0xff]
        %v3114 = vld [vmem:[#allocation2 + $0xa0] sm:$0xff]
        %v3115 = vld [vmem:[#allocation2 + $0xa8] sm:$0xff]
        %v3116 = vld [vmem:[#allocation2 + $0xb0] sm:$0xff]
        %v3117 = vld [vmem:[#allocation2 + $0xb8] sm:$0xff]
        %v3118 = vld [vmem:[#allocation2 + $0xc0] sm:$0xff]
        %v3119 = vld [vmem:[#allocation2 + $0xc8] sm:$0xff]
        %v3120 = vld [vmem:[#allocation2 + $0xd0] sm:$0xff]
        %v3121 = vld [vmem:[#allocation2 + $0xd8] sm:$0xff]
        %v3122 = vld [vmem:[#allocation2 + $0xe0] sm:$0xff]
        %v3123 = vld [vmem:[#allocation2 + $0xe8] sm:$0xff]
        %v3124 = vld [vmem:[#allocation2 + $0xf0] sm:$0xff]
        %v3125 = vld [vmem:[#allocation2 + $0xf8] sm:$0xff]
        %v3126 = vld [vmem:[#allocation2 + $0x100] sm:$0xff]
        %v3127 = vld [vmem:[#allocation2 + $0x108] sm:$0xff]
        %v3128 = vld [vmem:[#allocation2 + $0x110] sm:$0xff]
        %v3129 = vld [vmem:[#allocation2 + $0x118] sm:$0xff]
        %v3130 = vld [vmem:[#allocation2 + $0x120] sm:$0xff]
        %v3131 = vld [vmem:[#allocation2 + $0x128] sm:$0xff]
        %v3132 = vld [vmem:[#allocation2 + $0x130] sm:$0xff]
        %v3133 = vld [vmem:[#allocation2 + $0x138] sm:$0xff]
        %v3134 = vld [vmem:[#allocation2 + $0x140] sm:$0xff]
        %s3135 = scalar_lea.vmem [#allocation6], 384
        %v3136 = vld [vmem:[%s3135] sm:$0xf]
        %v3137 = vld [vmem:[%s3135 + $0x4] sm:$0xf]
        %v3138 = vld [vmem:[%s3135 + $0x8] sm:$0xf]
        %v3139 = vld [vmem:[%s3135 + $0xc] sm:$0xf]
        %v3140 = vld [vmem:[%s3135 + $0x10] sm:$0xf]
        %v3141 = vld [vmem:[%s3135 + $0x14] sm:$0xf]
        %v3142 = vld [vmem:[%s3135 + $0x18] sm:$0xf]
        %v3143 = vld [vmem:[%s3135 + $0x1c] sm:$0xf]
        %v3144 = vld [vmem:[%s3135 + $0x20] sm:$0xf]
        %v3145 = vld [vmem:[%s3135 + $0x24] sm:$0xf]
        %v3146 = vld [vmem:[%s3135 + $0x28] sm:$0xf]
        %v3147 = vld [vmem:[%s3135 + $0x2c] sm:$0xf]
        %v3148 = vld [vmem:[%s3135 + $0x30] sm:$0xf]
        %v3149 = vld [vmem:[%s3135 + $0x34] sm:$0xf]
        %v3150 = vld [vmem:[%s3135 + $0x38] sm:$0xf]
        %v3151 = vld [vmem:[%s3135 + $0x3c] sm:$0xf]
        %v3168 = vunpack.c.l.b16 %v3136
        %v3169 = vunpack.c.l.b16 %v3137
        %v3170 = vunpack.c.l.b16 %v3138
        %v3171 = vunpack.c.l.b16 %v3139
        %v3172 = vunpack.c.l.b16 %v3140
        %v3173 = vunpack.c.l.b16 %v3141
        %v3174 = vunpack.c.l.b16 %v3142
        %v3175 = vunpack.c.l.b16 %v3143
        %v3176 = vunpack.c.l.b16 %v3144
        %v3177 = vunpack.c.l.b16 %v3145
        %v3178 = vunpack.c.l.b16 %v3146
        %v3179 = vunpack.c.l.b16 %v3147
        %v3180 = vunpack.c.l.b16 %v3148
        %v3181 = vunpack.c.l.b16 %v3149
        %v3182 = vunpack.c.l.b16 %v3150
        %v3183 = vunpack.c.l.b16 %v3151
        %v3184 = vpack.c.b16 %v3169, %v3168
        %v3185 = vpack.c.b16 %v3171, %v3170
        %v3186 = vpack.c.b16 %v3173, %v3172
        %v3187 = vpack.c.b16 %v3175, %v3174
        %v3188 = vpack.c.b16 %v3177, %v3176
        %v3189 = vpack.c.b16 %v3179, %v3178
        %v3190 = vpack.c.b16 %v3181, %v3180
        %v3191 = vpack.c.b16 %v3183, %v3182
        %3200 = vmatprep.subr.bf16.mxu0 0
        %3201 = vmatpush1.bf16.msra.mxu0 %v3184
        %3202 = vmatprep.subr.bf16.mxu0 0
        %3203 = vmatpush1.bf16.msra.mxu0 %v3185
        %3204 = vmatprep.subr.bf16.mxu0 0
        %3205 = vmatpush1.bf16.msra.mxu0 %v3186
        %3206 = vmatprep.subr.bf16.mxu0 0
        %3207 = vmatpush1.bf16.msra.mxu0 %v3187
        %3208 = vmatprep.subr.bf16.mxu0 0
        %3209 = vmatpush1.bf16.msra.mxu0 %v3188
        %3210 = vmatprep.subr.bf16.mxu0 0
        %3211 = vmatpush1.bf16.msra.mxu0 %v3189
        %3212 = vmatprep.subr.bf16.mxu0 0
        %3213 = vmatpush1.bf16.msra.mxu0 %v3190
        %3214 = vmatprep.subr.bf16.mxu0 0
        %3215 = vmatpush1.bf16.msra.mxu0 %v3191
        %3216 = vmatprep.subr.bf16.mxu0 0
        %3217 = vmatpush1.bf16.msra.mxu0 0
        %3218 = vmatprep.subr.bf16.mxu0 0
        %3219 = vmatpush1.bf16.msra.mxu0 0
        %3220 = vmatprep.subr.bf16.mxu0 0
        %3221 = vmatpush1.bf16.msra.mxu0 0
        %3222 = vmatprep.subr.bf16.mxu0 0
        %3223 = vmatpush1.bf16.msra.mxu0 0
        %3224 = vmatprep.subr.bf16.mxu0 0
        %3225 = vmatpush1.bf16.msra.mxu0 0
        %3226 = vmatprep.subr.bf16.mxu0 0
        %3227 = vmatpush1.bf16.msra.mxu0 0
        %3228 = vmatprep.subr.bf16.mxu0 0
        %3229 = vmatpush1.bf16.msra.mxu0 0
        %3230 = vmatprep.subr.bf16.mxu0 0
        %3231 = vmatpush1.bf16.msra.mxu0 0
        %3232 = vmatprep.mubr.bf16.mxu0 0
        %3233 = vmatmul.mubr.bf16.gmra.mrb[0].mxu0 %v3073
        %v3234 = vpop.f32.mrb[0].mxu0
        %v3235 = vadd.f32 0.0, %v3234
        %v3236 = vpop.f32.mrb[0].mxu0
        %v3237 = vpop.f32.mrb[0].mxu0
        %v3238 = vadd.f32 0.0, %v3237
        %v3239 = vpop.f32.mrb[0].mxu0
        %3240 = vmatprep.mubr.bf16.mxu0 0
        %3241 = vmatmul.mubr.bf16.gmra.mrb[0].mxu0 %v3074
        %v3242 = vpop.f32.mrb[0].mxu0
        %v3243 = vadd.f32 0.0, %v3242
        %v3244 = vpop.f32.mrb[0].mxu0
        %v3245 = vpop.f32.mrb[0].mxu0
        %v3246 = vadd.f32 0.0, %v3245
        %v3247 = vpop.f32.mrb[0].mxu0
        %3248 = vmatprep.mubr.bf16.mxu0 0
        %3249 = vmatmul.mubr.bf16.gmra.mrb[0].mxu0 %v3075
        %v3250 = vpop.f32.mrb[0].mxu0
        %v3251 = vadd.f32 0.0, %v3250
        %v3252 = vpop.f32.mrb[0].mxu0
        %v3253 = vpop.f32.mrb[0].mxu0
        %v3254 = vadd.f32 0.0, %v3253
        %v3255 = vpop.f32.mrb[0].mxu0
        %3256 = vmatprep.mubr.bf16.mxu0 0
        %3257 = vmatmul.mubr.bf16.gmra.mrb[0].mxu0 %v3076
        %v3258 = vpop.f32.mrb[0].mxu0
        %v3259 = vadd.f32 0.0, %v3258
        %v3260 = vpop.f32.mrb[0].mxu0
        %v3261 = vpop.f32.mrb[0].mxu0
        %v3262 = vadd.f32 0.0, %v3261
        %v3263 = vpop.f32.mrb[0].mxu0
        %3264 = vmatprep.mubr.bf16.mxu0 0
        %3265 = vmatmul.mubr.bf16.gmra.mrb[0].mxu0 %v3077
        %v3266 = vpop.f32.mrb[0].mxu0
        %v3267 = vadd.f32 0.0, %v3266
        %v3268 = vpop.f32.mrb[0].mxu0
        %v3269 = vpop.f32.mrb[0].mxu0
        %v3270 = vadd.f32 0.0, %v3269
        %v3271 = vpop.f32.mrb[0].mxu0
        %3272 = vmatprep.mubr.bf16.mxu0 0
        %3273 = vmatmul.mubr.bf16.gmra.mrb[0].mxu0 %v3078
        %v3274 = vpop.f32.mrb[0].mxu0
        %v3275 = vadd.f32 0.0, %v3274
        %v3276 = vpop.f32.mrb[0].mxu0
        %v3277 = vpop.f32.mrb[0].mxu0
        %v3278 = vadd.f32 0.0, %v3277
        %v3279 = vpop.f32.mrb[0].mxu0
        %3280 = vmatprep.mubr.bf16.mxu0 0
        %3281 = vmatmul.mubr.bf16.gmra.mrb[0].mxu0 %v3079
        %v3282 = vpop.f32.mrb[0].mxu0
        %v3283 = vadd.f32 0.0, %v3282
        %v3284 = vpop.f32.mrb[0].mxu0
        %v3285 = vpop.f32.mrb[0].mxu0
        %v3286 = vadd.f32 0.0, %v3285
        %v3287 = vpop.f32.mrb[0].mxu0
        %3288 = vmatprep.mubr.bf16.mxu0 0
        %3289 = vmatmul.mubr.bf16.gmra.mrb[0].mxu0 %v3080
        %v3290 = vpop.f32.mrb[0].mxu0
        %v3291 = vadd.f32 0.0, %v3290
        %v3292 = vpop.f32.mrb[0].mxu0
        %v3293 = vpop.f32.mrb[0].mxu0
        %v3294 = vadd.f32 0.0, %v3293
        %v3295 = vpop.f32.mrb[0].mxu0
        %3296 = vmatprep.mubr.bf16.mxu0 0
        %3297 = vmatmul.mubr.bf16.gmra.mrb[0].mxu0 %v3081
        %v3298 = vpop.f32.mrb[0].mxu0
        %v3299 = vadd.f32 0.0, %v3298
        %v3300 = vpop.f32.mrb[0].mxu0
        %v3301 = vpop.f32.mrb[0].mxu0
        %v3302 = vadd.f32 0.0, %v3301
        %v3303 = vpop.f32.mrb[0].mxu0
        %3304 = vmatprep.mubr.bf16.mxu0 0
        %3305 = vmatmul.mubr.bf16.gmra.mrb[0].mxu0 %v3082
        %v3306 = vpop.f32.mrb[0].mxu0
        %v3307 = vadd.f32 0.0, %v3306
        %v3308 = vpop.f32.mrb[0].mxu0
        %v3309 = vpop.f32.mrb[0].mxu0
        %v3310 = vadd.f32 0.0, %v3309
        %v3311 = vpop.f32.mrb[0].mxu0
        %3312 = vmatprep.mubr.bf16.mxu0 0
        %3313 = vmatmul.mubr.bf16.gmra.mrb[0].mxu0 %v3083
        %v3314 = vpop.f32.mrb[0].mxu0
        %v3315 = vadd.f32 0.0, %v3314
        %v3316 = vpop.f32.mrb[0].mxu0
        %v3317 = vpop.f32.mrb[0].mxu0
        %v3318 = vadd.f32 0.0, %v3317
        %v3319 = vpop.f32.mrb[0].mxu0
        %3320 = vmatprep.mubr.bf16.mxu0 0
        %3321 = vmatmul.mubr.bf16.gmra.mrb[0].mxu0 %v3084
        %v3322 = vpop.f32.mrb[0].mxu0
        %v3323 = vadd.f32 0.0, %v3322
        %v3324 = vpop.f32.mrb[0].mxu0
        %v3325 = vpop.f32.mrb[0].mxu0
        %v3326 = vadd.f32 0.0, %v3325
        %v3327 = vpop.f32.mrb[0].mxu0
        %3328 = vmatprep.mubr.bf16.mxu0 0
        %3329 = vmatmul.mubr.bf16.gmra.mrb[0].mxu0 %v3085
        %v3330 = vpop.f32.mrb[0].mxu0
        %v3331 = vadd.f32 0.0, %v3330
        %v3332 = vpop.f32.mrb[0].mxu0
        %v3333 = vpop.f32.mrb[0].mxu0
        %v3334 = vadd.f32 0.0, %v3333
        %v3335 = vpop.f32.mrb[0].mxu0
        %3336 = vmatprep.mubr.bf16.mxu0 0
        %3337 = vmatmul.mubr.bf16.gmra.mrb[0].mxu0 %v3086
        %v3338 = vpop.f32.mrb[0].mxu0
        %v3339 = vadd.f32 0.0, %v3338
        %v3340 = vpop.f32.mrb[0].mxu0
        %v3341 = vpop.f32.mrb[0].mxu0
        %v3342 = vadd.f32 0.0, %v3341
        %v3343 = vpop.f32.mrb[0].mxu0
        %3344 = vmatprep.mubr.bf16.mxu0 0
        %3345 = vmatmul.mubr.bf16.gmra.mrb[0].mxu0 %v3087
        %v3346 = vpop.f32.mrb[0].mxu0
        %v3347 = vadd.f32 0.0, %v3346
        %v3348 = vpop.f32.mrb[0].mxu0
        %v3349 = vpop.f32.mrb[0].mxu0
        %v3350 = vadd.f32 0.0, %v3349
        %v3351 = vpop.f32.mrb[0].mxu0
        %3352 = vmatprep.mubr.bf16.mxu0 0
        %3353 = vmatmul.mubr.bf16.gmra.mrb[0].mxu0 %v3088
        %v3354 = vpop.f32.mrb[0].mxu0
        %v3355 = vadd.f32 0.0, %v3354
        %v3356 = vpop.f32.mrb[0].mxu0
        %v3357 = vpop.f32.mrb[0].mxu0
        %v3358 = vadd.f32 0.0, %v3357
        %v3359 = vpop.f32.mrb[0].mxu0
        %3360 = vmatprep.mubr.bf16.mxu0 0
        %3361 = vmatmul.mubr.bf16.gmra.mrb[0].mxu0 %v3089
        %v3362 = vpop.f32.mrb[0].mxu0
        %v3363 = vadd.f32 0.0, %v3362
        %v3364 = vpop.f32.mrb[0].mxu0
        %v3365 = vpop.f32.mrb[0].mxu0
        %v3366 = vadd.f32 0.0, %v3365
        %v3367 = vpop.f32.mrb[0].mxu0
        %3368 = vmatprep.mubr.bf16.mxu0 0
        %3369 = vmatmul.mubr.bf16.gmra.mrb[0].mxu0 %v3090
        %v3370 = vpop.f32.mrb[0].mxu0
        %v3371 = vadd.f32 0.0, %v3370
        %v3372 = vpop.f32.mrb[0].mxu0
        %v3373 = vpop.f32.mrb[0].mxu0
        %v3374 = vadd.f32 0.0, %v3373
        %v3375 = vpop.f32.mrb[0].mxu0
        %3376 = vmatprep.mubr.bf16.mxu0 0
        %3377 = vmatmul.mubr.bf16.gmra.mrb[0].mxu0 %v3091
        %v3378 = vpop.f32.mrb[0].mxu0
        %v3379 = vadd.f32 0.0, %v3378
        %v3380 = vpop.f32.mrb[0].mxu0
        %v3381 = vpop.f32.mrb[0].mxu0
        %v3382 = vadd.f32 0.0, %v3381
        %v3383 = vpop.f32.mrb[0].mxu0
        %3384 = vmatprep.mubr.bf16.mxu0 0
        %3385 = vmatmul.mubr.bf16.gmra.mrb[0].mxu0 %v3092
        %v3386 = vpop.f32.mrb[0].mxu0
        %v3387 = vadd.f32 0.0, %v3386
        %v3388 = vpop.f32.mrb[0].mxu0
        %v3389 = vpop.f32.mrb[0].mxu0
        %v3390 = vadd.f32 0.0, %v3389
        %v3391 = vpop.f32.mrb[0].mxu0
        %3392 = vmatprep.mubr.bf16.mxu0 0
        %3393 = vmatmul.mubr.bf16.gmra.mrb[0].mxu0 %v3093
        %v3394 = vpop.f32.mrb[0].mxu0
        %v3395 = vadd.f32 0.0, %v3394
        %v3396 = vpop.f32.mrb[0].mxu0
        %v3397 = vpop.f32.mrb[0].mxu0
        %v3398 = vpop.f32.mrb[0].mxu0
        %3399 = vdwg.mxu0
        %v3400 = vadd.f32 %v3094, %v3235
        %v3401 = vadd.f32 %v3095, %v3238
        %v3402 = vadd.f32 %v3096, %v3243
        %v3403 = vadd.f32 %v3097, %v3246
        %v3404 = vadd.f32 %v3098, %v3251
        %v3405 = vadd.f32 %v3099, %v3254
        %v3406 = vadd.f32 %v3100, %v3259
        %v3407 = vadd.f32 %v3101, %v3262
        %v3408 = vadd.f32 %v3102, %v3267
        %v3409 = vadd.f32 %v3103, %v3270
        %v3410 = vadd.f32 %v3104, %v3275
        %v3411 = vadd.f32 %v3105, %v3278
        %v3412 = vadd.f32 %v3106, %v3283
        %v3413 = vadd.f32 %v3107, %v3286
        %v3414 = vadd.f32 %v3108, %v3291
        %v3415 = vadd.f32 %v3109, %v3294
        %v3416 = vadd.f32 %v3110, %v3299
        %v3417 = vadd.f32 %v3111, %v3302
        %v3418 = vadd.f32 %v3112, %v3307
        %v3419 = vadd.f32 %v3113, %v3310
        %v3420 = vadd.f32 %v3114, %v3315
        %v3421 = vadd.f32 %v3115, %v3318
        %v3422 = vadd.f32 %v3116, %v3323
        %v3423 = vadd.f32 %v3117, %v3326
        %v3424 = vadd.f32 %v3118, %v3331
        %v3425 = vadd.f32 %v3119, %v3334
        %v3426 = vadd.f32 %v3120, %v3339
        %v3427 = vadd.f32 %v3121, %v3342
        %v3428 = vadd.f32 %v3122, %v3347
        %v3429 = vadd.f32 %v3123, %v3350
        %v3430 = vadd.f32 %v3124, %v3355
        %v3431 = vadd.f32 %v3125, %v3358
        %v3432 = vadd.f32 %v3126, %v3363
        %v3433 = vadd.f32 %v3127, %v3366
        %v3434 = vadd.f32 %v3128, %v3371
        %v3435 = vadd.f32 %v3129, %v3374
        %v3436 = vadd.f32 %v3130, %v3379
        %v3437 = vadd.f32 %v3131, %v3382
        %v3438 = vadd.f32 %v3132, %v3387
        %v3439 = vadd.f32 %v3133, %v3390
        %v3440 = vadd.f32 %v3134, %v3395
        %3441 = vst [vmem:[#allocation2] sm:$0xff] %v3400
        %3442 = vst [vmem:[#allocation2 + $0x8] sm:$0xff] %v3401
        %3443 = vst [vmem:[#allocation2 + $0x10] sm:$0xff] %v3402
        %3444 = vst [vmem:[#allocation2 + $0x18] sm:$0xff] %v3403
        %3445 = vst [vmem:[#allocation2 + $0x20] sm:$0xff] %v3404
        %3446 = vst [vmem:[#allocation2 + $0x28] sm:$0xff] %v3405
        %3447 = vst [vmem:[#allocation2 + $0x30] sm:$0xff] %v3406
        %3448 = vst [vmem:[#allocation2 + $0x38] sm:$0xff] %v3407
        %3449 = vst [vmem:[#allocation2 + $0x40] sm:$0xff] %v3408
        %3450 = vst [vmem:[#allocation2 + $0x48] sm:$0xff] %v3409
        %3451 = vst [vmem:[#allocation2 + $0x50] sm:$0xff] %v3410
        %3452 = vst [vmem:[#allocation2 + $0x58] sm:$0xff] %v3411
        %3453 = vst [vmem:[#allocation2 + $0x60] sm:$0xff] %v3412
        %3454 = vst [vmem:[#allocation2 + $0x68] sm:$0xff] %v3413
        %3455 = vst [vmem:[#allocation2 + $0x70] sm:$0xff] %v3414
        %3456 = vst [vmem:[#allocation2 + $0x78] sm:$0xff] %v3415
        %3457 = vst [vmem:[#allocation2 + $0x80] sm:$0xff] %v3416
        %3458 = vst [vmem:[#allocation2 + $0x88] sm:$0xff] %v3417
        %3459 = vst [vmem:[#allocation2 + $0x90] sm:$0xff] %v3418
        %3460 = vst [vmem:[#allocation2 + $0x98] sm:$0xff] %v3419
        %3461 = vst [vmem:[#allocation2 + $0xa0] sm:$0xff] %v3420
        %3462 = vst [vmem:[#allocation2 + $0xa8] sm:$0xff] %v3421
        %3463 = vst [vmem:[#allocation2 + $0xb0] sm:$0xff] %v3422
        %3464 = vst [vmem:[#allocation2 + $0xb8] sm:$0xff] %v3423
        %3465 = vst [vmem:[#allocation2 + $0xc0] sm:$0xff] %v3424
        %3466 = vst [vmem:[#allocation2 + $0xc8] sm:$0xff] %v3425
        %3467 = vst [vmem:[#allocation2 + $0xd0] sm:$0xff] %v3426
        %3468 = vst [vmem:[#allocation2 + $0xd8] sm:$0xff] %v3427
        %3469 = vst [vmem:[#allocation2 + $0xe0] sm:$0xff] %v3428
        %3470 = vst [vmem:[#allocation2 + $0xe8] sm:$0xff] %v3429
        %3471 = vst [vmem:[#allocation2 + $0xf0] sm:$0xff] %v3430
        %3472 = vst [vmem:[#allocation2 + $0xf8] sm:$0xff] %v3431
        %3473 = vst [vmem:[#allocation2 + $0x100] sm:$0xff] %v3432
        %3474 = vst [vmem:[#allocation2 + $0x108] sm:$0xff] %v3433
        %3475 = vst [vmem:[#allocation2 + $0x110] sm:$0xff] %v3434
        %3476 = vst [vmem:[#allocation2 + $0x118] sm:$0xff] %v3435
        %3477 = vst [vmem:[#allocation2 + $0x120] sm:$0xff] %v3436
        %3478 = vst [vmem:[#allocation2 + $0x128] sm:$0xff] %v3437
        %3479 = vst [vmem:[#allocation2 + $0x130] sm:$0xff] %v3438
        %3480 = vst [vmem:[#allocation2 + $0x138] sm:$0xff] %v3439
        %3481 = vst [vmem:[#allocation2 + $0x140] sm:$0xff] %v3440
        %v3482 = vld [vmem:[%s254 + $0x25] sm:$0xff]
        %v3483 = vld [vmem:[%s254 + $0x2d] sm:$0xff]
        %v3484 = vld [vmem:[%s254 + $0x35] sm:$0xff]
        %v3485 = vld [vmem:[%s254 + $0x3d] sm:$0xff]
        %v3486 = vld [vmem:[%s254 + $0x45] sm:$0xff]
        %v3487 = vld [vmem:[%s254 + $0x4d] sm:$0xff]
        %v3488 = vld [vmem:[%s254 + $0x55] sm:$0xff]
        %v3489 = vld [vmem:[%s254 + $0x5d] sm:$0xff]
        %v3490 = vld [vmem:[%s254 + $0x65] sm:$0xff]
        %v3491 = vld [vmem:[%s254 + $0x6d] sm:$0xff]
        %v3492 = vld [vmem:[%s254 + $0x75] sm:$0xff]
        %v3493 = vld [vmem:[%s254 + $0x7d] sm:$0xff]
        %v3494 = vld [vmem:[%s254 + $0x85] sm:$0xff]
        %v3495 = vld [vmem:[%s254 + $0x8d] sm:$0xff]
        %v3496 = vld [vmem:[%s254 + $0x95] sm:$0xff]
        %v3497 = vld [vmem:[%s254 + $0x9d] sm:$0xff]
        %v3498 = vld [vmem:[%s254 + $0xa5] sm:$0xff]
        %v3499 = vld [vmem:[%s254 + $0xad] sm:$0xff]
        %v3500 = vld [vmem:[%s254 + $0xb5] sm:$0xff]
        %v3501 = vld [vmem:[%s254 + $0xbd] sm:$0xff]
        %v3502 = vld [vmem:[%s254 + $0xc5] sm:$0xff]
        %v3503 = vld [vmem:[%s254 + $0xcd] sm:$0xff]
        %v3504 = vld [vmem:[%s254 + $0xd5] sm:$0xff]
        %v3505 = vld [vmem:[%s254 + $0xdd] sm:$0xff]
        %v3506 = vld [vmem:[%s254 + $0xe5] sm:$0xff]
        %v3507 = vld [vmem:[%s254 + $0xed] sm:$0xff]
        %v3508 = vld [vmem:[%s254 + $0xf5] sm:$0xff]
        %v3509 = vld [vmem:[%s254 + $0xfd] sm:$0xff]
        %v3510 = vld [vmem:[%s254 + $0x105] sm:$0xff]
        %v3511 = vld [vmem:[%s254 + $0x10d] sm:$0xff]
        %v3512 = vld [vmem:[%s254 + $0x115] sm:$0xff]
        %v3513 = vld [vmem:[%s254 + $0x11d] sm:$0xff]
        %v3514 = vld [vmem:[%s254 + $0x125] sm:$0xff]
        %v3515 = vld [vmem:[%s254 + $0x12d] sm:$0xff]
        %v3516 = vld [vmem:[%s254 + $0x135] sm:$0xff]
        %v3517 = vld [vmem:[%s254 + $0x13d] sm:$0xff]
        %v3518 = vld [vmem:[%s254 + $0x145] sm:$0xff]
        %v3519 = vld [vmem:[%s254 + $0x14d] sm:$0xff]
        %v3520 = vld [vmem:[%s254 + $0x155] sm:$0xff]
        %v3521 = vld [vmem:[%s254 + $0x15d] sm:$0xff]
        %v3522 = vld [vmem:[%s254 + $0x165] sm:$0xff]
        %v3523 = vpack.c.bf16 %v3483, %v3482
        %v3524 = vpack.c.bf16 %v3485, %v3484
        %v3525 = vpack.c.bf16 %v3487, %v3486
        %v3526 = vpack.c.bf16 %v3489, %v3488
        %v3527 = vpack.c.bf16 %v3491, %v3490
        %v3528 = vpack.c.bf16 %v3493, %v3492
        %v3529 = vpack.c.bf16 %v3495, %v3494
        %v3530 = vpack.c.bf16 %v3497, %v3496
        %v3531 = vpack.c.bf16 %v3499, %v3498
        %v3532 = vpack.c.bf16 %v3501, %v3500
        %v3533 = vpack.c.bf16 %v3503, %v3502
        %v3534 = vpack.c.bf16 %v3505, %v3504
        %v3535 = vpack.c.bf16 %v3507, %v3506
        %v3536 = vpack.c.bf16 %v3509, %v3508
        %v3537 = vpack.c.bf16 %v3511, %v3510
        %v3538 = vpack.c.bf16 %v3513, %v3512
        %v3539 = vpack.c.bf16 %v3515, %v3514
        %v3540 = vpack.c.bf16 %v3517, %v3516
        %v3541 = vpack.c.bf16 %v3519, %v3518
        %v3542 = vpack.c.bf16 %v3521, %v3520
        %v3543 = vpack.c.bf16 %v3522, %v3522
        %v3544 = vld [vmem:[#allocation2] sm:$0xff]
        %v3545 = vld [vmem:[#allocation2 + $0x8] sm:$0xff]
        %v3546 = vld [vmem:[#allocation2 + $0x10] sm:$0xff]
        %v3547 = vld [vmem:[#allocation2 + $0x18] sm:$0xff]
        %v3548 = vld [vmem:[#allocation2 + $0x20] sm:$0xff]
        %v3549 = vld [vmem:[#allocation2 + $0x28] sm:$0xff]
        %v3550 = vld [vmem:[#allocation2 + $0x30] sm:$0xff]
        %v3551 = vld [vmem:[#allocation2 + $0x38] sm:$0xff]
        %v3552 = vld [vmem:[#allocation2 + $0x40] sm:$0xff]
        %v3553 = vld [vmem:[#allocation2 + $0x48] sm:$0xff]
        %v3554 = vld [vmem:[#allocation2 + $0x50] sm:$0xff]
        %v3555 = vld [vmem:[#allocation2 + $0x58] sm:$0xff]
        %v3556 = vld [vmem:[#allocation2 + $0x60] sm:$0xff]
        %v3557 = vld [vmem:[#allocation2 + $0x68] sm:$0xff]
        %v3558 = vld [vmem:[#allocation2 + $0x70] sm:$0xff]
        %v3559 = vld [vmem:[#allocation2 + $0x78] sm:$0xff]
        %v3560 = vld [vmem:[#allocation2 + $0x80] sm:$0xff]
        %v3561 = vld [vmem:[#allocation2 + $0x88] sm:$0xff]
        %v3562 = vld [vmem:[#allocation2 + $0x90] sm:$0xff]
        %v3563 = vld [vmem:[#allocation2 + $0x98] sm:$0xff]
        %v3564 = vld [vmem:[#allocation2 + $0xa0] sm:$0xff]
        %v3565 = vld [vmem:[#allocation2 + $0xa8] sm:$0xff]
        %v3566 = vld [vmem:[#allocation2 + $0xb0] sm:$0xff]
        %v3567 = vld [vmem:[#allocation2 + $0xb8] sm:$0xff]
        %v3568 = vld [vmem:[#allocation2 + $0xc0] sm:$0xff]
        %v3569 = vld [vmem:[#allocation2 + $0xc8] sm:$0xff]
        %v3570 = vld [vmem:[#allocation2 + $0xd0] sm:$0xff]
        %v3571 = vld [vmem:[#allocation2 + $0xd8] sm:$0xff]
        %v3572 = vld [vmem:[#allocation2 + $0xe0] sm:$0xff]
        %v3573 = vld [vmem:[#allocation2 + $0xe8] sm:$0xff]
        %v3574 = vld [vmem:[#allocation2 + $0xf0] sm:$0xff]
        %v3575 = vld [vmem:[#allocation2 + $0xf8] sm:$0xff]
        %v3576 = vld [vmem:[#allocation2 + $0x100] sm:$0xff]
        %v3577 = vld [vmem:[#allocation2 + $0x108] sm:$0xff]
        %v3578 = vld [vmem:[#allocation2 + $0x110] sm:$0xff]
        %v3579 = vld [vmem:[#allocation2 + $0x118] sm:$0xff]
        %v3580 = vld [vmem:[#allocation2 + $0x120] sm:$0xff]
        %v3581 = vld [vmem:[#allocation2 + $0x128] sm:$0xff]
        %v3582 = vld [vmem:[#allocation2 + $0x130] sm:$0xff]
        %v3583 = vld [vmem:[#allocation2 + $0x138] sm:$0xff]
        %v3584 = vld [vmem:[#allocation2 + $0x140] sm:$0xff]
        %s3585 = scalar_lea.vmem [#allocation6], 448
        %v3586 = vld [vmem:[%s3585] sm:$0xf]
        %v3587 = vld [vmem:[%s3585 + $0x4] sm:$0xf]
        %v3588 = vld [vmem:[%s3585 + $0x8] sm:$0xf]
        %v3589 = vld [vmem:[%s3585 + $0xc] sm:$0xf]
        %v3590 = vld [vmem:[%s3585 + $0x10] sm:$0xf]
        %v3591 = vld [vmem:[%s3585 + $0x14] sm:$0xf]
        %v3592 = vld [vmem:[%s3585 + $0x18] sm:$0xf]
        %v3593 = vld [vmem:[%s3585 + $0x1c] sm:$0xf]
        %v3594 = vld [vmem:[%s3585 + $0x20] sm:$0xf]
        %v3595 = vld [vmem:[%s3585 + $0x24] sm:$0xf]
        %v3596 = vld [vmem:[%s3585 + $0x28] sm:$0xf]
        %v3597 = vld [vmem:[%s3585 + $0x2c] sm:$0xf]
        %v3598 = vld [vmem:[%s3585 + $0x30] sm:$0xf]
        %v3599 = vld [vmem:[%s3585 + $0x34] sm:$0xf]
        %v3600 = vld [vmem:[%s3585 + $0x38] sm:$0xf]
        %v3601 = vld [vmem:[%s3585 + $0x3c] sm:$0xf]
        %v3618 = vunpack.c.l.b16 %v3586
        %v3619 = vunpack.c.l.b16 %v3587
        %v3620 = vunpack.c.l.b16 %v3588
        %v3621 = vunpack.c.l.b16 %v3589
        %v3622 = vunpack.c.l.b16 %v3590
        %v3623 = vunpack.c.l.b16 %v3591
        %v3624 = vunpack.c.l.b16 %v3592
        %v3625 = vunpack.c.l.b16 %v3593
        %v3626 = vunpack.c.l.b16 %v3594
        %v3627 = vunpack.c.l.b16 %v3595
        %v3628 = vunpack.c.l.b16 %v3596
        %v3629 = vunpack.c.l.b16 %v3597
        %v3630 = vunpack.c.l.b16 %v3598
        %v3631 = vunpack.c.l.b16 %v3599
        %v3632 = vunpack.c.l.b16 %v3600
        %v3633 = vunpack.c.l.b16 %v3601
        %v3634 = vpack.c.b16 %v3619, %v3618
        %v3635 = vpack.c.b16 %v3621, %v3620
        %v3636 = vpack.c.b16 %v3623, %v3622
        %v3637 = vpack.c.b16 %v3625, %v3624
        %v3638 = vpack.c.b16 %v3627, %v3626
        %v3639 = vpack.c.b16 %v3629, %v3628
        %v3640 = vpack.c.b16 %v3631, %v3630
        %v3641 = vpack.c.b16 %v3633, %v3632
        %3650 = vmatprep.subr.bf16.mxu0 0
        %3651 = vmatpush1.bf16.msra.mxu0 %v3634
        %3652 = vmatprep.subr.bf16.mxu0 0
        %3653 = vmatpush1.bf16.msra.mxu0 %v3635
        %3654 = vmatprep.subr.bf16.mxu0 0
        %3655 = vmatpush1.bf16.msra.mxu0 %v3636
        %3656 = vmatprep.subr.bf16.mxu0 0
        %3657 = vmatpush1.bf16.msra.mxu0 %v3637
        %3658 = vmatprep.subr.bf16.mxu0 0
        %3659 = vmatpush1.bf16.msra.mxu0 %v3638
        %3660 = vmatprep.subr.bf16.mxu0 0
        %3661 = vmatpush1.bf16.msra.mxu0 %v3639
        %3662 = vmatprep.subr.bf16.mxu0 0
        %3663 = vmatpush1.bf16.msra.mxu0 %v3640
        %3664 = vmatprep.subr.bf16.mxu0 0
        %3665 = vmatpush1.bf16.msra.mxu0 %v3641
        %3666 = vmatprep.subr.bf16.mxu0 0
        %3667 = vmatpush1.bf16.msra.mxu0 0
        %3668 = vmatprep.subr.bf16.mxu0 0
        %3669 = vmatpush1.bf16.msra.mxu0 0
        %3670 = vmatprep.subr.bf16.mxu0 0
        %3671 = vmatpush1.bf16.msra.mxu0 0
        %3672 = vmatprep.subr.bf16.mxu0 0
        %3673 = vmatpush1.bf16.msra.mxu0 0
        %3674 = vmatprep.subr.bf16.mxu0 0
        %3675 = vmatpush1.bf16.msra.mxu0 0
        %3676 = vmatprep.subr.bf16.mxu0 0
        %3677 = vmatpush1.bf16.msra.mxu0 0
        %3678 = vmatprep.subr.bf16.mxu0 0
        %3679 = vmatpush1.bf16.msra.mxu0 0
        %3680 = vmatprep.subr.bf16.mxu0 0
        %3681 = vmatpush1.bf16.msra.mxu0 0
        %3682 = vmatprep.mubr.bf16.mxu0 0
        %3683 = vmatmul.mubr.bf16.gmra.mrb[0].mxu0 %v3523
        %v3684 = vpop.f32.mrb[0].mxu0
        %v3685 = vadd.f32 0.0, %v3684
        %v3686 = vpop.f32.mrb[0].mxu0
        %v3687 = vpop.f32.mrb[0].mxu0
        %v3688 = vadd.f32 0.0, %v3687
        %v3689 = vpop.f32.mrb[0].mxu0
        %3690 = vmatprep.mubr.bf16.mxu0 0
        %3691 = vmatmul.mubr.bf16.gmra.mrb[0].mxu0 %v3524
        %v3692 = vpop.f32.mrb[0].mxu0
        %v3693 = vadd.f32 0.0, %v3692
        %v3694 = vpop.f32.mrb[0].mxu0
        %v3695 = vpop.f32.mrb[0].mxu0
        %v3696 = vadd.f32 0.0, %v3695
        %v3697 = vpop.f32.mrb[0].mxu0
        %3698 = vmatprep.mubr.bf16.mxu0 0
        %3699 = vmatmul.mubr.bf16.gmra.mrb[0].mxu0 %v3525
        %v3700 = vpop.f32.mrb[0].mxu0
        %v3701 = vadd.f32 0.0, %v3700
        %v3702 = vpop.f32.mrb[0].mxu0
        %v3703 = vpop.f32.mrb[0].mxu0
        %v3704 = vadd.f32 0.0, %v3703
        %v3705 = vpop.f32.mrb[0].mxu0
        %3706 = vmatprep.mubr.bf16.mxu0 0
        %3707 = vmatmul.mubr.bf16.gmra.mrb[0].mxu0 %v3526
        %v3708 = vpop.f32.mrb[0].mxu0
        %v3709 = vadd.f32 0.0, %v3708
        %v3710 = vpop.f32.mrb[0].mxu0
        %v3711 = vpop.f32.mrb[0].mxu0
        %v3712 = vadd.f32 0.0, %v3711
        %v3713 = vpop.f32.mrb[0].mxu0
        %3714 = vmatprep.mubr.bf16.mxu0 0
        %3715 = vmatmul.mubr.bf16.gmra.mrb[0].mxu0 %v3527
        %v3716 = vpop.f32.mrb[0].mxu0
        %v3717 = vadd.f32 0.0, %v3716
        %v3718 = vpop.f32.mrb[0].mxu0
        %v3719 = vpop.f32.mrb[0].mxu0
        %v3720 = vadd.f32 0.0, %v3719
        %v3721 = vpop.f32.mrb[0].mxu0
        %3722 = vmatprep.mubr.bf16.mxu0 0
        %3723 = vmatmul.mubr.bf16.gmra.mrb[0].mxu0 %v3528
        %v3724 = vpop.f32.mrb[0].mxu0
        %v3725 = vadd.f32 0.0, %v3724
        %v3726 = vpop.f32.mrb[0].mxu0
        %v3727 = vpop.f32.mrb[0].mxu0
        %v3728 = vadd.f32 0.0, %v3727
        %v3729 = vpop.f32.mrb[0].mxu0
        %3730 = vmatprep.mubr.bf16.mxu0 0
        %3731 = vmatmul.mubr.bf16.gmra.mrb[0].mxu0 %v3529
        %v3732 = vpop.f32.mrb[0].mxu0
        %v3733 = vadd.f32 0.0, %v3732
        %v3734 = vpop.f32.mrb[0].mxu0
        %v3735 = vpop.f32.mrb[0].mxu0
        %v3736 = vadd.f32 0.0, %v3735
        %v3737 = vpop.f32.mrb[0].mxu0
        %3738 = vmatprep.mubr.bf16.mxu0 0
        %3739 = vmatmul.mubr.bf16.gmra.mrb[0].mxu0 %v3530
        %v3740 = vpop.f32.mrb[0].mxu0
        %v3741 = vadd.f32 0.0, %v3740
        %v3742 = vpop.f32.mrb[0].mxu0
        %v3743 = vpop.f32.mrb[0].mxu0
        %v3744 = vadd.f32 0.0, %v3743
        %v3745 = vpop.f32.mrb[0].mxu0
        %3746 = vmatprep.mubr.bf16.mxu0 0
        %3747 = vmatmul.mubr.bf16.gmra.mrb[0].mxu0 %v3531
        %v3748 = vpop.f32.mrb[0].mxu0
        %v3749 = vadd.f32 0.0, %v3748
        %v3750 = vpop.f32.mrb[0].mxu0
        %v3751 = vpop.f32.mrb[0].mxu0
        %v3752 = vadd.f32 0.0, %v3751
        %v3753 = vpop.f32.mrb[0].mxu0
        %3754 = vmatprep.mubr.bf16.mxu0 0
        %3755 = vmatmul.mubr.bf16.gmra.mrb[0].mxu0 %v3532
        %v3756 = vpop.f32.mrb[0].mxu0
        %v3757 = vadd.f32 0.0, %v3756
        %v3758 = vpop.f32.mrb[0].mxu0
        %v3759 = vpop.f32.mrb[0].mxu0
        %v3760 = vadd.f32 0.0, %v3759
        %v3761 = vpop.f32.mrb[0].mxu0
        %3762 = vmatprep.mubr.bf16.mxu0 0
        %3763 = vmatmul.mubr.bf16.gmra.mrb[0].mxu0 %v3533
        %v3764 = vpop.f32.mrb[0].mxu0
        %v3765 = vadd.f32 0.0, %v3764
        %v3766 = vpop.f32.mrb[0].mxu0
        %v3767 = vpop.f32.mrb[0].mxu0
        %v3768 = vadd.f32 0.0, %v3767
        %v3769 = vpop.f32.mrb[0].mxu0
        %3770 = vmatprep.mubr.bf16.mxu0 0
        %3771 = vmatmul.mubr.bf16.gmra.mrb[0].mxu0 %v3534
        %v3772 = vpop.f32.mrb[0].mxu0
        %v3773 = vadd.f32 0.0, %v3772
        %v3774 = vpop.f32.mrb[0].mxu0
        %v3775 = vpop.f32.mrb[0].mxu0
        %v3776 = vadd.f32 0.0, %v3775
        %v3777 = vpop.f32.mrb[0].mxu0
        %3778 = vmatprep.mubr.bf16.mxu0 0
        %3779 = vmatmul.mubr.bf16.gmra.mrb[0].mxu0 %v3535
        %v3780 = vpop.f32.mrb[0].mxu0
        %v3781 = vadd.f32 0.0, %v3780
        %v3782 = vpop.f32.mrb[0].mxu0
        %v3783 = vpop.f32.mrb[0].mxu0
        %v3784 = vadd.f32 0.0, %v3783
        %v3785 = vpop.f32.mrb[0].mxu0
        %3786 = vmatprep.mubr.bf16.mxu0 0
        %3787 = vmatmul.mubr.bf16.gmra.mrb[0].mxu0 %v3536
        %v3788 = vpop.f32.mrb[0].mxu0
        %v3789 = vadd.f32 0.0, %v3788
        %v3790 = vpop.f32.mrb[0].mxu0
        %v3791 = vpop.f32.mrb[0].mxu0
        %v3792 = vadd.f32 0.0, %v3791
        %v3793 = vpop.f32.mrb[0].mxu0
        %3794 = vmatprep.mubr.bf16.mxu0 0
        %3795 = vmatmul.mubr.bf16.gmra.mrb[0].mxu0 %v3537
        %v3796 = vpop.f32.mrb[0].mxu0
        %v3797 = vadd.f32 0.0, %v3796
        %v3798 = vpop.f32.mrb[0].mxu0
        %v3799 = vpop.f32.mrb[0].mxu0
        %v3800 = vadd.f32 0.0, %v3799
        %v3801 = vpop.f32.mrb[0].mxu0
        %3802 = vmatprep.mubr.bf16.mxu0 0
        %3803 = vmatmul.mubr.bf16.gmra.mrb[0].mxu0 %v3538
        %v3804 = vpop.f32.mrb[0].mxu0
        %v3805 = vadd.f32 0.0, %v3804
        %v3806 = vpop.f32.mrb[0].mxu0
        %v3807 = vpop.f32.mrb[0].mxu0
        %v3808 = vadd.f32 0.0, %v3807
        %v3809 = vpop.f32.mrb[0].mxu0
        %3810 = vmatprep.mubr.bf16.mxu0 0
        %3811 = vmatmul.mubr.bf16.gmra.mrb[0].mxu0 %v3539
        %v3812 = vpop.f32.mrb[0].mxu0
        %v3813 = vadd.f32 0.0, %v3812
        %v3814 = vpop.f32.mrb[0].mxu0
        %v3815 = vpop.f32.mrb[0].mxu0
        %v3816 = vadd.f32 0.0, %v3815
        %v3817 = vpop.f32.mrb[0].mxu0
        %3818 = vmatprep.mubr.bf16.mxu0 0
        %3819 = vmatmul.mubr.bf16.gmra.mrb[0].mxu0 %v3540
        %v3820 = vpop.f32.mrb[0].mxu0
        %v3821 = vadd.f32 0.0, %v3820
        %v3822 = vpop.f32.mrb[0].mxu0
        %v3823 = vpop.f32.mrb[0].mxu0
        %v3824 = vadd.f32 0.0, %v3823
        %v3825 = vpop.f32.mrb[0].mxu0
        %3826 = vmatprep.mubr.bf16.mxu0 0
        %3827 = vmatmul.mubr.bf16.gmra.mrb[0].mxu0 %v3541
        %v3828 = vpop.f32.mrb[0].mxu0
        %v3829 = vadd.f32 0.0, %v3828
        %v3830 = vpop.f32.mrb[0].mxu0
        %v3831 = vpop.f32.mrb[0].mxu0
        %v3832 = vadd.f32 0.0, %v3831
        %v3833 = vpop.f32.mrb[0].mxu0
        %3834 = vmatprep.mubr.bf16.mxu0 0
        %3835 = vmatmul.mubr.bf16.gmra.mrb[0].mxu0 %v3542
        %v3836 = vpop.f32.mrb[0].mxu0
        %v3837 = vadd.f32 0.0, %v3836
        %v3838 = vpop.f32.mrb[0].mxu0
        %v3839 = vpop.f32.mrb[0].mxu0
        %v3840 = vadd.f32 0.0, %v3839
        %v3841 = vpop.f32.mrb[0].mxu0
        %3842 = vmatprep.mubr.bf16.mxu0 0
        %3843 = vmatmul.mubr.bf16.gmra.mrb[0].mxu0 %v3543
        %v3844 = vpop.f32.mrb[0].mxu0
        %v3845 = vadd.f32 0.0, %v3844
        %v3846 = vpop.f32.mrb[0].mxu0
        %v3847 = vpop.f32.mrb[0].mxu0
        %v3848 = vpop.f32.mrb[0].mxu0
        %3849 = vdwg.mxu0
        %v3850 = vadd.f32 %v3544, %v3685
        %v3851 = vadd.f32 %v3545, %v3688
        %v3852 = vadd.f32 %v3546, %v3693
        %v3853 = vadd.f32 %v3547, %v3696
        %v3854 = vadd.f32 %v3548, %v3701
        %v3855 = vadd.f32 %v3549, %v3704
        %v3856 = vadd.f32 %v3550, %v3709
        %v3857 = vadd.f32 %v3551, %v3712
        %v3858 = vadd.f32 %v3552, %v3717
        %v3859 = vadd.f32 %v3553, %v3720
        %v3860 = vadd.f32 %v3554, %v3725
        %v3861 = vadd.f32 %v3555, %v3728
        %v3862 = vadd.f32 %v3556, %v3733
        %v3863 = vadd.f32 %v3557, %v3736
        %v3864 = vadd.f32 %v3558, %v3741
        %v3865 = vadd.f32 %v3559, %v3744
        %v3866 = vadd.f32 %v3560, %v3749
        %v3867 = vadd.f32 %v3561, %v3752
        %v3868 = vadd.f32 %v3562, %v3757
        %v3869 = vadd.f32 %v3563, %v3760
        %v3870 = vadd.f32 %v3564, %v3765
        %v3871 = vadd.f32 %v3565, %v3768
        %v3872 = vadd.f32 %v3566, %v3773
        %v3873 = vadd.f32 %v3567, %v3776
        %v3874 = vadd.f32 %v3568, %v3781
        %v3875 = vadd.f32 %v3569, %v3784
        %v3876 = vadd.f32 %v3570, %v3789
        %v3877 = vadd.f32 %v3571, %v3792
        %v3878 = vadd.f32 %v3572, %v3797
        %v3879 = vadd.f32 %v3573, %v3800
        %v3880 = vadd.f32 %v3574, %v3805
        %v3881 = vadd.f32 %v3575, %v3808
        %v3882 = vadd.f32 %v3576, %v3813
        %v3883 = vadd.f32 %v3577, %v3816
        %v3884 = vadd.f32 %v3578, %v3821
        %v3885 = vadd.f32 %v3579, %v3824
        %v3886 = vadd.f32 %v3580, %v3829
        %v3887 = vadd.f32 %v3581, %v3832
        %v3888 = vadd.f32 %v3582, %v3837
        %v3889 = vadd.f32 %v3583, %v3840
        %v3890 = vadd.f32 %v3584, %v3845
        %3891 = vst [vmem:[#allocation2] sm:$0xff] %v3850
        %3892 = vst [vmem:[#allocation2 + $0x8] sm:$0xff] %v3851
        %3893 = vst [vmem:[#allocation2 + $0x10] sm:$0xff] %v3852
        %3894 = vst [vmem:[#allocation2 + $0x18] sm:$0xff] %v3853
        %3895 = vst [vmem:[#allocation2 + $0x20] sm:$0xff] %v3854
        %3896 = vst [vmem:[#allocation2 + $0x28] sm:$0xff] %v3855
        %3897 = vst [vmem:[#allocation2 + $0x30] sm:$0xff] %v3856
        %3898 = vst [vmem:[#allocation2 + $0x38] sm:$0xff] %v3857
        %3899 = vst [vmem:[#allocation2 + $0x40] sm:$0xff] %v3858
        %3900 = vst [vmem:[#allocation2 + $0x48] sm:$0xff] %v3859
        %3901 = vst [vmem:[#allocation2 + $0x50] sm:$0xff] %v3860
        %3902 = vst [vmem:[#allocation2 + $0x58] sm:$0xff] %v3861
        %3903 = vst [vmem:[#allocation2 + $0x60] sm:$0xff] %v3862
        %3904 = vst [vmem:[#allocation2 + $0x68] sm:$0xff] %v3863
        %3905 = vst [vmem:[#allocation2 + $0x70] sm:$0xff] %v3864
        %3906 = vst [vmem:[#allocation2 + $0x78] sm:$0xff] %v3865
        %3907 = vst [vmem:[#allocation2 + $0x80] sm:$0xff] %v3866
        %3908 = vst [vmem:[#allocation2 + $0x88] sm:$0xff] %v3867
        %3909 = vst [vmem:[#allocation2 + $0x90] sm:$0xff] %v3868
        %3910 = vst [vmem:[#allocation2 + $0x98] sm:$0xff] %v3869
        %3911 = vst [vmem:[#allocation2 + $0xa0] sm:$0xff] %v3870
        %3912 = vst [vmem:[#allocation2 + $0xa8] sm:$0xff] %v3871
        %3913 = vst [vmem:[#allocation2 + $0xb0] sm:$0xff] %v3872
        %3914 = vst [vmem:[#allocation2 + $0xb8] sm:$0xff] %v3873
        %3915 = vst [vmem:[#allocation2 + $0xc0] sm:$0xff] %v3874
        %3916 = vst [vmem:[#allocation2 + $0xc8] sm:$0xff] %v3875
        %3917 = vst [vmem:[#allocation2 + $0xd0] sm:$0xff] %v3876
        %3918 = vst [vmem:[#allocation2 + $0xd8] sm:$0xff] %v3877
        %3919 = vst [vmem:[#allocation2 + $0xe0] sm:$0xff] %v3878
        %3920 = vst [vmem:[#allocation2 + $0xe8] sm:$0xff] %v3879
        %3921 = vst [vmem:[#allocation2 + $0xf0] sm:$0xff] %v3880
        %3922 = vst [vmem:[#allocation2 + $0xf8] sm:$0xff] %v3881
        %3923 = vst [vmem:[#allocation2 + $0x100] sm:$0xff] %v3882
        %3924 = vst [vmem:[#allocation2 + $0x108] sm:$0xff] %v3883
        %3925 = vst [vmem:[#allocation2 + $0x110] sm:$0xff] %v3884
        %3926 = vst [vmem:[#allocation2 + $0x118] sm:$0xff] %v3885
        %3927 = vst [vmem:[#allocation2 + $0x120] sm:$0xff] %v3886
        %3928 = vst [vmem:[#allocation2 + $0x128] sm:$0xff] %v3887
        %3929 = vst [vmem:[#allocation2 + $0x130] sm:$0xff] %v3888
        %3930 = vst [vmem:[#allocation2 + $0x138] sm:$0xff] %v3889
        %3931 = vst [vmem:[#allocation2 + $0x140] sm:$0xff] %v3890
        %v3932 = vld [vmem:[%s254 + $0x26] sm:$0xff]
        %v3933 = vld [vmem:[%s254 + $0x2e] sm:$0xff]
        %v3934 = vld [vmem:[%s254 + $0x36] sm:$0xff]
        %v3935 = vld [vmem:[%s254 + $0x3e] sm:$0xff]
        %v3936 = vld [vmem:[%s254 + $0x46] sm:$0xff]
        %v3937 = vld [vmem:[%s254 + $0x4e] sm:$0xff]
        %v3938 = vld [vmem:[%s254 + $0x56] sm:$0xff]
        %v3939 = vld [vmem:[%s254 + $0x5e] sm:$0xff]
        %v3940 = vld [vmem:[%s254 + $0x66] sm:$0xff]
        %v3941 = vld [vmem:[%s254 + $0x6e] sm:$0xff]
        %v3942 = vld [vmem:[%s254 + $0x76] sm:$0xff]
        %v3943 = vld [vmem:[%s254 + $0x7e] sm:$0xff]
        %v3944 = vld [vmem:[%s254 + $0x86] sm:$0xff]
        %v3945 = vld [vmem:[%s254 + $0x8e] sm:$0xff]
        %v3946 = vld [vmem:[%s254 + $0x96] sm:$0xff]
        %v3947 = vld [vmem:[%s254 + $0x9e] sm:$0xff]
        %v3948 = vld [vmem:[%s254 + $0xa6] sm:$0xff]
        %v3949 = vld [vmem:[%s254 + $0xae] sm:$0xff]
        %v3950 = vld [vmem:[%s254 + $0xb6] sm:$0xff]
        %v3951 = vld [vmem:[%s254 + $0xbe] sm:$0xff]
        %v3952 = vld [vmem:[%s254 + $0xc6] sm:$0xff]
        %v3953 = vld [vmem:[%s254 + $0xce] sm:$0xff]
        %v3954 = vld [vmem:[%s254 + $0xd6] sm:$0xff]
        %v3955 = vld [vmem:[%s254 + $0xde] sm:$0xff]
        %v3956 = vld [vmem:[%s254 + $0xe6] sm:$0xff]
        %v3957 = vld [vmem:[%s254 + $0xee] sm:$0xff]
        %v3958 = vld [vmem:[%s254 + $0xf6] sm:$0xff]
        %v3959 = vld [vmem:[%s254 + $0xfe] sm:$0xff]
        %v3960 = vld [vmem:[%s254 + $0x106] sm:$0xff]
        %v3961 = vld [vmem:[%s254 + $0x10e] sm:$0xff]
        %v3962 = vld [vmem:[%s254 + $0x116] sm:$0xff]
        %v3963 = vld [vmem:[%s254 + $0x11e] sm:$0xff]
        %v3964 = vld [vmem:[%s254 + $0x126] sm:$0xff]
        %v3965 = vld [vmem:[%s254 + $0x12e] sm:$0xff]
        %v3966 = vld [vmem:[%s254 + $0x136] sm:$0xff]
        %v3967 = vld [vmem:[%s254 + $0x13e] sm:$0xff]
        %v3968 = vld [vmem:[%s254 + $0x146] sm:$0xff]
        %v3969 = vld [vmem:[%s254 + $0x14e] sm:$0xff]
        %v3970 = vld [vmem:[%s254 + $0x156] sm:$0xff]
        %v3971 = vld [vmem:[%s254 + $0x15e] sm:$0xff]
        %v3972 = vld [vmem:[%s254 + $0x166] sm:$0xff]
        %v3973 = vpack.c.bf16 %v3933, %v3932
        %v3974 = vpack.c.bf16 %v3935, %v3934
        %v3975 = vpack.c.bf16 %v3937, %v3936
        %v3976 = vpack.c.bf16 %v3939, %v3938
        %v3977 = vpack.c.bf16 %v3941, %v3940
        %v3978 = vpack.c.bf16 %v3943, %v3942
        %v3979 = vpack.c.bf16 %v3945, %v3944
        %v3980 = vpack.c.bf16 %v3947, %v3946
        %v3981 = vpack.c.bf16 %v3949, %v3948
        %v3982 = vpack.c.bf16 %v3951, %v3950
        %v3983 = vpack.c.bf16 %v3953, %v3952
        %v3984 = vpack.c.bf16 %v3955, %v3954
        %v3985 = vpack.c.bf16 %v3957, %v3956
        %v3986 = vpack.c.bf16 %v3959, %v3958
        %v3987 = vpack.c.bf16 %v3961, %v3960
        %v3988 = vpack.c.bf16 %v3963, %v3962
        %v3989 = vpack.c.bf16 %v3965, %v3964
        %v3990 = vpack.c.bf16 %v3967, %v3966
        %v3991 = vpack.c.bf16 %v3969, %v3968
        %v3992 = vpack.c.bf16 %v3971, %v3970
        %v3993 = vpack.c.bf16 %v3972, %v3972
        %v3994 = vld [vmem:[#allocation2] sm:$0xff]
        %v3995 = vld [vmem:[#allocation2 + $0x8] sm:$0xff]
        %v3996 = vld [vmem:[#allocation2 + $0x10] sm:$0xff]
        %v3997 = vld [vmem:[#allocation2 + $0x18] sm:$0xff]
        %v3998 = vld [vmem:[#allocation2 + $0x20] sm:$0xff]
        %v3999 = vld [vmem:[#allocation2 + $0x28] sm:$0xff]
        %v4000 = vld [vmem:[#allocation2 + $0x30] sm:$0xff]
        %v4001 = vld [vmem:[#allocation2 + $0x38] sm:$0xff]
        %v4002 = vld [vmem:[#allocation2 + $0x40] sm:$0xff]
        %v4003 = vld [vmem:[#allocation2 + $0x48] sm:$0xff]
        %v4004 = vld [vmem:[#allocation2 + $0x50] sm:$0xff]
        %v4005 = vld [vmem:[#allocation2 + $0x58] sm:$0xff]
        %v4006 = vld [vmem:[#allocation2 + $0x60] sm:$0xff]
        %v4007 = vld [vmem:[#allocation2 + $0x68] sm:$0xff]
        %v4008 = vld [vmem:[#allocation2 + $0x70] sm:$0xff]
        %v4009 = vld [vmem:[#allocation2 + $0x78] sm:$0xff]
        %v4010 = vld [vmem:[#allocation2 + $0x80] sm:$0xff]
        %v4011 = vld [vmem:[#allocation2 + $0x88] sm:$0xff]
        %v4012 = vld [vmem:[#allocation2 + $0x90] sm:$0xff]
        %v4013 = vld [vmem:[#allocation2 + $0x98] sm:$0xff]
        %v4014 = vld [vmem:[#allocation2 + $0xa0] sm:$0xff]
        %v4015 = vld [vmem:[#allocation2 + $0xa8] sm:$0xff]
        %v4016 = vld [vmem:[#allocation2 + $0xb0] sm:$0xff]
        %v4017 = vld [vmem:[#allocation2 + $0xb8] sm:$0xff]
        %v4018 = vld [vmem:[#allocation2 + $0xc0] sm:$0xff]
        %v4019 = vld [vmem:[#allocation2 + $0xc8] sm:$0xff]
        %v4020 = vld [vmem:[#allocation2 + $0xd0] sm:$0xff]
        %v4021 = vld [vmem:[#allocation2 + $0xd8] sm:$0xff]
        %v4022 = vld [vmem:[#allocation2 + $0xe0] sm:$0xff]
        %v4023 = vld [vmem:[#allocation2 + $0xe8] sm:$0xff]
        %v4024 = vld [vmem:[#allocation2 + $0xf0] sm:$0xff]
        %v4025 = vld [vmem:[#allocation2 + $0xf8] sm:$0xff]
        %v4026 = vld [vmem:[#allocation2 + $0x100] sm:$0xff]
        %v4027 = vld [vmem:[#allocation2 + $0x108] sm:$0xff]
        %v4028 = vld [vmem:[#allocation2 + $0x110] sm:$0xff]
        %v4029 = vld [vmem:[#allocation2 + $0x118] sm:$0xff]
        %v4030 = vld [vmem:[#allocation2 + $0x120] sm:$0xff]
        %v4031 = vld [vmem:[#allocation2 + $0x128] sm:$0xff]
        %v4032 = vld [vmem:[#allocation2 + $0x130] sm:$0xff]
        %v4033 = vld [vmem:[#allocation2 + $0x138] sm:$0xff]
        %v4034 = vld [vmem:[#allocation2 + $0x140] sm:$0xff]
        %s4035 = scalar_lea.vmem [#allocation6], 512
        %v4036 = vld [vmem:[%s4035] sm:$0xf]
        %v4037 = vld [vmem:[%s4035 + $0x4] sm:$0xf]
        %v4038 = vld [vmem:[%s4035 + $0x8] sm:$0xf]
        %v4039 = vld [vmem:[%s4035 + $0xc] sm:$0xf]
        %v4040 = vld [vmem:[%s4035 + $0x10] sm:$0xf]
        %v4041 = vld [vmem:[%s4035 + $0x14] sm:$0xf]
        %v4042 = vld [vmem:[%s4035 + $0x18] sm:$0xf]
        %v4043 = vld [vmem:[%s4035 + $0x1c] sm:$0xf]
        %v4044 = vld [vmem:[%s4035 + $0x20] sm:$0xf]
        %v4045 = vld [vmem:[%s4035 + $0x24] sm:$0xf]
        %v4046 = vld [vmem:[%s4035 + $0x28] sm:$0xf]
        %v4047 = vld [vmem:[%s4035 + $0x2c] sm:$0xf]
        %v4048 = vld [vmem:[%s4035 + $0x30] sm:$0xf]
        %v4049 = vld [vmem:[%s4035 + $0x34] sm:$0xf]
        %v4050 = vld [vmem:[%s4035 + $0x38] sm:$0xf]
        %v4051 = vld [vmem:[%s4035 + $0x3c] sm:$0xf]
        %v4068 = vunpack.c.l.b16 %v4036
        %v4069 = vunpack.c.l.b16 %v4037
        %v4070 = vunpack.c.l.b16 %v4038
        %v4071 = vunpack.c.l.b16 %v4039
        %v4072 = vunpack.c.l.b16 %v4040
        %v4073 = vunpack.c.l.b16 %v4041
        %v4074 = vunpack.c.l.b16 %v4042
        %v4075 = vunpack.c.l.b16 %v4043
        %v4076 = vunpack.c.l.b16 %v4044
        %v4077 = vunpack.c.l.b16 %v4045
        %v4078 = vunpack.c.l.b16 %v4046
        %v4079 = vunpack.c.l.b16 %v4047
        %v4080 = vunpack.c.l.b16 %v4048
        %v4081 = vunpack.c.l.b16 %v4049
        %v4082 = vunpack.c.l.b16 %v4050
        %v4083 = vunpack.c.l.b16 %v4051
        %v4084 = vpack.c.b16 %v4069, %v4068
        %v4085 = vpack.c.b16 %v4071, %v4070
        %v4086 = vpack.c.b16 %v4073, %v4072
        %v4087 = vpack.c.b16 %v4075, %v4074
        %v4088 = vpack.c.b16 %v4077, %v4076
        %v4089 = vpack.c.b16 %v4079, %v4078
        %v4090 = vpack.c.b16 %v4081, %v4080
        %v4091 = vpack.c.b16 %v4083, %v4082
        %4100 = vmatprep.subr.bf16.mxu0 0
        %4101 = vmatpush1.bf16.msra.mxu0 %v4084
        %4102 = vmatprep.subr.bf16.mxu0 0
        %4103 = vmatpush1.bf16.msra.mxu0 %v4085
        %4104 = vmatprep.subr.bf16.mxu0 0
        %4105 = vmatpush1.bf16.msra.mxu0 %v4086
        %4106 = vmatprep.subr.bf16.mxu0 0
        %4107 = vmatpush1.bf16.msra.mxu0 %v4087
        %4108 = vmatprep.subr.bf16.mxu0 0
        %4109 = vmatpush1.bf16.msra.mxu0 %v4088
        %4110 = vmatprep.subr.bf16.mxu0 0
        %4111 = vmatpush1.bf16.msra.mxu0 %v4089
        %4112 = vmatprep.subr.bf16.mxu0 0
        %4113 = vmatpush1.bf16.msra.mxu0 %v4090
        %4114 = vmatprep.subr.bf16.mxu0 0
        %4115 = vmatpush1.bf16.msra.mxu0 %v4091
        %4116 = vmatprep.subr.bf16.mxu0 0
        %4117 = vmatpush1.bf16.msra.mxu0 0
        %4118 = vmatprep.subr.bf16.mxu0 0
        %4119 = vmatpush1.bf16.msra.mxu0 0
        %4120 = vmatprep.subr.bf16.mxu0 0
        %4121 = vmatpush1.bf16.msra.mxu0 0
        %4122 = vmatprep.subr.bf16.mxu0 0
        %4123 = vmatpush1.bf16.msra.mxu0 0
        %4124 = vmatprep.subr.bf16.mxu0 0
        %4125 = vmatpush1.bf16.msra.mxu0 0
        %4126 = vmatprep.subr.bf16.mxu0 0
        %4127 = vmatpush1.bf16.msra.mxu0 0
        %4128 = vmatprep.subr.bf16.mxu0 0
        %4129 = vmatpush1.bf16.msra.mxu0 0
        %4130 = vmatprep.subr.bf16.mxu0 0
        %4131 = vmatpush1.bf16.msra.mxu0 0
        %4132 = vmatprep.mubr.bf16.mxu0 0
        %4133 = vmatmul.mubr.bf16.gmra.mrb[0].mxu0 %v3973
        %v4134 = vpop.f32.mrb[0].mxu0
        %v4135 = vadd.f32 0.0, %v4134
        %v4136 = vpop.f32.mrb[0].mxu0
        %v4137 = vpop.f32.mrb[0].mxu0
        %v4138 = vadd.f32 0.0, %v4137
        %v4139 = vpop.f32.mrb[0].mxu0
        %4140 = vmatprep.mubr.bf16.mxu0 0
        %4141 = vmatmul.mubr.bf16.gmra.mrb[0].mxu0 %v3974
        %v4142 = vpop.f32.mrb[0].mxu0
        %v4143 = vadd.f32 0.0, %v4142
        %v4144 = vpop.f32.mrb[0].mxu0
        %v4145 = vpop.f32.mrb[0].mxu0
        %v4146 = vadd.f32 0.0, %v4145
        %v4147 = vpop.f32.mrb[0].mxu0
        %4148 = vmatprep.mubr.bf16.mxu0 0
        %4149 = vmatmul.mubr.bf16.gmra.mrb[0].mxu0 %v3975
        %v4150 = vpop.f32.mrb[0].mxu0
        %v4151 = vadd.f32 0.0, %v4150
        %v4152 = vpop.f32.mrb[0].mxu0
        %v4153 = vpop.f32.mrb[0].mxu0
        %v4154 = vadd.f32 0.0, %v4153
        %v4155 = vpop.f32.mrb[0].mxu0
        %4156 = vmatprep.mubr.bf16.mxu0 0
        %4157 = vmatmul.mubr.bf16.gmra.mrb[0].mxu0 %v3976
        %v4158 = vpop.f32.mrb[0].mxu0
        %v4159 = vadd.f32 0.0, %v4158
        %v4160 = vpop.f32.mrb[0].mxu0
        %v4161 = vpop.f32.mrb[0].mxu0
        %v4162 = vadd.f32 0.0, %v4161
        %v4163 = vpop.f32.mrb[0].mxu0
        %4164 = vmatprep.mubr.bf16.mxu0 0
        %4165 = vmatmul.mubr.bf16.gmra.mrb[0].mxu0 %v3977
        %v4166 = vpop.f32.mrb[0].mxu0
        %v4167 = vadd.f32 0.0, %v4166
        %v4168 = vpop.f32.mrb[0].mxu0
        %v4169 = vpop.f32.mrb[0].mxu0
        %v4170 = vadd.f32 0.0, %v4169
        %v4171 = vpop.f32.mrb[0].mxu0
        %4172 = vmatprep.mubr.bf16.mxu0 0
        %4173 = vmatmul.mubr.bf16.gmra.mrb[0].mxu0 %v3978
        %v4174 = vpop.f32.mrb[0].mxu0
        %v4175 = vadd.f32 0.0, %v4174
        %v4176 = vpop.f32.mrb[0].mxu0
        %v4177 = vpop.f32.mrb[0].mxu0
        %v4178 = vadd.f32 0.0, %v4177
        %v4179 = vpop.f32.mrb[0].mxu0
        %4180 = vmatprep.mubr.bf16.mxu0 0
        %4181 = vmatmul.mubr.bf16.gmra.mrb[0].mxu0 %v3979
        %v4182 = vpop.f32.mrb[0].mxu0
        %v4183 = vadd.f32 0.0, %v4182
        %v4184 = vpop.f32.mrb[0].mxu0
        %v4185 = vpop.f32.mrb[0].mxu0
        %v4186 = vadd.f32 0.0, %v4185
        %v4187 = vpop.f32.mrb[0].mxu0
        %4188 = vmatprep.mubr.bf16.mxu0 0
        %4189 = vmatmul.mubr.bf16.gmra.mrb[0].mxu0 %v3980
        %v4190 = vpop.f32.mrb[0].mxu0
        %v4191 = vadd.f32 0.0, %v4190
        %v4192 = vpop.f32.mrb[0].mxu0
        %v4193 = vpop.f32.mrb[0].mxu0
        %v4194 = vadd.f32 0.0, %v4193
        %v4195 = vpop.f32.mrb[0].mxu0
        %4196 = vmatprep.mubr.bf16.mxu0 0
        %4197 = vmatmul.mubr.bf16.gmra.mrb[0].mxu0 %v3981
        %v4198 = vpop.f32.mrb[0].mxu0
        %v4199 = vadd.f32 0.0, %v4198
        %v4200 = vpop.f32.mrb[0].mxu0
        %v4201 = vpop.f32.mrb[0].mxu0
        %v4202 = vadd.f32 0.0, %v4201
        %v4203 = vpop.f32.mrb[0].mxu0
        %4204 = vmatprep.mubr.bf16.mxu0 0
        %4205 = vmatmul.mubr.bf16.gmra.mrb[0].mxu0 %v3982
        %v4206 = vpop.f32.mrb[0].mxu0
        %v4207 = vadd.f32 0.0, %v4206
        %v4208 = vpop.f32.mrb[0].mxu0
        %v4209 = vpop.f32.mrb[0].mxu0
        %v4210 = vadd.f32 0.0, %v4209
        %v4211 = vpop.f32.mrb[0].mxu0
        %4212 = vmatprep.mubr.bf16.mxu0 0
        %4213 = vmatmul.mubr.bf16.gmra.mrb[0].mxu0 %v3983
        %v4214 = vpop.f32.mrb[0].mxu0
        %v4215 = vadd.f32 0.0, %v4214
        %v4216 = vpop.f32.mrb[0].mxu0
        %v4217 = vpop.f32.mrb[0].mxu0
        %v4218 = vadd.f32 0.0, %v4217
        %v4219 = vpop.f32.mrb[0].mxu0
        %4220 = vmatprep.mubr.bf16.mxu0 0
        %4221 = vmatmul.mubr.bf16.gmra.mrb[0].mxu0 %v3984
        %v4222 = vpop.f32.mrb[0].mxu0
        %v4223 = vadd.f32 0.0, %v4222
        %v4224 = vpop.f32.mrb[0].mxu0
        %v4225 = vpop.f32.mrb[0].mxu0
        %v4226 = vadd.f32 0.0, %v4225
        %v4227 = vpop.f32.mrb[0].mxu0
        %4228 = vmatprep.mubr.bf16.mxu0 0
        %4229 = vmatmul.mubr.bf16.gmra.mrb[0].mxu0 %v3985
        %v4230 = vpop.f32.mrb[0].mxu0
        %v4231 = vadd.f32 0.0, %v4230
        %v4232 = vpop.f32.mrb[0].mxu0
        %v4233 = vpop.f32.mrb[0].mxu0
        %v4234 = vadd.f32 0.0, %v4233
        %v4235 = vpop.f32.mrb[0].mxu0
        %4236 = vmatprep.mubr.bf16.mxu0 0
        %4237 = vmatmul.mubr.bf16.gmra.mrb[0].mxu0 %v3986
        %v4238 = vpop.f32.mrb[0].mxu0
        %v4239 = vadd.f32 0.0, %v4238
        %v4240 = vpop.f32.mrb[0].mxu0
        %v4241 = vpop.f32.mrb[0].mxu0
        %v4242 = vadd.f32 0.0, %v4241
        %v4243 = vpop.f32.mrb[0].mxu0
        %4244 = vmatprep.mubr.bf16.mxu0 0
        %4245 = vmatmul.mubr.bf16.gmra.mrb[0].mxu0 %v3987
        %v4246 = vpop.f32.mrb[0].mxu0
        %v4247 = vadd.f32 0.0, %v4246
        %v4248 = vpop.f32.mrb[0].mxu0
        %v4249 = vpop.f32.mrb[0].mxu0
        %v4250 = vadd.f32 0.0, %v4249
        %v4251 = vpop.f32.mrb[0].mxu0
        %4252 = vmatprep.mubr.bf16.mxu0 0
        %4253 = vmatmul.mubr.bf16.gmra.mrb[0].mxu0 %v3988
        %v4254 = vpop.f32.mrb[0].mxu0
        %v4255 = vadd.f32 0.0, %v4254
        %v4256 = vpop.f32.mrb[0].mxu0
        %v4257 = vpop.f32.mrb[0].mxu0
        %v4258 = vadd.f32 0.0, %v4257
        %v4259 = vpop.f32.mrb[0].mxu0
        %4260 = vmatprep.mubr.bf16.mxu0 0
        %4261 = vmatmul.mubr.bf16.gmra.mrb[0].mxu0 %v3989
        %v4262 = vpop.f32.mrb[0].mxu0
        %v4263 = vadd.f32 0.0, %v4262
        %v4264 = vpop.f32.mrb[0].mxu0
        %v4265 = vpop.f32.mrb[0].mxu0
        %v4266 = vadd.f32 0.0, %v4265
        %v4267 = vpop.f32.mrb[0].mxu0
        %4268 = vmatprep.mubr.bf16.mxu0 0
        %4269 = vmatmul.mubr.bf16.gmra.mrb[0].mxu0 %v3990
        %v4270 = vpop.f32.mrb[0].mxu0
        %v4271 = vadd.f32 0.0, %v4270
        %v4272 = vpop.f32.mrb[0].mxu0
        %v4273 = vpop.f32.mrb[0].mxu0
        %v4274 = vadd.f32 0.0, %v4273
        %v4275 = vpop.f32.mrb[0].mxu0
        %4276 = vmatprep.mubr.bf16.mxu0 0
        %4277 = vmatmul.mubr.bf16.gmra.mrb[0].mxu0 %v3991
        %v4278 = vpop.f32.mrb[0].mxu0
        %v4279 = vadd.f32 0.0, %v4278
        %v4280 = vpop.f32.mrb[0].mxu0
        %v4281 = vpop.f32.mrb[0].mxu0
        %v4282 = vadd.f32 0.0, %v4281
        %v4283 = vpop.f32.mrb[0].mxu0
        %4284 = vmatprep.mubr.bf16.mxu0 0
        %4285 = vmatmul.mubr.bf16.gmra.mrb[0].mxu0 %v3992
        %v4286 = vpop.f32.mrb[0].mxu0
        %v4287 = vadd.f32 0.0, %v4286
        %v4288 = vpop.f32.mrb[0].mxu0
        %v4289 = vpop.f32.mrb[0].mxu0
        %v4290 = vadd.f32 0.0, %v4289
        %v4291 = vpop.f32.mrb[0].mxu0
        %4292 = vmatprep.mubr.bf16.mxu0 0
        %4293 = vmatmul.mubr.bf16.gmra.mrb[0].mxu0 %v3993
        %v4294 = vpop.f32.mrb[0].mxu0
        %v4295 = vadd.f32 0.0, %v4294
        %v4296 = vpop.f32.mrb[0].mxu0
        %v4297 = vpop.f32.mrb[0].mxu0
        %v4298 = vpop.f32.mrb[0].mxu0
        %4299 = vdwg.mxu0
        %v4300 = vadd.f32 %v3994, %v4135
        %v4301 = vadd.f32 %v3995, %v4138
        %v4302 = vadd.f32 %v3996, %v4143
        %v4303 = vadd.f32 %v3997, %v4146
        %v4304 = vadd.f32 %v3998, %v4151
        %v4305 = vadd.f32 %v3999, %v4154
        %v4306 = vadd.f32 %v4000, %v4159
        %v4307 = vadd.f32 %v4001, %v4162
        %v4308 = vadd.f32 %v4002, %v4167
        %v4309 = vadd.f32 %v4003, %v4170
        %v4310 = vadd.f32 %v4004, %v4175
        %v4311 = vadd.f32 %v4005, %v4178
        %v4312 = vadd.f32 %v4006, %v4183
        %v4313 = vadd.f32 %v4007, %v4186
        %v4314 = vadd.f32 %v4008, %v4191
        %v4315 = vadd.f32 %v4009, %v4194
        %v4316 = vadd.f32 %v4010, %v4199
        %v4317 = vadd.f32 %v4011, %v4202
        %v4318 = vadd.f32 %v4012, %v4207
        %v4319 = vadd.f32 %v4013, %v4210
        %v4320 = vadd.f32 %v4014, %v4215
        %v4321 = vadd.f32 %v4015, %v4218
        %v4322 = vadd.f32 %v4016, %v4223
        %v4323 = vadd.f32 %v4017, %v4226
        %v4324 = vadd.f32 %v4018, %v4231
        %v4325 = vadd.f32 %v4019, %v4234
        %v4326 = vadd.f32 %v4020, %v4239
        %v4327 = vadd.f32 %v4021, %v4242
        %v4328 = vadd.f32 %v4022, %v4247
        %v4329 = vadd.f32 %v4023, %v4250
        %v4330 = vadd.f32 %v4024, %v4255
        %v4331 = vadd.f32 %v4025, %v4258
        %v4332 = vadd.f32 %v4026, %v4263
        %v4333 = vadd.f32 %v4027, %v4266
        %v4334 = vadd.f32 %v4028, %v4271
        %v4335 = vadd.f32 %v4029, %v4274
        %v4336 = vadd.f32 %v4030, %v4279
        %v4337 = vadd.f32 %v4031, %v4282
        %v4338 = vadd.f32 %v4032, %v4287
        %v4339 = vadd.f32 %v4033, %v4290
        %v4340 = vadd.f32 %v4034, %v4295
        %4341 = vst [vmem:[#allocation2] sm:$0xff] %v4300
        %4342 = vst [vmem:[#allocation2 + $0x8] sm:$0xff] %v4301
        %4343 = vst [vmem:[#allocation2 + $0x10] sm:$0xff] %v4302
        %4344 = vst [vmem:[#allocation2 + $0x18] sm:$0xff] %v4303
        %4345 = vst [vmem:[#allocation2 + $0x20] sm:$0xff] %v4304
        %4346 = vst [vmem:[#allocation2 + $0x28] sm:$0xff] %v4305
        %4347 = vst [vmem:[#allocation2 + $0x30] sm:$0xff] %v4306
        %4348 = vst [vmem:[#allocation2 + $0x38] sm:$0xff] %v4307
        %4349 = vst [vmem:[#allocation2 + $0x40] sm:$0xff] %v4308
        %4350 = vst [vmem:[#allocation2 + $0x48] sm:$0xff] %v4309
        %4351 = vst [vmem:[#allocation2 + $0x50] sm:$0xff] %v4310
        %4352 = vst [vmem:[#allocation2 + $0x58] sm:$0xff] %v4311
        %4353 = vst [vmem:[#allocation2 + $0x60] sm:$0xff] %v4312
        %4354 = vst [vmem:[#allocation2 + $0x68] sm:$0xff] %v4313
        %4355 = vst [vmem:[#allocation2 + $0x70] sm:$0xff] %v4314
        %4356 = vst [vmem:[#allocation2 + $0x78] sm:$0xff] %v4315
        %4357 = vst [vmem:[#allocation2 + $0x80] sm:$0xff] %v4316
        %4358 = vst [vmem:[#allocation2 + $0x88] sm:$0xff] %v4317
        %4359 = vst [vmem:[#allocation2 + $0x90] sm:$0xff] %v4318
        %4360 = vst [vmem:[#allocation2 + $0x98] sm:$0xff] %v4319
        %4361 = vst [vmem:[#allocation2 + $0xa0] sm:$0xff] %v4320
        %4362 = vst [vmem:[#allocation2 + $0xa8] sm:$0xff] %v4321
        %4363 = vst [vmem:[#allocation2 + $0xb0] sm:$0xff] %v4322
        %4364 = vst [vmem:[#allocation2 + $0xb8] sm:$0xff] %v4323
        %4365 = vst [vmem:[#allocation2 + $0xc0] sm:$0xff] %v4324
        %4366 = vst [vmem:[#allocation2 + $0xc8] sm:$0xff] %v4325
        %4367 = vst [vmem:[#allocation2 + $0xd0] sm:$0xff] %v4326
        %4368 = vst [vmem:[#allocation2 + $0xd8] sm:$0xff] %v4327
        %4369 = vst [vmem:[#allocation2 + $0xe0] sm:$0xff] %v4328
        %4370 = vst [vmem:[#allocation2 + $0xe8] sm:$0xff] %v4329
        %4371 = vst [vmem:[#allocation2 + $0xf0] sm:$0xff] %v4330
        %4372 = vst [vmem:[#allocation2 + $0xf8] sm:$0xff] %v4331
        %4373 = vst [vmem:[#allocation2 + $0x100] sm:$0xff] %v4332
        %4374 = vst [vmem:[#allocation2 + $0x108] sm:$0xff] %v4333
        %4375 = vst [vmem:[#allocation2 + $0x110] sm:$0xff] %v4334
        %4376 = vst [vmem:[#allocation2 + $0x118] sm:$0xff] %v4335
        %4377 = vst [vmem:[#allocation2 + $0x120] sm:$0xff] %v4336
        %4378 = vst [vmem:[#allocation2 + $0x128] sm:$0xff] %v4337
        %4379 = vst [vmem:[#allocation2 + $0x130] sm:$0xff] %v4338
        %4380 = vst [vmem:[#allocation2 + $0x138] sm:$0xff] %v4339
        %4381 = vst [vmem:[#allocation2 + $0x140] sm:$0xff] %v4340
        %v4382 = vld [vmem:[#allocation2] sm:$0xff]
        %v4383 = vld [vmem:[#allocation2 + $0x8] sm:$0xff]
        %v4384 = vld [vmem:[#allocation2 + $0x10] sm:$0xff]
        %v4385 = vld [vmem:[#allocation2 + $0x18] sm:$0xff]
        %v4386 = vld [vmem:[#allocation2 + $0x20] sm:$0xff]
        %v4387 = vld [vmem:[#allocation2 + $0x28] sm:$0xff]
        %v4388 = vld [vmem:[#allocation2 + $0x30] sm:$0xff]
        %v4389 = vld [vmem:[#allocation2 + $0x38] sm:$0xff]
        %v4390 = vld [vmem:[#allocation2 + $0x40] sm:$0xff]
        %v4391 = vld [vmem:[#allocation2 + $0x48] sm:$0xff]
        %v4392 = vld [vmem:[#allocation2 + $0x50] sm:$0xff]
        %v4393 = vld [vmem:[#allocation2 + $0x58] sm:$0xff]
        %v4394 = vld [vmem:[#allocation2 + $0x60] sm:$0xff]
        %v4395 = vld [vmem:[#allocation2 + $0x68] sm:$0xff]
        %v4396 = vld [vmem:[#allocation2 + $0x70] sm:$0xff]
        %v4397 = vld [vmem:[#allocation2 + $0x78] sm:$0xff]
        %v4398 = vld [vmem:[#allocation2 + $0x80] sm:$0xff]
        %v4399 = vld [vmem:[#allocation2 + $0x88] sm:$0xff]
        %v4400 = vld [vmem:[#allocation2 + $0x90] sm:$0xff]
        %v4401 = vld [vmem:[#allocation2 + $0x98] sm:$0xff]
        %v4402 = vld [vmem:[#allocation2 + $0xa0] sm:$0xff]
        %v4403 = vld [vmem:[#allocation2 + $0xa8] sm:$0xff]
        %v4404 = vld [vmem:[#allocation2 + $0xb0] sm:$0xff]
        %v4405 = vld [vmem:[#allocation2 + $0xb8] sm:$0xff]
        %v4406 = vld [vmem:[#allocation2 + $0xc0] sm:$0xff]
        %v4407 = vld [vmem:[#allocation2 + $0xc8] sm:$0xff]
        %v4408 = vld [vmem:[#allocation2 + $0xd0] sm:$0xff]
        %v4409 = vld [vmem:[#allocation2 + $0xd8] sm:$0xff]
        %v4410 = vld [vmem:[#allocation2 + $0xe0] sm:$0xff]
        %v4411 = vld [vmem:[#allocation2 + $0xe8] sm:$0xff]
        %v4412 = vld [vmem:[#allocation2 + $0xf0] sm:$0xff]
        %v4413 = vld [vmem:[#allocation2 + $0xf8] sm:$0xff]
        %v4414 = vld [vmem:[#allocation2 + $0x100] sm:$0xff]
        %v4415 = vld [vmem:[#allocation2 + $0x108] sm:$0xff]
        %v4416 = vld [vmem:[#allocation2 + $0x110] sm:$0xff]
        %v4417 = vld [vmem:[#allocation2 + $0x118] sm:$0xff]
        %v4418 = vld [vmem:[#allocation2 + $0x120] sm:$0xff]
        %v4419 = vld [vmem:[#allocation2 + $0x128] sm:$0xff]
        %v4420 = vld [vmem:[#allocation2 + $0x130] sm:$0xff]
        %v4421 = vld [vmem:[#allocation2 + $0x138] sm:$0xff]
        %v4422 = vld [vmem:[#allocation2 + $0x140] sm:$0xff]
        %v4423 = vld [vmem:[#allocation8] sm:$0x1]
        %v4425 = vlaneseq
        %v4426 = vshrl.u32 %v4425, 7
        %v4427 = vsub.s32 0, %v4426
        %v4428 = vrot.slane %v4423, %v4427
        %v4430 = vmul.f32 %v4382, %v4428
        %v4431 = vmul.f32 %v4383, %v4428
        %v4432 = vmul.f32 %v4384, %v4428
        %v4433 = vmul.f32 %v4385, %v4428
        %v4434 = vmul.f32 %v4386, %v4428
        %v4435 = vmul.f32 %v4387, %v4428
        %v4436 = vmul.f32 %v4388, %v4428
        %v4437 = vmul.f32 %v4389, %v4428
        %v4438 = vmul.f32 %v4390, %v4428
        %v4439 = vmul.f32 %v4391, %v4428
        %v4440 = vmul.f32 %v4392, %v4428
        %v4441 = vmul.f32 %v4393, %v4428
        %v4442 = vmul.f32 %v4394, %v4428
        %v4443 = vmul.f32 %v4395, %v4428
        %v4444 = vmul.f32 %v4396, %v4428
        %v4445 = vmul.f32 %v4397, %v4428
        %v4446 = vmul.f32 %v4398, %v4428
        %v4447 = vmul.f32 %v4399, %v4428
        %v4448 = vmul.f32 %v4400, %v4428
        %v4449 = vmul.f32 %v4401, %v4428
        %v4450 = vmul.f32 %v4402, %v4428
        %v4451 = vmul.f32 %v4403, %v4428
        %v4452 = vmul.f32 %v4404, %v4428
        %v4453 = vmul.f32 %v4405, %v4428
        %v4454 = vmul.f32 %v4406, %v4428
        %v4455 = vmul.f32 %v4407, %v4428
        %v4456 = vmul.f32 %v4408, %v4428
        %v4457 = vmul.f32 %v4409, %v4428
        %v4458 = vmul.f32 %v4410, %v4428
        %v4459 = vmul.f32 %v4411, %v4428
        %v4460 = vmul.f32 %v4412, %v4428
        %v4461 = vmul.f32 %v4413, %v4428
        %v4462 = vmul.f32 %v4414, %v4428
        %v4463 = vmul.f32 %v4415, %v4428
        %v4464 = vmul.f32 %v4416, %v4428
        %v4465 = vmul.f32 %v4417, %v4428
        %v4466 = vmul.f32 %v4418, %v4428
        %v4467 = vmul.f32 %v4419, %v4428
        %v4468 = vmul.f32 %v4420, %v4428
        %v4469 = vmul.f32 %v4421, %v4428
        %v4470 = vmul.f32 %v4422, %v4428
        %v4471 = vld [vmem:[#allocation9] sm:$0x1]
        %v4473 = vlaneseq
        %v4474 = vshrl.u32 %v4473, 7
        %v4475 = vsub.s32 0, %v4474
        %v4476 = vrot.slane %v4471, %v4475
        %v4478 = vadd.f32 %v4430, %v4476
        %v4479 = vadd.f32 %v4431, %v4476
        %v4480 = vadd.f32 %v4432, %v4476
        %v4481 = vadd.f32 %v4433, %v4476
        %v4482 = vadd.f32 %v4434, %v4476
        %v4483 = vadd.f32 %v4435, %v4476
        %v4484 = vadd.f32 %v4436, %v4476
        %v4485 = vadd.f32 %v4437, %v4476
        %v4486 = vadd.f32 %v4438, %v4476
        %v4487 = vadd.f32 %v4439, %v4476
        %v4488 = vadd.f32 %v4440, %v4476
        %v4489 = vadd.f32 %v4441, %v4476
        %v4490 = vadd.f32 %v4442, %v4476
        %v4491 = vadd.f32 %v4443, %v4476
        %v4492 = vadd.f32 %v4444, %v4476
        %v4493 = vadd.f32 %v4445, %v4476
        %v4494 = vadd.f32 %v4446, %v4476
        %v4495 = vadd.f32 %v4447, %v4476
        %v4496 = vadd.f32 %v4448, %v4476
        %v4497 = vadd.f32 %v4449, %v4476
        %v4498 = vadd.f32 %v4450, %v4476
        %v4499 = vadd.f32 %v4451, %v4476
        %v4500 = vadd.f32 %v4452, %v4476
        %v4501 = vadd.f32 %v4453, %v4476
        %v4502 = vadd.f32 %v4454, %v4476
        %v4503 = vadd.f32 %v4455, %v4476
        %v4504 = vadd.f32 %v4456, %v4476
        %v4505 = vadd.f32 %v4457, %v4476
        %v4506 = vadd.f32 %v4458, %v4476
        %v4507 = vadd.f32 %v4459, %v4476
        %v4508 = vadd.f32 %v4460, %v4476
        %v4509 = vadd.f32 %v4461, %v4476
        %v4510 = vadd.f32 %v4462, %v4476
        %v4511 = vadd.f32 %v4463, %v4476
        %v4512 = vadd.f32 %v4464, %v4476
        %v4513 = vadd.f32 %v4465, %v4476
        %v4514 = vadd.f32 %v4466, %v4476
        %v4515 = vadd.f32 %v4467, %v4476
        %v4516 = vadd.f32 %v4468, %v4476
        %v4517 = vadd.f32 %v4469, %v4476
        %v4518 = vadd.f32 %v4470, %v4476
        %v4519 = vmax.f32 %v4478, 0.0
        %v4520 = vmax.f32 %v4479, 0.0
        %v4521 = vmax.f32 %v4480, 0.0
        %v4522 = vmax.f32 %v4481, 0.0
        %v4523 = vmax.f32 %v4482, 0.0
        %v4524 = vmax.f32 %v4483, 0.0
        %v4525 = vmax.f32 %v4484, 0.0
        %v4526 = vmax.f32 %v4485, 0.0
        %v4527 = vmax.f32 %v4486, 0.0
        %v4528 = vmax.f32 %v4487, 0.0
        %v4529 = vmax.f32 %v4488, 0.0
        %v4530 = vmax.f32 %v4489, 0.0
        %v4531 = vmax.f32 %v4490, 0.0
        %v4532 = vmax.f32 %v4491, 0.0
        %v4533 = vmax.f32 %v4492, 0.0
        %v4534 = vmax.f32 %v4493, 0.0
        %v4535 = vmax.f32 %v4494, 0.0
        %v4536 = vmax.f32 %v4495, 0.0
        %v4537 = vmax.f32 %v4496, 0.0
        %v4538 = vmax.f32 %v4497, 0.0
        %v4539 = vmax.f32 %v4498, 0.0
        %v4540 = vmax.f32 %v4499, 0.0
        %v4541 = vmax.f32 %v4500, 0.0
        %v4542 = vmax.f32 %v4501, 0.0
        %v4543 = vmax.f32 %v4502, 0.0
        %v4544 = vmax.f32 %v4503, 0.0
        %v4545 = vmax.f32 %v4504, 0.0
        %v4546 = vmax.f32 %v4505, 0.0
        %v4547 = vmax.f32 %v4506, 0.0
        %v4548 = vmax.f32 %v4507, 0.0
        %v4549 = vmax.f32 %v4508, 0.0
        %v4550 = vmax.f32 %v4509, 0.0
        %v4551 = vmax.f32 %v4510, 0.0
        %v4552 = vmax.f32 %v4511, 0.0
        %v4553 = vmax.f32 %v4512, 0.0
        %v4554 = vmax.f32 %v4513, 0.0
        %v4555 = vmax.f32 %v4514, 0.0
        %v4556 = vmax.f32 %v4515, 0.0
        %v4557 = vmax.f32 %v4516, 0.0
        %v4558 = vmax.f32 %v4517, 0.0
        %v4559 = vmax.f32 %v4518, 0.0
        %v4560 = vpack.c.bf16 %v4520, %v4519
        %v4561 = vpack.c.bf16 %v4522, %v4521
        %v4562 = vpack.c.bf16 %v4524, %v4523
        %v4563 = vpack.c.bf16 %v4526, %v4525
        %v4564 = vpack.c.bf16 %v4528, %v4527
        %v4565 = vpack.c.bf16 %v4530, %v4529
        %v4566 = vpack.c.bf16 %v4532, %v4531
        %v4567 = vpack.c.bf16 %v4534, %v4533
        %v4568 = vpack.c.bf16 %v4536, %v4535
        %v4569 = vpack.c.bf16 %v4538, %v4537
        %v4570 = vpack.c.bf16 %v4540, %v4539
        %v4571 = vpack.c.bf16 %v4542, %v4541
        %v4572 = vpack.c.bf16 %v4544, %v4543
        %v4573 = vpack.c.bf16 %v4546, %v4545
        %v4574 = vpack.c.bf16 %v4548, %v4547
        %v4575 = vpack.c.bf16 %v4550, %v4549
        %v4576 = vpack.c.bf16 %v4552, %v4551
        %v4577 = vpack.c.bf16 %v4554, %v4553
        %v4578 = vpack.c.bf16 %v4556, %v4555
        %v4579 = vpack.c.bf16 %v4558, %v4557
        %v4580 = vpack.c.bf16 %v4559, %v4559
        %v4602 = vunpack.c.l.b16 %v4560
        %v4603 = vunpack.c.h.b16 %v4560
        %v4604 = vunpack.c.l.b16 %v4561
        %v4605 = vunpack.c.h.b16 %v4561
        %v4606 = vunpack.c.l.b16 %v4562
        %v4607 = vunpack.c.h.b16 %v4562
        %v4608 = vunpack.c.l.b16 %v4563
        %v4609 = vunpack.c.h.b16 %v4563
        %v4610 = vunpack.c.l.b16 %v4564
        %v4611 = vunpack.c.h.b16 %v4564
        %v4612 = vunpack.c.l.b16 %v4565
        %v4613 = vunpack.c.h.b16 %v4565
        %v4614 = vunpack.c.l.b16 %v4566
        %v4615 = vunpack.c.h.b16 %v4566
        %v4616 = vunpack.c.l.b16 %v4567
        %v4617 = vunpack.c.h.b16 %v4567
        %v4618 = vunpack.c.l.b16 %v4568
        %v4619 = vunpack.c.h.b16 %v4568
        %v4620 = vunpack.c.l.b16 %v4569
        %v4621 = vunpack.c.h.b16 %v4569
        %v4622 = vunpack.c.l.b16 %v4570
        %v4623 = vunpack.c.h.b16 %v4570
        %v4624 = vunpack.c.l.b16 %v4571
        %v4625 = vunpack.c.h.b16 %v4571
        %v4626 = vunpack.c.l.b16 %v4572
        %v4627 = vunpack.c.h.b16 %v4572
        %v4628 = vunpack.c.l.b16 %v4573
        %v4629 = vunpack.c.h.b16 %v4573
        %v4630 = vunpack.c.l.b16 %v4574
        %v4631 = vunpack.c.h.b16 %v4574
        %v4632 = vunpack.c.l.b16 %v4575
        %v4633 = vunpack.c.h.b16 %v4575
        %v4634 = vunpack.c.l.b16 %v4576
        %v4635 = vunpack.c.h.b16 %v4576
        %v4636 = vunpack.c.l.b16 %v4577
        %v4637 = vunpack.c.h.b16 %v4577
        %v4638 = vunpack.c.l.b16 %v4578
        %v4639 = vunpack.c.h.b16 %v4578
        %v4640 = vunpack.c.l.b16 %v4579
        %v4641 = vunpack.c.h.b16 %v4579
        %v4642 = vunpack.c.l.b16 %v4580
        %v4643 = vpack.c.b16 %v4602, %v4602
        %v4644 = vpack.c.b16 %v4603, %v4603
        %v4645 = vpack.c.b16 %v4604, %v4604
        %v4646 = vpack.c.b16 %v4605, %v4605
        %v4647 = vpack.c.b16 %v4606, %v4606
        %v4648 = vpack.c.b16 %v4607, %v4607
        %v4649 = vpack.c.b16 %v4608, %v4608
        %v4650 = vpack.c.b16 %v4609, %v4609
        %v4651 = vpack.c.b16 %v4610, %v4610
        %v4652 = vpack.c.b16 %v4611, %v4611
        %v4653 = vpack.c.b16 %v4612, %v4612
        %v4654 = vpack.c.b16 %v4613, %v4613
        %v4655 = vpack.c.b16 %v4614, %v4614
        %v4656 = vpack.c.b16 %v4615, %v4615
        %v4657 = vpack.c.b16 %v4616, %v4616
        %v4658 = vpack.c.b16 %v4617, %v4617
        %v4659 = vpack.c.b16 %v4618, %v4618
        %v4660 = vpack.c.b16 %v4619, %v4619
        %v4661 = vpack.c.b16 %v4620, %v4620
        %v4662 = vpack.c.b16 %v4621, %v4621
        %v4663 = vpack.c.b16 %v4622, %v4622
        %v4664 = vpack.c.b16 %v4623, %v4623
        %v4665 = vpack.c.b16 %v4624, %v4624
        %v4666 = vpack.c.b16 %v4625, %v4625
        %v4667 = vpack.c.b16 %v4626, %v4626
        %v4668 = vpack.c.b16 %v4627, %v4627
        %v4669 = vpack.c.b16 %v4628, %v4628
        %v4670 = vpack.c.b16 %v4629, %v4629
        %v4671 = vpack.c.b16 %v4630, %v4630
        %v4672 = vpack.c.b16 %v4631, %v4631
        %v4673 = vpack.c.b16 %v4632, %v4632
        %v4674 = vpack.c.b16 %v4633, %v4633
        %v4675 = vpack.c.b16 %v4634, %v4634
        %v4676 = vpack.c.b16 %v4635, %v4635
        %v4677 = vpack.c.b16 %v4636, %v4636
        %v4678 = vpack.c.b16 %v4637, %v4637
        %v4679 = vpack.c.b16 %v4638, %v4638
        %v4680 = vpack.c.b16 %v4639, %v4639
        %v4681 = vpack.c.b16 %v4640, %v4640
        %v4682 = vpack.c.b16 %v4641, %v4641
        %v4683 = vpack.c.b16 %v4642, %v4642
        %4725 = vst [vmem:[%s290] sm:$0xf] %v4643
        %4726 = vst [vmem:[%s290 + $0x4] sm:$0xf] %v4644
        %4727 = vst [vmem:[%s290 + $0x8] sm:$0xf] %v4645
        %4728 = vst [vmem:[%s290 + $0xc] sm:$0xf] %v4646
        %4729 = vst [vmem:[%s290 + $0x10] sm:$0xf] %v4647
        %4730 = vst [vmem:[%s290 + $0x14] sm:$0xf] %v4648
        %4731 = vst [vmem:[%s290 + $0x18] sm:$0xf] %v4649
        %4732 = vst [vmem:[%s290 + $0x1c] sm:$0xf] %v4650
        %4733 = vst [vmem:[%s290 + $0x20] sm:$0xf] %v4651
        %4734 = vst [vmem:[%s290 + $0x24] sm:$0xf] %v4652
        %4735 = vst [vmem:[%s290 + $0x28] sm:$0xf] %v4653
        %4736 = vst [vmem:[%s290 + $0x2c] sm:$0xf] %v4654
        %4737 = vst [vmem:[%s290 + $0x30] sm:$0xf] %v4655
        %4738 = vst [vmem:[%s290 + $0x34] sm:$0xf] %v4656
        %4739 = vst [vmem:[%s290 + $0x38] sm:$0xf] %v4657
        %4740 = vst [vmem:[%s290 + $0x3c] sm:$0xf] %v4658
        %4741 = vst [vmem:[%s290 + $0x40] sm:$0xf] %v4659
        %4742 = vst [vmem:[%s290 + $0x44] sm:$0xf] %v4660
        %4743 = vst [vmem:[%s290 + $0x48] sm:$0xf] %v4661
        %4744 = vst [vmem:[%s290 + $0x4c] sm:$0xf] %v4662
        %4745 = vst [vmem:[%s290 + $0x50] sm:$0xf] %v4663
        %4746 = vst [vmem:[%s290 + $0x54] sm:$0xf] %v4664
        %4747 = vst [vmem:[%s290 + $0x58] sm:$0xf] %v4665
        %4748 = vst [vmem:[%s290 + $0x5c] sm:$0xf] %v4666
        %4749 = vst [vmem:[%s290 + $0x60] sm:$0xf] %v4667
        %4750 = vst [vmem:[%s290 + $0x64] sm:$0xf] %v4668
        %4751 = vst [vmem:[%s290 + $0x68] sm:$0xf] %v4669
        %4752 = vst [vmem:[%s290 + $0x6c] sm:$0xf] %v4670
        %4753 = vst [vmem:[%s290 + $0x70] sm:$0xf] %v4671
        %4754 = vst [vmem:[%s290 + $0x74] sm:$0xf] %v4672
        %4755 = vst [vmem:[%s290 + $0x78] sm:$0xf] %v4673
        %4756 = vst [vmem:[%s290 + $0x7c] sm:$0xf] %v4674
        %4757 = vst [vmem:[%s290 + $0x80] sm:$0xf] %v4675
        %4758 = vst [vmem:[%s290 + $0x84] sm:$0xf] %v4676
        %4759 = vst [vmem:[%s290 + $0x88] sm:$0xf] %v4677
        %4760 = vst [vmem:[%s290 + $0x8c] sm:$0xf] %v4678
        %4761 = vst [vmem:[%s290 + $0x90] sm:$0xf] %v4679
        %4762 = vst [vmem:[%s290 + $0x94] sm:$0xf] %v4680
        %4763 = vst [vmem:[%s290 + $0x98] sm:$0xf] %v4681
        %4764 = vst [vmem:[%s290 + $0x9c] sm:$0xf] %v4682
        %4765 = vst [vmem:[%s290 + $0xa0] sm:$0xf] %v4683
        %s4766 = sand.u32 %s149, 1
        %s4767 = scalar_lea.sflag [#allocation5], %s4766
        %s4768 = sand.u32 %s149, 1
        %s4769 = smul.addr %s4768, 164
        %s4770 = scalar_lea.vmem [#allocation11], %s4769
        // Predicated region
        $region53: #{bottleneck_fwd.4} parent=35 // pred_check
          %p4771 = pneg %p159
        $region54: #{bottleneck_fwd.4} parent=35 // pred_check_branch
          %4773 = sbr.rel (%p4771) target = $region56
        $region55: #{bottleneck_fwd.4} parent=35 // pred_region
          %s4775 = ssub.s32 2624, 2624
          %4776 = vsyncadd %s4767, %s4775
          %s4777 = smul.addr %s27, 41
          %s4778 = sadd.s32 %s28, %s4777
          %s4779 = smul.addr %s4778, 64
          %s4780 = scalar_lea.hbm %s4, %s4779
          %s4781 = sshll.u32 %s4770, 4
          %s4782 = int_to_ptr.vmem [resolvable:$true] %s4781
          %4787 = dma.vmem_to_hbm [thread:$0]  %s4782, 2624, %s4780, %s4767, 64, 64, 4
        $region56: #{bottleneck_fwd.4} parent=35 // pred_fallthru
          _
      $region36: #{bottleneck_fwd.4} parent=5 // pred_fallthru
        _
      %p4788 = scmp.le.s32.totalorder 2, %s18
      // Predicated region
      $region57: #{bottleneck_fwd.4} parent=5 // pred_check
        %p4789 = pneg %p4788
      $region58: #{bottleneck_fwd.4} parent=5 // pred_check_branch
        %4791 = sbr.rel (%p4789) target = $region60
      $region59: #{bottleneck_fwd.4} parent=5 // pred_region
        %s4792 = ssub.s32 %s18, 2
        // Predicated region
        $region61: #{bottleneck_fwd.4} parent=59 // pred_check
          %p4793 = pneg %p165
        $region62: #{bottleneck_fwd.4} parent=59 // pred_check_branch
          %4795 = sbr.rel (%p4793) target = $region64
        $region63: #{bottleneck_fwd.4} parent=59 // pred_region
          %s4796 = sand.u32 %s150, 1
          %s4797 = scalar_lea.sflag [#allocation5], %s4796
          %s4798 = sand.u32 %s150, 1
          %s4799 = smul.addr %s4798, 164
          %s4800 = scalar_lea.vmem [#allocation11], %s4799
          %4801 = dma.done %s4797, 2624
        $region64: #{bottleneck_fwd.4} parent=59 // pred_fallthru
          _
      $region60: #{bottleneck_fwd.4} parent=5 // pred_fallthru
        _
    $region6: #{bottleneck_fwd.4} parent=1 // loop_footer
      %s22 = sadd.s32 1, %s18
    $region7: #{bottleneck_fwd.4} parent=1 // loop_footer_branch
      %17 = sbr.rel target = $region3
    $region8: #{bottleneck_fwd.4} parent=1 // loop_exit
      _
    %4802 = vsyncpa [#allocation4], 1
    %s4803 = scalar_lea.sflag [#allocation4], 1
    %4804 = vsyncpa %s4803, 1
    %4805 = vsyncpa [#allocation7], 1
    %4806 = vsyncpa [#allocation10], 1
    %4807 = vsyncpa [#allocation5], 1
    %s4808 = scalar_lea.sflag [#allocation5], 1
    %4809 = vsyncpa %s4808, 1

</llo_original>
